<compile_context>
chip_gen: v7x
topology: tpu7x:2x2x1
jax: 0.10.0
libtpu: 0.0.40
codegen_flags: <defaults>
</compile_context>

<pallas_src>
import functools

import numpy as np
import jax
import jax.numpy as jnp
from jax import lax
from jax.experimental import pallas as pl
from jax.experimental.pallas import tpu as pltpu

GROUPS = 32
EPS = 1e-6


def _silu(x):
    return x * jax.nn.sigmoid(x)


# ---------------------------------------------------------------------------
# Fused ResBlock kernel (one sample per grid step)
# ---------------------------------------------------------------------------
def resblock_kernel(*refs, hw, wpp, l2, lout, use_gm1, use_gm2, use_nin):
    it = iter(refs)
    x_ref = next(it)       # (1, L1, Cin)  f32  halo-padded, flattened sample
    m0_ref = next(it)      # (L1, 1)       f32  valid-pixel mask (input grid)
    m1_ref = next(it)      # (L2, 1)       f32  valid-pixel mask (conv1 grid)
    g1_ref = next(it)      # (1, Cin)      norm1 gamma
    b1_ref = next(it)      # (1, Cin)      norm1 beta
    w1_ref = next(it)      # (9, Cin, Cout) bf16 conv1 weights (tap-major)
    cb1_ref = next(it)     # (1, Cout)     conv1 bias
    g2_ref = next(it)      # (1, Cout)
    b2_ref = next(it)      # (1, Cout)
    w2_ref = next(it)      # (9, Cout, Cout) bf16
    cb2_ref = next(it)     # (1, Cout)
    gm1_ref = next(it) if use_gm1 else None   # (Cin, Cin)   group-average matrix
    gm2_ref = next(it) if use_gm2 else None   # (Cout, Cout)
    wsc_ref = next(it) if use_nin else None   # (Cin, Cout)  bf16 1x1 shortcut
    bsc_ref = next(it) if use_nin else None   # (1, Cout)
    o_ref = next(it)       # (1, Lout, Cout) f32  "wide" output grid
    h1_scr = next(it)      # (L1, Cin)  f32 VMEM scratch (zero-halo activation)
    h2_scr = next(it)      # (L2, Cout) f32 VMEM scratch

    inv_hw = 1.0 / float(hw)
    cout = w1_ref.shape[-1]

    x = x_ref[0]                                           # (L1, Cin) f32

    # ---- GroupNorm 1 (halo rows are zero, so sums are over valid pixels) ----
    mean1 = jnp.sum(x, axis=0, keepdims=True) * inv_hw
    msq1 = jnp.sum(x * x, axis=0, keepdims=True) * inv_hw
    if use_gm1:
        mean1 = jnp.dot(mean1, gm1_ref[...], preferred_element_type=jnp.float32)
        msq1 = jnp.dot(msq1, gm1_ref[...], preferred_element_type=jnp.float32)
    var1 = jnp.maximum(msq1 - mean1 * mean1, 0.0)
    inv1 = lax.rsqrt(var1 + EPS)
    h1 = (x - mean1) * (inv1 * g1_ref[...]) + b1_ref[...]
    h1_scr[...] = _silu(h1) * m0_ref[...]                  # re-zero halo for conv1

    # ---- conv1: 9 shifted contiguous-slice matmuls over the (H+3)*Wpp grid ----
    acc1 = jnp.zeros((l2, cout), jnp.float32)
    for t in range(9):
        off = (t // 3) * wpp + (t % 3)
        lhs = h1_scr[off:off + l2, :].astype(jnp.bfloat16)
        acc1 = acc1 + jnp.dot(lhs, w1_ref[t], preferred_element_type=jnp.float32)
    y1 = acc1 + cb1_ref[...]

    # ---- GroupNorm 2 (stats over valid pixels only) ----
    m1 = m1_ref[...]
    y1m = y1 * m1
    mean2 = jnp.sum(y1m, axis=0, keepdims=True) * inv_hw
    msq2 = jnp.sum(y1m * y1m, axis=0, keepdims=True) * inv_hw
    if use_gm2:
        mean2 = jnp.dot(mean2, gm2_ref[...], preferred_element_type=jnp.float32)
        msq2 = jnp.dot(msq2, gm2_ref[...], preferred_element_type=jnp.float32)
    var2 = jnp.maximum(msq2 - mean2 * mean2, 0.0)
    inv2 = lax.rsqrt(var2 + EPS)
    h2 = (y1 - mean2) * (inv2 * g2_ref[...]) + b2_ref[...]
    h2_scr[...] = _silu(h2) * m1                           # zero halo/garbage for conv2

    # ---- conv2: 9 shifted-slice matmuls onto the H*Wpp output grid ----
    acc2 = jnp.zeros((lout, cout), jnp.float32)
    for t in range(9):
        off = (t // 3) * wpp + (t % 3)
        lhs = h2_scr[off:off + lout, :].astype(jnp.bfloat16)
        acc2 = acc2 + jnp.dot(lhs, w2_ref[t], preferred_element_type=jnp.float32)
    out = acc2 + cb2_ref[...]

    # ---- shortcut (1x1 conv or identity) + residual add ----
    xs = x[2 * wpp + 2: 2 * wpp + 2 + lout, :]             # input pixels on the output grid
    if use_nin:
        out = out + (jnp.dot(xs.astype(jnp.bfloat16), wsc_ref[...],
                             preferred_element_type=jnp.float32) + bsc_ref[...])
    else:
        out = out + xs
    o_ref[0] = out


# ---------------------------------------------------------------------------
# Wrapper glue (layout only: pad / flatten / slice / transpose)
# ---------------------------------------------------------------------------
def group_avg_matrix(c, groups=GROUPS):
    cg = c // groups
    gid = np.arange(c) // cg
    m = (gid[:, None] == gid[None, :]).astype(np.float32) / cg
    return jnp.asarray(m)


def _row(v):
    return jnp.asarray(v).reshape(1, -1).astype(jnp.float32)


def resblock_forward(x_nchw, params):
    n, cin, h, w = x_nchw.shape
    cout = params["conv2_w"].shape[-1]

    wpp = w + 4                      # padded row width
    l1 = (h + 6) * wpp               # flattened padded-input rows
    l2 = (h + 3) * wpp               # conv1 "wide" grid rows
    lout = h * wpp                   # conv2 / output "wide" grid rows
    hw = h * w

    # NCHW -> NHWC, zero halo pad (top=2, bottom=4, left=2, right=2), flatten.
    x_nhwc = jnp.transpose(x_nchw, (0, 2, 3, 1)).astype(jnp.float32)
    xpad = jnp.pad(x_nhwc, ((0, 0), (2, 4), (2, 2), (0, 0)))
    xf = xpad.reshape(n, l1, cin)

    # Valid-pixel masks for the padded input grid and the conv1 grid.
    m0 = np.zeros((h + 6, wpp), np.float32)
    m0[2:h + 2, 2:w + 2] = 1.0
    m0 = jnp.asarray(m0.reshape(l1, 1))
    m1 = np.zeros((h + 3, wpp), np.float32)
    m1[1:h + 1, 1:w + 1] = 1.0
    m1 = jnp.asarray(m1.reshape(l2, 1))

    # Conv weights: HWIO -> (9 taps, Cin, Cout), bf16 for the MXU.
    w1 = jnp.asarray(params["conv1_w"]).reshape(9, cin, cout).astype(jnp.bfloat16)
    w2 = jnp.asarray(params["conv2_w"]).reshape(9, cout, cout).astype(jnp.bfloat16)

    use_gm1 = (cin // GROUPS) > 1
    use_gm2 = (cout // GROUPS) > 1
    use_nin = cin != cout

    args = [xf, m0, m1,
            _row(params["norm1_g"]), _row(params["norm1_b"]), w1, _row(params["conv1_b"]),
            _row(params["norm2_g"]), _row(params["norm2_b"]), w2, _row(params["conv2_b"])]
    in_specs = [
        pl.BlockSpec((1, l1, cin), lambda i: (i, 0, 0)),
        pl.BlockSpec((l1, 1), lambda i: (0, 0)),
        pl.BlockSpec((l2, 1), lambda i: (0, 0)),
        pl.BlockSpec((1, cin), lambda i: (0, 0)),
        pl.BlockSpec((1, cin), lambda i: (0, 0)),
        pl.BlockSpec((9, cin, cout), lambda i: (0, 0, 0)),
        pl.BlockSpec((1, cout), lambda i: (0, 0)),
        pl.BlockSpec((1, cout), lambda i: (0, 0)),
        pl.BlockSpec((1, cout), lambda i: (0, 0)),
        pl.BlockSpec((9, cout, cout), lambda i: (0, 0, 0)),
        pl.BlockSpec((1, cout), lambda i: (0, 0)),
    ]
    if use_gm1:
        args.append(group_avg_matrix(cin))
        in_specs.append(pl.BlockSpec((cin, cin), lambda i: (0, 0)))
    if use_gm2:
        args.append(group_avg_matrix(cout))
        in_specs.append(pl.BlockSpec((cout, cout), lambda i: (0, 0)))
    if use_nin:
        args.append(jnp.asarray(params["nin_w"]).astype(jnp.bfloat16))
        in_specs.append(pl.BlockSpec((cin, cout), lambda i: (0, 0)))
        args.append(_row(params["nin_b"]))
        in_specs.append(pl.BlockSpec((1, cout), lambda i: (0, 0)))

    kernel = functools.partial(
        resblock_kernel, hw=hw, wpp=wpp, l2=l2, lout=lout,
        use_gm1=use_gm1, use_gm2=use_gm2, use_nin=use_nin)

    out_wide = pl.pallas_call(
        kernel,
        out_shape=jax.ShapeDtypeStruct((n, lout, cout), jnp.float32),
        grid=(n,),
        in_specs=in_specs,
        out_specs=pl.BlockSpec((1, lout, cout), lambda i: (i, 0, 0)),
        scratch_shapes=[pltpu.VMEM((l1, cin), jnp.float32),
                        pltpu.VMEM((l2, cout), jnp.float32)],
        compiler_params=pltpu.CompilerParams(
            dimension_semantics=("parallel",),
            vmem_limit_bytes=64 * 1024 * 1024),
    )(*args)

    # Keep the W valid columns of the wide grid, back to NCHW.
    out = out_wide.reshape(n, h, wpp, cout)[:, :, :w, :]
    return jnp.transpose(out, (0, 3, 1, 2))


# ---------------------------------------------------------------------------
# Pure-JAX reference (PyTorch semantics) for the correctness check
# ---------------------------------------------------------------------------
def ref_resblock(x_nchw, params):
    x = jnp.transpose(x_nchw, (0, 2, 3, 1)).astype(jnp.float32)

    def gn(hh, g, b):
        n_, hy, wx, c = hh.shape
        cg = c // GROUPS
        hg = hh.reshape(n_, hy, wx, GROUPS, cg)
        mean = hg.mean(axis=(1, 2, 4), keepdims=True)
        var = hg.var(axis=(1, 2, 4), keepdims=True)
        hn = ((hg - mean) / jnp.sqrt(var + EPS)).reshape(n_, hy, wx, c)
        return hn * g + b

    def conv3(hh, w_, b_):
        return lax.conv_general_dilated(
            hh, w_, (1, 1), "SAME",
            dimension_numbers=("NHWC", "HWIO", "NHWC"),
            precision=lax.Precision.HIGHEST) + b_

    h = _silu(gn(x, params["norm1_g"], params["norm1_b"]))
    h = conv3(h, params["conv1_w"], params["conv1_b"])
    h = _silu(gn(h, params["norm2_g"], params["norm2_b"]))
    h = conv3(h, params["conv2_w"], params["conv2_b"])
    cin, cout = x.shape[-1], h.shape[-1]
    if cin != cout:
        x = jnp.einsum("nhwc,cd->nhwd", x, params["nin_w"],
                       precision=lax.Precision.HIGHEST) + params["nin_b"]
    return jnp.transpose(x + h, (0, 3, 1, 2))


if __name__ == "__main__":
    # GroupNorm(num_groups=32) requires channels divisible by 32.
    N, Cin, Cout, H, W = 2, 32, 64, 16, 16

    key = jax.random.PRNGKey(0)
    ks = jax.random.split(key, 12)
    x = jax.random.normal(ks[0], (N, Cin, H, W), jnp.float32)     # NCHW like PyTorch

    params = {
        "norm1_g": 1.0 + 0.1 * jax.random.normal(ks[1], (Cin,), jnp.float32),
        "norm1_b": 0.1 * jax.random.normal(ks[2], (Cin,), jnp.float32),
        "conv1_w": 0.05 * jax.random.normal(ks[3], (3, 3, Cin, Cout), jnp.float32),  # HWIO
        "conv1_b": 0.1 * jax.random.normal(ks[4], (Cout,), jnp.float32),
        "norm2_g": 1.0 + 0.1 * jax.random.normal(ks[5], (Cout,), jnp.float32),
        "norm2_b": 0.1 * jax.random.normal(ks[6], (Cout,), jnp.float32),
        "conv2_w": 0.05 * jax.random.normal(ks[7], (3, 3, Cout, Cout), jnp.float32),
        "conv2_b": 0.1 * jax.random.normal(ks[8], (Cout,), jnp.float32),
        "nin_w": 0.1 * jax.random.normal(ks[9], (Cin, Cout), jnp.float32),           # 1x1 conv
        "nin_b": 0.1 * jax.random.normal(ks[10], (Cout,), jnp.float32),
    }

    out = jax.block_until_ready(resblock_forward(x, params))
    ref = jax.block_until_ready(ref_resblock(x, params))

    assert out.shape == (N, Cout, H, W), out.shape
    # Tolerance accounts for bf16 MXU operands (fp32 accumulation).
    if not bool(jnp.allclose(out, ref, atol=3e-2, rtol=3e-2)):
        raise AssertionError(
            f"mismatch: max abs err = {float(jnp.max(jnp.abs(out - ref)))}")
    print("KERNEL_OK")
</pallas_src>

<mosaic_0001>
module attributes {stable_mosaic.version = 11 : i64} {
  func.func @resblock_kernel(%arg0: i32, %arg1: memref<1x440x32xf32, #tpu.memory_space<vmem>>, %arg2: memref<440x1xf32, #tpu.memory_space<vmem>>, %arg3: memref<380x1xf32, #tpu.memory_space<vmem>>, %arg4: memref<1x32xf32, #tpu.memory_space<vmem>>, %arg5: memref<1x32xf32, #tpu.memory_space<vmem>>, %arg6: memref<9x32x64xbf16, #tpu.memory_space<vmem>>, %arg7: memref<1x64xf32, #tpu.memory_space<vmem>>, %arg8: memref<1x64xf32, #tpu.memory_space<vmem>>, %arg9: memref<1x64xf32, #tpu.memory_space<vmem>>, %arg10: memref<9x64x64xbf16, #tpu.memory_space<vmem>>, %arg11: memref<1x64xf32, #tpu.memory_space<vmem>>, %arg12: memref<64x64xf32, #tpu.memory_space<vmem>>, %arg13: memref<32x64xbf16, #tpu.memory_space<vmem>>, %arg14: memref<1x64xf32, #tpu.memory_space<vmem>>, %arg15: memref<1x320x64xf32, #tpu.memory_space<vmem>>, %arg16: memref<440x32xf32, #tpu.memory_space<vmem>>, %arg17: memref<380x64xf32, #tpu.memory_space<vmem>>) attributes {dimension_semantics = [#tpu.dimension_semantics<parallel>], iteration_bounds = array<i64: 2>, scalar_prefetch = 0 : i64, scratch_operands = 2 : i64, tpu.core_type = #tpu.core_type<tc>, window_params = [{transform_indices = @transform_0, window_bounds = array<i64: 1, 440, 32>}, {pipeline_mode = #tpu.pipeline_mode<synchronous>, transform_indices = @transform_1, window_bounds = array<i64: 440, 1>}, {pipeline_mode = #tpu.pipeline_mode<synchronous>, transform_indices = @transform_2, window_bounds = array<i64: 380, 1>}, {pipeline_mode = #tpu.pipeline_mode<synchronous>, transform_indices = @transform_3, window_bounds = array<i64: 1, 32>}, {pipeline_mode = #tpu.pipeline_mode<synchronous>, transform_indices = @transform_4, window_bounds = array<i64: 1, 32>}, {pipeline_mode = #tpu.pipeline_mode<synchronous>, transform_indices = @transform_5, window_bounds = array<i64: 9, 32, 64>}, {pipeline_mode = #tpu.pipeline_mode<synchronous>, transform_indices = @transform_6, window_bounds = array<i64: 1, 64>}, {pipeline_mode = #tpu.pipeline_mode<synchronous>, transform_indices = @transform_7, window_bounds = array<i64: 1, 64>}, {pipeline_mode = #tpu.pipeline_mode<synchronous>, transform_indices = @transform_8, window_bounds = array<i64: 1, 64>}, {pipeline_mode = #tpu.pipeline_mode<synchronous>, transform_indices = @transform_9, window_bounds = array<i64: 9, 64, 64>}, {pipeline_mode = #tpu.pipeline_mode<synchronous>, transform_indices = @transform_10, window_bounds = array<i64: 1, 64>}, {pipeline_mode = #tpu.pipeline_mode<synchronous>, transform_indices = @transform_11, window_bounds = array<i64: 64, 64>}, {pipeline_mode = #tpu.pipeline_mode<synchronous>, transform_indices = @transform_12, window_bounds = array<i64: 32, 64>}, {pipeline_mode = #tpu.pipeline_mode<synchronous>, transform_indices = @transform_13, window_bounds = array<i64: 1, 64>}, {transform_indices = @transform_14, window_bounds = array<i64: 1, 320, 64>}]} {
    %c0 = arith.constant 0 : index
    %c0_0 = arith.constant 0 : index
    %c0_1 = arith.constant 0 : index
    %0 = vector.load %arg1[%c0, %c0_0, %c0_1] : memref<1x440x32xf32, #tpu.memory_space<vmem>>, vector<1x440x32xf32>
    %1 = vector.shape_cast %0 : vector<1x440x32xf32> to vector<440x32xf32>
    %cst = arith.constant dense<0.000000e+00> : vector<32xf32>
    %2 = vector.multi_reduction <add>, %1, %cst [0] : vector<440x32xf32> to vector<32xf32>
    %3 = vector.shape_cast %2 : vector<32xf32> to vector<1x32xf32>
    %cst_2 = arith.constant 3.906250e-03 : f32
    %4 = vector.broadcast %cst_2 : f32 to vector<1x32xf32>
    %5 = arith.mulf %3, %4 : vector<1x32xf32>
    %6 = arith.mulf %1, %1 : vector<440x32xf32>
    %cst_3 = arith.constant dense<0.000000e+00> : vector<32xf32>
    %7 = vector.multi_reduction <add>, %6, %cst_3 [0] : vector<440x32xf32> to vector<32xf32>
    %8 = vector.shape_cast %7 : vector<32xf32> to vector<1x32xf32>
    %cst_4 = arith.constant 3.906250e-03 : f32
    %9 = vector.broadcast %cst_4 : f32 to vector<1x32xf32>
    %10 = arith.mulf %8, %9 : vector<1x32xf32>
    %11 = arith.mulf %5, %5 : vector<1x32xf32>
    %12 = arith.subf %10, %11 : vector<1x32xf32>
    %cst_5 = arith.constant 0.000000e+00 : f32
    %13 = vector.broadcast %cst_5 : f32 to vector<1x32xf32>
    %14 = arith.maximumf %12, %13 : vector<1x32xf32>
    %cst_6 = arith.constant 9.99999997E-7 : f32
    %15 = vector.broadcast %cst_6 : f32 to vector<1x32xf32>
    %16 = arith.addf %14, %15 : vector<1x32xf32>
    %17 = math.rsqrt %16 : vector<1x32xf32>
    %18 = vector.broadcast %5 : vector<1x32xf32> to vector<440x32xf32>
    %19 = arith.subf %1, %18 : vector<440x32xf32>
    %c0_7 = arith.constant 0 : index
    %c0_8 = arith.constant 0 : index
    %20 = vector.load %arg4[%c0_7, %c0_8] : memref<1x32xf32, #tpu.memory_space<vmem>>, vector<1x32xf32>
    %21 = arith.mulf %17, %20 : vector<1x32xf32>
    %22 = vector.broadcast %21 : vector<1x32xf32> to vector<440x32xf32>
    %23 = arith.mulf %19, %22 : vector<440x32xf32>
    %c0_9 = arith.constant 0 : index
    %c0_10 = arith.constant 0 : index
    %24 = vector.load %arg5[%c0_9, %c0_10] : memref<1x32xf32, #tpu.memory_space<vmem>>, vector<1x32xf32>
    %25 = vector.broadcast %24 : vector<1x32xf32> to vector<440x32xf32>
    %26 = arith.addf %23, %25 : vector<440x32xf32>
    %27 = arith.negf %26 : vector<440x32xf32>
    %28 = math.exp %27 : vector<440x32xf32>
    %cst_11 = arith.constant 1.000000e+00 : f32
    %29 = vector.broadcast %cst_11 : f32 to vector<440x32xf32>
    %30 = arith.addf %29, %28 : vector<440x32xf32>
    %31 = arith.divf %29, %30 : vector<440x32xf32>
    %32 = arith.mulf %26, %31 : vector<440x32xf32>
    %c0_12 = arith.constant 0 : index
    %c0_13 = arith.constant 0 : index
    %33 = vector.load %arg2[%c0_12, %c0_13] : memref<440x1xf32, #tpu.memory_space<vmem>>, vector<440x1xf32>
    %34 = vector.broadcast %33 : vector<440x1xf32> to vector<440x32xf32>
    %35 = arith.mulf %32, %34 : vector<440x32xf32>
    %c0_14 = arith.constant 0 : index
    %c0_15 = arith.constant 0 : index
    %36 = vector.load %arg16[%c0_14, %c0_15] : memref<440x32xf32, #tpu.memory_space<vmem>>, vector<440x32xf32>
    tpu.vector_store %arg16[%c0_14, %c0_15], %35 {strides = array<i32>} : memref<440x32xf32, #tpu.memory_space<vmem>>, vector<440x32xf32>,
    %cst_16 = arith.constant 0.000000e+00 : f32
    %37 = vector.broadcast %cst_16 : f32 to vector<380x64xf32>
    %c0_17 = arith.constant 0 : index
    %c0_18 = arith.constant 0 : index
    %38 = vector.load %arg16[%c0_17, %c0_18] : memref<440x32xf32, #tpu.memory_space<vmem>>, vector<380x32xf32>
    %39 = arith.truncf %38 : vector<380x32xf32> to vector<380x32xbf16>
    %c0_19 = arith.constant 0 : index
    %c0_20 = arith.constant 0 : index
    %c0_21 = arith.constant 0 : index
    %40 = vector.load %arg6[%c0_19, %c0_20, %c0_21] : memref<9x32x64xbf16, #tpu.memory_space<vmem>>, vector<1x32x64xbf16>
    %41 = vector.shape_cast %40 : vector<1x32x64xbf16> to vector<32x64xbf16>
    %cst_22 = arith.constant dense<0.000000e+00> : vector<380x64xf32>
    %42 = tpu.matmul %39, %41, %cst_22 {dimension_numbers = #tpu.dot_dimension_numbers<[1], [0], [0], [1], [0, 0, 1, 1], [], []>} : vector<380x32xbf16>, vector<32x64xbf16>, vector<380x64xf32> -> vector<380x64xf32>
    %43 = arith.addf %37, %42 : vector<380x64xf32>
    %c1 = arith.constant 1 : index
    %c0_23 = arith.constant 0 : index
    %44 = vector.load %arg16[%c1, %c0_23] : memref<440x32xf32, #tpu.memory_space<vmem>>, vector<380x32xf32>
    %45 = arith.truncf %44 : vector<380x32xf32> to vector<380x32xbf16>
    %c1_24 = arith.constant 1 : index
    %c0_25 = arith.constant 0 : index
    %c0_26 = arith.constant 0 : index
    %46 = vector.load %arg6[%c1_24, %c0_25, %c0_26] : memref<9x32x64xbf16, #tpu.memory_space<vmem>>, vector<1x32x64xbf16>
    %47 = vector.shape_cast %46 : vector<1x32x64xbf16> to vector<32x64xbf16>
    %cst_27 = arith.constant dense<0.000000e+00> : vector<380x64xf32>
    %48 = tpu.matmul %45, %47, %cst_27 {dimension_numbers = #tpu.dot_dimension_numbers<[1], [0], [0], [1], [0, 0, 1, 1], [], []>} : vector<380x32xbf16>, vector<32x64xbf16>, vector<380x64xf32> -> vector<380x64xf32>
    %49 = arith.addf %43, %48 : vector<380x64xf32>
    %c2 = arith.constant 2 : index
    %c0_28 = arith.constant 0 : index
    %50 = vector.load %arg16[%c2, %c0_28] : memref<440x32xf32, #tpu.memory_space<vmem>>, vector<380x32xf32>
    %51 = arith.truncf %50 : vector<380x32xf32> to vector<380x32xbf16>
    %c2_29 = arith.constant 2 : index
    %c0_30 = arith.constant 0 : index
    %c0_31 = arith.constant 0 : index
    %52 = vector.load %arg6[%c2_29, %c0_30, %c0_31] : memref<9x32x64xbf16, #tpu.memory_space<vmem>>, vector<1x32x64xbf16>
    %53 = vector.shape_cast %52 : vector<1x32x64xbf16> to vector<32x64xbf16>
    %cst_32 = arith.constant dense<0.000000e+00> : vector<380x64xf32>
    %54 = tpu.matmul %51, %53, %cst_32 {dimension_numbers = #tpu.dot_dimension_numbers<[1], [0], [0], [1], [0, 0, 1, 1], [], []>} : vector<380x32xbf16>, vector<32x64xbf16>, vector<380x64xf32> -> vector<380x64xf32>
    %55 = arith.addf %49, %54 : vector<380x64xf32>
    %c20 = arith.constant 20 : index
    %c0_33 = arith.constant 0 : index
    %56 = vector.load %arg16[%c20, %c0_33] : memref<440x32xf32, #tpu.memory_space<vmem>>, vector<380x32xf32>
    %57 = arith.truncf %56 : vector<380x32xf32> to vector<380x32xbf16>
    %c3 = arith.constant 3 : index
    %c0_34 = arith.constant 0 : index
    %c0_35 = arith.constant 0 : index
    %58 = vector.load %arg6[%c3, %c0_34, %c0_35] : memref<9x32x64xbf16, #tpu.memory_space<vmem>>, vector<1x32x64xbf16>
    %59 = vector.shape_cast %58 : vector<1x32x64xbf16> to vector<32x64xbf16>
    %cst_36 = arith.constant dense<0.000000e+00> : vector<380x64xf32>
    %60 = tpu.matmul %57, %59, %cst_36 {dimension_numbers = #tpu.dot_dimension_numbers<[1], [0], [0], [1], [0, 0, 1, 1], [], []>} : vector<380x32xbf16>, vector<32x64xbf16>, vector<380x64xf32> -> vector<380x64xf32>
    %61 = arith.addf %55, %60 : vector<380x64xf32>
    %c21 = arith.constant 21 : index
    %c0_37 = arith.constant 0 : index
    %62 = vector.load %arg16[%c21, %c0_37] : memref<440x32xf32, #tpu.memory_space<vmem>>, vector<380x32xf32>
    %63 = arith.truncf %62 : vector<380x32xf32> to vector<380x32xbf16>
    %c4 = arith.constant 4 : index
    %c0_38 = arith.constant 0 : index
    %c0_39 = arith.constant 0 : index
    %64 = vector.load %arg6[%c4, %c0_38, %c0_39] : memref<9x32x64xbf16, #tpu.memory_space<vmem>>, vector<1x32x64xbf16>
    %65 = vector.shape_cast %64 : vector<1x32x64xbf16> to vector<32x64xbf16>
    %cst_40 = arith.constant dense<0.000000e+00> : vector<380x64xf32>
    %66 = tpu.matmul %63, %65, %cst_40 {dimension_numbers = #tpu.dot_dimension_numbers<[1], [0], [0], [1], [0, 0, 1, 1], [], []>} : vector<380x32xbf16>, vector<32x64xbf16>, vector<380x64xf32> -> vector<380x64xf32>
    %67 = arith.addf %61, %66 : vector<380x64xf32>
    %c22 = arith.constant 22 : index
    %c0_41 = arith.constant 0 : index
    %68 = vector.load %arg16[%c22, %c0_41] : memref<440x32xf32, #tpu.memory_space<vmem>>, vector<380x32xf32>
    %69 = arith.truncf %68 : vector<380x32xf32> to vector<380x32xbf16>
    %c5 = arith.constant 5 : index
    %c0_42 = arith.constant 0 : index
    %c0_43 = arith.constant 0 : index
    %70 = vector.load %arg6[%c5, %c0_42, %c0_43] : memref<9x32x64xbf16, #tpu.memory_space<vmem>>, vector<1x32x64xbf16>
    %71 = vector.shape_cast %70 : vector<1x32x64xbf16> to vector<32x64xbf16>
    %cst_44 = arith.constant dense<0.000000e+00> : vector<380x64xf32>
    %72 = tpu.matmul %69, %71, %cst_44 {dimension_numbers = #tpu.dot_dimension_numbers<[1], [0], [0], [1], [0, 0, 1, 1], [], []>} : vector<380x32xbf16>, vector<32x64xbf16>, vector<380x64xf32> -> vector<380x64xf32>
    %73 = arith.addf %67, %72 : vector<380x64xf32>
    %c40 = arith.constant 40 : index
    %c0_45 = arith.constant 0 : index
    %74 = vector.load %arg16[%c40, %c0_45] : memref<440x32xf32, #tpu.memory_space<vmem>>, vector<380x32xf32>
    %75 = arith.truncf %74 : vector<380x32xf32> to vector<380x32xbf16>
    %c6 = arith.constant 6 : index
    %c0_46 = arith.constant 0 : index
    %c0_47 = arith.constant 0 : index
    %76 = vector.load %arg6[%c6, %c0_46, %c0_47] : memref<9x32x64xbf16, #tpu.memory_space<vmem>>, vector<1x32x64xbf16>
    %77 = vector.shape_cast %76 : vector<1x32x64xbf16> to vector<32x64xbf16>
    %cst_48 = arith.constant dense<0.000000e+00> : vector<380x64xf32>
    %78 = tpu.matmul %75, %77, %cst_48 {dimension_numbers = #tpu.dot_dimension_numbers<[1], [0], [0], [1], [0, 0, 1, 1], [], []>} : vector<380x32xbf16>, vector<32x64xbf16>, vector<380x64xf32> -> vector<380x64xf32>
    %79 = arith.addf %73, %78 : vector<380x64xf32>
    %c41 = arith.constant 41 : index
    %c0_49 = arith.constant 0 : index
    %80 = vector.load %arg16[%c41, %c0_49] : memref<440x32xf32, #tpu.memory_space<vmem>>, vector<380x32xf32>
    %81 = arith.truncf %80 : vector<380x32xf32> to vector<380x32xbf16>
    %c7 = arith.constant 7 : index
    %c0_50 = arith.constant 0 : index
    %c0_51 = arith.constant 0 : index
    %82 = vector.load %arg6[%c7, %c0_50, %c0_51] : memref<9x32x64xbf16, #tpu.memory_space<vmem>>, vector<1x32x64xbf16>
    %83 = vector.shape_cast %82 : vector<1x32x64xbf16> to vector<32x64xbf16>
    %cst_52 = arith.constant dense<0.000000e+00> : vector<380x64xf32>
    %84 = tpu.matmul %81, %83, %cst_52 {dimension_numbers = #tpu.dot_dimension_numbers<[1], [0], [0], [1], [0, 0, 1, 1], [], []>} : vector<380x32xbf16>, vector<32x64xbf16>, vector<380x64xf32> -> vector<380x64xf32>
    %85 = arith.addf %79, %84 : vector<380x64xf32>
    %c42 = arith.constant 42 : index
    %c0_53 = arith.constant 0 : index
    %86 = vector.load %arg16[%c42, %c0_53] : memref<440x32xf32, #tpu.memory_space<vmem>>, vector<380x32xf32>
    %87 = arith.truncf %86 : vector<380x32xf32> to vector<380x32xbf16>
    %c8 = arith.constant 8 : index
    %c0_54 = arith.constant 0 : index
    %c0_55 = arith.constant 0 : index
    %88 = vector.load %arg6[%c8, %c0_54, %c0_55] : memref<9x32x64xbf16, #tpu.memory_space<vmem>>, vector<1x32x64xbf16>
    %89 = vector.shape_cast %88 : vector<1x32x64xbf16> to vector<32x64xbf16>
    %cst_56 = arith.constant dense<0.000000e+00> : vector<380x64xf32>
    %90 = tpu.matmul %87, %89, %cst_56 {dimension_numbers = #tpu.dot_dimension_numbers<[1], [0], [0], [1], [0, 0, 1, 1], [], []>} : vector<380x32xbf16>, vector<32x64xbf16>, vector<380x64xf32> -> vector<380x64xf32>
    %91 = arith.addf %85, %90 : vector<380x64xf32>
    %c0_57 = arith.constant 0 : index
    %c0_58 = arith.constant 0 : index
    %92 = vector.load %arg7[%c0_57, %c0_58] : memref<1x64xf32, #tpu.memory_space<vmem>>, vector<1x64xf32>
    %93 = vector.broadcast %92 : vector<1x64xf32> to vector<380x64xf32>
    %94 = arith.addf %91, %93 : vector<380x64xf32>
    %c0_59 = arith.constant 0 : index
    %c0_60 = arith.constant 0 : index
    %95 = vector.load %arg3[%c0_59, %c0_60] : memref<380x1xf32, #tpu.memory_space<vmem>>, vector<380x1xf32>
    %96 = vector.broadcast %95 : vector<380x1xf32> to vector<380x64xf32>
    %97 = arith.mulf %94, %96 : vector<380x64xf32>
    %cst_61 = arith.constant dense<0.000000e+00> : vector<64xf32>
    %98 = vector.multi_reduction <add>, %97, %cst_61 [0] : vector<380x64xf32> to vector<64xf32>
    %99 = vector.shape_cast %98 : vector<64xf32> to vector<1x64xf32>
    %cst_62 = arith.constant 3.906250e-03 : f32
    %100 = vector.broadcast %cst_62 : f32 to vector<1x64xf32>
    %101 = arith.mulf %99, %100 : vector<1x64xf32>
    %102 = arith.mulf %97, %97 : vector<380x64xf32>
    %cst_63 = arith.constant dense<0.000000e+00> : vector<64xf32>
    %103 = vector.multi_reduction <add>, %102, %cst_63 [0] : vector<380x64xf32> to vector<64xf32>
    %104 = vector.shape_cast %103 : vector<64xf32> to vector<1x64xf32>
    %cst_64 = arith.constant 3.906250e-03 : f32
    %105 = vector.broadcast %cst_64 : f32 to vector<1x64xf32>
    %106 = arith.mulf %104, %105 : vector<1x64xf32>
    %c0_65 = arith.constant 0 : index
    %c0_66 = arith.constant 0 : index
    %107 = vector.load %arg12[%c0_65, %c0_66] : memref<64x64xf32, #tpu.memory_space<vmem>>, vector<64x64xf32>
    %cst_67 = arith.constant dense<0.000000e+00> : vector<1x64xf32>
    %108 = tpu.matmul %101, %107, %cst_67 {dimension_numbers = #tpu.dot_dimension_numbers<[1], [0], [0], [1], [0, 0, 1, 1], [], []>} : vector<1x64xf32>, vector<64x64xf32>, vector<1x64xf32> -> vector<1x64xf32>
    %c0_68 = arith.constant 0 : index
    %c0_69 = arith.constant 0 : index
    %109 = vector.load %arg12[%c0_68, %c0_69] : memref<64x64xf32, #tpu.memory_space<vmem>>, vector<64x64xf32>
    %cst_70 = arith.constant dense<0.000000e+00> : vector<1x64xf32>
    %110 = tpu.matmul %106, %109, %cst_70 {dimension_numbers = #tpu.dot_dimension_numbers<[1], [0], [0], [1], [0, 0, 1, 1], [], []>} : vector<1x64xf32>, vector<64x64xf32>, vector<1x64xf32> -> vector<1x64xf32>
    %111 = arith.mulf %108, %108 : vector<1x64xf32>
    %112 = arith.subf %110, %111 : vector<1x64xf32>
    %cst_71 = arith.constant 0.000000e+00 : f32
    %113 = vector.broadcast %cst_71 : f32 to vector<1x64xf32>
    %114 = arith.maximumf %112, %113 : vector<1x64xf32>
    %cst_72 = arith.constant 9.99999997E-7 : f32
    %115 = vector.broadcast %cst_72 : f32 to vector<1x64xf32>
    %116 = arith.addf %114, %115 : vector<1x64xf32>
    %117 = math.rsqrt %116 : vector<1x64xf32>
    %118 = vector.broadcast %108 : vector<1x64xf32> to vector<380x64xf32>
    %119 = arith.subf %94, %118 : vector<380x64xf32>
    %c0_73 = arith.constant 0 : index
    %c0_74 = arith.constant 0 : index
    %120 = vector.load %arg8[%c0_73, %c0_74] : memref<1x64xf32, #tpu.memory_space<vmem>>, vector<1x64xf32>
    %121 = arith.mulf %117, %120 : vector<1x64xf32>
    %122 = vector.broadcast %121 : vector<1x64xf32> to vector<380x64xf32>
    %123 = arith.mulf %119, %122 : vector<380x64xf32>
    %c0_75 = arith.constant 0 : index
    %c0_76 = arith.constant 0 : index
    %124 = vector.load %arg9[%c0_75, %c0_76] : memref<1x64xf32, #tpu.memory_space<vmem>>, vector<1x64xf32>
    %125 = vector.broadcast %124 : vector<1x64xf32> to vector<380x64xf32>
    %126 = arith.addf %123, %125 : vector<380x64xf32>
    %127 = arith.negf %126 : vector<380x64xf32>
    %128 = math.exp %127 : vector<380x64xf32>
    %cst_77 = arith.constant 1.000000e+00 : f32
    %129 = vector.broadcast %cst_77 : f32 to vector<380x64xf32>
    %130 = arith.addf %129, %128 : vector<380x64xf32>
    %131 = arith.divf %129, %130 : vector<380x64xf32>
    %132 = arith.mulf %126, %131 : vector<380x64xf32>
    %133 = vector.broadcast %95 : vector<380x1xf32> to vector<380x64xf32>
    %134 = arith.mulf %132, %133 : vector<380x64xf32>
    %c0_78 = arith.constant 0 : index
    %c0_79 = arith.constant 0 : index
    %135 = vector.load %arg17[%c0_78, %c0_79] : memref<380x64xf32, #tpu.memory_space<vmem>>, vector<380x64xf32>
    tpu.vector_store %arg17[%c0_78, %c0_79], %134 {strides = array<i32>} : memref<380x64xf32, #tpu.memory_space<vmem>>, vector<380x64xf32>,
    %cst_80 = arith.constant 0.000000e+00 : f32
    %136 = vector.broadcast %cst_80 : f32 to vector<320x64xf32>
    %c0_81 = arith.constant 0 : index
    %c0_82 = arith.constant 0 : index
    %137 = vector.load %arg17[%c0_81, %c0_82] : memref<380x64xf32, #tpu.memory_space<vmem>>, vector<320x64xf32>
    %138 = arith.truncf %137 : vector<320x64xf32> to vector<320x64xbf16>
    %c0_83 = arith.constant 0 : index
    %c0_84 = arith.constant 0 : index
    %c0_85 = arith.constant 0 : index
    %139 = vector.load %arg10[%c0_83, %c0_84, %c0_85] : memref<9x64x64xbf16, #tpu.memory_space<vmem>>, vector<1x64x64xbf16>
    %140 = vector.shape_cast %139 : vector<1x64x64xbf16> to vector<64x64xbf16>
    %cst_86 = arith.constant dense<0.000000e+00> : vector<320x64xf32>
    %141 = tpu.matmul %138, %140, %cst_86 {dimension_numbers = #tpu.dot_dimension_numbers<[1], [0], [0], [1], [0, 0, 1, 1], [], []>} : vector<320x64xbf16>, vector<64x64xbf16>, vector<320x64xf32> -> vector<320x64xf32>
    %142 = arith.addf %136, %141 : vector<320x64xf32>
    %c1_87 = arith.constant 1 : index
    %c0_88 = arith.constant 0 : index
    %143 = vector.load %arg17[%c1_87, %c0_88] : memref<380x64xf32, #tpu.memory_space<vmem>>, vector<320x64xf32>
    %144 = arith.truncf %143 : vector<320x64xf32> to vector<320x64xbf16>
    %c1_89 = arith.constant 1 : index
    %c0_90 = arith.constant 0 : index
    %c0_91 = arith.constant 0 : index
    %145 = vector.load %arg10[%c1_89, %c0_90, %c0_91] : memref<9x64x64xbf16, #tpu.memory_space<vmem>>, vector<1x64x64xbf16>
    %146 = vector.shape_cast %145 : vector<1x64x64xbf16> to vector<64x64xbf16>
    %cst_92 = arith.constant dense<0.000000e+00> : vector<320x64xf32>
    %147 = tpu.matmul %144, %146, %cst_92 {dimension_numbers = #tpu.dot_dimension_numbers<[1], [0], [0], [1], [0, 0, 1, 1], [], []>} : vector<320x64xbf16>, vector<64x64xbf16>, vector<320x64xf32> -> vector<320x64xf32>
    %148 = arith.addf %142, %147 : vector<320x64xf32>
    %c2_93 = arith.constant 2 : index
    %c0_94 = arith.constant 0 : index
    %149 = vector.load %arg17[%c2_93, %c0_94] : memref<380x64xf32, #tpu.memory_space<vmem>>, vector<320x64xf32>
    %150 = arith.truncf %149 : vector<320x64xf32> to vector<320x64xbf16>
    %c2_95 = arith.constant 2 : index
    %c0_96 = arith.constant 0 : index
    %c0_97 = arith.constant 0 : index
    %151 = vector.load %arg10[%c2_95, %c0_96, %c0_97] : memref<9x64x64xbf16, #tpu.memory_space<vmem>>, vector<1x64x64xbf16>
    %152 = vector.shape_cast %151 : vector<1x64x64xbf16> to vector<64x64xbf16>
    %cst_98 = arith.constant dense<0.000000e+00> : vector<320x64xf32>
    %153 = tpu.matmul %150, %152, %cst_98 {dimension_numbers = #tpu.dot_dimension_numbers<[1], [0], [0], [1], [0, 0, 1, 1], [], []>} : vector<320x64xbf16>, vector<64x64xbf16>, vector<320x64xf32> -> vector<320x64xf32>
    %154 = arith.addf %148, %153 : vector<320x64xf32>
    %c20_99 = arith.constant 20 : index
    %c0_100 = arith.constant 0 : index
    %155 = vector.load %arg17[%c20_99, %c0_100] : memref<380x64xf32, #tpu.memory_space<vmem>>, vector<320x64xf32>
    %156 = arith.truncf %155 : vector<320x64xf32> to vector<320x64xbf16>
    %c3_101 = arith.constant 3 : index
    %c0_102 = arith.constant 0 : index
    %c0_103 = arith.constant 0 : index
    %157 = vector.load %arg10[%c3_101, %c0_102, %c0_103] : memref<9x64x64xbf16, #tpu.memory_space<vmem>>, vector<1x64x64xbf16>
    %158 = vector.shape_cast %157 : vector<1x64x64xbf16> to vector<64x64xbf16>
    %cst_104 = arith.constant dense<0.000000e+00> : vector<320x64xf32>
    %159 = tpu.matmul %156, %158, %cst_104 {dimension_numbers = #tpu.dot_dimension_numbers<[1], [0], [0], [1], [0, 0, 1, 1], [], []>} : vector<320x64xbf16>, vector<64x64xbf16>, vector<320x64xf32> -> vector<320x64xf32>
    %160 = arith.addf %154, %159 : vector<320x64xf32>
    %c21_105 = arith.constant 21 : index
    %c0_106 = arith.constant 0 : index
    %161 = vector.load %arg17[%c21_105, %c0_106] : memref<380x64xf32, #tpu.memory_space<vmem>>, vector<320x64xf32>
    %162 = arith.truncf %161 : vector<320x64xf32> to vector<320x64xbf16>
    %c4_107 = arith.constant 4 : index
    %c0_108 = arith.constant 0 : index
    %c0_109 = arith.constant 0 : index
    %163 = vector.load %arg10[%c4_107, %c0_108, %c0_109] : memref<9x64x64xbf16, #tpu.memory_space<vmem>>, vector<1x64x64xbf16>
    %164 = vector.shape_cast %163 : vector<1x64x64xbf16> to vector<64x64xbf16>
    %cst_110 = arith.constant dense<0.000000e+00> : vector<320x64xf32>
    %165 = tpu.matmul %162, %164, %cst_110 {dimension_numbers = #tpu.dot_dimension_numbers<[1], [0], [0], [1], [0, 0, 1, 1], [], []>} : vector<320x64xbf16>, vector<64x64xbf16>, vector<320x64xf32> -> vector<320x64xf32>
    %166 = arith.addf %160, %165 : vector<320x64xf32>
    %c22_111 = arith.constant 22 : index
    %c0_112 = arith.constant 0 : index
    %167 = vector.load %arg17[%c22_111, %c0_112] : memref<380x64xf32, #tpu.memory_space<vmem>>, vector<320x64xf32>
    %168 = arith.truncf %167 : vector<320x64xf32> to vector<320x64xbf16>
    %c5_113 = arith.constant 5 : index
    %c0_114 = arith.constant 0 : index
    %c0_115 = arith.constant 0 : index
    %169 = vector.load %arg10[%c5_113, %c0_114, %c0_115] : memref<9x64x64xbf16, #tpu.memory_space<vmem>>, vector<1x64x64xbf16>
    %170 = vector.shape_cast %169 : vector<1x64x64xbf16> to vector<64x64xbf16>
    %cst_116 = arith.constant dense<0.000000e+00> : vector<320x64xf32>
    %171 = tpu.matmul %168, %170, %cst_116 {dimension_numbers = #tpu.dot_dimension_numbers<[1], [0], [0], [1], [0, 0, 1, 1], [], []>} : vector<320x64xbf16>, vector<64x64xbf16>, vector<320x64xf32> -> vector<320x64xf32>
    %172 = arith.addf %166, %171 : vector<320x64xf32>
    %c40_117 = arith.constant 40 : index
    %c0_118 = arith.constant 0 : index
    %173 = vector.load %arg17[%c40_117, %c0_118] : memref<380x64xf32, #tpu.memory_space<vmem>>, vector<320x64xf32>
    %174 = arith.truncf %173 : vector<320x64xf32> to vector<320x64xbf16>
    %c6_119 = arith.constant 6 : index
    %c0_120 = arith.constant 0 : index
    %c0_121 = arith.constant 0 : index
    %175 = vector.load %arg10[%c6_119, %c0_120, %c0_121] : memref<9x64x64xbf16, #tpu.memory_space<vmem>>, vector<1x64x64xbf16>
    %176 = vector.shape_cast %175 : vector<1x64x64xbf16> to vector<64x64xbf16>
    %cst_122 = arith.constant dense<0.000000e+00> : vector<320x64xf32>
    %177 = tpu.matmul %174, %176, %cst_122 {dimension_numbers = #tpu.dot_dimension_numbers<[1], [0], [0], [1], [0, 0, 1, 1], [], []>} : vector<320x64xbf16>, vector<64x64xbf16>, vector<320x64xf32> -> vector<320x64xf32>
    %178 = arith.addf %172, %177 : vector<320x64xf32>
    %c41_123 = arith.constant 41 : index
    %c0_124 = arith.constant 0 : index
    %179 = vector.load %arg17[%c41_123, %c0_124] : memref<380x64xf32, #tpu.memory_space<vmem>>, vector<320x64xf32>
    %180 = arith.truncf %179 : vector<320x64xf32> to vector<320x64xbf16>
    %c7_125 = arith.constant 7 : index
    %c0_126 = arith.constant 0 : index
    %c0_127 = arith.constant 0 : index
    %181 = vector.load %arg10[%c7_125, %c0_126, %c0_127] : memref<9x64x64xbf16, #tpu.memory_space<vmem>>, vector<1x64x64xbf16>
    %182 = vector.shape_cast %181 : vector<1x64x64xbf16> to vector<64x64xbf16>
    %cst_128 = arith.constant dense<0.000000e+00> : vector<320x64xf32>
    %183 = tpu.matmul %180, %182, %cst_128 {dimension_numbers = #tpu.dot_dimension_numbers<[1], [0], [0], [1], [0, 0, 1, 1], [], []>} : vector<320x64xbf16>, vector<64x64xbf16>, vector<320x64xf32> -> vector<320x64xf32>
    %184 = arith.addf %178, %183 : vector<320x64xf32>
    %c42_129 = arith.constant 42 : index
    %c0_130 = arith.constant 0 : index
    %185 = vector.load %arg17[%c42_129, %c0_130] : memref<380x64xf32, #tpu.memory_space<vmem>>, vector<320x64xf32>
    %186 = arith.truncf %185 : vector<320x64xf32> to vector<320x64xbf16>
    %c8_131 = arith.constant 8 : index
    %c0_132 = arith.constant 0 : index
    %c0_133 = arith.constant 0 : index
    %187 = vector.load %arg10[%c8_131, %c0_132, %c0_133] : memref<9x64x64xbf16, #tpu.memory_space<vmem>>, vector<1x64x64xbf16>
    %188 = vector.shape_cast %187 : vector<1x64x64xbf16> to vector<64x64xbf16>
    %cst_134 = arith.constant dense<0.000000e+00> : vector<320x64xf32>
    %189 = tpu.matmul %186, %188, %cst_134 {dimension_numbers = #tpu.dot_dimension_numbers<[1], [0], [0], [1], [0, 0, 1, 1], [], []>} : vector<320x64xbf16>, vector<64x64xbf16>, vector<320x64xf32> -> vector<320x64xf32>
    %190 = arith.addf %184, %189 : vector<320x64xf32>
    %c0_135 = arith.constant 0 : index
    %c0_136 = arith.constant 0 : index
    %191 = vector.load %arg11[%c0_135, %c0_136] : memref<1x64xf32, #tpu.memory_space<vmem>>, vector<1x64xf32>
    %192 = vector.broadcast %191 : vector<1x64xf32> to vector<320x64xf32>
    %193 = arith.addf %190, %192 : vector<320x64xf32>
    %194 = vector.extract_strided_slice %1 {offsets = [42, 0], sizes = [320, 32], strides = [1, 1]} : vector<440x32xf32> to vector<320x32xf32>
    %195 = arith.truncf %194 : vector<320x32xf32> to vector<320x32xbf16>
    %c0_137 = arith.constant 0 : index
    %c0_138 = arith.constant 0 : index
    %196 = vector.load %arg13[%c0_137, %c0_138] : memref<32x64xbf16, #tpu.memory_space<vmem>>, vector<32x64xbf16>
    %cst_139 = arith.constant dense<0.000000e+00> : vector<320x64xf32>
    %197 = tpu.matmul %195, %196, %cst_139 {dimension_numbers = #tpu.dot_dimension_numbers<[1], [0], [0], [1], [0, 0, 1, 1], [], []>} : vector<320x32xbf16>, vector<32x64xbf16>, vector<320x64xf32> -> vector<320x64xf32>
    %c0_140 = arith.constant 0 : index
    %c0_141 = arith.constant 0 : index
    %198 = vector.load %arg14[%c0_140, %c0_141] : memref<1x64xf32, #tpu.memory_space<vmem>>, vector<1x64xf32>
    %199 = vector.broadcast %198 : vector<1x64xf32> to vector<320x64xf32>
    %200 = arith.addf %197, %199 : vector<320x64xf32>
    %201 = arith.addf %193, %200 : vector<320x64xf32>
    %c0_142 = arith.constant 0 : index
    %c0_143 = arith.constant 0 : index
    %c0_144 = arith.constant 0 : index
    %202 = vector.load %arg15[%c0_142, %c0_143, %c0_144] : memref<1x320x64xf32, #tpu.memory_space<vmem>>, vector<1x320x64xf32>
    %203 = vector.shape_cast %202 : vector<1x320x64xf32> to vector<320x64xf32>
    %204 = vector.shape_cast %201 : vector<320x64xf32> to vector<1x320x64xf32>
    tpu.vector_store %arg15[%c0_142, %c0_143, %c0_144], %204 {strides = array<i32>} : memref<1x320x64xf32, #tpu.memory_space<vmem>>, vector<1x320x64xf32>,
    return
  }
  func.func @transform_0(%arg0: i32) -> (i32, i32, i32) {
    %c0_i32 = arith.constant 0 : i32
    %c0_i32_0 = arith.constant 0 : i32
    %c0_i32_1 = arith.constant 0 : i32
    return %arg0, %c0_i32, %c0_i32_0 : i32, i32, i32
  }
  func.func @transform_1(%arg0: i32) -> (i32, i32) {
    %c0_i32 = arith.constant 0 : i32
    %c0_i32_0 = arith.constant 0 : i32
    %c0_i32_1 = arith.constant 0 : i32
    return %c0_i32, %c0_i32_0 : i32, i32
  }
  func.func @transform_2(%arg0: i32) -> (i32, i32) {
    %c0_i32 = arith.constant 0 : i32
    %c0_i32_0 = arith.constant 0 : i32
    %c0_i32_1 = arith.constant 0 : i32
    return %c0_i32, %c0_i32_0 : i32, i32
  }
  func.func @transform_3(%arg0: i32) -> (i32, i32) {
    %c0_i32 = arith.constant 0 : i32
    %c0_i32_0 = arith.constant 0 : i32
    %c0_i32_1 = arith.constant 0 : i32
    return %c0_i32, %c0_i32_0 : i32, i32
  }
  func.func @transform_4(%arg0: i32) -> (i32, i32) {
    %c0_i32 = arith.constant 0 : i32
    %c0_i32_0 = arith.constant 0 : i32
    %c0_i32_1 = arith.constant 0 : i32
    return %c0_i32, %c0_i32_0 : i32, i32
  }
  func.func @transform_5(%arg0: i32) -> (i32, i32, i32) {
    %c0_i32 = arith.constant 0 : i32
    %c0_i32_0 = arith.constant 0 : i32
    %c0_i32_1 = arith.constant 0 : i32
    %c0_i32_2 = arith.constant 0 : i32
    return %c0_i32, %c0_i32_0, %c0_i32_1 : i32, i32, i32
  }
  func.func @transform_6(%arg0: i32) -> (i32, i32) {
    %c0_i32 = arith.constant 0 : i32
    %c0_i32_0 = arith.constant 0 : i32
    %c0_i32_1 = arith.constant 0 : i32
    return %c0_i32, %c0_i32_0 : i32, i32
  }
  func.func @transform_7(%arg0: i32) -> (i32, i32) {
    %c0_i32 = arith.constant 0 : i32
    %c0_i32_0 = arith.constant 0 : i32
    %c0_i32_1 = arith.constant 0 : i32
    return %c0_i32, %c0_i32_0 : i32, i32
  }
  func.func @transform_8(%arg0: i32) -> (i32, i32) {
    %c0_i32 = arith.constant 0 : i32
    %c0_i32_0 = arith.constant 0 : i32
    %c0_i32_1 = arith.constant 0 : i32
    return %c0_i32, %c0_i32_0 : i32, i32
  }
  func.func @transform_9(%arg0: i32) -> (i32, i32, i32) {
    %c0_i32 = arith.constant 0 : i32
    %c0_i32_0 = arith.constant 0 : i32
    %c0_i32_1 = arith.constant 0 : i32
    %c0_i32_2 = arith.constant 0 : i32
    return %c0_i32, %c0_i32_0, %c0_i32_1 : i32, i32, i32
  }
  func.func @transform_10(%arg0: i32) -> (i32, i32) {
    %c0_i32 = arith.constant 0 : i32
    %c0_i32_0 = arith.constant 0 : i32
    %c0_i32_1 = arith.constant 0 : i32
    return %c0_i32, %c0_i32_0 : i32, i32
  }
  func.func @transform_11(%arg0: i32) -> (i32, i32) {
    %c0_i32 = arith.constant 0 : i32
    %c0_i32_0 = arith.constant 0 : i32
    %c0_i32_1 = arith.constant 0 : i32
    return %c0_i32, %c0_i32_0 : i32, i32
  }
  func.func @transform_12(%arg0: i32) -> (i32, i32) {
    %c0_i32 = arith.constant 0 : i32
    %c0_i32_0 = arith.constant 0 : i32
    %c0_i32_1 = arith.constant 0 : i32
    return %c0_i32, %c0_i32_0 : i32, i32
  }
  func.func @transform_13(%arg0: i32) -> (i32, i32) {
    %c0_i32 = arith.constant 0 : i32
    %c0_i32_0 = arith.constant 0 : i32
    %c0_i32_1 = arith.constant 0 : i32
    return %c0_i32, %c0_i32_0 : i32, i32
  }
  func.func @transform_14(%arg0: i32) -> (i32, i32, i32) {
    %c0_i32 = arith.constant 0 : i32
    %c0_i32_0 = arith.constant 0 : i32
    %c0_i32_1 = arith.constant 0 : i32
    return %arg0, %c0_i32, %c0_i32_0 : i32, i32, i32
  }
}

</mosaic_0001>

<llo_original>
// kernel: tpu_custom_call.1
$region0: #{tpu_custom_call.1}
  #allocation0 [shape = 'u32[]', space=smem, size = 0x4, offset = 0x4, fixed_abs, tag = 'smem constant byte address 0x4 - core index']
  #allocation1 [shape = 'u32[144,128]{1,0:T(1,128)}', space=vmem, size = 0x12000, scoped, tag = 'internal scratch']
  #allocation2 [shape = 'f32[440,32]{1,0:T(8,128)}', space=vmem, size = 0x37000, scoped, tag = 'scratch operand']
  #allocation3 [shape = 'f32[380,64]{1,0:T(8,128)}', space=vmem, size = 0x30000, scoped, tag = 'scratch operand']
  %s0 = inlined_call_operand.hbm [shape: f32[2,440,32], index: 0, kind: input, shape index: {}]
  %s1 = inlined_call_operand.hbm [shape: f32[440,1], index: 1, kind: input, shape index: {}]
  %s2 = inlined_call_operand.hbm [shape: f32[380,1], index: 2, kind: input, shape index: {}]
  %s3 = inlined_call_operand.hbm [shape: f32[1,32], index: 3, kind: input, shape index: {}]
  %s4 = inlined_call_operand.hbm [shape: f32[1,32], index: 4, kind: input, shape index: {}]
  %s5 = inlined_call_operand.hbm [shape: bf16[9,32,64], index: 5, kind: input, shape index: {}]
  %s6 = inlined_call_operand.hbm [shape: f32[1,64], index: 6, kind: input, shape index: {}]
  %s7 = inlined_call_operand.hbm [shape: f32[1,64], index: 7, kind: input, shape index: {}]
  %s8 = inlined_call_operand.hbm [shape: f32[1,64], index: 8, kind: input, shape index: {}]
  %s9 = inlined_call_operand.hbm [shape: bf16[9,64,64], index: 9, kind: input, shape index: {}]
  %s10 = inlined_call_operand.hbm [shape: f32[1,64], index: 10, kind: input, shape index: {}]
  %s11 = inlined_call_operand.hbm [shape: f32[64,64], index: 11, kind: input, shape index: {}]
  %s12 = inlined_call_operand.hbm [shape: bf16[32,64], index: 12, kind: input, shape index: {}]
  %s13 = inlined_call_operand.hbm [shape: f32[1,64], index: 13, kind: input, shape index: {}]
  %s14 = inlined_call_operand.hbm [shape: f32[2,320,64], index: 14, kind: output, shape index: {}]
  %s15 = sld [smem:[#allocation0]]
  $region145: #{tpu_custom_call.1} parent=0
    _
  %s17 = ssub.s32 1, %s15
  %s18 = scalar_select 0, %s17, %s15
  $region1: #{tpu_custom_call.1} parent=0
    #allocation4 [shape = 'u8[450560]{0}', space=vmem, size = 0x6e000, scoped, tag = 'input window, operand 0']
    #allocation5 [shape = 's32[2]{0}', space=sflag, size = 0x8, scoped, tag = 'scoped memory for tpu_custom_call.1']
    #allocation6 [shape = 's32[2]{0}', space=sflag, size = 0x8, scoped, tag = 'scoped memory for tpu_custom_call.1']
    #allocation7 [shape = 'u8[225280]{0}', space=vmem, size = 0x37000, scoped, tag = 'input window, operand 1, single buffered']
    #allocation8 [shape = 's32[1]{0}', space=sflag, size = 0x4, scoped, tag = 'scoped memory for tpu_custom_call.1']
    #allocation9 [shape = 'u8[196608]{0}', space=vmem, size = 0x30000, scoped, tag = 'input window, operand 2, single buffered']
    #allocation10 [shape = 'u8[512]{0}', space=vmem, size = 0x400, scoped, tag = 'input window, operand 3, single buffered']
    #allocation11 [shape = 's32[1]{0}', space=sflag, size = 0x4, scoped, tag = 'scoped memory for tpu_custom_call.1']
    #allocation12 [shape = 'u8[512]{0}', space=vmem, size = 0x400, scoped, tag = 'input window, operand 4, single buffered']
    #allocation13 [shape = 'u8[73728]{0}', space=vmem, size = 0x12000, scoped, tag = 'input window, operand 5, single buffered']
    #allocation14 [shape = 's32[1]{0}', space=sflag, size = 0x4, scoped, tag = 'scoped memory for tpu_custom_call.1']
    #allocation15 [shape = 'u8[512]{0}', space=vmem, size = 0x400, scoped, tag = 'input window, operand 6, single buffered']
    #allocation16 [shape = 'u8[512]{0}', space=vmem, size = 0x400, scoped, tag = 'input window, operand 7, single buffered']
    #allocation17 [shape = 's32[1]{0}', space=sflag, size = 0x4, scoped, tag = 'scoped memory for tpu_custom_call.1']
    #allocation18 [shape = 'u8[512]{0}', space=vmem, size = 0x400, scoped, tag = 'input window, operand 8, single buffered']
    #allocation19 [shape = 'u8[147456]{0}', space=vmem, size = 0x24000, scoped, tag = 'input window, operand 9, single buffered']
    #allocation20 [shape = 's32[1]{0}', space=sflag, size = 0x4, scoped, tag = 'scoped memory for tpu_custom_call.1']
    #allocation21 [shape = 'u8[512]{0}', space=vmem, size = 0x400, scoped, tag = 'input window, operand 10, single buffered']
    #allocation22 [shape = 'u8[32768]{0}', space=vmem, size = 0x8000, scoped, tag = 'input window, operand 11, single buffered']
    #allocation23 [shape = 's32[1]{0}', space=sflag, size = 0x4, scoped, tag = 'scoped memory for tpu_custom_call.1']
    #allocation24 [shape = 'u8[8192]{0}', space=vmem, size = 0x2000, scoped, tag = 'input window, operand 12, single buffered']
    #allocation25 [shape = 'u8[512]{0}', space=vmem, size = 0x400, scoped, tag = 'input window, operand 13, single buffered']
    #allocation26 [shape = 's32[1]{0}', space=sflag, size = 0x4, scoped, tag = 'scoped memory for tpu_custom_call.1']
    #allocation27 [shape = 'u8[327680]{0}', space=vmem, size = 0x50000, scoped, tag = 'output window, operand 0']
    %19 = vsyncpa [#allocation5], 0
    %s20 = scalar_lea.sflag [#allocation5], 1
    %21 = vsyncpa %s20, 0
    %22 = vsyncpa [#allocation8], 0
    %23 = vsyncpa [#allocation11], 0
    %24 = vsyncpa [#allocation14], 0
    %25 = vsyncpa [#allocation17], 0
    %26 = vsyncpa [#allocation20], 0
    %27 = vsyncpa [#allocation23], 0
    %28 = vsyncpa [#allocation26], 0
    %29 = vsyncpa [#allocation6], 0
    %s30 = scalar_lea.sflag [#allocation6], 1
    %31 = vsyncpa %s30, 0
    loop: start=0, step=1, limit=4
    $region2: #{tpu_custom_call.1} parent=1 // loop_pre_header
      _
    $region3: #{tpu_custom_call.1} parent=1 // loop_header
      %s33 = sphi 0, %s37
      %p34 = scmp.ge.s32.totalorder %s33, 4
      %s43 = sphi 0, %s45
      %s46 = sphi 0, %s43
      %s47 = sphi 0, %s46
      %s63 = sphi 0, %s47
      %s67 = sphi 0, %s67
      %s69 = sphi 0, %s67
      %s70 = sphi 0, %s69
      %s84 = sphi 0, %s70
      %s88 = sphi 0, %s88
      %s90 = sphi 0, %s88
      %s91 = sphi 0, %s90
      %s105 = sphi 0, %s91
      %s109 = sphi 0, %s109
      %s111 = sphi 0, %s109
      %s112 = sphi 0, %s111
      %s126 = sphi 0, %s112
      %s130 = sphi 0, %s130
      %s132 = sphi 0, %s130
      %s133 = sphi 0, %s132
      %s147 = sphi 0, %s133
      %s151 = sphi 0, %s151
      %s153 = sphi 0, %s151
      %s154 = sphi 0, %s153
      %s168 = sphi 0, %s154
      %s172 = sphi 0, %s172
      %s174 = sphi 0, %s172
      %s175 = sphi 0, %s174
      %s189 = sphi 0, %s175
      %s193 = sphi 0, %s193
      %s195 = sphi 0, %s193
      %s196 = sphi 0, %s195
      %s210 = sphi 0, %s196
      %s214 = sphi 0, %s214
      %s216 = sphi 0, %s214
      %s217 = sphi 0, %s216
      %s231 = sphi 0, %s217
      %s235 = sphi 0, %s235
      %s237 = sphi 0, %s235
      %s238 = sphi 0, %s237
      %s252 = sphi 0, %s238
      %s256 = sphi 0, %s256
      %s258 = sphi 0, %s256
      %s259 = sphi 0, %s258
      %s273 = sphi 0, %s259
      %s277 = sphi 0, %s277
      %s279 = sphi 0, %s277
      %s280 = sphi 0, %s279
      %s294 = sphi 0, %s280
      %s298 = sphi 0, %s298
      %s300 = sphi 0, %s298
      %s301 = sphi 0, %s300
      %s315 = sphi 0, %s301
      %s319 = sphi 0, %s319
      %s321 = sphi 0, %s319
      %s322 = sphi 0, %s321
      %s336 = sphi 0, %s322
      %s342 = sphi 0, %s344
      %s345 = sphi 0, %s342
      %s346 = sphi 0, %s345
      %s362 = sphi 0, %s346
    $region4: #{tpu_custom_call.1} parent=1 // loop_header_branch
      %36 = sbr.rel (%p34) target = $region8
    $region5: #{tpu_custom_call.1} parent=1 // loop_body
      %s38 = ssub.s32 %s33, 1
      %s39 = ssub.s32 %s33, 2
      %s40 = sadd.s32 %s33, 1
      %s41 = ssub.s32 %s33, %s40
      %p42 = scmp.eq.s32.totalorder %s41, 0
      %s44 = sadd.s32 %s43, 1
      %s45 = scalar_select %p42, %s43, %s44
      %p48 = pneg %p42
      %p49 = scmp.eq.s32.totalorder %s33, 1
      %p50 = por %p48, %p49
      %p51 = scmp.ne.s32.totalorder %s43, %s46
      %p52 = scmp.eq.s32.totalorder %s33, 0
      %p53 = por %p51, %p52
      %p54 = scmp.ne.s32.totalorder %s43, %s46
      %p55 = scmp.eq.s32.totalorder %s38, 1
      %p56 = por %p54, %p55
      %p57 = scmp.ne.s32.totalorder %s46, %s47
      %p58 = scmp.eq.s32.totalorder %s38, 0
      %p59 = por %p57, %p58
      %p60 = scmp.ne.s32.totalorder %s46, %s47
      %p61 = scmp.eq.s32.totalorder %s39, 1
      %p62 = por %p60, %p61
      %p64 = scmp.ne.s32.totalorder %s47, %s63
      %p65 = scmp.eq.s32.totalorder %s39, 0
      %p66 = por %p64, %p65
      %s68 = sadd.s32 %s67, 1
      %p71 = scmp.eq.s32.totalorder %s33, 1
      %p72 = scmp.ne.s32.totalorder %s67, %s69
      %p73 = scmp.eq.s32.totalorder %s33, 0
      %p74 = por %p72, %p73
      %p75 = scmp.ne.s32.totalorder %s67, %s69
      %p76 = scmp.eq.s32.totalorder %s38, 1
      %p77 = por %p75, %p76
      %p78 = scmp.ne.s32.totalorder %s69, %s70
      %p79 = scmp.eq.s32.totalorder %s38, 0
      %p80 = por %p78, %p79
      %p81 = scmp.ne.s32.totalorder %s69, %s70
      %p82 = scmp.eq.s32.totalorder %s39, 1
      %p83 = por %p81, %p82
      %p85 = scmp.ne.s32.totalorder %s70, %s84
      %p86 = scmp.eq.s32.totalorder %s39, 0
      %p87 = por %p85, %p86
      %s89 = sadd.s32 %s88, 1
      %p92 = scmp.eq.s32.totalorder %s33, 1
      %p93 = scmp.ne.s32.totalorder %s88, %s90
      %p94 = scmp.eq.s32.totalorder %s33, 0
      %p95 = por %p93, %p94
      %p96 = scmp.ne.s32.totalorder %s88, %s90
      %p97 = scmp.eq.s32.totalorder %s38, 1
      %p98 = por %p96, %p97
      %p99 = scmp.ne.s32.totalorder %s90, %s91
      %p100 = scmp.eq.s32.totalorder %s38, 0
      %p101 = por %p99, %p100
      %p102 = scmp.ne.s32.totalorder %s90, %s91
      %p103 = scmp.eq.s32.totalorder %s39, 1
      %p104 = por %p102, %p103
      %p106 = scmp.ne.s32.totalorder %s91, %s105
      %p107 = scmp.eq.s32.totalorder %s39, 0
      %p108 = por %p106, %p107
      %s110 = sadd.s32 %s109, 1
      %p113 = scmp.eq.s32.totalorder %s33, 1
      %p114 = scmp.ne.s32.totalorder %s109, %s111
      %p115 = scmp.eq.s32.totalorder %s33, 0
      %p116 = por %p114, %p115
      %p117 = scmp.ne.s32.totalorder %s109, %s111
      %p118 = scmp.eq.s32.totalorder %s38, 1
      %p119 = por %p117, %p118
      %p120 = scmp.ne.s32.totalorder %s111, %s112
      %p121 = scmp.eq.s32.totalorder %s38, 0
      %p122 = por %p120, %p121
      %p123 = scmp.ne.s32.totalorder %s111, %s112
      %p124 = scmp.eq.s32.totalorder %s39, 1
      %p125 = por %p123, %p124
      %p127 = scmp.ne.s32.totalorder %s112, %s126
      %p128 = scmp.eq.s32.totalorder %s39, 0
      %p129 = por %p127, %p128
      %s131 = sadd.s32 %s130, 1
      %p134 = scmp.eq.s32.totalorder %s33, 1
      %p135 = scmp.ne.s32.totalorder %s130, %s132
      %p136 = scmp.eq.s32.totalorder %s33, 0
      %p137 = por %p135, %p136
      %p138 = scmp.ne.s32.totalorder %s130, %s132
      %p139 = scmp.eq.s32.totalorder %s38, 1
      %p140 = por %p138, %p139
      %p141 = scmp.ne.s32.totalorder %s132, %s133
      %p142 = scmp.eq.s32.totalorder %s38, 0
      %p143 = por %p141, %p142
      %p144 = scmp.ne.s32.totalorder %s132, %s133
      %p145 = scmp.eq.s32.totalorder %s39, 1
      %p146 = por %p144, %p145
      %p148 = scmp.ne.s32.totalorder %s133, %s147
      %p149 = scmp.eq.s32.totalorder %s39, 0
      %p150 = por %p148, %p149
      %s152 = sadd.s32 %s151, 1
      %p155 = scmp.eq.s32.totalorder %s33, 1
      %p156 = scmp.ne.s32.totalorder %s151, %s153
      %p157 = scmp.eq.s32.totalorder %s33, 0
      %p158 = por %p156, %p157
      %p159 = scmp.ne.s32.totalorder %s151, %s153
      %p160 = scmp.eq.s32.totalorder %s38, 1
      %p161 = por %p159, %p160
      %p162 = scmp.ne.s32.totalorder %s153, %s154
      %p163 = scmp.eq.s32.totalorder %s38, 0
      %p164 = por %p162, %p163
      %p165 = scmp.ne.s32.totalorder %s153, %s154
      %p166 = scmp.eq.s32.totalorder %s39, 1
      %p167 = por %p165, %p166
      %p169 = scmp.ne.s32.totalorder %s154, %s168
      %p170 = scmp.eq.s32.totalorder %s39, 0
      %p171 = por %p169, %p170
      %s173 = sadd.s32 %s172, 1
      %p176 = scmp.eq.s32.totalorder %s33, 1
      %p177 = scmp.ne.s32.totalorder %s172, %s174
      %p178 = scmp.eq.s32.totalorder %s33, 0
      %p179 = por %p177, %p178
      %p180 = scmp.ne.s32.totalorder %s172, %s174
      %p181 = scmp.eq.s32.totalorder %s38, 1
      %p182 = por %p180, %p181
      %p183 = scmp.ne.s32.totalorder %s174, %s175
      %p184 = scmp.eq.s32.totalorder %s38, 0
      %p185 = por %p183, %p184
      %p186 = scmp.ne.s32.totalorder %s174, %s175
      %p187 = scmp.eq.s32.totalorder %s39, 1
      %p188 = por %p186, %p187
      %p190 = scmp.ne.s32.totalorder %s175, %s189
      %p191 = scmp.eq.s32.totalorder %s39, 0
      %p192 = por %p190, %p191
      %s194 = sadd.s32 %s193, 1
      %p197 = scmp.eq.s32.totalorder %s33, 1
      %p198 = scmp.ne.s32.totalorder %s193, %s195
      %p199 = scmp.eq.s32.totalorder %s33, 0
      %p200 = por %p198, %p199
      %p201 = scmp.ne.s32.totalorder %s193, %s195
      %p202 = scmp.eq.s32.totalorder %s38, 1
      %p203 = por %p201, %p202
      %p204 = scmp.ne.s32.totalorder %s195, %s196
      %p205 = scmp.eq.s32.totalorder %s38, 0
      %p206 = por %p204, %p205
      %p207 = scmp.ne.s32.totalorder %s195, %s196
      %p208 = scmp.eq.s32.totalorder %s39, 1
      %p209 = por %p207, %p208
      %p211 = scmp.ne.s32.totalorder %s196, %s210
      %p212 = scmp.eq.s32.totalorder %s39, 0
      %p213 = por %p211, %p212
      %s215 = sadd.s32 %s214, 1
      %p218 = scmp.eq.s32.totalorder %s33, 1
      %p219 = scmp.ne.s32.totalorder %s214, %s216
      %p220 = scmp.eq.s32.totalorder %s33, 0
      %p221 = por %p219, %p220
      %p222 = scmp.ne.s32.totalorder %s214, %s216
      %p223 = scmp.eq.s32.totalorder %s38, 1
      %p224 = por %p222, %p223
      %p225 = scmp.ne.s32.totalorder %s216, %s217
      %p226 = scmp.eq.s32.totalorder %s38, 0
      %p227 = por %p225, %p226
      %p228 = scmp.ne.s32.totalorder %s216, %s217
      %p229 = scmp.eq.s32.totalorder %s39, 1
      %p230 = por %p228, %p229
      %p232 = scmp.ne.s32.totalorder %s217, %s231
      %p233 = scmp.eq.s32.totalorder %s39, 0
      %p234 = por %p232, %p233
      %s236 = sadd.s32 %s235, 1
      %p239 = scmp.eq.s32.totalorder %s33, 1
      %p240 = scmp.ne.s32.totalorder %s235, %s237
      %p241 = scmp.eq.s32.totalorder %s33, 0
      %p242 = por %p240, %p241
      %p243 = scmp.ne.s32.totalorder %s235, %s237
      %p244 = scmp.eq.s32.totalorder %s38, 1
      %p245 = por %p243, %p244
      %p246 = scmp.ne.s32.totalorder %s237, %s238
      %p247 = scmp.eq.s32.totalorder %s38, 0
      %p248 = por %p246, %p247
      %p249 = scmp.ne.s32.totalorder %s237, %s238
      %p250 = scmp.eq.s32.totalorder %s39, 1
      %p251 = por %p249, %p250
      %p253 = scmp.ne.s32.totalorder %s238, %s252
      %p254 = scmp.eq.s32.totalorder %s39, 0
      %p255 = por %p253, %p254
      %s257 = sadd.s32 %s256, 1
      %p260 = scmp.eq.s32.totalorder %s33, 1
      %p261 = scmp.ne.s32.totalorder %s256, %s258
      %p262 = scmp.eq.s32.totalorder %s33, 0
      %p263 = por %p261, %p262
      %p264 = scmp.ne.s32.totalorder %s256, %s258
      %p265 = scmp.eq.s32.totalorder %s38, 1
      %p266 = por %p264, %p265
      %p267 = scmp.ne.s32.totalorder %s258, %s259
      %p268 = scmp.eq.s32.totalorder %s38, 0
      %p269 = por %p267, %p268
      %p270 = scmp.ne.s32.totalorder %s258, %s259
      %p271 = scmp.eq.s32.totalorder %s39, 1
      %p272 = por %p270, %p271
      %p274 = scmp.ne.s32.totalorder %s259, %s273
      %p275 = scmp.eq.s32.totalorder %s39, 0
      %p276 = por %p274, %p275
      %s278 = sadd.s32 %s277, 1
      %p281 = scmp.eq.s32.totalorder %s33, 1
      %p282 = scmp.ne.s32.totalorder %s277, %s279
      %p283 = scmp.eq.s32.totalorder %s33, 0
      %p284 = por %p282, %p283
      %p285 = scmp.ne.s32.totalorder %s277, %s279
      %p286 = scmp.eq.s32.totalorder %s38, 1
      %p287 = por %p285, %p286
      %p288 = scmp.ne.s32.totalorder %s279, %s280
      %p289 = scmp.eq.s32.totalorder %s38, 0
      %p290 = por %p288, %p289
      %p291 = scmp.ne.s32.totalorder %s279, %s280
      %p292 = scmp.eq.s32.totalorder %s39, 1
      %p293 = por %p291, %p292
      %p295 = scmp.ne.s32.totalorder %s280, %s294
      %p296 = scmp.eq.s32.totalorder %s39, 0
      %p297 = por %p295, %p296
      %s299 = sadd.s32 %s298, 1
      %p302 = scmp.eq.s32.totalorder %s33, 1
      %p303 = scmp.ne.s32.totalorder %s298, %s300
      %p304 = scmp.eq.s32.totalorder %s33, 0
      %p305 = por %p303, %p304
      %p306 = scmp.ne.s32.totalorder %s298, %s300
      %p307 = scmp.eq.s32.totalorder %s38, 1
      %p308 = por %p306, %p307
      %p309 = scmp.ne.s32.totalorder %s300, %s301
      %p310 = scmp.eq.s32.totalorder %s38, 0
      %p311 = por %p309, %p310
      %p312 = scmp.ne.s32.totalorder %s300, %s301
      %p313 = scmp.eq.s32.totalorder %s39, 1
      %p314 = por %p312, %p313
      %p316 = scmp.ne.s32.totalorder %s301, %s315
      %p317 = scmp.eq.s32.totalorder %s39, 0
      %p318 = por %p316, %p317
      %s320 = sadd.s32 %s319, 1
      %p323 = scmp.eq.s32.totalorder %s33, 1
      %p324 = scmp.ne.s32.totalorder %s319, %s321
      %p325 = scmp.eq.s32.totalorder %s33, 0
      %p326 = por %p324, %p325
      %p327 = scmp.ne.s32.totalorder %s319, %s321
      %p328 = scmp.eq.s32.totalorder %s38, 1
      %p329 = por %p327, %p328
      %p330 = scmp.ne.s32.totalorder %s321, %s322
      %p331 = scmp.eq.s32.totalorder %s38, 0
      %p332 = por %p330, %p331
      %p333 = scmp.ne.s32.totalorder %s321, %s322
      %p334 = scmp.eq.s32.totalorder %s39, 1
      %p335 = por %p333, %p334
      %p337 = scmp.ne.s32.totalorder %s322, %s336
      %p338 = scmp.eq.s32.totalorder %s39, 0
      %p339 = por %p337, %p338
      %s340 = ssub.s32 %s33, %s40
      %p341 = scmp.eq.s32.totalorder %s340, 0
      %s343 = sadd.s32 %s342, 1
      %s344 = scalar_select %p341, %s342, %s343
      %p347 = pneg %p341
      %p348 = scmp.eq.s32.totalorder %s33, 1
      %p349 = por %p347, %p348
      %p350 = scmp.ne.s32.totalorder %s342, %s345
      %p351 = scmp.eq.s32.totalorder %s33, 0
      %p352 = por %p350, %p351
      %p353 = scmp.ne.s32.totalorder %s342, %s345
      %p354 = scmp.eq.s32.totalorder %s38, 1
      %p355 = por %p353, %p354
      %p356 = scmp.ne.s32.totalorder %s345, %s346
      %p357 = scmp.eq.s32.totalorder %s38, 0
      %p358 = por %p356, %p357
      %p359 = scmp.ne.s32.totalorder %s345, %s346
      %p360 = scmp.eq.s32.totalorder %s39, 1
      %p361 = por %p359, %p360
      %p363 = scmp.ne.s32.totalorder %s346, %s362
      %p364 = scmp.eq.s32.totalorder %s39, 0
      %p365 = por %p363, %p364
      %p366 = scmp.le.s32.totalorder 1, %s33
      %p367 = scmp.lt.s32.totalorder %s33, 3
      %p368 = pnand %p366, %p367
      %p369 = pneg %p368
      // Predicated region
      $region9: #{tpu_custom_call.1} parent=5 // pred_check
        _
      $region10: #{tpu_custom_call.1} parent=5 // pred_check_branch
        %371 = sbr.rel (%p368) target = $region12
      $region11: #{tpu_custom_call.1} parent=5 // pred_region
        %s372 = ssub.s32 %s33, 1
        // Predicated region
        $region13: #{tpu_custom_call.1} parent=11 // pred_check
          %p373 = pneg %p80
        $region14: #{tpu_custom_call.1} parent=11 // pred_check_branch
          %375 = sbr.rel (%p373) target = $region16
        $region15: #{tpu_custom_call.1} parent=11 // pred_region
          %s377 = ssub.s32 7040, 7040
          %378 = vsyncadd [#allocation8], %s377
          %s379 = sshll.u32 [#allocation7], 4
          %s380 = int_to_ptr.vmem [resolvable:$true] %s379
          %385 = dma.hbm_to_vmem [thread:$0]  %s1, 7040, %s380, [#allocation8], 128, 128, 8
        $region16: #{tpu_custom_call.1} parent=11 // pred_fallthru
          _
        // Predicated region
        $region17: #{tpu_custom_call.1} parent=11 // pred_check
          %p386 = pneg %p101
        $region18: #{tpu_custom_call.1} parent=11 // pred_check_branch
          %388 = sbr.rel (%p386) target = $region20
        $region19: #{tpu_custom_call.1} parent=11 // pred_region
          %s390 = ssub.s32 6144, 6144
          %391 = vsyncadd [#allocation8], %s390
          %s392 = sshll.u32 [#allocation9], 4
          %s393 = int_to_ptr.vmem [resolvable:$true] %s392
          %398 = dma.hbm_to_vmem [thread:$0]  %s2, 6144, %s393, [#allocation8], 128, 128, 8
        $region20: #{tpu_custom_call.1} parent=11 // pred_fallthru
          _
        // Predicated region
        $region21: #{tpu_custom_call.1} parent=11 // pred_check
          %p399 = pneg %p122
        $region22: #{tpu_custom_call.1} parent=11 // pred_check_branch
          %401 = sbr.rel (%p399) target = $region24
        $region23: #{tpu_custom_call.1} parent=11 // pred_region
          %s403 = ssub.s32 16, 16
          %404 = vsyncadd [#allocation11], %s403
          %s406 = sshll.u32 [#allocation10], 4
          %s407 = int_to_ptr.vmem [resolvable:$true] %s406
          %409 = dma.hbm_to_vmem [thread:$0]  %s3, 16, %s407, [#allocation11]
        $region24: #{tpu_custom_call.1} parent=11 // pred_fallthru
          _
        // Predicated region
        $region25: #{tpu_custom_call.1} parent=11 // pred_check
          %p410 = pneg %p143
        $region26: #{tpu_custom_call.1} parent=11 // pred_check_branch
          %412 = sbr.rel (%p410) target = $region28
        $region27: #{tpu_custom_call.1} parent=11 // pred_region
          %s414 = ssub.s32 16, 16
          %415 = vsyncadd [#allocation11], %s414
          %s417 = sshll.u32 [#allocation12], 4
          %s418 = int_to_ptr.vmem [resolvable:$true] %s417
          %420 = dma.hbm_to_vmem [thread:$0]  %s4, 16, %s418, [#allocation11]
        $region28: #{tpu_custom_call.1} parent=11 // pred_fallthru
          _
        // Predicated region
        $region29: #{tpu_custom_call.1} parent=11 // pred_check
          %p421 = pneg %p164
        $region30: #{tpu_custom_call.1} parent=11 // pred_check_branch
          %423 = sbr.rel (%p421) target = $region32
        $region31: #{tpu_custom_call.1} parent=11 // pred_region
          %s425 = ssub.s32 2304, 2304
          %426 = vsyncadd [#allocation14], %s425
          %s427 = sshll.u32 [#allocation13], 4
          %s428 = int_to_ptr.vmem [resolvable:$true] %s427
          %433 = dma.hbm_to_vmem [thread:$0]  %s5, 2304, %s428, [#allocation14], 64, 64, 4
        $region32: #{tpu_custom_call.1} parent=11 // pred_fallthru
          _
        // Predicated region
        $region33: #{tpu_custom_call.1} parent=11 // pred_check
          %p434 = pneg %p185
        $region34: #{tpu_custom_call.1} parent=11 // pred_check_branch
          %436 = sbr.rel (%p434) target = $region36
        $region35: #{tpu_custom_call.1} parent=11 // pred_region
          %s438 = ssub.s32 16, 16
          %439 = vsyncadd [#allocation14], %s438
          %s441 = sshll.u32 [#allocation15], 4
          %s442 = int_to_ptr.vmem [resolvable:$true] %s441
          %444 = dma.hbm_to_vmem [thread:$0]  %s6, 16, %s442, [#allocation14]
        $region36: #{tpu_custom_call.1} parent=11 // pred_fallthru
          _
        // Predicated region
        $region37: #{tpu_custom_call.1} parent=11 // pred_check
          %p445 = pneg %p206
        $region38: #{tpu_custom_call.1} parent=11 // pred_check_branch
          %447 = sbr.rel (%p445) target = $region40
        $region39: #{tpu_custom_call.1} parent=11 // pred_region
          %s449 = ssub.s32 16, 16
          %450 = vsyncadd [#allocation17], %s449
          %s452 = sshll.u32 [#allocation16], 4
          %s453 = int_to_ptr.vmem [resolvable:$true] %s452
          %455 = dma.hbm_to_vmem [thread:$0]  %s7, 16, %s453, [#allocation17]
        $region40: #{tpu_custom_call.1} parent=11 // pred_fallthru
          _
        // Predicated region
        $region41: #{tpu_custom_call.1} parent=11 // pred_check
          %p456 = pneg %p227
        $region42: #{tpu_custom_call.1} parent=11 // pred_check_branch
          %458 = sbr.rel (%p456) target = $region44
        $region43: #{tpu_custom_call.1} parent=11 // pred_region
          %s460 = ssub.s32 16, 16
          %461 = vsyncadd [#allocation17], %s460
          %s463 = sshll.u32 [#allocation18], 4
          %s464 = int_to_ptr.vmem [resolvable:$true] %s463
          %466 = dma.hbm_to_vmem [thread:$0]  %s8, 16, %s464, [#allocation17]
        $region44: #{tpu_custom_call.1} parent=11 // pred_fallthru
          _
        // Predicated region
        $region45: #{tpu_custom_call.1} parent=11 // pred_check
          %p467 = pneg %p248
        $region46: #{tpu_custom_call.1} parent=11 // pred_check_branch
          %469 = sbr.rel (%p467) target = $region48
        $region47: #{tpu_custom_call.1} parent=11 // pred_region
          %s471 = ssub.s32 4608, 4608
          %472 = vsyncadd [#allocation20], %s471
          %s473 = sshll.u32 [#allocation19], 4
          %s474 = int_to_ptr.vmem [resolvable:$true] %s473
          %479 = dma.hbm_to_vmem [thread:$0]  %s9, 4608, %s474, [#allocation20], 64, 64, 4
        $region48: #{tpu_custom_call.1} parent=11 // pred_fallthru
          _
        // Predicated region
        $region49: #{tpu_custom_call.1} parent=11 // pred_check
          %p480 = pneg %p269
        $region50: #{tpu_custom_call.1} parent=11 // pred_check_branch
          %482 = sbr.rel (%p480) target = $region52
        $region51: #{tpu_custom_call.1} parent=11 // pred_region
          %s484 = ssub.s32 16, 16
          %485 = vsyncadd [#allocation20], %s484
          %s487 = sshll.u32 [#allocation21], 4
          %s488 = int_to_ptr.vmem [resolvable:$true] %s487
          %490 = dma.hbm_to_vmem [thread:$0]  %s10, 16, %s488, [#allocation20]
        $region52: #{tpu_custom_call.1} parent=11 // pred_fallthru
          _
        // Predicated region
        $region53: #{tpu_custom_call.1} parent=11 // pred_check
          %p491 = pneg %p290
        $region54: #{tpu_custom_call.1} parent=11 // pred_check_branch
          %493 = sbr.rel (%p491) target = $region56
        $region55: #{tpu_custom_call.1} parent=11 // pred_region
          %s495 = ssub.s32 1024, 1024
          %496 = vsyncadd [#allocation23], %s495
          %s497 = sshll.u32 [#allocation22], 4
          %s498 = int_to_ptr.vmem [resolvable:$true] %s497
          %503 = dma.hbm_to_vmem [thread:$0]  %s11, 1024, %s498, [#allocation23], 128, 128, 8
        $region56: #{tpu_custom_call.1} parent=11 // pred_fallthru
          _
        // Predicated region
        $region57: #{tpu_custom_call.1} parent=11 // pred_check
          %p504 = pneg %p311
        $region58: #{tpu_custom_call.1} parent=11 // pred_check_branch
          %506 = sbr.rel (%p504) target = $region60
        $region59: #{tpu_custom_call.1} parent=11 // pred_region
          %s508 = ssub.s32 256, 256
          %509 = vsyncadd [#allocation23], %s508
          %s510 = sshll.u32 [#allocation24], 4
          %s511 = int_to_ptr.vmem [resolvable:$true] %s510
          %516 = dma.hbm_to_vmem [thread:$0]  %s12, 256, %s511, [#allocation23], 64, 64, 4
        $region60: #{tpu_custom_call.1} parent=11 // pred_fallthru
          _
        // Predicated region
        $region61: #{tpu_custom_call.1} parent=11 // pred_check
          %p517 = pneg %p332
        $region62: #{tpu_custom_call.1} parent=11 // pred_check_branch
          %519 = sbr.rel (%p517) target = $region64
        $region63: #{tpu_custom_call.1} parent=11 // pred_region
          %s521 = ssub.s32 16, 16
          %522 = vsyncadd [#allocation26], %s521
          %s524 = sshll.u32 [#allocation25], 4
          %s525 = int_to_ptr.vmem [resolvable:$true] %s524
          %527 = dma.hbm_to_vmem [thread:$0]  %s13, 16, %s525, [#allocation26]
        $region64: #{tpu_custom_call.1} parent=11 // pred_fallthru
          _
      $region12: #{tpu_custom_call.1} parent=5 // pred_fallthru
        _
      %p528 = scmp.lt.s32.totalorder %s33, 2
      // Predicated region
      $region65: #{tpu_custom_call.1} parent=5 // pred_check
        %p529 = pneg %p528
      $region66: #{tpu_custom_call.1} parent=5 // pred_check_branch
        %531 = sbr.rel (%p529) target = $region68
      $region67: #{tpu_custom_call.1} parent=5 // pred_region
        // Predicated region
        $region69: #{tpu_custom_call.1} parent=67 // pred_check
          %p532 = pneg %p53
        $region70: #{tpu_custom_call.1} parent=67 // pred_check_branch
          %534 = sbr.rel (%p532) target = $region72
        $region71: #{tpu_custom_call.1} parent=67 // pred_region
          %s535 = sand.u32 %s43, 1
          %s536 = scalar_lea.sflag [#allocation5], %s535
          %s537 = sand.u32 %s43, 1
          %s538 = smul.addr %s537, 440
          %s539 = scalar_lea.vmem [#allocation4], %s538
          %s541 = ssub.s32 7040, 7040
          %542 = vsyncadd %s536, %s541
          %s543 = smul.addr %s33, 55
          %s544 = smul.addr %s543, 128
          %s545 = scalar_lea.hbm %s0, %s544
          %s546 = sshll.u32 %s539, 4
          %s547 = int_to_ptr.vmem [resolvable:$true] %s546
          %552 = dma.hbm_to_vmem [thread:$0]  %s545, 7040, %s547, %s536, 128, 128, 8
        $region72: #{tpu_custom_call.1} parent=67 // pred_fallthru
          _
      $region68: #{tpu_custom_call.1} parent=5 // pred_fallthru
        _
      %p553 = scmp.le.s32.totalorder 1, %s33
      %p554 = scmp.lt.s32.totalorder %s33, 3
      %p555 = pnand %p553, %p554
      %p556 = pneg %p555
      // Predicated region
      $region73: #{tpu_custom_call.1} parent=5 // pred_check
        _
      $region74: #{tpu_custom_call.1} parent=5 // pred_check_branch
        %558 = sbr.rel (%p555) target = $region76
      $region75: #{tpu_custom_call.1} parent=5 // pred_region
        %s559 = ssub.s32 %s33, 1
        %s560 = sand.u32 %s46, 1
        %s561 = scalar_lea.sflag [#allocation5], %s560
        %s562 = sand.u32 %s46, 1
        %s563 = smul.addr %s562, 440
        %s564 = scalar_lea.vmem [#allocation4], %s563
        // Predicated region
        $region77: #{tpu_custom_call.1} parent=75 // pred_check
          %p565 = pneg %p59
        $region78: #{tpu_custom_call.1} parent=75 // pred_check_branch
          %567 = sbr.rel (%p565) target = $region80
        $region79: #{tpu_custom_call.1} parent=75 // pred_region
          %568 = dma.done %s561, 7040
        $region80: #{tpu_custom_call.1} parent=75 // pred_fallthru
          _
        // Predicated region
        $region81: #{tpu_custom_call.1} parent=75 // pred_check
          %p569 = pneg %p80
        $region82: #{tpu_custom_call.1} parent=75 // pred_check_branch
          %571 = sbr.rel (%p569) target = $region84
        $region83: #{tpu_custom_call.1} parent=75 // pred_region
          %572 = dma.done [#allocation8], 7040
        $region84: #{tpu_custom_call.1} parent=75 // pred_fallthru
          _
        // Predicated region
        $region85: #{tpu_custom_call.1} parent=75 // pred_check
          %p573 = pneg %p101
        $region86: #{tpu_custom_call.1} parent=75 // pred_check_branch
          %575 = sbr.rel (%p573) target = $region88
        $region87: #{tpu_custom_call.1} parent=75 // pred_region
          %576 = dma.done [#allocation8], 6144
        $region88: #{tpu_custom_call.1} parent=75 // pred_fallthru
          _
        // Predicated region
        $region89: #{tpu_custom_call.1} parent=75 // pred_check
          %p577 = pneg %p122
        $region90: #{tpu_custom_call.1} parent=75 // pred_check_branch
          %579 = sbr.rel (%p577) target = $region92
        $region91: #{tpu_custom_call.1} parent=75 // pred_region
          %580 = dma.done [#allocation11], 16
        $region92: #{tpu_custom_call.1} parent=75 // pred_fallthru
          _
        // Predicated region
        $region93: #{tpu_custom_call.1} parent=75 // pred_check
          %p581 = pneg %p143
        $region94: #{tpu_custom_call.1} parent=75 // pred_check_branch
          %583 = sbr.rel (%p581) target = $region96
        $region95: #{tpu_custom_call.1} parent=75 // pred_region
          %584 = dma.done [#allocation11], 16
        $region96: #{tpu_custom_call.1} parent=75 // pred_fallthru
          _
        // Predicated region
        $region97: #{tpu_custom_call.1} parent=75 // pred_check
          %p585 = pneg %p164
        $region98: #{tpu_custom_call.1} parent=75 // pred_check_branch
          %587 = sbr.rel (%p585) target = $region100
        $region99: #{tpu_custom_call.1} parent=75 // pred_region
          %588 = dma.done [#allocation14], 2304
        $region100: #{tpu_custom_call.1} parent=75 // pred_fallthru
          _
        // Predicated region
        $region101: #{tpu_custom_call.1} parent=75 // pred_check
          %p589 = pneg %p185
        $region102: #{tpu_custom_call.1} parent=75 // pred_check_branch
          %591 = sbr.rel (%p589) target = $region104
        $region103: #{tpu_custom_call.1} parent=75 // pred_region
          %592 = dma.done [#allocation14], 16
        $region104: #{tpu_custom_call.1} parent=75 // pred_fallthru
          _
        // Predicated region
        $region105: #{tpu_custom_call.1} parent=75 // pred_check
          %p593 = pneg %p206
        $region106: #{tpu_custom_call.1} parent=75 // pred_check_branch
          %595 = sbr.rel (%p593) target = $region108
        $region107: #{tpu_custom_call.1} parent=75 // pred_region
          %596 = dma.done [#allocation17], 16
        $region108: #{tpu_custom_call.1} parent=75 // pred_fallthru
          _
        // Predicated region
        $region109: #{tpu_custom_call.1} parent=75 // pred_check
          %p597 = pneg %p227
        $region110: #{tpu_custom_call.1} parent=75 // pred_check_branch
          %599 = sbr.rel (%p597) target = $region112
        $region111: #{tpu_custom_call.1} parent=75 // pred_region
          %600 = dma.done [#allocation17], 16
        $region112: #{tpu_custom_call.1} parent=75 // pred_fallthru
          _
        // Predicated region
        $region113: #{tpu_custom_call.1} parent=75 // pred_check
          %p601 = pneg %p248
        $region114: #{tpu_custom_call.1} parent=75 // pred_check_branch
          %603 = sbr.rel (%p601) target = $region116
        $region115: #{tpu_custom_call.1} parent=75 // pred_region
          %604 = dma.done [#allocation20], 4608
        $region116: #{tpu_custom_call.1} parent=75 // pred_fallthru
          _
        // Predicated region
        $region117: #{tpu_custom_call.1} parent=75 // pred_check
          %p605 = pneg %p269
        $region118: #{tpu_custom_call.1} parent=75 // pred_check_branch
          %607 = sbr.rel (%p605) target = $region120
        $region119: #{tpu_custom_call.1} parent=75 // pred_region
          %608 = dma.done [#allocation20], 16
        $region120: #{tpu_custom_call.1} parent=75 // pred_fallthru
          _
        // Predicated region
        $region121: #{tpu_custom_call.1} parent=75 // pred_check
          %p609 = pneg %p290
        $region122: #{tpu_custom_call.1} parent=75 // pred_check_branch
          %611 = sbr.rel (%p609) target = $region124
        $region123: #{tpu_custom_call.1} parent=75 // pred_region
          %612 = dma.done [#allocation23], 1024
        $region124: #{tpu_custom_call.1} parent=75 // pred_fallthru
          _
        // Predicated region
        $region125: #{tpu_custom_call.1} parent=75 // pred_check
          %p613 = pneg %p311
        $region126: #{tpu_custom_call.1} parent=75 // pred_check_branch
          %615 = sbr.rel (%p613) target = $region128
        $region127: #{tpu_custom_call.1} parent=75 // pred_region
          %616 = dma.done [#allocation23], 256
        $region128: #{tpu_custom_call.1} parent=75 // pred_fallthru
          _
        // Predicated region
        $region129: #{tpu_custom_call.1} parent=75 // pred_check
          %p617 = pneg %p332
        $region130: #{tpu_custom_call.1} parent=75 // pred_check_branch
          %619 = sbr.rel (%p617) target = $region132
        $region131: #{tpu_custom_call.1} parent=75 // pred_region
          %620 = dma.done [#allocation26], 16
        $region132: #{tpu_custom_call.1} parent=75 // pred_fallthru
          _
        %s621 = sand.u32 %s46, 1
        %s622 = scalar_lea.sflag [#allocation5], %s621
        %s623 = sand.u32 %s46, 1
        %s624 = smul.addr %s623, 440
        %s625 = scalar_lea.vmem [#allocation4], %s624
        %p626 = pneg %p59
        %p627 = pneg %p56
        %p628 = pneg %p80
        %p629 = pneg %p77
        %p630 = pneg %p101
        %p631 = pneg %p98
        %p632 = pneg %p122
        %p633 = pneg %p119
        %p634 = pneg %p143
        %p635 = pneg %p140
        %p636 = pneg %p164
        %p637 = pneg %p161
        %p638 = pneg %p185
        %p639 = pneg %p182
        %p640 = pneg %p206
        %p641 = pneg %p203
        %p642 = pneg %p227
        %p643 = pneg %p224
        %p644 = pneg %p248
        %p645 = pneg %p245
        %p646 = pneg %p269
        %p647 = pneg %p266
        %p648 = pneg %p290
        %p649 = pneg %p287
        %p650 = pneg %p311
        %p651 = pneg %p308
        %p652 = pneg %p332
        %p653 = pneg %p329
        %p654 = pneg %p358
        %p655 = pneg %p355
        %s656 = sand.u32 %s345, 1
        %s657 = scalar_lea.sflag [#allocation6], %s656
        %s658 = sand.u32 %s345, 1
        %s659 = smul.addr %s658, 320
        %s660 = scalar_lea.vmem [#allocation27], %s659
        %v662 = vld [vmem:[%s564] sm:$0xff]
        %v663 = vld [vmem:[%s564 + $0x8] sm:$0xff]
        %v664 = vld [vmem:[%s564 + $0x10] sm:$0xff]
        %v665 = vld [vmem:[%s564 + $0x18] sm:$0xff]
        %v666 = vld [vmem:[%s564 + $0x20] sm:$0xff]
        %v667 = vld [vmem:[%s564 + $0x28] sm:$0xff]
        %v668 = vld [vmem:[%s564 + $0x30] sm:$0xff]
        %v669 = vld [vmem:[%s564 + $0x38] sm:$0xff]
        %v670 = vld [vmem:[%s564 + $0x40] sm:$0xff]
        %v671 = vld [vmem:[%s564 + $0x48] sm:$0xff]
        %v672 = vld [vmem:[%s564 + $0x50] sm:$0xff]
        %v673 = vld [vmem:[%s564 + $0x58] sm:$0xff]
        %v674 = vld [vmem:[%s564 + $0x60] sm:$0xff]
        %v675 = vld [vmem:[%s564 + $0x68] sm:$0xff]
        %v676 = vld [vmem:[%s564 + $0x70] sm:$0xff]
        %v677 = vld [vmem:[%s564 + $0x78] sm:$0xff]
        %v678 = vld [vmem:[%s564 + $0x80] sm:$0xff]
        %v679 = vld [vmem:[%s564 + $0x88] sm:$0xff]
        %v680 = vld [vmem:[%s564 + $0x90] sm:$0xff]
        %v681 = vld [vmem:[%s564 + $0x98] sm:$0xff]
        %v682 = vld [vmem:[%s564 + $0xa0] sm:$0xff]
        %v683 = vld [vmem:[%s564 + $0xa8] sm:$0xff]
        %v684 = vld [vmem:[%s564 + $0xb0] sm:$0xff]
        %v685 = vld [vmem:[%s564 + $0xb8] sm:$0xff]
        %v686 = vld [vmem:[%s564 + $0xc0] sm:$0xff]
        %v687 = vld [vmem:[%s564 + $0xc8] sm:$0xff]
        %v688 = vld [vmem:[%s564 + $0xd0] sm:$0xff]
        %v689 = vld [vmem:[%s564 + $0xd8] sm:$0xff]
        %v690 = vld [vmem:[%s564 + $0xe0] sm:$0xff]
        %v691 = vld [vmem:[%s564 + $0xe8] sm:$0xff]
        %v692 = vld [vmem:[%s564 + $0xf0] sm:$0xff]
        %v693 = vld [vmem:[%s564 + $0xf8] sm:$0xff]
        %v694 = vld [vmem:[%s564 + $0x100] sm:$0xff]
        %v695 = vld [vmem:[%s564 + $0x108] sm:$0xff]
        %v696 = vld [vmem:[%s564 + $0x110] sm:$0xff]
        %v697 = vld [vmem:[%s564 + $0x118] sm:$0xff]
        %v698 = vld [vmem:[%s564 + $0x120] sm:$0xff]
        %v699 = vld [vmem:[%s564 + $0x128] sm:$0xff]
        %v700 = vld [vmem:[%s564 + $0x130] sm:$0xff]
        %v701 = vld [vmem:[%s564 + $0x138] sm:$0xff]
        %v702 = vld [vmem:[%s564 + $0x140] sm:$0xff]
        %v703 = vld [vmem:[%s564 + $0x148] sm:$0xff]
        %v704 = vld [vmem:[%s564 + $0x150] sm:$0xff]
        %v705 = vld [vmem:[%s564 + $0x158] sm:$0xff]
        %v706 = vld [vmem:[%s564 + $0x160] sm:$0xff]
        %v707 = vld [vmem:[%s564 + $0x168] sm:$0xff]
        %v708 = vld [vmem:[%s564 + $0x170] sm:$0xff]
        %v709 = vld [vmem:[%s564 + $0x178] sm:$0xff]
        %v710 = vld [vmem:[%s564 + $0x180] sm:$0xff]
        %v711 = vld [vmem:[%s564 + $0x188] sm:$0xff]
        %v712 = vld [vmem:[%s564 + $0x190] sm:$0xff]
        %v713 = vld [vmem:[%s564 + $0x198] sm:$0xff]
        %v714 = vld [vmem:[%s564 + $0x1a0] sm:$0xff]
        %v715 = vld [vmem:[%s564 + $0x1a8] sm:$0xff]
        %v716 = vld [vmem:[%s564 + $0x1b0] sm:$0xff]
        %vm717 = vcmask 261120
        %v718 = vsel %vm717, %v662, 0.0
        %v719 = vsel %vm717, %v663, 0.0
        %v720 = vadd.f32 %v718, %v719
        %v721 = vsel %vm717, %v664, 0.0
        %v722 = vadd.f32 %v720, %v721
        %v723 = vsel %vm717, %v665, 0.0
        %v724 = vadd.f32 %v722, %v723
        %v725 = vsel %vm717, %v666, 0.0
        %v726 = vadd.f32 %v724, %v725
        %v727 = vsel %vm717, %v667, 0.0
        %v728 = vadd.f32 %v726, %v727
        %v729 = vsel %vm717, %v668, 0.0
        %v730 = vadd.f32 %v728, %v729
        %v731 = vsel %vm717, %v669, 0.0
        %v732 = vadd.f32 %v730, %v731
        %v733 = vsel %vm717, %v670, 0.0
        %v734 = vadd.f32 %v732, %v733
        %v735 = vsel %vm717, %v671, 0.0
        %v736 = vadd.f32 %v734, %v735
        %v737 = vsel %vm717, %v672, 0.0
        %v738 = vadd.f32 %v736, %v737
        %v739 = vsel %vm717, %v673, 0.0
        %v740 = vadd.f32 %v738, %v739
        %v741 = vsel %vm717, %v674, 0.0
        %v742 = vadd.f32 %v740, %v741
        %v743 = vsel %vm717, %v675, 0.0
        %v744 = vadd.f32 %v742, %v743
        %v745 = vsel %vm717, %v676, 0.0
        %v746 = vadd.f32 %v744, %v745
        %v747 = vsel %vm717, %v677, 0.0
        %v748 = vadd.f32 %v746, %v747
        %v749 = vsel %vm717, %v678, 0.0
        %v750 = vadd.f32 %v748, %v749
        %v751 = vsel %vm717, %v679, 0.0
        %v752 = vadd.f32 %v750, %v751
        %v753 = vsel %vm717, %v680, 0.0
        %v754 = vadd.f32 %v752, %v753
        %v755 = vsel %vm717, %v681, 0.0
        %v756 = vadd.f32 %v754, %v755
        %v757 = vsel %vm717, %v682, 0.0
        %v758 = vadd.f32 %v756, %v757
        %v759 = vsel %vm717, %v683, 0.0
        %v760 = vadd.f32 %v758, %v759
        %v761 = vsel %vm717, %v684, 0.0
        %v762 = vadd.f32 %v760, %v761
        %v763 = vsel %vm717, %v685, 0.0
        %v764 = vadd.f32 %v762, %v763
        %v765 = vsel %vm717, %v686, 0.0
        %v766 = vadd.f32 %v764, %v765
        %v767 = vsel %vm717, %v687, 0.0
        %v768 = vadd.f32 %v766, %v767
        %v769 = vsel %vm717, %v688, 0.0
        %v770 = vadd.f32 %v768, %v769
        %v771 = vsel %vm717, %v689, 0.0
        %v772 = vadd.f32 %v770, %v771
        %v773 = vsel %vm717, %v690, 0.0
        %v774 = vadd.f32 %v772, %v773
        %v775 = vsel %vm717, %v691, 0.0
        %v776 = vadd.f32 %v774, %v775
        %v777 = vsel %vm717, %v692, 0.0
        %v778 = vadd.f32 %v776, %v777
        %v779 = vsel %vm717, %v693, 0.0
        %v780 = vadd.f32 %v778, %v779
        %v781 = vsel %vm717, %v694, 0.0
        %v782 = vadd.f32 %v780, %v781
        %v783 = vsel %vm717, %v695, 0.0
        %v784 = vadd.f32 %v782, %v783
        %v785 = vsel %vm717, %v696, 0.0
        %v786 = vadd.f32 %v784, %v785
        %v787 = vsel %vm717, %v697, 0.0
        %v788 = vadd.f32 %v786, %v787
        %v789 = vsel %vm717, %v698, 0.0
        %v790 = vadd.f32 %v788, %v789
        %v791 = vsel %vm717, %v699, 0.0
        %v792 = vadd.f32 %v790, %v791
        %v793 = vsel %vm717, %v700, 0.0
        %v794 = vadd.f32 %v792, %v793
        %v795 = vsel %vm717, %v701, 0.0
        %v796 = vadd.f32 %v794, %v795
        %v797 = vsel %vm717, %v702, 0.0
        %v798 = vadd.f32 %v796, %v797
        %v799 = vsel %vm717, %v703, 0.0
        %v800 = vadd.f32 %v798, %v799
        %v801 = vsel %vm717, %v704, 0.0
        %v802 = vadd.f32 %v800, %v801
        %v803 = vsel %vm717, %v705, 0.0
        %v804 = vadd.f32 %v802, %v803
        %v805 = vsel %vm717, %v706, 0.0
        %v806 = vadd.f32 %v804, %v805
        %v807 = vsel %vm717, %v707, 0.0
        %v808 = vadd.f32 %v806, %v807
        %v809 = vsel %vm717, %v708, 0.0
        %v810 = vadd.f32 %v808, %v809
        %v811 = vsel %vm717, %v709, 0.0
        %v812 = vadd.f32 %v810, %v811
        %v813 = vsel %vm717, %v710, 0.0
        %v814 = vadd.f32 %v812, %v813
        %v815 = vsel %vm717, %v711, 0.0
        %v816 = vadd.f32 %v814, %v815
        %v817 = vsel %vm717, %v712, 0.0
        %v818 = vadd.f32 %v816, %v817
        %v819 = vsel %vm717, %v713, 0.0
        %v820 = vadd.f32 %v818, %v819
        %v821 = vsel %vm717, %v714, 0.0
        %v822 = vadd.f32 %v820, %v821
        %v823 = vsel %vm717, %v715, 0.0
        %v824 = vadd.f32 %v822, %v823
        %v825 = vsel %vm717, %v716, 0.0
        %v826 = vadd.f32 %v824, %v825
        %v827 = vrot.slane %v826, 4
        %v828 = vadd.f32 %v826, %v827
        %v829 = vrot.slane %v828, 2
        %v830 = vadd.f32 %v828, %v829
        %v831 = vrot.slane %v830, 1
        %v832 = vadd.f32 %v830, %v831
        %v833 = vmul.f32 %v832, 0.00390625
        %v834 = vmul.f32 %v662, %v662
        %v835 = vmul.f32 %v663, %v663
        %v836 = vmul.f32 %v664, %v664
        %v837 = vmul.f32 %v665, %v665
        %v838 = vmul.f32 %v666, %v666
        %v839 = vmul.f32 %v667, %v667
        %v840 = vmul.f32 %v668, %v668
        %v841 = vmul.f32 %v669, %v669
        %v842 = vmul.f32 %v670, %v670
        %v843 = vmul.f32 %v671, %v671
        %v844 = vmul.f32 %v672, %v672
        %v845 = vmul.f32 %v673, %v673
        %v846 = vmul.f32 %v674, %v674
        %v847 = vmul.f32 %v675, %v675
        %v848 = vmul.f32 %v676, %v676
        %v849 = vmul.f32 %v677, %v677
        %v850 = vmul.f32 %v678, %v678
        %v851 = vmul.f32 %v679, %v679
        %v852 = vmul.f32 %v680, %v680
        %v853 = vmul.f32 %v681, %v681
        %v854 = vmul.f32 %v682, %v682
        %v855 = vmul.f32 %v683, %v683
        %v856 = vmul.f32 %v684, %v684
        %v857 = vmul.f32 %v685, %v685
        %v858 = vmul.f32 %v686, %v686
        %v859 = vmul.f32 %v687, %v687
        %v860 = vmul.f32 %v688, %v688
        %v861 = vmul.f32 %v689, %v689
        %v862 = vmul.f32 %v690, %v690
        %v863 = vmul.f32 %v691, %v691
        %v864 = vmul.f32 %v692, %v692
        %v865 = vmul.f32 %v693, %v693
        %v866 = vmul.f32 %v694, %v694
        %v867 = vmul.f32 %v695, %v695
        %v868 = vmul.f32 %v696, %v696
        %v869 = vmul.f32 %v697, %v697
        %v870 = vmul.f32 %v698, %v698
        %v871 = vmul.f32 %v699, %v699
        %v872 = vmul.f32 %v700, %v700
        %v873 = vmul.f32 %v701, %v701
        %v874 = vmul.f32 %v702, %v702
        %v875 = vmul.f32 %v703, %v703
        %v876 = vmul.f32 %v704, %v704
        %v877 = vmul.f32 %v705, %v705
        %v878 = vmul.f32 %v706, %v706
        %v879 = vmul.f32 %v707, %v707
        %v880 = vmul.f32 %v708, %v708
        %v881 = vmul.f32 %v709, %v709
        %v882 = vmul.f32 %v710, %v710
        %v883 = vmul.f32 %v711, %v711
        %v884 = vmul.f32 %v712, %v712
        %v885 = vmul.f32 %v713, %v713
        %v886 = vmul.f32 %v714, %v714
        %v887 = vmul.f32 %v715, %v715
        %v888 = vmul.f32 %v716, %v716
        %v889 = vsel %vm717, %v834, 0.0
        %v890 = vsel %vm717, %v835, 0.0
        %v891 = vadd.f32 %v889, %v890
        %v892 = vsel %vm717, %v836, 0.0
        %v893 = vadd.f32 %v891, %v892
        %v894 = vsel %vm717, %v837, 0.0
        %v895 = vadd.f32 %v893, %v894
        %v896 = vsel %vm717, %v838, 0.0
        %v897 = vadd.f32 %v895, %v896
        %v898 = vsel %vm717, %v839, 0.0
        %v899 = vadd.f32 %v897, %v898
        %v900 = vsel %vm717, %v840, 0.0
        %v901 = vadd.f32 %v899, %v900
        %v902 = vsel %vm717, %v841, 0.0
        %v903 = vadd.f32 %v901, %v902
        %v904 = vsel %vm717, %v842, 0.0
        %v905 = vadd.f32 %v903, %v904
        %v906 = vsel %vm717, %v843, 0.0
        %v907 = vadd.f32 %v905, %v906
        %v908 = vsel %vm717, %v844, 0.0
        %v909 = vadd.f32 %v907, %v908
        %v910 = vsel %vm717, %v845, 0.0
        %v911 = vadd.f32 %v909, %v910
        %v912 = vsel %vm717, %v846, 0.0
        %v913 = vadd.f32 %v911, %v912
        %v914 = vsel %vm717, %v847, 0.0
        %v915 = vadd.f32 %v913, %v914
        %v916 = vsel %vm717, %v848, 0.0
        %v917 = vadd.f32 %v915, %v916
        %v918 = vsel %vm717, %v849, 0.0
        %v919 = vadd.f32 %v917, %v918
        %v920 = vsel %vm717, %v850, 0.0
        %v921 = vadd.f32 %v919, %v920
        %v922 = vsel %vm717, %v851, 0.0
        %v923 = vadd.f32 %v921, %v922
        %v924 = vsel %vm717, %v852, 0.0
        %v925 = vadd.f32 %v923, %v924
        %v926 = vsel %vm717, %v853, 0.0
        %v927 = vadd.f32 %v925, %v926
        %v928 = vsel %vm717, %v854, 0.0
        %v929 = vadd.f32 %v927, %v928
        %v930 = vsel %vm717, %v855, 0.0
        %v931 = vadd.f32 %v929, %v930
        %v932 = vsel %vm717, %v856, 0.0
        %v933 = vadd.f32 %v931, %v932
        %v934 = vsel %vm717, %v857, 0.0
        %v935 = vadd.f32 %v933, %v934
        %v936 = vsel %vm717, %v858, 0.0
        %v937 = vadd.f32 %v935, %v936
        %v938 = vsel %vm717, %v859, 0.0
        %v939 = vadd.f32 %v937, %v938
        %v940 = vsel %vm717, %v860, 0.0
        %v941 = vadd.f32 %v939, %v940
        %v942 = vsel %vm717, %v861, 0.0
        %v943 = vadd.f32 %v941, %v942
        %v944 = vsel %vm717, %v862, 0.0
        %v945 = vadd.f32 %v943, %v944
        %v946 = vsel %vm717, %v863, 0.0
        %v947 = vadd.f32 %v945, %v946
        %v948 = vsel %vm717, %v864, 0.0
        %v949 = vadd.f32 %v947, %v948
        %v950 = vsel %vm717, %v865, 0.0
        %v951 = vadd.f32 %v949, %v950
        %v952 = vsel %vm717, %v866, 0.0
        %v953 = vadd.f32 %v951, %v952
        %v954 = vsel %vm717, %v867, 0.0
        %v955 = vadd.f32 %v953, %v954
        %v956 = vsel %vm717, %v868, 0.0
        %v957 = vadd.f32 %v955, %v956
        %v958 = vsel %vm717, %v869, 0.0
        %v959 = vadd.f32 %v957, %v958
        %v960 = vsel %vm717, %v870, 0.0
        %v961 = vadd.f32 %v959, %v960
        %v962 = vsel %vm717, %v871, 0.0
        %v963 = vadd.f32 %v961, %v962
        %v964 = vsel %vm717, %v872, 0.0
        %v965 = vadd.f32 %v963, %v964
        %v966 = vsel %vm717, %v873, 0.0
        %v967 = vadd.f32 %v965, %v966
        %v968 = vsel %vm717, %v874, 0.0
        %v969 = vadd.f32 %v967, %v968
        %v970 = vsel %vm717, %v875, 0.0
        %v971 = vadd.f32 %v969, %v970
        %v972 = vsel %vm717, %v876, 0.0
        %v973 = vadd.f32 %v971, %v972
        %v974 = vsel %vm717, %v877, 0.0
        %v975 = vadd.f32 %v973, %v974
        %v976 = vsel %vm717, %v878, 0.0
        %v977 = vadd.f32 %v975, %v976
        %v978 = vsel %vm717, %v879, 0.0
        %v979 = vadd.f32 %v977, %v978
        %v980 = vsel %vm717, %v880, 0.0
        %v981 = vadd.f32 %v979, %v980
        %v982 = vsel %vm717, %v881, 0.0
        %v983 = vadd.f32 %v981, %v982
        %v984 = vsel %vm717, %v882, 0.0
        %v985 = vadd.f32 %v983, %v984
        %v986 = vsel %vm717, %v883, 0.0
        %v987 = vadd.f32 %v985, %v986
        %v988 = vsel %vm717, %v884, 0.0
        %v989 = vadd.f32 %v987, %v988
        %v990 = vsel %vm717, %v885, 0.0
        %v991 = vadd.f32 %v989, %v990
        %v992 = vsel %vm717, %v886, 0.0
        %v993 = vadd.f32 %v991, %v992
        %v994 = vsel %vm717, %v887, 0.0
        %v995 = vadd.f32 %v993, %v994
        %v996 = vsel %vm717, %v888, 0.0
        %v997 = vadd.f32 %v995, %v996
        %v998 = vrot.slane %v997, 4
        %v999 = vadd.f32 %v997, %v998
        %v1000 = vrot.slane %v999, 2
        %v1001 = vadd.f32 %v999, %v1000
        %v1002 = vrot.slane %v1001, 1
        %v1003 = vadd.f32 %v1001, %v1002
        %v1004 = vmul.f32 %v1003, 0.00390625
        %v1005 = vmul.f32 %v833, %v833
        %v1006 = vsub.f32 %v1004, %v1005
        %v1007 = vmax.f32 %v1006, 0.0
        %v1008 = vadd.f32 %v1007, 1e-06
        %v1009 = vrsqrt.pop %v1008
        %v1010 = vsub.f32 %v662, %v833
        %v1011 = vsub.f32 %v663, %v833
        %v1012 = vsub.f32 %v664, %v833
        %v1013 = vsub.f32 %v665, %v833
        %v1014 = vsub.f32 %v666, %v833
        %v1015 = vsub.f32 %v667, %v833
        %v1016 = vsub.f32 %v668, %v833
        %v1017 = vsub.f32 %v669, %v833
        %v1018 = vsub.f32 %v670, %v833
        %v1019 = vsub.f32 %v671, %v833
        %v1020 = vsub.f32 %v672, %v833
        %v1021 = vsub.f32 %v673, %v833
        %v1022 = vsub.f32 %v674, %v833
        %v1023 = vsub.f32 %v675, %v833
        %v1024 = vsub.f32 %v676, %v833
        %v1025 = vsub.f32 %v677, %v833
        %v1026 = vsub.f32 %v678, %v833
        %v1027 = vsub.f32 %v679, %v833
        %v1028 = vsub.f32 %v680, %v833
        %v1029 = vsub.f32 %v681, %v833
        %v1030 = vsub.f32 %v682, %v833
        %v1031 = vsub.f32 %v683, %v833
        %v1032 = vsub.f32 %v684, %v833
        %v1033 = vsub.f32 %v685, %v833
        %v1034 = vsub.f32 %v686, %v833
        %v1035 = vsub.f32 %v687, %v833
        %v1036 = vsub.f32 %v688, %v833
        %v1037 = vsub.f32 %v689, %v833
        %v1038 = vsub.f32 %v690, %v833
        %v1039 = vsub.f32 %v691, %v833
        %v1040 = vsub.f32 %v692, %v833
        %v1041 = vsub.f32 %v693, %v833
        %v1042 = vsub.f32 %v694, %v833
        %v1043 = vsub.f32 %v695, %v833
        %v1044 = vsub.f32 %v696, %v833
        %v1045 = vsub.f32 %v697, %v833
        %v1046 = vsub.f32 %v698, %v833
        %v1047 = vsub.f32 %v699, %v833
        %v1048 = vsub.f32 %v700, %v833
        %v1049 = vsub.f32 %v701, %v833
        %v1050 = vsub.f32 %v702, %v833
        %v1051 = vsub.f32 %v703, %v833
        %v1052 = vsub.f32 %v704, %v833
        %v1053 = vsub.f32 %v705, %v833
        %v1054 = vsub.f32 %v706, %v833
        %v1055 = vsub.f32 %v707, %v833
        %v1056 = vsub.f32 %v708, %v833
        %v1057 = vsub.f32 %v709, %v833
        %v1058 = vsub.f32 %v710, %v833
        %v1059 = vsub.f32 %v711, %v833
        %v1060 = vsub.f32 %v712, %v833
        %v1061 = vsub.f32 %v713, %v833
        %v1062 = vsub.f32 %v714, %v833
        %v1063 = vsub.f32 %v715, %v833
        %v1064 = vsub.f32 %v716, %v833
        %v1065 = vld [vmem:[#allocation10] sm:$0x1]
        %v1066 = vmul.f32 %v1009, %v1065
        %v1067 = vlaneseq
        %v1068 = vshrl.u32 %v1067, 7
        %v1069 = vsub.s32 0, %v1068
        %v1070 = vrot.slane %v1066, %v1069
        %v1071 = vmul.f32 %v1010, %v1070
        %v1072 = vmul.f32 %v1011, %v1070
        %v1073 = vmul.f32 %v1012, %v1070
        %v1074 = vmul.f32 %v1013, %v1070
        %v1075 = vmul.f32 %v1014, %v1070
        %v1076 = vmul.f32 %v1015, %v1070
        %v1077 = vmul.f32 %v1016, %v1070
        %v1078 = vmul.f32 %v1017, %v1070
        %v1079 = vmul.f32 %v1018, %v1070
        %v1080 = vmul.f32 %v1019, %v1070
        %v1081 = vmul.f32 %v1020, %v1070
        %v1082 = vmul.f32 %v1021, %v1070
        %v1083 = vmul.f32 %v1022, %v1070
        %v1084 = vmul.f32 %v1023, %v1070
        %v1085 = vmul.f32 %v1024, %v1070
        %v1086 = vmul.f32 %v1025, %v1070
        %v1087 = vmul.f32 %v1026, %v1070
        %v1088 = vmul.f32 %v1027, %v1070
        %v1089 = vmul.f32 %v1028, %v1070
        %v1090 = vmul.f32 %v1029, %v1070
        %v1091 = vmul.f32 %v1030, %v1070
        %v1092 = vmul.f32 %v1031, %v1070
        %v1093 = vmul.f32 %v1032, %v1070
        %v1094 = vmul.f32 %v1033, %v1070
        %v1095 = vmul.f32 %v1034, %v1070
        %v1096 = vmul.f32 %v1035, %v1070
        %v1097 = vmul.f32 %v1036, %v1070
        %v1098 = vmul.f32 %v1037, %v1070
        %v1099 = vmul.f32 %v1038, %v1070
        %v1100 = vmul.f32 %v1039, %v1070
        %v1101 = vmul.f32 %v1040, %v1070
        %v1102 = vmul.f32 %v1041, %v1070
        %v1103 = vmul.f32 %v1042, %v1070
        %v1104 = vmul.f32 %v1043, %v1070
        %v1105 = vmul.f32 %v1044, %v1070
        %v1106 = vmul.f32 %v1045, %v1070
        %v1107 = vmul.f32 %v1046, %v1070
        %v1108 = vmul.f32 %v1047, %v1070
        %v1109 = vmul.f32 %v1048, %v1070
        %v1110 = vmul.f32 %v1049, %v1070
        %v1111 = vmul.f32 %v1050, %v1070
        %v1112 = vmul.f32 %v1051, %v1070
        %v1113 = vmul.f32 %v1052, %v1070
        %v1114 = vmul.f32 %v1053, %v1070
        %v1115 = vmul.f32 %v1054, %v1070
        %v1116 = vmul.f32 %v1055, %v1070
        %v1117 = vmul.f32 %v1056, %v1070
        %v1118 = vmul.f32 %v1057, %v1070
        %v1119 = vmul.f32 %v1058, %v1070
        %v1120 = vmul.f32 %v1059, %v1070
        %v1121 = vmul.f32 %v1060, %v1070
        %v1122 = vmul.f32 %v1061, %v1070
        %v1123 = vmul.f32 %v1062, %v1070
        %v1124 = vmul.f32 %v1063, %v1070
        %v1125 = vmul.f32 %v1064, %v1070
        %v1126 = vld [vmem:[#allocation12] sm:$0x1]
        %v1128 = vlaneseq
        %v1129 = vshrl.u32 %v1128, 7
        %v1130 = vsub.s32 0, %v1129
        %v1131 = vrot.slane %v1126, %v1130
        %v1133 = vadd.f32 %v1071, %v1131
        %v1134 = vadd.f32 %v1072, %v1131
        %v1135 = vadd.f32 %v1073, %v1131
        %v1136 = vadd.f32 %v1074, %v1131
        %v1137 = vadd.f32 %v1075, %v1131
        %v1138 = vadd.f32 %v1076, %v1131
        %v1139 = vadd.f32 %v1077, %v1131
        %v1140 = vadd.f32 %v1078, %v1131
        %v1141 = vadd.f32 %v1079, %v1131
        %v1142 = vadd.f32 %v1080, %v1131
        %v1143 = vadd.f32 %v1081, %v1131
        %v1144 = vadd.f32 %v1082, %v1131
        %v1145 = vadd.f32 %v1083, %v1131
        %v1146 = vadd.f32 %v1084, %v1131
        %v1147 = vadd.f32 %v1085, %v1131
        %v1148 = vadd.f32 %v1086, %v1131
        %v1149 = vadd.f32 %v1087, %v1131
        %v1150 = vadd.f32 %v1088, %v1131
        %v1151 = vadd.f32 %v1089, %v1131
        %v1152 = vadd.f32 %v1090, %v1131
        %v1153 = vadd.f32 %v1091, %v1131
        %v1154 = vadd.f32 %v1092, %v1131
        %v1155 = vadd.f32 %v1093, %v1131
        %v1156 = vadd.f32 %v1094, %v1131
        %v1157 = vadd.f32 %v1095, %v1131
        %v1158 = vadd.f32 %v1096, %v1131
        %v1159 = vadd.f32 %v1097, %v1131
        %v1160 = vadd.f32 %v1098, %v1131
        %v1161 = vadd.f32 %v1099, %v1131
        %v1162 = vadd.f32 %v1100, %v1131
        %v1163 = vadd.f32 %v1101, %v1131
        %v1164 = vadd.f32 %v1102, %v1131
        %v1165 = vadd.f32 %v1103, %v1131
        %v1166 = vadd.f32 %v1104, %v1131
        %v1167 = vadd.f32 %v1105, %v1131
        %v1168 = vadd.f32 %v1106, %v1131
        %v1169 = vadd.f32 %v1107, %v1131
        %v1170 = vadd.f32 %v1108, %v1131
        %v1171 = vadd.f32 %v1109, %v1131
        %v1172 = vadd.f32 %v1110, %v1131
        %v1173 = vadd.f32 %v1111, %v1131
        %v1174 = vadd.f32 %v1112, %v1131
        %v1175 = vadd.f32 %v1113, %v1131
        %v1176 = vadd.f32 %v1114, %v1131
        %v1177 = vadd.f32 %v1115, %v1131
        %v1178 = vadd.f32 %v1116, %v1131
        %v1179 = vadd.f32 %v1117, %v1131
        %v1180 = vadd.f32 %v1118, %v1131
        %v1181 = vadd.f32 %v1119, %v1131
        %v1182 = vadd.f32 %v1120, %v1131
        %v1183 = vadd.f32 %v1121, %v1131
        %v1184 = vadd.f32 %v1122, %v1131
        %v1185 = vadd.f32 %v1123, %v1131
        %v1186 = vadd.f32 %v1124, %v1131
        %v1187 = vadd.f32 %v1125, %v1131
        %v1188 = vxor.u32 %v1133, 2147483648
        %v1189 = vxor.u32 %v1134, 2147483648
        %v1190 = vxor.u32 %v1135, 2147483648
        %v1191 = vxor.u32 %v1136, 2147483648
        %v1192 = vxor.u32 %v1137, 2147483648
        %v1193 = vxor.u32 %v1138, 2147483648
        %v1194 = vxor.u32 %v1139, 2147483648
        %v1195 = vxor.u32 %v1140, 2147483648
        %v1196 = vxor.u32 %v1141, 2147483648
        %v1197 = vxor.u32 %v1142, 2147483648
        %v1198 = vxor.u32 %v1143, 2147483648
        %v1199 = vxor.u32 %v1144, 2147483648
        %v1200 = vxor.u32 %v1145, 2147483648
        %v1201 = vxor.u32 %v1146, 2147483648
        %v1202 = vxor.u32 %v1147, 2147483648
        %v1203 = vxor.u32 %v1148, 2147483648
        %v1204 = vxor.u32 %v1149, 2147483648
        %v1205 = vxor.u32 %v1150, 2147483648
        %v1206 = vxor.u32 %v1151, 2147483648
        %v1207 = vxor.u32 %v1152, 2147483648
        %v1208 = vxor.u32 %v1153, 2147483648
        %v1209 = vxor.u32 %v1154, 2147483648
        %v1210 = vxor.u32 %v1155, 2147483648
        %v1211 = vxor.u32 %v1156, 2147483648
        %v1212 = vxor.u32 %v1157, 2147483648
        %v1213 = vxor.u32 %v1158, 2147483648
        %v1214 = vxor.u32 %v1159, 2147483648
        %v1215 = vxor.u32 %v1160, 2147483648
        %v1216 = vxor.u32 %v1161, 2147483648
        %v1217 = vxor.u32 %v1162, 2147483648
        %v1218 = vxor.u32 %v1163, 2147483648
        %v1219 = vxor.u32 %v1164, 2147483648
        %v1220 = vxor.u32 %v1165, 2147483648
        %v1221 = vxor.u32 %v1166, 2147483648
        %v1222 = vxor.u32 %v1167, 2147483648
        %v1223 = vxor.u32 %v1168, 2147483648
        %v1224 = vxor.u32 %v1169, 2147483648
        %v1225 = vxor.u32 %v1170, 2147483648
        %v1226 = vxor.u32 %v1171, 2147483648
        %v1227 = vxor.u32 %v1172, 2147483648
        %v1228 = vxor.u32 %v1173, 2147483648
        %v1229 = vxor.u32 %v1174, 2147483648
        %v1230 = vxor.u32 %v1175, 2147483648
        %v1231 = vxor.u32 %v1176, 2147483648
        %v1232 = vxor.u32 %v1177, 2147483648
        %v1233 = vxor.u32 %v1178, 2147483648
        %v1234 = vxor.u32 %v1179, 2147483648
        %v1235 = vxor.u32 %v1180, 2147483648
        %v1236 = vxor.u32 %v1181, 2147483648
        %v1237 = vxor.u32 %v1182, 2147483648
        %v1238 = vxor.u32 %v1183, 2147483648
        %v1239 = vxor.u32 %v1184, 2147483648
        %v1240 = vxor.u32 %v1185, 2147483648
        %v1241 = vxor.u32 %v1186, 2147483648
        %v1242 = vxor.u32 %v1187, 2147483648
        %v1243 = vmul.f32 %v1188, 1.442695
        %v1244 = vpow.pop %v1243
        %v1245 = vmul.f32 %v1189, 1.442695
        %v1246 = vpow.pop %v1245
        %v1247 = vmul.f32 %v1190, 1.442695
        %v1248 = vpow.pop %v1247
        %v1249 = vmul.f32 %v1191, 1.442695
        %v1250 = vpow.pop %v1249
        %v1251 = vmul.f32 %v1192, 1.442695
        %v1252 = vpow.pop %v1251
        %v1253 = vmul.f32 %v1193, 1.442695
        %v1254 = vpow.pop %v1253
        %v1255 = vmul.f32 %v1194, 1.442695
        %v1256 = vpow.pop %v1255
        %v1257 = vmul.f32 %v1195, 1.442695
        %v1258 = vpow.pop %v1257
        %v1259 = vmul.f32 %v1196, 1.442695
        %v1260 = vpow.pop %v1259
        %v1261 = vmul.f32 %v1197, 1.442695
        %v1262 = vpow.pop %v1261
        %v1263 = vmul.f32 %v1198, 1.442695
        %v1264 = vpow.pop %v1263
        %v1265 = vmul.f32 %v1199, 1.442695
        %v1266 = vpow.pop %v1265
        %v1267 = vmul.f32 %v1200, 1.442695
        %v1268 = vpow.pop %v1267
        %v1269 = vmul.f32 %v1201, 1.442695
        %v1270 = vpow.pop %v1269
        %v1271 = vmul.f32 %v1202, 1.442695
        %v1272 = vpow.pop %v1271
        %v1273 = vmul.f32 %v1203, 1.442695
        %v1274 = vpow.pop %v1273
        %v1275 = vmul.f32 %v1204, 1.442695
        %v1276 = vpow.pop %v1275
        %v1277 = vmul.f32 %v1205, 1.442695
        %v1278 = vpow.pop %v1277
        %v1279 = vmul.f32 %v1206, 1.442695
        %v1280 = vpow.pop %v1279
        %v1281 = vmul.f32 %v1207, 1.442695
        %v1282 = vpow.pop %v1281
        %v1283 = vmul.f32 %v1208, 1.442695
        %v1284 = vpow.pop %v1283
        %v1285 = vmul.f32 %v1209, 1.442695
        %v1286 = vpow.pop %v1285
        %v1287 = vmul.f32 %v1210, 1.442695
        %v1288 = vpow.pop %v1287
        %v1289 = vmul.f32 %v1211, 1.442695
        %v1290 = vpow.pop %v1289
        %v1291 = vmul.f32 %v1212, 1.442695
        %v1292 = vpow.pop %v1291
        %v1293 = vmul.f32 %v1213, 1.442695
        %v1294 = vpow.pop %v1293
        %v1295 = vmul.f32 %v1214, 1.442695
        %v1296 = vpow.pop %v1295
        %v1297 = vmul.f32 %v1215, 1.442695
        %v1298 = vpow.pop %v1297
        %v1299 = vmul.f32 %v1216, 1.442695
        %v1300 = vpow.pop %v1299
        %v1301 = vmul.f32 %v1217, 1.442695
        %v1302 = vpow.pop %v1301
        %v1303 = vmul.f32 %v1218, 1.442695
        %v1304 = vpow.pop %v1303
        %v1305 = vmul.f32 %v1219, 1.442695
        %v1306 = vpow.pop %v1305
        %v1307 = vmul.f32 %v1220, 1.442695
        %v1308 = vpow.pop %v1307
        %v1309 = vmul.f32 %v1221, 1.442695
        %v1310 = vpow.pop %v1309
        %v1311 = vmul.f32 %v1222, 1.442695
        %v1312 = vpow.pop %v1311
        %v1313 = vmul.f32 %v1223, 1.442695
        %v1314 = vpow.pop %v1313
        %v1315 = vmul.f32 %v1224, 1.442695
        %v1316 = vpow.pop %v1315
        %v1317 = vmul.f32 %v1225, 1.442695
        %v1318 = vpow.pop %v1317
        %v1319 = vmul.f32 %v1226, 1.442695
        %v1320 = vpow.pop %v1319
        %v1321 = vmul.f32 %v1227, 1.442695
        %v1322 = vpow.pop %v1321
        %v1323 = vmul.f32 %v1228, 1.442695
        %v1324 = vpow.pop %v1323
        %v1325 = vmul.f32 %v1229, 1.442695
        %v1326 = vpow.pop %v1325
        %v1327 = vmul.f32 %v1230, 1.442695
        %v1328 = vpow.pop %v1327
        %v1329 = vmul.f32 %v1231, 1.442695
        %v1330 = vpow.pop %v1329
        %v1331 = vmul.f32 %v1232, 1.442695
        %v1332 = vpow.pop %v1331
        %v1333 = vmul.f32 %v1233, 1.442695
        %v1334 = vpow.pop %v1333
        %v1335 = vmul.f32 %v1234, 1.442695
        %v1336 = vpow.pop %v1335
        %v1337 = vmul.f32 %v1235, 1.442695
        %v1338 = vpow.pop %v1337
        %v1339 = vmul.f32 %v1236, 1.442695
        %v1340 = vpow.pop %v1339
        %v1341 = vmul.f32 %v1237, 1.442695
        %v1342 = vpow.pop %v1341
        %v1343 = vmul.f32 %v1238, 1.442695
        %v1344 = vpow.pop %v1343
        %v1345 = vmul.f32 %v1239, 1.442695
        %v1346 = vpow.pop %v1345
        %v1347 = vmul.f32 %v1240, 1.442695
        %v1348 = vpow.pop %v1347
        %v1349 = vmul.f32 %v1241, 1.442695
        %v1350 = vpow.pop %v1349
        %v1351 = vmul.f32 %v1242, 1.442695
        %v1352 = vpow.pop %v1351
        %v1353 = vadd.f32 %v1244, 1.0
        %v1354 = vadd.f32 %v1246, 1.0
        %v1355 = vadd.f32 %v1248, 1.0
        %v1356 = vadd.f32 %v1250, 1.0
        %v1357 = vadd.f32 %v1252, 1.0
        %v1358 = vadd.f32 %v1254, 1.0
        %v1359 = vadd.f32 %v1256, 1.0
        %v1360 = vadd.f32 %v1258, 1.0
        %v1361 = vadd.f32 %v1260, 1.0
        %v1362 = vadd.f32 %v1262, 1.0
        %v1363 = vadd.f32 %v1264, 1.0
        %v1364 = vadd.f32 %v1266, 1.0
        %v1365 = vadd.f32 %v1268, 1.0
        %v1366 = vadd.f32 %v1270, 1.0
        %v1367 = vadd.f32 %v1272, 1.0
        %v1368 = vadd.f32 %v1274, 1.0
        %v1369 = vadd.f32 %v1276, 1.0
        %v1370 = vadd.f32 %v1278, 1.0
        %v1371 = vadd.f32 %v1280, 1.0
        %v1372 = vadd.f32 %v1282, 1.0
        %v1373 = vadd.f32 %v1284, 1.0
        %v1374 = vadd.f32 %v1286, 1.0
        %v1375 = vadd.f32 %v1288, 1.0
        %v1376 = vadd.f32 %v1290, 1.0
        %v1377 = vadd.f32 %v1292, 1.0
        %v1378 = vadd.f32 %v1294, 1.0
        %v1379 = vadd.f32 %v1296, 1.0
        %v1380 = vadd.f32 %v1298, 1.0
        %v1381 = vadd.f32 %v1300, 1.0
        %v1382 = vadd.f32 %v1302, 1.0
        %v1383 = vadd.f32 %v1304, 1.0
        %v1384 = vadd.f32 %v1306, 1.0
        %v1385 = vadd.f32 %v1308, 1.0
        %v1386 = vadd.f32 %v1310, 1.0
        %v1387 = vadd.f32 %v1312, 1.0
        %v1388 = vadd.f32 %v1314, 1.0
        %v1389 = vadd.f32 %v1316, 1.0
        %v1390 = vadd.f32 %v1318, 1.0
        %v1391 = vadd.f32 %v1320, 1.0
        %v1392 = vadd.f32 %v1322, 1.0
        %v1393 = vadd.f32 %v1324, 1.0
        %v1394 = vadd.f32 %v1326, 1.0
        %v1395 = vadd.f32 %v1328, 1.0
        %v1396 = vadd.f32 %v1330, 1.0
        %v1397 = vadd.f32 %v1332, 1.0
        %v1398 = vadd.f32 %v1334, 1.0
        %v1399 = vadd.f32 %v1336, 1.0
        %v1400 = vadd.f32 %v1338, 1.0
        %v1401 = vadd.f32 %v1340, 1.0
        %v1402 = vadd.f32 %v1342, 1.0
        %v1403 = vadd.f32 %v1344, 1.0
        %v1404 = vadd.f32 %v1346, 1.0
        %v1405 = vadd.f32 %v1348, 1.0
        %v1406 = vadd.f32 %v1350, 1.0
        %v1407 = vadd.f32 %v1352, 1.0
        %v1408 = vrcp.pop %v1353
        %v1409 = vmul.f32 1.0, %v1408
        %v1410 = vrcp.pop %v1354
        %v1411 = vmul.f32 1.0, %v1410
        %v1412 = vrcp.pop %v1355
        %v1413 = vmul.f32 1.0, %v1412
        %v1414 = vrcp.pop %v1356
        %v1415 = vmul.f32 1.0, %v1414
        %v1416 = vrcp.pop %v1357
        %v1417 = vmul.f32 1.0, %v1416
        %v1418 = vrcp.pop %v1358
        %v1419 = vmul.f32 1.0, %v1418
        %v1420 = vrcp.pop %v1359
        %v1421 = vmul.f32 1.0, %v1420
        %v1422 = vrcp.pop %v1360
        %v1423 = vmul.f32 1.0, %v1422
        %v1424 = vrcp.pop %v1361
        %v1425 = vmul.f32 1.0, %v1424
        %v1426 = vrcp.pop %v1362
        %v1427 = vmul.f32 1.0, %v1426
        %v1428 = vrcp.pop %v1363
        %v1429 = vmul.f32 1.0, %v1428
        %v1430 = vrcp.pop %v1364
        %v1431 = vmul.f32 1.0, %v1430
        %v1432 = vrcp.pop %v1365
        %v1433 = vmul.f32 1.0, %v1432
        %v1434 = vrcp.pop %v1366
        %v1435 = vmul.f32 1.0, %v1434
        %v1436 = vrcp.pop %v1367
        %v1437 = vmul.f32 1.0, %v1436
        %v1438 = vrcp.pop %v1368
        %v1439 = vmul.f32 1.0, %v1438
        %v1440 = vrcp.pop %v1369
        %v1441 = vmul.f32 1.0, %v1440
        %v1442 = vrcp.pop %v1370
        %v1443 = vmul.f32 1.0, %v1442
        %v1444 = vrcp.pop %v1371
        %v1445 = vmul.f32 1.0, %v1444
        %v1446 = vrcp.pop %v1372
        %v1447 = vmul.f32 1.0, %v1446
        %v1448 = vrcp.pop %v1373
        %v1449 = vmul.f32 1.0, %v1448
        %v1450 = vrcp.pop %v1374
        %v1451 = vmul.f32 1.0, %v1450
        %v1452 = vrcp.pop %v1375
        %v1453 = vmul.f32 1.0, %v1452
        %v1454 = vrcp.pop %v1376
        %v1455 = vmul.f32 1.0, %v1454
        %v1456 = vrcp.pop %v1377
        %v1457 = vmul.f32 1.0, %v1456
        %v1458 = vrcp.pop %v1378
        %v1459 = vmul.f32 1.0, %v1458
        %v1460 = vrcp.pop %v1379
        %v1461 = vmul.f32 1.0, %v1460
        %v1462 = vrcp.pop %v1380
        %v1463 = vmul.f32 1.0, %v1462
        %v1464 = vrcp.pop %v1381
        %v1465 = vmul.f32 1.0, %v1464
        %v1466 = vrcp.pop %v1382
        %v1467 = vmul.f32 1.0, %v1466
        %v1468 = vrcp.pop %v1383
        %v1469 = vmul.f32 1.0, %v1468
        %v1470 = vrcp.pop %v1384
        %v1471 = vmul.f32 1.0, %v1470
        %v1472 = vrcp.pop %v1385
        %v1473 = vmul.f32 1.0, %v1472
        %v1474 = vrcp.pop %v1386
        %v1475 = vmul.f32 1.0, %v1474
        %v1476 = vrcp.pop %v1387
        %v1477 = vmul.f32 1.0, %v1476
        %v1478 = vrcp.pop %v1388
        %v1479 = vmul.f32 1.0, %v1478
        %v1480 = vrcp.pop %v1389
        %v1481 = vmul.f32 1.0, %v1480
        %v1482 = vrcp.pop %v1390
        %v1483 = vmul.f32 1.0, %v1482
        %v1484 = vrcp.pop %v1391
        %v1485 = vmul.f32 1.0, %v1484
        %v1486 = vrcp.pop %v1392
        %v1487 = vmul.f32 1.0, %v1486
        %v1488 = vrcp.pop %v1393
        %v1489 = vmul.f32 1.0, %v1488
        %v1490 = vrcp.pop %v1394
        %v1491 = vmul.f32 1.0, %v1490
        %v1492 = vrcp.pop %v1395
        %v1493 = vmul.f32 1.0, %v1492
        %v1494 = vrcp.pop %v1396
        %v1495 = vmul.f32 1.0, %v1494
        %v1496 = vrcp.pop %v1397
        %v1497 = vmul.f32 1.0, %v1496
        %v1498 = vrcp.pop %v1398
        %v1499 = vmul.f32 1.0, %v1498
        %v1500 = vrcp.pop %v1399
        %v1501 = vmul.f32 1.0, %v1500
        %v1502 = vrcp.pop %v1400
        %v1503 = vmul.f32 1.0, %v1502
        %v1504 = vrcp.pop %v1401
        %v1505 = vmul.f32 1.0, %v1504
        %v1506 = vrcp.pop %v1402
        %v1507 = vmul.f32 1.0, %v1506
        %v1508 = vrcp.pop %v1403
        %v1509 = vmul.f32 1.0, %v1508
        %v1510 = vrcp.pop %v1404
        %v1511 = vmul.f32 1.0, %v1510
        %v1512 = vrcp.pop %v1405
        %v1513 = vmul.f32 1.0, %v1512
        %v1514 = vrcp.pop %v1406
        %v1515 = vmul.f32 1.0, %v1514
        %v1516 = vrcp.pop %v1407
        %v1517 = vmul.f32 1.0, %v1516
        %v1518 = vmul.f32 %v1133, %v1409
        %v1519 = vmul.f32 %v1134, %v1411
        %v1520 = vmul.f32 %v1135, %v1413
        %v1521 = vmul.f32 %v1136, %v1415
        %v1522 = vmul.f32 %v1137, %v1417
        %v1523 = vmul.f32 %v1138, %v1419
        %v1524 = vmul.f32 %v1139, %v1421
        %v1525 = vmul.f32 %v1140, %v1423
        %v1526 = vmul.f32 %v1141, %v1425
        %v1527 = vmul.f32 %v1142, %v1427
        %v1528 = vmul.f32 %v1143, %v1429
        %v1529 = vmul.f32 %v1144, %v1431
        %v1530 = vmul.f32 %v1145, %v1433
        %v1531 = vmul.f32 %v1146, %v1435
        %v1532 = vmul.f32 %v1147, %v1437
        %v1533 = vmul.f32 %v1148, %v1439
        %v1534 = vmul.f32 %v1149, %v1441
        %v1535 = vmul.f32 %v1150, %v1443
        %v1536 = vmul.f32 %v1151, %v1445
        %v1537 = vmul.f32 %v1152, %v1447
        %v1538 = vmul.f32 %v1153, %v1449
        %v1539 = vmul.f32 %v1154, %v1451
        %v1540 = vmul.f32 %v1155, %v1453
        %v1541 = vmul.f32 %v1156, %v1455
        %v1542 = vmul.f32 %v1157, %v1457
        %v1543 = vmul.f32 %v1158, %v1459
        %v1544 = vmul.f32 %v1159, %v1461
        %v1545 = vmul.f32 %v1160, %v1463
        %v1546 = vmul.f32 %v1161, %v1465
        %v1547 = vmul.f32 %v1162, %v1467
        %v1548 = vmul.f32 %v1163, %v1469
        %v1549 = vmul.f32 %v1164, %v1471
        %v1550 = vmul.f32 %v1165, %v1473
        %v1551 = vmul.f32 %v1166, %v1475
        %v1552 = vmul.f32 %v1167, %v1477
        %v1553 = vmul.f32 %v1168, %v1479
        %v1554 = vmul.f32 %v1169, %v1481
        %v1555 = vmul.f32 %v1170, %v1483
        %v1556 = vmul.f32 %v1171, %v1485
        %v1557 = vmul.f32 %v1172, %v1487
        %v1558 = vmul.f32 %v1173, %v1489
        %v1559 = vmul.f32 %v1174, %v1491
        %v1560 = vmul.f32 %v1175, %v1493
        %v1561 = vmul.f32 %v1176, %v1495
        %v1562 = vmul.f32 %v1177, %v1497
        %v1563 = vmul.f32 %v1178, %v1499
        %v1564 = vmul.f32 %v1179, %v1501
        %v1565 = vmul.f32 %v1180, %v1503
        %v1566 = vmul.f32 %v1181, %v1505
        %v1567 = vmul.f32 %v1182, %v1507
        %v1568 = vmul.f32 %v1183, %v1509
        %v1569 = vmul.f32 %v1184, %v1511
        %v1570 = vmul.f32 %v1185, %v1513
        %v1571 = vmul.f32 %v1186, %v1515
        %v1572 = vmul.f32 %v1187, %v1517
        %v1573 = vld [vmem:[#allocation7] sm:$0xff]
        %v1574 = vld [vmem:[#allocation7 + $0x8] sm:$0xff]
        %v1575 = vld [vmem:[#allocation7 + $0x10] sm:$0xff]
        %v1576 = vld [vmem:[#allocation7 + $0x18] sm:$0xff]
        %v1577 = vld [vmem:[#allocation7 + $0x20] sm:$0xff]
        %v1578 = vld [vmem:[#allocation7 + $0x28] sm:$0xff]
        %v1579 = vld [vmem:[#allocation7 + $0x30] sm:$0xff]
        %v1580 = vld [vmem:[#allocation7 + $0x38] sm:$0xff]
        %v1581 = vld [vmem:[#allocation7 + $0x40] sm:$0xff]
        %v1582 = vld [vmem:[#allocation7 + $0x48] sm:$0xff]
        %v1583 = vld [vmem:[#allocation7 + $0x50] sm:$0xff]
        %v1584 = vld [vmem:[#allocation7 + $0x58] sm:$0xff]
        %v1585 = vld [vmem:[#allocation7 + $0x60] sm:$0xff]
        %v1586 = vld [vmem:[#allocation7 + $0x68] sm:$0xff]
        %v1587 = vld [vmem:[#allocation7 + $0x70] sm:$0xff]
        %v1588 = vld [vmem:[#allocation7 + $0x78] sm:$0xff]
        %v1589 = vld [vmem:[#allocation7 + $0x80] sm:$0xff]
        %v1590 = vld [vmem:[#allocation7 + $0x88] sm:$0xff]
        %v1591 = vld [vmem:[#allocation7 + $0x90] sm:$0xff]
        %v1592 = vld [vmem:[#allocation7 + $0x98] sm:$0xff]
        %v1593 = vld [vmem:[#allocation7 + $0xa0] sm:$0xff]
        %v1594 = vld [vmem:[#allocation7 + $0xa8] sm:$0xff]
        %v1595 = vld [vmem:[#allocation7 + $0xb0] sm:$0xff]
        %v1596 = vld [vmem:[#allocation7 + $0xb8] sm:$0xff]
        %v1597 = vld [vmem:[#allocation7 + $0xc0] sm:$0xff]
        %v1598 = vld [vmem:[#allocation7 + $0xc8] sm:$0xff]
        %v1599 = vld [vmem:[#allocation7 + $0xd0] sm:$0xff]
        %v1600 = vld [vmem:[#allocation7 + $0xd8] sm:$0xff]
        %v1601 = vld [vmem:[#allocation7 + $0xe0] sm:$0xff]
        %v1602 = vld [vmem:[#allocation7 + $0xe8] sm:$0xff]
        %v1603 = vld [vmem:[#allocation7 + $0xf0] sm:$0xff]
        %v1604 = vld [vmem:[#allocation7 + $0xf8] sm:$0xff]
        %v1605 = vld [vmem:[#allocation7 + $0x100] sm:$0xff]
        %v1606 = vld [vmem:[#allocation7 + $0x108] sm:$0xff]
        %v1607 = vld [vmem:[#allocation7 + $0x110] sm:$0xff]
        %v1608 = vld [vmem:[#allocation7 + $0x118] sm:$0xff]
        %v1609 = vld [vmem:[#allocation7 + $0x120] sm:$0xff]
        %v1610 = vld [vmem:[#allocation7 + $0x128] sm:$0xff]
        %v1611 = vld [vmem:[#allocation7 + $0x130] sm:$0xff]
        %v1612 = vld [vmem:[#allocation7 + $0x138] sm:$0xff]
        %v1613 = vld [vmem:[#allocation7 + $0x140] sm:$0xff]
        %v1614 = vld [vmem:[#allocation7 + $0x148] sm:$0xff]
        %v1615 = vld [vmem:[#allocation7 + $0x150] sm:$0xff]
        %v1616 = vld [vmem:[#allocation7 + $0x158] sm:$0xff]
        %v1617 = vld [vmem:[#allocation7 + $0x160] sm:$0xff]
        %v1618 = vld [vmem:[#allocation7 + $0x168] sm:$0xff]
        %v1619 = vld [vmem:[#allocation7 + $0x170] sm:$0xff]
        %v1620 = vld [vmem:[#allocation7 + $0x178] sm:$0xff]
        %v1621 = vld [vmem:[#allocation7 + $0x180] sm:$0xff]
        %v1622 = vld [vmem:[#allocation7 + $0x188] sm:$0xff]
        %v1623 = vld [vmem:[#allocation7 + $0x190] sm:$0xff]
        %v1624 = vld [vmem:[#allocation7 + $0x198] sm:$0xff]
        %v1625 = vld [vmem:[#allocation7 + $0x1a0] sm:$0xff]
        %v1626 = vld [vmem:[#allocation7 + $0x1a8] sm:$0xff]
        %v1627 = vld [vmem:[#allocation7 + $0x1b0] sm:$0xff]
        %1629 = vset.pattern.permute.xlu0 0
        %1630 = vperm.xlu0 %1629, %v1573
        %v1631 = vpop.permute.xlu0 %1630
        %1634 = vset.pattern.permute.xlu0 0
        %1635 = vperm.xlu0 %1634, %v1574
        %v1636 = vpop.permute.xlu0 %1635
        %1639 = vset.pattern.permute.xlu0 0
        %1640 = vperm.xlu0 %1639, %v1575
        %v1641 = vpop.permute.xlu0 %1640
        %1644 = vset.pattern.permute.xlu0 0
        %1645 = vperm.xlu0 %1644, %v1576
        %v1646 = vpop.permute.xlu0 %1645
        %1649 = vset.pattern.permute.xlu0 0
        %1650 = vperm.xlu0 %1649, %v1577
        %v1651 = vpop.permute.xlu0 %1650
        %1654 = vset.pattern.permute.xlu0 0
        %1655 = vperm.xlu0 %1654, %v1578
        %v1656 = vpop.permute.xlu0 %1655
        %1659 = vset.pattern.permute.xlu0 0
        %1660 = vperm.xlu0 %1659, %v1579
        %v1661 = vpop.permute.xlu0 %1660
        %1664 = vset.pattern.permute.xlu0 0
        %1665 = vperm.xlu0 %1664, %v1580
        %v1666 = vpop.permute.xlu0 %1665
        %1669 = vset.pattern.permute.xlu0 0
        %1670 = vperm.xlu0 %1669, %v1581
        %v1671 = vpop.permute.xlu0 %1670
        %1674 = vset.pattern.permute.xlu0 0
        %1675 = vperm.xlu0 %1674, %v1582
        %v1676 = vpop.permute.xlu0 %1675
        %1679 = vset.pattern.permute.xlu0 0
        %1680 = vperm.xlu0 %1679, %v1583
        %v1681 = vpop.permute.xlu0 %1680
        %1684 = vset.pattern.permute.xlu0 0
        %1685 = vperm.xlu0 %1684, %v1584
        %v1686 = vpop.permute.xlu0 %1685
        %1689 = vset.pattern.permute.xlu0 0
        %1690 = vperm.xlu0 %1689, %v1585
        %v1691 = vpop.permute.xlu0 %1690
        %1694 = vset.pattern.permute.xlu0 0
        %1695 = vperm.xlu0 %1694, %v1586
        %v1696 = vpop.permute.xlu0 %1695
        %1699 = vset.pattern.permute.xlu0 0
        %1700 = vperm.xlu0 %1699, %v1587
        %v1701 = vpop.permute.xlu0 %1700
        %1704 = vset.pattern.permute.xlu0 0
        %1705 = vperm.xlu0 %1704, %v1588
        %v1706 = vpop.permute.xlu0 %1705
        %1709 = vset.pattern.permute.xlu0 0
        %1710 = vperm.xlu0 %1709, %v1589
        %v1711 = vpop.permute.xlu0 %1710
        %1714 = vset.pattern.permute.xlu0 0
        %1715 = vperm.xlu0 %1714, %v1590
        %v1716 = vpop.permute.xlu0 %1715
        %1719 = vset.pattern.permute.xlu0 0
        %1720 = vperm.xlu0 %1719, %v1591
        %v1721 = vpop.permute.xlu0 %1720
        %1724 = vset.pattern.permute.xlu0 0
        %1725 = vperm.xlu0 %1724, %v1592
        %v1726 = vpop.permute.xlu0 %1725
        %1729 = vset.pattern.permute.xlu0 0
        %1730 = vperm.xlu0 %1729, %v1593
        %v1731 = vpop.permute.xlu0 %1730
        %1734 = vset.pattern.permute.xlu0 0
        %1735 = vperm.xlu0 %1734, %v1594
        %v1736 = vpop.permute.xlu0 %1735
        %1739 = vset.pattern.permute.xlu0 0
        %1740 = vperm.xlu0 %1739, %v1595
        %v1741 = vpop.permute.xlu0 %1740
        %1744 = vset.pattern.permute.xlu0 0
        %1745 = vperm.xlu0 %1744, %v1596
        %v1746 = vpop.permute.xlu0 %1745
        %1749 = vset.pattern.permute.xlu0 0
        %1750 = vperm.xlu0 %1749, %v1597
        %v1751 = vpop.permute.xlu0 %1750
        %1754 = vset.pattern.permute.xlu0 0
        %1755 = vperm.xlu0 %1754, %v1598
        %v1756 = vpop.permute.xlu0 %1755
        %1759 = vset.pattern.permute.xlu0 0
        %1760 = vperm.xlu0 %1759, %v1599
        %v1761 = vpop.permute.xlu0 %1760
        %1764 = vset.pattern.permute.xlu0 0
        %1765 = vperm.xlu0 %1764, %v1600
        %v1766 = vpop.permute.xlu0 %1765
        %1769 = vset.pattern.permute.xlu0 0
        %1770 = vperm.xlu0 %1769, %v1601
        %v1771 = vpop.permute.xlu0 %1770
        %1774 = vset.pattern.permute.xlu0 0
        %1775 = vperm.xlu0 %1774, %v1602
        %v1776 = vpop.permute.xlu0 %1775
        %1779 = vset.pattern.permute.xlu0 0
        %1780 = vperm.xlu0 %1779, %v1603
        %v1781 = vpop.permute.xlu0 %1780
        %1784 = vset.pattern.permute.xlu0 0
        %1785 = vperm.xlu0 %1784, %v1604
        %v1786 = vpop.permute.xlu0 %1785
        %1789 = vset.pattern.permute.xlu0 0
        %1790 = vperm.xlu0 %1789, %v1605
        %v1791 = vpop.permute.xlu0 %1790
        %1794 = vset.pattern.permute.xlu0 0
        %1795 = vperm.xlu0 %1794, %v1606
        %v1796 = vpop.permute.xlu0 %1795
        %1799 = vset.pattern.permute.xlu0 0
        %1800 = vperm.xlu0 %1799, %v1607
        %v1801 = vpop.permute.xlu0 %1800
        %1804 = vset.pattern.permute.xlu0 0
        %1805 = vperm.xlu0 %1804, %v1608
        %v1806 = vpop.permute.xlu0 %1805
        %1809 = vset.pattern.permute.xlu0 0
        %1810 = vperm.xlu0 %1809, %v1609
        %v1811 = vpop.permute.xlu0 %1810
        %1814 = vset.pattern.permute.xlu0 0
        %1815 = vperm.xlu0 %1814, %v1610
        %v1816 = vpop.permute.xlu0 %1815
        %1819 = vset.pattern.permute.xlu0 0
        %1820 = vperm.xlu0 %1819, %v1611
        %v1821 = vpop.permute.xlu0 %1820
        %1824 = vset.pattern.permute.xlu0 0
        %1825 = vperm.xlu0 %1824, %v1612
        %v1826 = vpop.permute.xlu0 %1825
        %1829 = vset.pattern.permute.xlu0 0
        %1830 = vperm.xlu0 %1829, %v1613
        %v1831 = vpop.permute.xlu0 %1830
        %1834 = vset.pattern.permute.xlu0 0
        %1835 = vperm.xlu0 %1834, %v1614
        %v1836 = vpop.permute.xlu0 %1835
        %1839 = vset.pattern.permute.xlu0 0
        %1840 = vperm.xlu0 %1839, %v1615
        %v1841 = vpop.permute.xlu0 %1840
        %1844 = vset.pattern.permute.xlu0 0
        %1845 = vperm.xlu0 %1844, %v1616
        %v1846 = vpop.permute.xlu0 %1845
        %1849 = vset.pattern.permute.xlu0 0
        %1850 = vperm.xlu0 %1849, %v1617
        %v1851 = vpop.permute.xlu0 %1850
        %1854 = vset.pattern.permute.xlu0 0
        %1855 = vperm.xlu0 %1854, %v1618
        %v1856 = vpop.permute.xlu0 %1855
        %1859 = vset.pattern.permute.xlu0 0
        %1860 = vperm.xlu0 %1859, %v1619
        %v1861 = vpop.permute.xlu0 %1860
        %1864 = vset.pattern.permute.xlu0 0
        %1865 = vperm.xlu0 %1864, %v1620
        %v1866 = vpop.permute.xlu0 %1865
        %1869 = vset.pattern.permute.xlu0 0
        %1870 = vperm.xlu0 %1869, %v1621
        %v1871 = vpop.permute.xlu0 %1870
        %1874 = vset.pattern.permute.xlu0 0
        %1875 = vperm.xlu0 %1874, %v1622
        %v1876 = vpop.permute.xlu0 %1875
        %1879 = vset.pattern.permute.xlu0 0
        %1880 = vperm.xlu0 %1879, %v1623
        %v1881 = vpop.permute.xlu0 %1880
        %1884 = vset.pattern.permute.xlu0 0
        %1885 = vperm.xlu0 %1884, %v1624
        %v1886 = vpop.permute.xlu0 %1885
        %1889 = vset.pattern.permute.xlu0 0
        %1890 = vperm.xlu0 %1889, %v1625
        %v1891 = vpop.permute.xlu0 %1890
        %1894 = vset.pattern.permute.xlu0 0
        %1895 = vperm.xlu0 %1894, %v1626
        %v1896 = vpop.permute.xlu0 %1895
        %1899 = vset.pattern.permute.xlu0 0
        %1900 = vperm.xlu0 %1899, %v1627
        %v1901 = vpop.permute.xlu0 %1900
        %v1903 = vmul.f32 %v1518, %v1631
        %v1904 = vmul.f32 %v1519, %v1636
        %v1905 = vmul.f32 %v1520, %v1641
        %v1906 = vmul.f32 %v1521, %v1646
        %v1907 = vmul.f32 %v1522, %v1651
        %v1908 = vmul.f32 %v1523, %v1656
        %v1909 = vmul.f32 %v1524, %v1661
        %v1910 = vmul.f32 %v1525, %v1666
        %v1911 = vmul.f32 %v1526, %v1671
        %v1912 = vmul.f32 %v1527, %v1676
        %v1913 = vmul.f32 %v1528, %v1681
        %v1914 = vmul.f32 %v1529, %v1686
        %v1915 = vmul.f32 %v1530, %v1691
        %v1916 = vmul.f32 %v1531, %v1696
        %v1917 = vmul.f32 %v1532, %v1701
        %v1918 = vmul.f32 %v1533, %v1706
        %v1919 = vmul.f32 %v1534, %v1711
        %v1920 = vmul.f32 %v1535, %v1716
        %v1921 = vmul.f32 %v1536, %v1721
        %v1922 = vmul.f32 %v1537, %v1726
        %v1923 = vmul.f32 %v1538, %v1731
        %v1924 = vmul.f32 %v1539, %v1736
        %v1925 = vmul.f32 %v1540, %v1741
        %v1926 = vmul.f32 %v1541, %v1746
        %v1927 = vmul.f32 %v1542, %v1751
        %v1928 = vmul.f32 %v1543, %v1756
        %v1929 = vmul.f32 %v1544, %v1761
        %v1930 = vmul.f32 %v1545, %v1766
        %v1931 = vmul.f32 %v1546, %v1771
        %v1932 = vmul.f32 %v1547, %v1776
        %v1933 = vmul.f32 %v1548, %v1781
        %v1934 = vmul.f32 %v1549, %v1786
        %v1935 = vmul.f32 %v1550, %v1791
        %v1936 = vmul.f32 %v1551, %v1796
        %v1937 = vmul.f32 %v1552, %v1801
        %v1938 = vmul.f32 %v1553, %v1806
        %v1939 = vmul.f32 %v1554, %v1811
        %v1940 = vmul.f32 %v1555, %v1816
        %v1941 = vmul.f32 %v1556, %v1821
        %v1942 = vmul.f32 %v1557, %v1826
        %v1943 = vmul.f32 %v1558, %v1831
        %v1944 = vmul.f32 %v1559, %v1836
        %v1945 = vmul.f32 %v1560, %v1841
        %v1946 = vmul.f32 %v1561, %v1846
        %v1947 = vmul.f32 %v1562, %v1851
        %v1948 = vmul.f32 %v1563, %v1856
        %v1949 = vmul.f32 %v1564, %v1861
        %v1950 = vmul.f32 %v1565, %v1866
        %v1951 = vmul.f32 %v1566, %v1871
        %v1952 = vmul.f32 %v1567, %v1876
        %v1953 = vmul.f32 %v1568, %v1881
        %v1954 = vmul.f32 %v1569, %v1886
        %v1955 = vmul.f32 %v1570, %v1891
        %v1956 = vmul.f32 %v1571, %v1896
        %v1957 = vmul.f32 %v1572, %v1901
        %1958 = vst.msk [vmem:[#allocation2] sm:$0xff] %vm717, %v1903
        %1959 = vst.msk [vmem:[#allocation2 + $0x8] sm:$0xff] %vm717, %v1904
        %1960 = vst.msk [vmem:[#allocation2 + $0x10] sm:$0xff] %vm717, %v1905
        %1961 = vst.msk [vmem:[#allocation2 + $0x18] sm:$0xff] %vm717, %v1906
        %1962 = vst.msk [vmem:[#allocation2 + $0x20] sm:$0xff] %vm717, %v1907
        %1963 = vst.msk [vmem:[#allocation2 + $0x28] sm:$0xff] %vm717, %v1908
        %1964 = vst.msk [vmem:[#allocation2 + $0x30] sm:$0xff] %vm717, %v1909
        %1965 = vst.msk [vmem:[#allocation2 + $0x38] sm:$0xff] %vm717, %v1910
        %1966 = vst.msk [vmem:[#allocation2 + $0x40] sm:$0xff] %vm717, %v1911
        %1967 = vst.msk [vmem:[#allocation2 + $0x48] sm:$0xff] %vm717, %v1912
        %1968 = vst.msk [vmem:[#allocation2 + $0x50] sm:$0xff] %vm717, %v1913
        %1969 = vst.msk [vmem:[#allocation2 + $0x58] sm:$0xff] %vm717, %v1914
        %1970 = vst.msk [vmem:[#allocation2 + $0x60] sm:$0xff] %vm717, %v1915
        %1971 = vst.msk [vmem:[#allocation2 + $0x68] sm:$0xff] %vm717, %v1916
        %1972 = vst.msk [vmem:[#allocation2 + $0x70] sm:$0xff] %vm717, %v1917
        %1973 = vst.msk [vmem:[#allocation2 + $0x78] sm:$0xff] %vm717, %v1918
        %1974 = vst.msk [vmem:[#allocation2 + $0x80] sm:$0xff] %vm717, %v1919
        %1975 = vst.msk [vmem:[#allocation2 + $0x88] sm:$0xff] %vm717, %v1920
        %1976 = vst.msk [vmem:[#allocation2 + $0x90] sm:$0xff] %vm717, %v1921
        %1977 = vst.msk [vmem:[#allocation2 + $0x98] sm:$0xff] %vm717, %v1922
        %1978 = vst.msk [vmem:[#allocation2 + $0xa0] sm:$0xff] %vm717, %v1923
        %1979 = vst.msk [vmem:[#allocation2 + $0xa8] sm:$0xff] %vm717, %v1924
        %1980 = vst.msk [vmem:[#allocation2 + $0xb0] sm:$0xff] %vm717, %v1925
        %1981 = vst.msk [vmem:[#allocation2 + $0xb8] sm:$0xff] %vm717, %v1926
        %1982 = vst.msk [vmem:[#allocation2 + $0xc0] sm:$0xff] %vm717, %v1927
        %1983 = vst.msk [vmem:[#allocation2 + $0xc8] sm:$0xff] %vm717, %v1928
        %1984 = vst.msk [vmem:[#allocation2 + $0xd0] sm:$0xff] %vm717, %v1929
        %1985 = vst.msk [vmem:[#allocation2 + $0xd8] sm:$0xff] %vm717, %v1930
        %1986 = vst.msk [vmem:[#allocation2 + $0xe0] sm:$0xff] %vm717, %v1931
        %1987 = vst.msk [vmem:[#allocation2 + $0xe8] sm:$0xff] %vm717, %v1932
        %1988 = vst.msk [vmem:[#allocation2 + $0xf0] sm:$0xff] %vm717, %v1933
        %1989 = vst.msk [vmem:[#allocation2 + $0xf8] sm:$0xff] %vm717, %v1934
        %1990 = vst.msk [vmem:[#allocation2 + $0x100] sm:$0xff] %vm717, %v1935
        %1991 = vst.msk [vmem:[#allocation2 + $0x108] sm:$0xff] %vm717, %v1936
        %1992 = vst.msk [vmem:[#allocation2 + $0x110] sm:$0xff] %vm717, %v1937
        %1993 = vst.msk [vmem:[#allocation2 + $0x118] sm:$0xff] %vm717, %v1938
        %1994 = vst.msk [vmem:[#allocation2 + $0x120] sm:$0xff] %vm717, %v1939
        %1995 = vst.msk [vmem:[#allocation2 + $0x128] sm:$0xff] %vm717, %v1940
        %1996 = vst.msk [vmem:[#allocation2 + $0x130] sm:$0xff] %vm717, %v1941
        %1997 = vst.msk [vmem:[#allocation2 + $0x138] sm:$0xff] %vm717, %v1942
        %1998 = vst.msk [vmem:[#allocation2 + $0x140] sm:$0xff] %vm717, %v1943
        %1999 = vst.msk [vmem:[#allocation2 + $0x148] sm:$0xff] %vm717, %v1944
        %2000 = vst.msk [vmem:[#allocation2 + $0x150] sm:$0xff] %vm717, %v1945
        %2001 = vst.msk [vmem:[#allocation2 + $0x158] sm:$0xff] %vm717, %v1946
        %2002 = vst.msk [vmem:[#allocation2 + $0x160] sm:$0xff] %vm717, %v1947
        %2003 = vst.msk [vmem:[#allocation2 + $0x168] sm:$0xff] %vm717, %v1948
        %2004 = vst.msk [vmem:[#allocation2 + $0x170] sm:$0xff] %vm717, %v1949
        %2005 = vst.msk [vmem:[#allocation2 + $0x178] sm:$0xff] %vm717, %v1950
        %2006 = vst.msk [vmem:[#allocation2 + $0x180] sm:$0xff] %vm717, %v1951
        %2007 = vst.msk [vmem:[#allocation2 + $0x188] sm:$0xff] %vm717, %v1952
        %2008 = vst.msk [vmem:[#allocation2 + $0x190] sm:$0xff] %vm717, %v1953
        %2009 = vst.msk [vmem:[#allocation2 + $0x198] sm:$0xff] %vm717, %v1954
        %2010 = vst.msk [vmem:[#allocation2 + $0x1a0] sm:$0xff] %vm717, %v1955
        %2011 = vst.msk [vmem:[#allocation2 + $0x1a8] sm:$0xff] %vm717, %v1956
        %2012 = vst.msk [vmem:[#allocation2 + $0x1b0] sm:$0xff] %vm717, %v1957
        %v2013 = vld [vmem:[#allocation2] sm:$0xff]
        %v2014 = vld [vmem:[#allocation2 + $0x8] sm:$0xff]
        %v2015 = vld [vmem:[#allocation2 + $0x10] sm:$0xff]
        %v2016 = vld [vmem:[#allocation2 + $0x18] sm:$0xff]
        %v2017 = vld [vmem:[#allocation2 + $0x20] sm:$0xff]
        %v2018 = vld [vmem:[#allocation2 + $0x28] sm:$0xff]
        %v2019 = vld [vmem:[#allocation2 + $0x30] sm:$0xff]
        %v2020 = vld [vmem:[#allocation2 + $0x38] sm:$0xff]
        %v2021 = vld [vmem:[#allocation2 + $0x40] sm:$0xff]
        %v2022 = vld [vmem:[#allocation2 + $0x48] sm:$0xff]
        %v2023 = vld [vmem:[#allocation2 + $0x50] sm:$0xff]
        %v2024 = vld [vmem:[#allocation2 + $0x58] sm:$0xff]
        %v2025 = vld [vmem:[#allocation2 + $0x60] sm:$0xff]
        %v2026 = vld [vmem:[#allocation2 + $0x68] sm:$0xff]
        %v2027 = vld [vmem:[#allocation2 + $0x70] sm:$0xff]
        %v2028 = vld [vmem:[#allocation2 + $0x78] sm:$0xff]
        %v2029 = vld [vmem:[#allocation2 + $0x80] sm:$0xff]
        %v2030 = vld [vmem:[#allocation2 + $0x88] sm:$0xff]
        %v2031 = vld [vmem:[#allocation2 + $0x90] sm:$0xff]
        %v2032 = vld [vmem:[#allocation2 + $0x98] sm:$0xff]
        %v2033 = vld [vmem:[#allocation2 + $0xa0] sm:$0xff]
        %v2034 = vld [vmem:[#allocation2 + $0xa8] sm:$0xff]
        %v2035 = vld [vmem:[#allocation2 + $0xb0] sm:$0xff]
        %v2036 = vld [vmem:[#allocation2 + $0xb8] sm:$0xff]
        %v2037 = vld [vmem:[#allocation2 + $0xc0] sm:$0xff]
        %v2038 = vld [vmem:[#allocation2 + $0xc8] sm:$0xff]
        %v2039 = vld [vmem:[#allocation2 + $0xd0] sm:$0xff]
        %v2040 = vld [vmem:[#allocation2 + $0xd8] sm:$0xff]
        %v2041 = vld [vmem:[#allocation2 + $0xe0] sm:$0xff]
        %v2042 = vld [vmem:[#allocation2 + $0xe8] sm:$0xff]
        %v2043 = vld [vmem:[#allocation2 + $0xf0] sm:$0xff]
        %v2044 = vld [vmem:[#allocation2 + $0xf8] sm:$0xff]
        %v2045 = vld [vmem:[#allocation2 + $0x100] sm:$0xff]
        %v2046 = vld [vmem:[#allocation2 + $0x108] sm:$0xff]
        %v2047 = vld [vmem:[#allocation2 + $0x110] sm:$0xff]
        %v2048 = vld [vmem:[#allocation2 + $0x118] sm:$0xff]
        %v2049 = vld [vmem:[#allocation2 + $0x120] sm:$0xff]
        %v2050 = vld [vmem:[#allocation2 + $0x128] sm:$0xff]
        %v2051 = vld [vmem:[#allocation2 + $0x130] sm:$0xff]
        %v2052 = vld [vmem:[#allocation2 + $0x138] sm:$0xff]
        %v2053 = vld [vmem:[#allocation2 + $0x140] sm:$0xff]
        %v2054 = vld [vmem:[#allocation2 + $0x148] sm:$0xff]
        %v2055 = vld [vmem:[#allocation2 + $0x150] sm:$0xff]
        %v2056 = vld [vmem:[#allocation2 + $0x158] sm:$0xff]
        %v2057 = vld [vmem:[#allocation2 + $0x160] sm:$0xff]
        %v2058 = vld [vmem:[#allocation2 + $0x168] sm:$0xff]
        %v2059 = vld [vmem:[#allocation2 + $0x170] sm:$0xff]
        %v2060 = vld [vmem:[#allocation2 + $0x178] sm:$0xf]
        %v2061 = vpack.c.bf16 %v2014, %v2013
        %v2062 = vpack.c.bf16 %v2016, %v2015
        %v2063 = vpack.c.bf16 %v2018, %v2017
        %v2064 = vpack.c.bf16 %v2020, %v2019
        %v2065 = vpack.c.bf16 %v2022, %v2021
        %v2066 = vpack.c.bf16 %v2024, %v2023
        %v2067 = vpack.c.bf16 %v2026, %v2025
        %v2068 = vpack.c.bf16 %v2028, %v2027
        %v2069 = vpack.c.bf16 %v2030, %v2029
        %v2070 = vpack.c.bf16 %v2032, %v2031
        %v2071 = vpack.c.bf16 %v2034, %v2033
        %v2072 = vpack.c.bf16 %v2036, %v2035
        %v2073 = vpack.c.bf16 %v2038, %v2037
        %v2074 = vpack.c.bf16 %v2040, %v2039
        %v2075 = vpack.c.bf16 %v2042, %v2041
        %v2076 = vpack.c.bf16 %v2044, %v2043
        %v2077 = vpack.c.bf16 %v2046, %v2045
        %v2078 = vpack.c.bf16 %v2048, %v2047
        %v2079 = vpack.c.bf16 %v2050, %v2049
        %v2080 = vpack.c.bf16 %v2052, %v2051
        %v2081 = vpack.c.bf16 %v2054, %v2053
        %v2082 = vpack.c.bf16 %v2056, %v2055
        %v2083 = vpack.c.bf16 %v2058, %v2057
        %v2084 = vpack.c.bf16 %v2060, %v2059
        %v2085 = vld [vmem:[#allocation13] sm:$0xf]
        %v2086 = vld [vmem:[#allocation13 + $0x4] sm:$0xf]
        %v2087 = vld [vmem:[#allocation13 + $0x8] sm:$0xf]
        %v2088 = vld [vmem:[#allocation13 + $0xc] sm:$0xf]
        %v2089 = vld [vmem:[#allocation2 + $0x1] sm:$0xff]
        %v2090 = vld [vmem:[#allocation2 + $0x9] sm:$0xff]
        %v2091 = vld [vmem:[#allocation2 + $0x11] sm:$0xff]
        %v2092 = vld [vmem:[#allocation2 + $0x19] sm:$0xff]
        %v2093 = vld [vmem:[#allocation2 + $0x21] sm:$0xff]
        %v2094 = vld [vmem:[#allocation2 + $0x29] sm:$0xff]
        %v2095 = vld [vmem:[#allocation2 + $0x31] sm:$0xff]
        %v2096 = vld [vmem:[#allocation2 + $0x39] sm:$0xff]
        %v2097 = vld [vmem:[#allocation2 + $0x41] sm:$0xff]
        %v2098 = vld [vmem:[#allocation2 + $0x49] sm:$0xff]
        %v2099 = vld [vmem:[#allocation2 + $0x51] sm:$0xff]
        %v2100 = vld [vmem:[#allocation2 + $0x59] sm:$0xff]
        %v2101 = vld [vmem:[#allocation2 + $0x61] sm:$0xff]
        %v2102 = vld [vmem:[#allocation2 + $0x69] sm:$0xff]
        %v2103 = vld [vmem:[#allocation2 + $0x71] sm:$0xff]
        %v2104 = vld [vmem:[#allocation2 + $0x79] sm:$0xff]
        %v2105 = vld [vmem:[#allocation2 + $0x81] sm:$0xff]
        %v2106 = vld [vmem:[#allocation2 + $0x89] sm:$0xff]
        %v2107 = vld [vmem:[#allocation2 + $0x91] sm:$0xff]
        %v2108 = vld [vmem:[#allocation2 + $0x99] sm:$0xff]
        %v2109 = vld [vmem:[#allocation2 + $0xa1] sm:$0xff]
        %v2110 = vld [vmem:[#allocation2 + $0xa9] sm:$0xff]
        %v2111 = vld [vmem:[#allocation2 + $0xb1] sm:$0xff]
        %v2112 = vld [vmem:[#allocation2 + $0xb9] sm:$0xff]
        %v2113 = vld [vmem:[#allocation2 + $0xc1] sm:$0xff]
        %v2114 = vld [vmem:[#allocation2 + $0xc9] sm:$0xff]
        %v2115 = vld [vmem:[#allocation2 + $0xd1] sm:$0xff]
        %v2116 = vld [vmem:[#allocation2 + $0xd9] sm:$0xff]
        %v2117 = vld [vmem:[#allocation2 + $0xe1] sm:$0xff]
        %v2118 = vld [vmem:[#allocation2 + $0xe9] sm:$0xff]
        %v2119 = vld [vmem:[#allocation2 + $0xf1] sm:$0xff]
        %v2120 = vld [vmem:[#allocation2 + $0xf9] sm:$0xff]
        %v2121 = vld [vmem:[#allocation2 + $0x101] sm:$0xff]
        %v2122 = vld [vmem:[#allocation2 + $0x109] sm:$0xff]
        %v2123 = vld [vmem:[#allocation2 + $0x111] sm:$0xff]
        %v2124 = vld [vmem:[#allocation2 + $0x119] sm:$0xff]
        %v2125 = vld [vmem:[#allocation2 + $0x121] sm:$0xff]
        %v2126 = vld [vmem:[#allocation2 + $0x129] sm:$0xff]
        %v2127 = vld [vmem:[#allocation2 + $0x131] sm:$0xff]
        %v2128 = vld [vmem:[#allocation2 + $0x139] sm:$0xff]
        %v2129 = vld [vmem:[#allocation2 + $0x141] sm:$0xff]
        %v2130 = vld [vmem:[#allocation2 + $0x149] sm:$0xff]
        %v2131 = vld [vmem:[#allocation2 + $0x151] sm:$0xff]
        %v2132 = vld [vmem:[#allocation2 + $0x159] sm:$0xff]
        %v2133 = vld [vmem:[#allocation2 + $0x161] sm:$0xff]
        %v2134 = vld [vmem:[#allocation2 + $0x169] sm:$0xff]
        %v2135 = vld [vmem:[#allocation2 + $0x171] sm:$0xff]
        %v2136 = vld [vmem:[#allocation2 + $0x179] sm:$0xf]
        %v2137 = vpack.c.bf16 %v2090, %v2089
        %v2138 = vpack.c.bf16 %v2092, %v2091
        %v2139 = vpack.c.bf16 %v2094, %v2093
        %v2140 = vpack.c.bf16 %v2096, %v2095
        %v2141 = vpack.c.bf16 %v2098, %v2097
        %v2142 = vpack.c.bf16 %v2100, %v2099
        %v2143 = vpack.c.bf16 %v2102, %v2101
        %v2144 = vpack.c.bf16 %v2104, %v2103
        %v2145 = vpack.c.bf16 %v2106, %v2105
        %v2146 = vpack.c.bf16 %v2108, %v2107
        %v2147 = vpack.c.bf16 %v2110, %v2109
        %v2148 = vpack.c.bf16 %v2112, %v2111
        %v2149 = vpack.c.bf16 %v2114, %v2113
        %v2150 = vpack.c.bf16 %v2116, %v2115
        %v2151 = vpack.c.bf16 %v2118, %v2117
        %v2152 = vpack.c.bf16 %v2120, %v2119
        %v2153 = vpack.c.bf16 %v2122, %v2121
        %v2154 = vpack.c.bf16 %v2124, %v2123
        %v2155 = vpack.c.bf16 %v2126, %v2125
        %v2156 = vpack.c.bf16 %v2128, %v2127
        %v2157 = vpack.c.bf16 %v2130, %v2129
        %v2158 = vpack.c.bf16 %v2132, %v2131
        %v2159 = vpack.c.bf16 %v2134, %v2133
        %v2160 = vpack.c.bf16 %v2136, %v2135
        %s2161 = scalar_lea.vmem [#allocation13], 16
        %v2162 = vld [vmem:[%s2161] sm:$0xf]
        %v2163 = vld [vmem:[%s2161 + $0x4] sm:$0xf]
        %v2164 = vld [vmem:[%s2161 + $0x8] sm:$0xf]
        %v2165 = vld [vmem:[%s2161 + $0xc] sm:$0xf]
        %v2170 = vunpack.c.l.b16 %v2162
        %v2171 = vunpack.c.l.b16 %v2163
        %v2172 = vunpack.c.l.b16 %v2164
        %v2173 = vunpack.c.l.b16 %v2165
        %v2174 = vpack.c.b16 %v2171, %v2170
        %v2175 = vpack.c.b16 %v2173, %v2172
        %v2179 = vsel %vm717, %v2137, 0
        %v2182 = vsel %vm717, %v2138, 0
        %v2185 = vsel %vm717, %v2139, 0
        %v2188 = vsel %vm717, %v2140, 0
        %v2191 = vsel %vm717, %v2141, 0
        %v2194 = vsel %vm717, %v2142, 0
        %v2197 = vsel %vm717, %v2143, 0
        %v2200 = vsel %vm717, %v2144, 0
        %v2203 = vsel %vm717, %v2145, 0
        %v2206 = vsel %vm717, %v2146, 0
        %v2209 = vsel %vm717, %v2147, 0
        %v2212 = vsel %vm717, %v2148, 0
        %v2215 = vsel %vm717, %v2149, 0
        %v2218 = vsel %vm717, %v2150, 0
        %v2221 = vsel %vm717, %v2151, 0
        %v2224 = vsel %vm717, %v2152, 0
        %v2227 = vsel %vm717, %v2153, 0
        %v2230 = vsel %vm717, %v2154, 0
        %v2233 = vsel %vm717, %v2155, 0
        %v2236 = vsel %vm717, %v2156, 0
        %v2239 = vsel %vm717, %v2157, 0
        %v2242 = vsel %vm717, %v2158, 0
        %v2245 = vsel %vm717, %v2159, 0
        %v2248 = vsel %vm717, %v2160, 0
        %2250 = vmatprep.subr.bf16.mxu0 0
        %2251 = vmatpush1.bf16.msra.mxu0 %v2174
        %2252 = vmatprep.subr.bf16.mxu0 0
        %2253 = vmatpush1.bf16.msra.mxu0 %v2175
        %2254 = vmatprep.subr.bf16.mxu0 0
        %2255 = vmatpush1.bf16.msra.mxu0 0
        %2256 = vmatprep.subr.bf16.mxu0 0
        %2257 = vmatpush1.bf16.msra.mxu0 0
        %2258 = vmatprep.subr.bf16.mxu0 0
        %2259 = vmatpush1.bf16.msra.mxu0 0
        %2260 = vmatprep.subr.bf16.mxu0 0
        %2261 = vmatpush1.bf16.msra.mxu0 0
        %2262 = vmatprep.subr.bf16.mxu0 0
        %2263 = vmatpush1.bf16.msra.mxu0 0
        %2264 = vmatprep.subr.bf16.mxu0 0
        %2265 = vmatpush1.bf16.msra.mxu0 0
        %2266 = vmatprep.subr.bf16.mxu0 0
        %2267 = vmatpush1.bf16.msra.mxu0 0
        %2268 = vmatprep.subr.bf16.mxu0 0
        %2269 = vmatpush1.bf16.msra.mxu0 0
        %2270 = vmatprep.subr.bf16.mxu0 0
        %2271 = vmatpush1.bf16.msra.mxu0 0
        %2272 = vmatprep.subr.bf16.mxu0 0
        %2273 = vmatpush1.bf16.msra.mxu0 0
        %2274 = vmatprep.subr.bf16.mxu0 0
        %2275 = vmatpush1.bf16.msra.mxu0 0
        %2276 = vmatprep.subr.bf16.mxu0 0
        %2277 = vmatpush1.bf16.msra.mxu0 0
        %2278 = vmatprep.subr.bf16.mxu0 0
        %2279 = vmatpush1.bf16.msra.mxu0 0
        %2280 = vmatprep.subr.bf16.mxu0 0
        %2281 = vmatpush1.bf16.msra.mxu0 0
        %2282 = vmatprep.mubr.bf16.mxu0 0
        %2283 = vmatmul.mubr.bf16.gmra.mrb[0].mxu0 %v2179
        %v2284 = vpop.f32.mrb[0].mxu0
        %v2285 = vadd.f32 0.0, %v2284
        %v2286 = vpop.f32.mrb[0].mxu0
        %v2287 = vpop.f32.mrb[0].mxu0
        %v2288 = vadd.f32 0.0, %v2287
        %v2289 = vpop.f32.mrb[0].mxu0
        %2290 = vmatprep.mubr.bf16.mxu0 0
        %2291 = vmatmul.mubr.bf16.gmra.mrb[0].mxu0 %v2182
        %v2292 = vpop.f32.mrb[0].mxu0
        %v2293 = vadd.f32 0.0, %v2292
        %v2294 = vpop.f32.mrb[0].mxu0
        %v2295 = vpop.f32.mrb[0].mxu0
        %v2296 = vadd.f32 0.0, %v2295
        %v2297 = vpop.f32.mrb[0].mxu0
        %2298 = vmatprep.mubr.bf16.mxu0 0
        %2299 = vmatmul.mubr.bf16.gmra.mrb[0].mxu0 %v2185
        %v2300 = vpop.f32.mrb[0].mxu0
        %v2301 = vadd.f32 0.0, %v2300
        %v2302 = vpop.f32.mrb[0].mxu0
        %v2303 = vpop.f32.mrb[0].mxu0
        %v2304 = vadd.f32 0.0, %v2303
        %v2305 = vpop.f32.mrb[0].mxu0
        %2306 = vmatprep.mubr.bf16.mxu0 0
        %2307 = vmatmul.mubr.bf16.gmra.mrb[0].mxu0 %v2188
        %v2308 = vpop.f32.mrb[0].mxu0
        %v2309 = vadd.f32 0.0, %v2308
        %v2310 = vpop.f32.mrb[0].mxu0
        %v2311 = vpop.f32.mrb[0].mxu0
        %v2312 = vadd.f32 0.0, %v2311
        %v2313 = vpop.f32.mrb[0].mxu0
        %2314 = vmatprep.mubr.bf16.mxu0 0
        %2315 = vmatmul.mubr.bf16.gmra.mrb[0].mxu0 %v2191
        %v2316 = vpop.f32.mrb[0].mxu0
        %v2317 = vadd.f32 0.0, %v2316
        %v2318 = vpop.f32.mrb[0].mxu0
        %v2319 = vpop.f32.mrb[0].mxu0
        %v2320 = vadd.f32 0.0, %v2319
        %v2321 = vpop.f32.mrb[0].mxu0
        %2322 = vmatprep.mubr.bf16.mxu0 0
        %2323 = vmatmul.mubr.bf16.gmra.mrb[0].mxu0 %v2194
        %v2324 = vpop.f32.mrb[0].mxu0
        %v2325 = vadd.f32 0.0, %v2324
        %v2326 = vpop.f32.mrb[0].mxu0
        %v2327 = vpop.f32.mrb[0].mxu0
        %v2328 = vadd.f32 0.0, %v2327
        %v2329 = vpop.f32.mrb[0].mxu0
        %2330 = vmatprep.mubr.bf16.mxu0 0
        %2331 = vmatmul.mubr.bf16.gmra.mrb[0].mxu0 %v2197
        %v2332 = vpop.f32.mrb[0].mxu0
        %v2333 = vadd.f32 0.0, %v2332
        %v2334 = vpop.f32.mrb[0].mxu0
        %v2335 = vpop.f32.mrb[0].mxu0
        %v2336 = vadd.f32 0.0, %v2335
        %v2337 = vpop.f32.mrb[0].mxu0
        %2338 = vmatprep.mubr.bf16.mxu0 0
        %2339 = vmatmul.mubr.bf16.gmra.mrb[0].mxu0 %v2200
        %v2340 = vpop.f32.mrb[0].mxu0
        %v2341 = vadd.f32 0.0, %v2340
        %v2342 = vpop.f32.mrb[0].mxu0
        %v2343 = vpop.f32.mrb[0].mxu0
        %v2344 = vadd.f32 0.0, %v2343
        %v2345 = vpop.f32.mrb[0].mxu0
        %2346 = vmatprep.mubr.bf16.mxu0 0
        %2347 = vmatmul.mubr.bf16.gmra.mrb[0].mxu0 %v2203
        %v2348 = vpop.f32.mrb[0].mxu0
        %v2349 = vadd.f32 0.0, %v2348
        %v2350 = vpop.f32.mrb[0].mxu0
        %v2351 = vpop.f32.mrb[0].mxu0
        %v2352 = vadd.f32 0.0, %v2351
        %v2353 = vpop.f32.mrb[0].mxu0
        %2354 = vmatprep.mubr.bf16.mxu0 0
        %2355 = vmatmul.mubr.bf16.gmra.mrb[0].mxu0 %v2206
        %v2356 = vpop.f32.mrb[0].mxu0
        %v2357 = vadd.f32 0.0, %v2356
        %v2358 = vpop.f32.mrb[0].mxu0
        %v2359 = vpop.f32.mrb[0].mxu0
        %v2360 = vadd.f32 0.0, %v2359
        %v2361 = vpop.f32.mrb[0].mxu0
        %2362 = vmatprep.mubr.bf16.mxu0 0
        %2363 = vmatmul.mubr.bf16.gmra.mrb[0].mxu0 %v2209
        %v2364 = vpop.f32.mrb[0].mxu0
        %v2365 = vadd.f32 0.0, %v2364
        %v2366 = vpop.f32.mrb[0].mxu0
        %v2367 = vpop.f32.mrb[0].mxu0
        %v2368 = vadd.f32 0.0, %v2367
        %v2369 = vpop.f32.mrb[0].mxu0
        %2370 = vmatprep.mubr.bf16.mxu0 0
        %2371 = vmatmul.mubr.bf16.gmra.mrb[0].mxu0 %v2212
        %v2372 = vpop.f32.mrb[0].mxu0
        %v2373 = vadd.f32 0.0, %v2372
        %v2374 = vpop.f32.mrb[0].mxu0
        %v2375 = vpop.f32.mrb[0].mxu0
        %v2376 = vadd.f32 0.0, %v2375
        %v2377 = vpop.f32.mrb[0].mxu0
        %2378 = vmatprep.mubr.bf16.mxu0 0
        %2379 = vmatmul.mubr.bf16.gmra.mrb[0].mxu0 %v2215
        %v2380 = vpop.f32.mrb[0].mxu0
        %v2381 = vadd.f32 0.0, %v2380
        %v2382 = vpop.f32.mrb[0].mxu0
        %v2383 = vpop.f32.mrb[0].mxu0
        %v2384 = vadd.f32 0.0, %v2383
        %v2385 = vpop.f32.mrb[0].mxu0
        %2386 = vmatprep.mubr.bf16.mxu0 0
        %2387 = vmatmul.mubr.bf16.gmra.mrb[0].mxu0 %v2218
        %v2388 = vpop.f32.mrb[0].mxu0
        %v2389 = vadd.f32 0.0, %v2388
        %v2390 = vpop.f32.mrb[0].mxu0
        %v2391 = vpop.f32.mrb[0].mxu0
        %v2392 = vadd.f32 0.0, %v2391
        %v2393 = vpop.f32.mrb[0].mxu0
        %2394 = vmatprep.mubr.bf16.mxu0 0
        %2395 = vmatmul.mubr.bf16.gmra.mrb[0].mxu0 %v2221
        %v2396 = vpop.f32.mrb[0].mxu0
        %v2397 = vadd.f32 0.0, %v2396
        %v2398 = vpop.f32.mrb[0].mxu0
        %v2399 = vpop.f32.mrb[0].mxu0
        %v2400 = vadd.f32 0.0, %v2399
        %v2401 = vpop.f32.mrb[0].mxu0
        %2402 = vmatprep.mubr.bf16.mxu0 0
        %2403 = vmatmul.mubr.bf16.gmra.mrb[0].mxu0 %v2224
        %v2404 = vpop.f32.mrb[0].mxu0
        %v2405 = vadd.f32 0.0, %v2404
        %v2406 = vpop.f32.mrb[0].mxu0
        %v2407 = vpop.f32.mrb[0].mxu0
        %v2408 = vadd.f32 0.0, %v2407
        %v2409 = vpop.f32.mrb[0].mxu0
        %2410 = vmatprep.mubr.bf16.mxu0 0
        %2411 = vmatmul.mubr.bf16.gmra.mrb[0].mxu0 %v2227
        %v2412 = vpop.f32.mrb[0].mxu0
        %v2413 = vadd.f32 0.0, %v2412
        %v2414 = vpop.f32.mrb[0].mxu0
        %v2415 = vpop.f32.mrb[0].mxu0
        %v2416 = vadd.f32 0.0, %v2415
        %v2417 = vpop.f32.mrb[0].mxu0
        %2418 = vmatprep.mubr.bf16.mxu0 0
        %2419 = vmatmul.mubr.bf16.gmra.mrb[0].mxu0 %v2230
        %v2420 = vpop.f32.mrb[0].mxu0
        %v2421 = vadd.f32 0.0, %v2420
        %v2422 = vpop.f32.mrb[0].mxu0
        %v2423 = vpop.f32.mrb[0].mxu0
        %v2424 = vadd.f32 0.0, %v2423
        %v2425 = vpop.f32.mrb[0].mxu0
        %2426 = vmatprep.mubr.bf16.mxu0 0
        %2427 = vmatmul.mubr.bf16.gmra.mrb[0].mxu0 %v2233
        %v2428 = vpop.f32.mrb[0].mxu0
        %v2429 = vadd.f32 0.0, %v2428
        %v2430 = vpop.f32.mrb[0].mxu0
        %v2431 = vpop.f32.mrb[0].mxu0
        %v2432 = vadd.f32 0.0, %v2431
        %v2433 = vpop.f32.mrb[0].mxu0
        %2434 = vmatprep.mubr.bf16.mxu0 0
        %2435 = vmatmul.mubr.bf16.gmra.mrb[0].mxu0 %v2236
        %v2436 = vpop.f32.mrb[0].mxu0
        %v2437 = vadd.f32 0.0, %v2436
        %v2438 = vpop.f32.mrb[0].mxu0
        %v2439 = vpop.f32.mrb[0].mxu0
        %v2440 = vadd.f32 0.0, %v2439
        %v2441 = vpop.f32.mrb[0].mxu0
        %2442 = vmatprep.mubr.bf16.mxu0 0
        %2443 = vmatmul.mubr.bf16.gmra.mrb[0].mxu0 %v2239
        %v2444 = vpop.f32.mrb[0].mxu0
        %v2445 = vadd.f32 0.0, %v2444
        %v2446 = vpop.f32.mrb[0].mxu0
        %v2447 = vpop.f32.mrb[0].mxu0
        %v2448 = vadd.f32 0.0, %v2447
        %v2449 = vpop.f32.mrb[0].mxu0
        %2450 = vmatprep.mubr.bf16.mxu0 0
        %2451 = vmatmul.mubr.bf16.gmra.mrb[0].mxu0 %v2242
        %v2452 = vpop.f32.mrb[0].mxu0
        %v2453 = vadd.f32 0.0, %v2452
        %v2454 = vpop.f32.mrb[0].mxu0
        %v2455 = vpop.f32.mrb[0].mxu0
        %v2456 = vadd.f32 0.0, %v2455
        %v2457 = vpop.f32.mrb[0].mxu0
        %2458 = vmatprep.mubr.bf16.mxu0 0
        %2459 = vmatmul.mubr.bf16.gmra.mrb[0].mxu0 %v2245
        %v2460 = vpop.f32.mrb[0].mxu0
        %v2461 = vadd.f32 0.0, %v2460
        %v2462 = vpop.f32.mrb[0].mxu0
        %v2463 = vpop.f32.mrb[0].mxu0
        %v2464 = vadd.f32 0.0, %v2463
        %v2465 = vpop.f32.mrb[0].mxu0
        %2466 = vmatprep.mubr.bf16.mxu0 0
        %2467 = vmatmul.mubr.bf16.gmra.mrb[0].mxu0 %v2248
        %v2468 = vpop.f32.mrb[0].mxu0
        %v2469 = vadd.f32 0.0, %v2468
        %v2470 = vpop.f32.mrb[0].mxu0
        %v2471 = vpop.f32.mrb[0].mxu0
        %v2472 = vadd.f32 0.0, %v2471
        %v2473 = vpop.f32.mrb[0].mxu0
        %2474 = vdwg.mxu0
        %v2479 = vunpack.c.l.b16 %v2085
        %v2480 = vunpack.c.l.b16 %v2086
        %v2481 = vunpack.c.l.b16 %v2087
        %v2482 = vunpack.c.l.b16 %v2088
        %v2483 = vpack.c.b16 %v2480, %v2479
        %v2484 = vpack.c.b16 %v2482, %v2481
        %v2488 = vsel %vm717, %v2061, 0
        %v2491 = vsel %vm717, %v2062, 0
        %v2494 = vsel %vm717, %v2063, 0
        %v2497 = vsel %vm717, %v2064, 0
        %v2500 = vsel %vm717, %v2065, 0
        %v2503 = vsel %vm717, %v2066, 0
        %v2506 = vsel %vm717, %v2067, 0
        %v2509 = vsel %vm717, %v2068, 0
        %v2512 = vsel %vm717, %v2069, 0
        %v2515 = vsel %vm717, %v2070, 0
        %v2518 = vsel %vm717, %v2071, 0
        %v2521 = vsel %vm717, %v2072, 0
        %v2524 = vsel %vm717, %v2073, 0
        %v2527 = vsel %vm717, %v2074, 0
        %v2530 = vsel %vm717, %v2075, 0
        %v2533 = vsel %vm717, %v2076, 0
        %v2536 = vsel %vm717, %v2077, 0
        %v2539 = vsel %vm717, %v2078, 0
        %v2542 = vsel %vm717, %v2079, 0
        %v2545 = vsel %vm717, %v2080, 0
        %v2548 = vsel %vm717, %v2081, 0
        %v2551 = vsel %vm717, %v2082, 0
        %v2554 = vsel %vm717, %v2083, 0
        %v2557 = vsel %vm717, %v2084, 0
        %2559 = vmatprep.subr.bf16.mxu0 0
        %2560 = vmatpush1.bf16.msra.mxu0 %v2483
        %2561 = vmatprep.subr.bf16.mxu0 0
        %2562 = vmatpush1.bf16.msra.mxu0 %v2484
        %2563 = vmatprep.subr.bf16.mxu0 0
        %2564 = vmatpush1.bf16.msra.mxu0 0
        %2565 = vmatprep.subr.bf16.mxu0 0
        %2566 = vmatpush1.bf16.msra.mxu0 0
        %2567 = vmatprep.subr.bf16.mxu0 0
        %2568 = vmatpush1.bf16.msra.mxu0 0
        %2569 = vmatprep.subr.bf16.mxu0 0
        %2570 = vmatpush1.bf16.msra.mxu0 0
        %2571 = vmatprep.subr.bf16.mxu0 0
        %2572 = vmatpush1.bf16.msra.mxu0 0
        %2573 = vmatprep.subr.bf16.mxu0 0
        %2574 = vmatpush1.bf16.msra.mxu0 0
        %2575 = vmatprep.subr.bf16.mxu0 0
        %2576 = vmatpush1.bf16.msra.mxu0 0
        %2577 = vmatprep.subr.bf16.mxu0 0
        %2578 = vmatpush1.bf16.msra.mxu0 0
        %2579 = vmatprep.subr.bf16.mxu0 0
        %2580 = vmatpush1.bf16.msra.mxu0 0
        %2581 = vmatprep.subr.bf16.mxu0 0
        %2582 = vmatpush1.bf16.msra.mxu0 0
        %2583 = vmatprep.subr.bf16.mxu0 0
        %2584 = vmatpush1.bf16.msra.mxu0 0
        %2585 = vmatprep.subr.bf16.mxu0 0
        %2586 = vmatpush1.bf16.msra.mxu0 0
        %2587 = vmatprep.subr.bf16.mxu0 0
        %2588 = vmatpush1.bf16.msra.mxu0 0
        %2589 = vmatprep.subr.bf16.mxu0 0
        %2590 = vmatpush1.bf16.msra.mxu0 0
        %2591 = vmatprep.mubr.bf16.mxu0 0
        %2592 = vmatmul.mubr.bf16.gmra.mrb[0].mxu0 %v2488
        %v2593 = vpop.f32.mrb[0].mxu0
        %v2594 = vadd.f32 %v2285, %v2593
        %v2595 = vpop.f32.mrb[0].mxu0
        %v2596 = vpop.f32.mrb[0].mxu0
        %v2597 = vadd.f32 %v2288, %v2596
        %v2598 = vpop.f32.mrb[0].mxu0
        %2599 = vmatprep.mubr.bf16.mxu0 0
        %2600 = vmatmul.mubr.bf16.gmra.mrb[0].mxu0 %v2491
        %v2601 = vpop.f32.mrb[0].mxu0
        %v2602 = vadd.f32 %v2293, %v2601
        %v2603 = vpop.f32.mrb[0].mxu0
        %v2604 = vpop.f32.mrb[0].mxu0
        %v2605 = vadd.f32 %v2296, %v2604
        %v2606 = vpop.f32.mrb[0].mxu0
        %2607 = vmatprep.mubr.bf16.mxu0 0
        %2608 = vmatmul.mubr.bf16.gmra.mrb[0].mxu0 %v2494
        %v2609 = vpop.f32.mrb[0].mxu0
        %v2610 = vadd.f32 %v2301, %v2609
        %v2611 = vpop.f32.mrb[0].mxu0
        %v2612 = vpop.f32.mrb[0].mxu0
        %v2613 = vadd.f32 %v2304, %v2612
        %v2614 = vpop.f32.mrb[0].mxu0
        %2615 = vmatprep.mubr.bf16.mxu0 0
        %2616 = vmatmul.mubr.bf16.gmra.mrb[0].mxu0 %v2497
        %v2617 = vpop.f32.mrb[0].mxu0
        %v2618 = vadd.f32 %v2309, %v2617
        %v2619 = vpop.f32.mrb[0].mxu0
        %v2620 = vpop.f32.mrb[0].mxu0
        %v2621 = vadd.f32 %v2312, %v2620
        %v2622 = vpop.f32.mrb[0].mxu0
        %2623 = vmatprep.mubr.bf16.mxu0 0
        %2624 = vmatmul.mubr.bf16.gmra.mrb[0].mxu0 %v2500
        %v2625 = vpop.f32.mrb[0].mxu0
        %v2626 = vadd.f32 %v2317, %v2625
        %v2627 = vpop.f32.mrb[0].mxu0
        %v2628 = vpop.f32.mrb[0].mxu0
        %v2629 = vadd.f32 %v2320, %v2628
        %v2630 = vpop.f32.mrb[0].mxu0
        %2631 = vmatprep.mubr.bf16.mxu0 0
        %2632 = vmatmul.mubr.bf16.gmra.mrb[0].mxu0 %v2503
        %v2633 = vpop.f32.mrb[0].mxu0
        %v2634 = vadd.f32 %v2325, %v2633
        %v2635 = vpop.f32.mrb[0].mxu0
        %v2636 = vpop.f32.mrb[0].mxu0
        %v2637 = vadd.f32 %v2328, %v2636
        %v2638 = vpop.f32.mrb[0].mxu0
        %2639 = vmatprep.mubr.bf16.mxu0 0
        %2640 = vmatmul.mubr.bf16.gmra.mrb[0].mxu0 %v2506
        %v2641 = vpop.f32.mrb[0].mxu0
        %v2642 = vadd.f32 %v2333, %v2641
        %v2643 = vpop.f32.mrb[0].mxu0
        %v2644 = vpop.f32.mrb[0].mxu0
        %v2645 = vadd.f32 %v2336, %v2644
        %v2646 = vpop.f32.mrb[0].mxu0
        %2647 = vmatprep.mubr.bf16.mxu0 0
        %2648 = vmatmul.mubr.bf16.gmra.mrb[0].mxu0 %v2509
        %v2649 = vpop.f32.mrb[0].mxu0
        %v2650 = vadd.f32 %v2341, %v2649
        %v2651 = vpop.f32.mrb[0].mxu0
        %v2652 = vpop.f32.mrb[0].mxu0
        %v2653 = vadd.f32 %v2344, %v2652
        %v2654 = vpop.f32.mrb[0].mxu0
        %2655 = vmatprep.mubr.bf16.mxu0 0
        %2656 = vmatmul.mubr.bf16.gmra.mrb[0].mxu0 %v2512
        %v2657 = vpop.f32.mrb[0].mxu0
        %v2658 = vadd.f32 %v2349, %v2657
        %v2659 = vpop.f32.mrb[0].mxu0
        %v2660 = vpop.f32.mrb[0].mxu0
        %v2661 = vadd.f32 %v2352, %v2660
        %v2662 = vpop.f32.mrb[0].mxu0
        %2663 = vmatprep.mubr.bf16.mxu0 0
        %2664 = vmatmul.mubr.bf16.gmra.mrb[0].mxu0 %v2515
        %v2665 = vpop.f32.mrb[0].mxu0
        %v2666 = vadd.f32 %v2357, %v2665
        %v2667 = vpop.f32.mrb[0].mxu0
        %v2668 = vpop.f32.mrb[0].mxu0
        %v2669 = vadd.f32 %v2360, %v2668
        %v2670 = vpop.f32.mrb[0].mxu0
        %2671 = vmatprep.mubr.bf16.mxu0 0
        %2672 = vmatmul.mubr.bf16.gmra.mrb[0].mxu0 %v2518
        %v2673 = vpop.f32.mrb[0].mxu0
        %v2674 = vadd.f32 %v2365, %v2673
        %v2675 = vpop.f32.mrb[0].mxu0
        %v2676 = vpop.f32.mrb[0].mxu0
        %v2677 = vadd.f32 %v2368, %v2676
        %v2678 = vpop.f32.mrb[0].mxu0
        %2679 = vmatprep.mubr.bf16.mxu0 0
        %2680 = vmatmul.mubr.bf16.gmra.mrb[0].mxu0 %v2521
        %v2681 = vpop.f32.mrb[0].mxu0
        %v2682 = vadd.f32 %v2373, %v2681
        %v2683 = vpop.f32.mrb[0].mxu0
        %v2684 = vpop.f32.mrb[0].mxu0
        %v2685 = vadd.f32 %v2376, %v2684
        %v2686 = vpop.f32.mrb[0].mxu0
        %2687 = vmatprep.mubr.bf16.mxu0 0
        %2688 = vmatmul.mubr.bf16.gmra.mrb[0].mxu0 %v2524
        %v2689 = vpop.f32.mrb[0].mxu0
        %v2690 = vadd.f32 %v2381, %v2689
        %v2691 = vpop.f32.mrb[0].mxu0
        %v2692 = vpop.f32.mrb[0].mxu0
        %v2693 = vadd.f32 %v2384, %v2692
        %v2694 = vpop.f32.mrb[0].mxu0
        %2695 = vmatprep.mubr.bf16.mxu0 0
        %2696 = vmatmul.mubr.bf16.gmra.mrb[0].mxu0 %v2527
        %v2697 = vpop.f32.mrb[0].mxu0
        %v2698 = vadd.f32 %v2389, %v2697
        %v2699 = vpop.f32.mrb[0].mxu0
        %v2700 = vpop.f32.mrb[0].mxu0
        %v2701 = vadd.f32 %v2392, %v2700
        %v2702 = vpop.f32.mrb[0].mxu0
        %2703 = vmatprep.mubr.bf16.mxu0 0
        %2704 = vmatmul.mubr.bf16.gmra.mrb[0].mxu0 %v2530
        %v2705 = vpop.f32.mrb[0].mxu0
        %v2706 = vadd.f32 %v2397, %v2705
        %v2707 = vpop.f32.mrb[0].mxu0
        %v2708 = vpop.f32.mrb[0].mxu0
        %v2709 = vadd.f32 %v2400, %v2708
        %v2710 = vpop.f32.mrb[0].mxu0
        %2711 = vmatprep.mubr.bf16.mxu0 0
        %2712 = vmatmul.mubr.bf16.gmra.mrb[0].mxu0 %v2533
        %v2713 = vpop.f32.mrb[0].mxu0
        %v2714 = vadd.f32 %v2405, %v2713
        %v2715 = vpop.f32.mrb[0].mxu0
        %v2716 = vpop.f32.mrb[0].mxu0
        %v2717 = vadd.f32 %v2408, %v2716
        %v2718 = vpop.f32.mrb[0].mxu0
        %2719 = vmatprep.mubr.bf16.mxu0 0
        %2720 = vmatmul.mubr.bf16.gmra.mrb[0].mxu0 %v2536
        %v2721 = vpop.f32.mrb[0].mxu0
        %v2722 = vadd.f32 %v2413, %v2721
        %v2723 = vpop.f32.mrb[0].mxu0
        %v2724 = vpop.f32.mrb[0].mxu0
        %v2725 = vadd.f32 %v2416, %v2724
        %v2726 = vpop.f32.mrb[0].mxu0
        %2727 = vmatprep.mubr.bf16.mxu0 0
        %2728 = vmatmul.mubr.bf16.gmra.mrb[0].mxu0 %v2539
        %v2729 = vpop.f32.mrb[0].mxu0
        %v2730 = vadd.f32 %v2421, %v2729
        %v2731 = vpop.f32.mrb[0].mxu0
        %v2732 = vpop.f32.mrb[0].mxu0
        %v2733 = vadd.f32 %v2424, %v2732
        %v2734 = vpop.f32.mrb[0].mxu0
        %2735 = vmatprep.mubr.bf16.mxu0 0
        %2736 = vmatmul.mubr.bf16.gmra.mrb[0].mxu0 %v2542
        %v2737 = vpop.f32.mrb[0].mxu0
        %v2738 = vadd.f32 %v2429, %v2737
        %v2739 = vpop.f32.mrb[0].mxu0
        %v2740 = vpop.f32.mrb[0].mxu0
        %v2741 = vadd.f32 %v2432, %v2740
        %v2742 = vpop.f32.mrb[0].mxu0
        %2743 = vmatprep.mubr.bf16.mxu0 0
        %2744 = vmatmul.mubr.bf16.gmra.mrb[0].mxu0 %v2545
        %v2745 = vpop.f32.mrb[0].mxu0
        %v2746 = vadd.f32 %v2437, %v2745
        %v2747 = vpop.f32.mrb[0].mxu0
        %v2748 = vpop.f32.mrb[0].mxu0
        %v2749 = vadd.f32 %v2440, %v2748
        %v2750 = vpop.f32.mrb[0].mxu0
        %2751 = vmatprep.mubr.bf16.mxu0 0
        %2752 = vmatmul.mubr.bf16.gmra.mrb[0].mxu0 %v2548
        %v2753 = vpop.f32.mrb[0].mxu0
        %v2754 = vadd.f32 %v2445, %v2753
        %v2755 = vpop.f32.mrb[0].mxu0
        %v2756 = vpop.f32.mrb[0].mxu0
        %v2757 = vadd.f32 %v2448, %v2756
        %v2758 = vpop.f32.mrb[0].mxu0
        %2759 = vmatprep.mubr.bf16.mxu0 0
        %2760 = vmatmul.mubr.bf16.gmra.mrb[0].mxu0 %v2551
        %v2761 = vpop.f32.mrb[0].mxu0
        %v2762 = vadd.f32 %v2453, %v2761
        %v2763 = vpop.f32.mrb[0].mxu0
        %v2764 = vpop.f32.mrb[0].mxu0
        %v2765 = vadd.f32 %v2456, %v2764
        %v2766 = vpop.f32.mrb[0].mxu0
        %2767 = vmatprep.mubr.bf16.mxu0 0
        %2768 = vmatmul.mubr.bf16.gmra.mrb[0].mxu0 %v2554
        %v2769 = vpop.f32.mrb[0].mxu0
        %v2770 = vadd.f32 %v2461, %v2769
        %v2771 = vpop.f32.mrb[0].mxu0
        %v2772 = vpop.f32.mrb[0].mxu0
        %v2773 = vadd.f32 %v2464, %v2772
        %v2774 = vpop.f32.mrb[0].mxu0
        %2775 = vmatprep.mubr.bf16.mxu0 0
        %2776 = vmatmul.mubr.bf16.gmra.mrb[0].mxu0 %v2557
        %v2777 = vpop.f32.mrb[0].mxu0
        %v2778 = vadd.f32 %v2469, %v2777
        %v2779 = vpop.f32.mrb[0].mxu0
        %v2780 = vpop.f32.mrb[0].mxu0
        %v2781 = vadd.f32 %v2472, %v2780
        %v2782 = vpop.f32.mrb[0].mxu0
        %2783 = vdwg.mxu0
        %v2784 = vld [vmem:[#allocation2 + $0x2] sm:$0xff]
        %v2785 = vld [vmem:[#allocation2 + $0xa] sm:$0xff]
        %v2786 = vld [vmem:[#allocation2 + $0x12] sm:$0xff]
        %v2787 = vld [vmem:[#allocation2 + $0x1a] sm:$0xff]
        %v2788 = vld [vmem:[#allocation2 + $0x22] sm:$0xff]
        %v2789 = vld [vmem:[#allocation2 + $0x2a] sm:$0xff]
        %v2790 = vld [vmem:[#allocation2 + $0x32] sm:$0xff]
        %v2791 = vld [vmem:[#allocation2 + $0x3a] sm:$0xff]
        %v2792 = vld [vmem:[#allocation2 + $0x42] sm:$0xff]
        %v2793 = vld [vmem:[#allocation2 + $0x4a] sm:$0xff]
        %v2794 = vld [vmem:[#allocation2 + $0x52] sm:$0xff]
        %v2795 = vld [vmem:[#allocation2 + $0x5a] sm:$0xff]
        %v2796 = vld [vmem:[#allocation2 + $0x62] sm:$0xff]
        %v2797 = vld [vmem:[#allocation2 + $0x6a] sm:$0xff]
        %v2798 = vld [vmem:[#allocation2 + $0x72] sm:$0xff]
        %v2799 = vld [vmem:[#allocation2 + $0x7a] sm:$0xff]
        %v2800 = vld [vmem:[#allocation2 + $0x82] sm:$0xff]
        %v2801 = vld [vmem:[#allocation2 + $0x8a] sm:$0xff]
        %v2802 = vld [vmem:[#allocation2 + $0x92] sm:$0xff]
        %v2803 = vld [vmem:[#allocation2 + $0x9a] sm:$0xff]
        %v2804 = vld [vmem:[#allocation2 + $0xa2] sm:$0xff]
        %v2805 = vld [vmem:[#allocation2 + $0xaa] sm:$0xff]
        %v2806 = vld [vmem:[#allocation2 + $0xb2] sm:$0xff]
        %v2807 = vld [vmem:[#allocation2 + $0xba] sm:$0xff]
        %v2808 = vld [vmem:[#allocation2 + $0xc2] sm:$0xff]
        %v2809 = vld [vmem:[#allocation2 + $0xca] sm:$0xff]
        %v2810 = vld [vmem:[#allocation2 + $0xd2] sm:$0xff]
        %v2811 = vld [vmem:[#allocation2 + $0xda] sm:$0xff]
        %v2812 = vld [vmem:[#allocation2 + $0xe2] sm:$0xff]
        %v2813 = vld [vmem:[#allocation2 + $0xea] sm:$0xff]
        %v2814 = vld [vmem:[#allocation2 + $0xf2] sm:$0xff]
        %v2815 = vld [vmem:[#allocation2 + $0xfa] sm:$0xff]
        %v2816 = vld [vmem:[#allocation2 + $0x102] sm:$0xff]
        %v2817 = vld [vmem:[#allocation2 + $0x10a] sm:$0xff]
        %v2818 = vld [vmem:[#allocation2 + $0x112] sm:$0xff]
        %v2819 = vld [vmem:[#allocation2 + $0x11a] sm:$0xff]
        %v2820 = vld [vmem:[#allocation2 + $0x122] sm:$0xff]
        %v2821 = vld [vmem:[#allocation2 + $0x12a] sm:$0xff]
        %v2822 = vld [vmem:[#allocation2 + $0x132] sm:$0xff]
        %v2823 = vld [vmem:[#allocation2 + $0x13a] sm:$0xff]
        %v2824 = vld [vmem:[#allocation2 + $0x142] sm:$0xff]
        %v2825 = vld [vmem:[#allocation2 + $0x14a] sm:$0xff]
        %v2826 = vld [vmem:[#allocation2 + $0x152] sm:$0xff]
        %v2827 = vld [vmem:[#allocation2 + $0x15a] sm:$0xff]
        %v2828 = vld [vmem:[#allocation2 + $0x162] sm:$0xff]
        %v2829 = vld [vmem:[#allocation2 + $0x16a] sm:$0xff]
        %v2830 = vld [vmem:[#allocation2 + $0x172] sm:$0xff]
        %v2831 = vld [vmem:[#allocation2 + $0x17a] sm:$0xf]
        %v2832 = vpack.c.bf16 %v2785, %v2784
        %v2833 = vpack.c.bf16 %v2787, %v2786
        %v2834 = vpack.c.bf16 %v2789, %v2788
        %v2835 = vpack.c.bf16 %v2791, %v2790
        %v2836 = vpack.c.bf16 %v2793, %v2792
        %v2837 = vpack.c.bf16 %v2795, %v2794
        %v2838 = vpack.c.bf16 %v2797, %v2796
        %v2839 = vpack.c.bf16 %v2799, %v2798
        %v2840 = vpack.c.bf16 %v2801, %v2800
        %v2841 = vpack.c.bf16 %v2803, %v2802
        %v2842 = vpack.c.bf16 %v2805, %v2804
        %v2843 = vpack.c.bf16 %v2807, %v2806
        %v2844 = vpack.c.bf16 %v2809, %v2808
        %v2845 = vpack.c.bf16 %v2811, %v2810
        %v2846 = vpack.c.bf16 %v2813, %v2812
        %v2847 = vpack.c.bf16 %v2815, %v2814
        %v2848 = vpack.c.bf16 %v2817, %v2816
        %v2849 = vpack.c.bf16 %v2819, %v2818
        %v2850 = vpack.c.bf16 %v2821, %v2820
        %v2851 = vpack.c.bf16 %v2823, %v2822
        %v2852 = vpack.c.bf16 %v2825, %v2824
        %v2853 = vpack.c.bf16 %v2827, %v2826
        %v2854 = vpack.c.bf16 %v2829, %v2828
        %v2855 = vpack.c.bf16 %v2831, %v2830
        %s2856 = scalar_lea.vmem [#allocation13], 32
        %v2857 = vld [vmem:[%s2856] sm:$0xf]
        %v2858 = vld [vmem:[%s2856 + $0x4] sm:$0xf]
        %v2859 = vld [vmem:[%s2856 + $0x8] sm:$0xf]
        %v2860 = vld [vmem:[%s2856 + $0xc] sm:$0xf]
        %v2865 = vunpack.c.l.b16 %v2857
        %v2866 = vunpack.c.l.b16 %v2858
        %v2867 = vunpack.c.l.b16 %v2859
        %v2868 = vunpack.c.l.b16 %v2860
        %v2869 = vpack.c.b16 %v2866, %v2865
        %v2870 = vpack.c.b16 %v2868, %v2867
        %v2874 = vsel %vm717, %v2832, 0
        %v2877 = vsel %vm717, %v2833, 0
        %v2880 = vsel %vm717, %v2834, 0
        %v2883 = vsel %vm717, %v2835, 0
        %v2886 = vsel %vm717, %v2836, 0
        %v2889 = vsel %vm717, %v2837, 0
        %v2892 = vsel %vm717, %v2838, 0
        %v2895 = vsel %vm717, %v2839, 0
        %v2898 = vsel %vm717, %v2840, 0
        %v2901 = vsel %vm717, %v2841, 0
        %v2904 = vsel %vm717, %v2842, 0
        %v2907 = vsel %vm717, %v2843, 0
        %v2910 = vsel %vm717, %v2844, 0
        %v2913 = vsel %vm717, %v2845, 0
        %v2916 = vsel %vm717, %v2846, 0
        %v2919 = vsel %vm717, %v2847, 0
        %v2922 = vsel %vm717, %v2848, 0
        %v2925 = vsel %vm717, %v2849, 0
        %v2928 = vsel %vm717, %v2850, 0
        %v2931 = vsel %vm717, %v2851, 0
        %v2934 = vsel %vm717, %v2852, 0
        %v2937 = vsel %vm717, %v2853, 0
        %v2940 = vsel %vm717, %v2854, 0
        %v2943 = vsel %vm717, %v2855, 0
        %2945 = vmatprep.subr.bf16.mxu0 0
        %2946 = vmatpush1.bf16.msra.mxu0 %v2869
        %2947 = vmatprep.subr.bf16.mxu0 0
        %2948 = vmatpush1.bf16.msra.mxu0 %v2870
        %2949 = vmatprep.subr.bf16.mxu0 0
        %2950 = vmatpush1.bf16.msra.mxu0 0
        %2951 = vmatprep.subr.bf16.mxu0 0
        %2952 = vmatpush1.bf16.msra.mxu0 0
        %2953 = vmatprep.subr.bf16.mxu0 0
        %2954 = vmatpush1.bf16.msra.mxu0 0
        %2955 = vmatprep.subr.bf16.mxu0 0
        %2956 = vmatpush1.bf16.msra.mxu0 0
        %2957 = vmatprep.subr.bf16.mxu0 0
        %2958 = vmatpush1.bf16.msra.mxu0 0
        %2959 = vmatprep.subr.bf16.mxu0 0
        %2960 = vmatpush1.bf16.msra.mxu0 0
        %2961 = vmatprep.subr.bf16.mxu0 0
        %2962 = vmatpush1.bf16.msra.mxu0 0
        %2963 = vmatprep.subr.bf16.mxu0 0
        %2964 = vmatpush1.bf16.msra.mxu0 0
        %2965 = vmatprep.subr.bf16.mxu0 0
        %2966 = vmatpush1.bf16.msra.mxu0 0
        %2967 = vmatprep.subr.bf16.mxu0 0
        %2968 = vmatpush1.bf16.msra.mxu0 0
        %2969 = vmatprep.subr.bf16.mxu0 0
        %2970 = vmatpush1.bf16.msra.mxu0 0
        %2971 = vmatprep.subr.bf16.mxu0 0
        %2972 = vmatpush1.bf16.msra.mxu0 0
        %2973 = vmatprep.subr.bf16.mxu0 0
        %2974 = vmatpush1.bf16.msra.mxu0 0
        %2975 = vmatprep.subr.bf16.mxu0 0
        %2976 = vmatpush1.bf16.msra.mxu0 0
        %2977 = vmatprep.mubr.bf16.mxu0 0
        %2978 = vmatmul.mubr.bf16.gmra.mrb[0].mxu0 %v2874
        %v2979 = vpop.f32.mrb[0].mxu0
        %v2980 = vadd.f32 0.0, %v2979
        %v2981 = vpop.f32.mrb[0].mxu0
        %v2982 = vpop.f32.mrb[0].mxu0
        %v2983 = vadd.f32 0.0, %v2982
        %v2984 = vpop.f32.mrb[0].mxu0
        %2985 = vmatprep.mubr.bf16.mxu0 0
        %2986 = vmatmul.mubr.bf16.gmra.mrb[0].mxu0 %v2877
        %v2987 = vpop.f32.mrb[0].mxu0
        %v2988 = vadd.f32 0.0, %v2987
        %v2989 = vpop.f32.mrb[0].mxu0
        %v2990 = vpop.f32.mrb[0].mxu0
        %v2991 = vadd.f32 0.0, %v2990
        %v2992 = vpop.f32.mrb[0].mxu0
        %2993 = vmatprep.mubr.bf16.mxu0 0
        %2994 = vmatmul.mubr.bf16.gmra.mrb[0].mxu0 %v2880
        %v2995 = vpop.f32.mrb[0].mxu0
        %v2996 = vadd.f32 0.0, %v2995
        %v2997 = vpop.f32.mrb[0].mxu0
        %v2998 = vpop.f32.mrb[0].mxu0
        %v2999 = vadd.f32 0.0, %v2998
        %v3000 = vpop.f32.mrb[0].mxu0
        %3001 = vmatprep.mubr.bf16.mxu0 0
        %3002 = vmatmul.mubr.bf16.gmra.mrb[0].mxu0 %v2883
        %v3003 = vpop.f32.mrb[0].mxu0
        %v3004 = vadd.f32 0.0, %v3003
        %v3005 = vpop.f32.mrb[0].mxu0
        %v3006 = vpop.f32.mrb[0].mxu0
        %v3007 = vadd.f32 0.0, %v3006
        %v3008 = vpop.f32.mrb[0].mxu0
        %3009 = vmatprep.mubr.bf16.mxu0 0
        %3010 = vmatmul.mubr.bf16.gmra.mrb[0].mxu0 %v2886
        %v3011 = vpop.f32.mrb[0].mxu0
        %v3012 = vadd.f32 0.0, %v3011
        %v3013 = vpop.f32.mrb[0].mxu0
        %v3014 = vpop.f32.mrb[0].mxu0
        %v3015 = vadd.f32 0.0, %v3014
        %v3016 = vpop.f32.mrb[0].mxu0
        %3017 = vmatprep.mubr.bf16.mxu0 0
        %3018 = vmatmul.mubr.bf16.gmra.mrb[0].mxu0 %v2889
        %v3019 = vpop.f32.mrb[0].mxu0
        %v3020 = vadd.f32 0.0, %v3019
        %v3021 = vpop.f32.mrb[0].mxu0
        %v3022 = vpop.f32.mrb[0].mxu0
        %v3023 = vadd.f32 0.0, %v3022
        %v3024 = vpop.f32.mrb[0].mxu0
        %3025 = vmatprep.mubr.bf16.mxu0 0
        %3026 = vmatmul.mubr.bf16.gmra.mrb[0].mxu0 %v2892
        %v3027 = vpop.f32.mrb[0].mxu0
        %v3028 = vadd.f32 0.0, %v3027
        %v3029 = vpop.f32.mrb[0].mxu0
        %v3030 = vpop.f32.mrb[0].mxu0
        %v3031 = vadd.f32 0.0, %v3030
        %v3032 = vpop.f32.mrb[0].mxu0
        %3033 = vmatprep.mubr.bf16.mxu0 0
        %3034 = vmatmul.mubr.bf16.gmra.mrb[0].mxu0 %v2895
        %v3035 = vpop.f32.mrb[0].mxu0
        %v3036 = vadd.f32 0.0, %v3035
        %v3037 = vpop.f32.mrb[0].mxu0
        %v3038 = vpop.f32.mrb[0].mxu0
        %v3039 = vadd.f32 0.0, %v3038
        %v3040 = vpop.f32.mrb[0].mxu0
        %3041 = vmatprep.mubr.bf16.mxu0 0
        %3042 = vmatmul.mubr.bf16.gmra.mrb[0].mxu0 %v2898
        %v3043 = vpop.f32.mrb[0].mxu0
        %v3044 = vadd.f32 0.0, %v3043
        %v3045 = vpop.f32.mrb[0].mxu0
        %v3046 = vpop.f32.mrb[0].mxu0
        %v3047 = vadd.f32 0.0, %v3046
        %v3048 = vpop.f32.mrb[0].mxu0
        %3049 = vmatprep.mubr.bf16.mxu0 0
        %3050 = vmatmul.mubr.bf16.gmra.mrb[0].mxu0 %v2901
        %v3051 = vpop.f32.mrb[0].mxu0
        %v3052 = vadd.f32 0.0, %v3051
        %v3053 = vpop.f32.mrb[0].mxu0
        %v3054 = vpop.f32.mrb[0].mxu0
        %v3055 = vadd.f32 0.0, %v3054
        %v3056 = vpop.f32.mrb[0].mxu0
        %3057 = vmatprep.mubr.bf16.mxu0 0
        %3058 = vmatmul.mubr.bf16.gmra.mrb[0].mxu0 %v2904
        %v3059 = vpop.f32.mrb[0].mxu0
        %v3060 = vadd.f32 0.0, %v3059
        %v3061 = vpop.f32.mrb[0].mxu0
        %v3062 = vpop.f32.mrb[0].mxu0
        %v3063 = vadd.f32 0.0, %v3062
        %v3064 = vpop.f32.mrb[0].mxu0
        %3065 = vmatprep.mubr.bf16.mxu0 0
        %3066 = vmatmul.mubr.bf16.gmra.mrb[0].mxu0 %v2907
        %v3067 = vpop.f32.mrb[0].mxu0
        %v3068 = vadd.f32 0.0, %v3067
        %v3069 = vpop.f32.mrb[0].mxu0
        %v3070 = vpop.f32.mrb[0].mxu0
        %v3071 = vadd.f32 0.0, %v3070
        %v3072 = vpop.f32.mrb[0].mxu0
        %3073 = vmatprep.mubr.bf16.mxu0 0
        %3074 = vmatmul.mubr.bf16.gmra.mrb[0].mxu0 %v2910
        %v3075 = vpop.f32.mrb[0].mxu0
        %v3076 = vadd.f32 0.0, %v3075
        %v3077 = vpop.f32.mrb[0].mxu0
        %v3078 = vpop.f32.mrb[0].mxu0
        %v3079 = vadd.f32 0.0, %v3078
        %v3080 = vpop.f32.mrb[0].mxu0
        %3081 = vmatprep.mubr.bf16.mxu0 0
        %3082 = vmatmul.mubr.bf16.gmra.mrb[0].mxu0 %v2913
        %v3083 = vpop.f32.mrb[0].mxu0
        %v3084 = vadd.f32 0.0, %v3083
        %v3085 = vpop.f32.mrb[0].mxu0
        %v3086 = vpop.f32.mrb[0].mxu0
        %v3087 = vadd.f32 0.0, %v3086
        %v3088 = vpop.f32.mrb[0].mxu0
        %3089 = vmatprep.mubr.bf16.mxu0 0
        %3090 = vmatmul.mubr.bf16.gmra.mrb[0].mxu0 %v2916
        %v3091 = vpop.f32.mrb[0].mxu0
        %v3092 = vadd.f32 0.0, %v3091
        %v3093 = vpop.f32.mrb[0].mxu0
        %v3094 = vpop.f32.mrb[0].mxu0
        %v3095 = vadd.f32 0.0, %v3094
        %v3096 = vpop.f32.mrb[0].mxu0
        %3097 = vmatprep.mubr.bf16.mxu0 0
        %3098 = vmatmul.mubr.bf16.gmra.mrb[0].mxu0 %v2919
        %v3099 = vpop.f32.mrb[0].mxu0
        %v3100 = vadd.f32 0.0, %v3099
        %v3101 = vpop.f32.mrb[0].mxu0
        %v3102 = vpop.f32.mrb[0].mxu0
        %v3103 = vadd.f32 0.0, %v3102
        %v3104 = vpop.f32.mrb[0].mxu0
        %3105 = vmatprep.mubr.bf16.mxu0 0
        %3106 = vmatmul.mubr.bf16.gmra.mrb[0].mxu0 %v2922
        %v3107 = vpop.f32.mrb[0].mxu0
        %v3108 = vadd.f32 0.0, %v3107
        %v3109 = vpop.f32.mrb[0].mxu0
        %v3110 = vpop.f32.mrb[0].mxu0
        %v3111 = vadd.f32 0.0, %v3110
        %v3112 = vpop.f32.mrb[0].mxu0
        %3113 = vmatprep.mubr.bf16.mxu0 0
        %3114 = vmatmul.mubr.bf16.gmra.mrb[0].mxu0 %v2925
        %v3115 = vpop.f32.mrb[0].mxu0
        %v3116 = vadd.f32 0.0, %v3115
        %v3117 = vpop.f32.mrb[0].mxu0
        %v3118 = vpop.f32.mrb[0].mxu0
        %v3119 = vadd.f32 0.0, %v3118
        %v3120 = vpop.f32.mrb[0].mxu0
        %3121 = vmatprep.mubr.bf16.mxu0 0
        %3122 = vmatmul.mubr.bf16.gmra.mrb[0].mxu0 %v2928
        %v3123 = vpop.f32.mrb[0].mxu0
        %v3124 = vadd.f32 0.0, %v3123
        %v3125 = vpop.f32.mrb[0].mxu0
        %v3126 = vpop.f32.mrb[0].mxu0
        %v3127 = vadd.f32 0.0, %v3126
        %v3128 = vpop.f32.mrb[0].mxu0
        %3129 = vmatprep.mubr.bf16.mxu0 0
        %3130 = vmatmul.mubr.bf16.gmra.mrb[0].mxu0 %v2931
        %v3131 = vpop.f32.mrb[0].mxu0
        %v3132 = vadd.f32 0.0, %v3131
        %v3133 = vpop.f32.mrb[0].mxu0
        %v3134 = vpop.f32.mrb[0].mxu0
        %v3135 = vadd.f32 0.0, %v3134
        %v3136 = vpop.f32.mrb[0].mxu0
        %3137 = vmatprep.mubr.bf16.mxu0 0
        %3138 = vmatmul.mubr.bf16.gmra.mrb[0].mxu0 %v2934
        %v3139 = vpop.f32.mrb[0].mxu0
        %v3140 = vadd.f32 0.0, %v3139
        %v3141 = vpop.f32.mrb[0].mxu0
        %v3142 = vpop.f32.mrb[0].mxu0
        %v3143 = vadd.f32 0.0, %v3142
        %v3144 = vpop.f32.mrb[0].mxu0
        %3145 = vmatprep.mubr.bf16.mxu0 0
        %3146 = vmatmul.mubr.bf16.gmra.mrb[0].mxu0 %v2937
        %v3147 = vpop.f32.mrb[0].mxu0
        %v3148 = vadd.f32 0.0, %v3147
        %v3149 = vpop.f32.mrb[0].mxu0
        %v3150 = vpop.f32.mrb[0].mxu0
        %v3151 = vadd.f32 0.0, %v3150
        %v3152 = vpop.f32.mrb[0].mxu0
        %3153 = vmatprep.mubr.bf16.mxu0 0
        %3154 = vmatmul.mubr.bf16.gmra.mrb[0].mxu0 %v2940
        %v3155 = vpop.f32.mrb[0].mxu0
        %v3156 = vadd.f32 0.0, %v3155
        %v3157 = vpop.f32.mrb[0].mxu0
        %v3158 = vpop.f32.mrb[0].mxu0
        %v3159 = vadd.f32 0.0, %v3158
        %v3160 = vpop.f32.mrb[0].mxu0
        %3161 = vmatprep.mubr.bf16.mxu0 0
        %3162 = vmatmul.mubr.bf16.gmra.mrb[0].mxu0 %v2943
        %v3163 = vpop.f32.mrb[0].mxu0
        %v3164 = vadd.f32 0.0, %v3163
        %v3165 = vpop.f32.mrb[0].mxu0
        %v3166 = vpop.f32.mrb[0].mxu0
        %v3167 = vadd.f32 0.0, %v3166
        %v3168 = vpop.f32.mrb[0].mxu0
        %3169 = vdwg.mxu0
        %v3170 = vadd.f32 %v2594, %v2980
        %v3171 = vadd.f32 %v2597, %v2983
        %v3172 = vadd.f32 %v2602, %v2988
        %v3173 = vadd.f32 %v2605, %v2991
        %v3174 = vadd.f32 %v2610, %v2996
        %v3175 = vadd.f32 %v2613, %v2999
        %v3176 = vadd.f32 %v2618, %v3004
        %v3177 = vadd.f32 %v2621, %v3007
        %v3178 = vadd.f32 %v2626, %v3012
        %v3179 = vadd.f32 %v2629, %v3015
        %v3180 = vadd.f32 %v2634, %v3020
        %v3181 = vadd.f32 %v2637, %v3023
        %v3182 = vadd.f32 %v2642, %v3028
        %v3183 = vadd.f32 %v2645, %v3031
        %v3184 = vadd.f32 %v2650, %v3036
        %v3185 = vadd.f32 %v2653, %v3039
        %v3186 = vadd.f32 %v2658, %v3044
        %v3187 = vadd.f32 %v2661, %v3047
        %v3188 = vadd.f32 %v2666, %v3052
        %v3189 = vadd.f32 %v2669, %v3055
        %v3190 = vadd.f32 %v2674, %v3060
        %v3191 = vadd.f32 %v2677, %v3063
        %v3192 = vadd.f32 %v2682, %v3068
        %v3193 = vadd.f32 %v2685, %v3071
        %v3194 = vadd.f32 %v2690, %v3076
        %v3195 = vadd.f32 %v2693, %v3079
        %v3196 = vadd.f32 %v2698, %v3084
        %v3197 = vadd.f32 %v2701, %v3087
        %v3198 = vadd.f32 %v2706, %v3092
        %v3199 = vadd.f32 %v2709, %v3095
        %v3200 = vadd.f32 %v2714, %v3100
        %v3201 = vadd.f32 %v2717, %v3103
        %v3202 = vadd.f32 %v2722, %v3108
        %v3203 = vadd.f32 %v2725, %v3111
        %v3204 = vadd.f32 %v2730, %v3116
        %v3205 = vadd.f32 %v2733, %v3119
        %v3206 = vadd.f32 %v2738, %v3124
        %v3207 = vadd.f32 %v2741, %v3127
        %v3208 = vadd.f32 %v2746, %v3132
        %v3209 = vadd.f32 %v2749, %v3135
        %v3210 = vadd.f32 %v2754, %v3140
        %v3211 = vadd.f32 %v2757, %v3143
        %v3212 = vadd.f32 %v2762, %v3148
        %v3213 = vadd.f32 %v2765, %v3151
        %v3214 = vadd.f32 %v2770, %v3156
        %v3215 = vadd.f32 %v2773, %v3159
        %v3216 = vadd.f32 %v2778, %v3164
        %v3217 = vadd.f32 %v2781, %v3167
        %v3218 = vld [vmem:[#allocation2 + $0x14] sm:$0xff]
        %v3219 = vld [vmem:[#allocation2 + $0x1c] sm:$0xff]
        %v3220 = vld [vmem:[#allocation2 + $0x24] sm:$0xff]
        %v3221 = vld [vmem:[#allocation2 + $0x2c] sm:$0xff]
        %v3222 = vld [vmem:[#allocation2 + $0x34] sm:$0xff]
        %v3223 = vld [vmem:[#allocation2 + $0x3c] sm:$0xff]
        %v3224 = vld [vmem:[#allocation2 + $0x44] sm:$0xff]
        %v3225 = vld [vmem:[#allocation2 + $0x4c] sm:$0xff]
        %v3226 = vld [vmem:[#allocation2 + $0x54] sm:$0xff]
        %v3227 = vld [vmem:[#allocation2 + $0x5c] sm:$0xff]
        %v3228 = vld [vmem:[#allocation2 + $0x64] sm:$0xff]
        %v3229 = vld [vmem:[#allocation2 + $0x6c] sm:$0xff]
        %v3230 = vld [vmem:[#allocation2 + $0x74] sm:$0xff]
        %v3231 = vld [vmem:[#allocation2 + $0x7c] sm:$0xff]
        %v3232 = vld [vmem:[#allocation2 + $0x84] sm:$0xff]
        %v3233 = vld [vmem:[#allocation2 + $0x8c] sm:$0xff]
        %v3234 = vld [vmem:[#allocation2 + $0x94] sm:$0xff]
        %v3235 = vld [vmem:[#allocation2 + $0x9c] sm:$0xff]
        %v3236 = vld [vmem:[#allocation2 + $0xa4] sm:$0xff]
        %v3237 = vld [vmem:[#allocation2 + $0xac] sm:$0xff]
        %v3238 = vld [vmem:[#allocation2 + $0xb4] sm:$0xff]
        %v3239 = vld [vmem:[#allocation2 + $0xbc] sm:$0xff]
        %v3240 = vld [vmem:[#allocation2 + $0xc4] sm:$0xff]
        %v3241 = vld [vmem:[#allocation2 + $0xcc] sm:$0xff]
        %v3242 = vld [vmem:[#allocation2 + $0xd4] sm:$0xff]
        %v3243 = vld [vmem:[#allocation2 + $0xdc] sm:$0xff]
        %v3244 = vld [vmem:[#allocation2 + $0xe4] sm:$0xff]
        %v3245 = vld [vmem:[#allocation2 + $0xec] sm:$0xff]
        %v3246 = vld [vmem:[#allocation2 + $0xf4] sm:$0xff]
        %v3247 = vld [vmem:[#allocation2 + $0xfc] sm:$0xff]
        %v3248 = vld [vmem:[#allocation2 + $0x104] sm:$0xff]
        %v3249 = vld [vmem:[#allocation2 + $0x10c] sm:$0xff]
        %v3250 = vld [vmem:[#allocation2 + $0x114] sm:$0xff]
        %v3251 = vld [vmem:[#allocation2 + $0x11c] sm:$0xff]
        %v3252 = vld [vmem:[#allocation2 + $0x124] sm:$0xff]
        %v3253 = vld [vmem:[#allocation2 + $0x12c] sm:$0xff]
        %v3254 = vld [vmem:[#allocation2 + $0x134] sm:$0xff]
        %v3255 = vld [vmem:[#allocation2 + $0x13c] sm:$0xff]
        %v3256 = vld [vmem:[#allocation2 + $0x144] sm:$0xff]
        %v3257 = vld [vmem:[#allocation2 + $0x14c] sm:$0xff]
        %v3258 = vld [vmem:[#allocation2 + $0x154] sm:$0xff]
        %v3259 = vld [vmem:[#allocation2 + $0x15c] sm:$0xff]
        %v3260 = vld [vmem:[#allocation2 + $0x164] sm:$0xff]
        %v3261 = vld [vmem:[#allocation2 + $0x16c] sm:$0xff]
        %v3262 = vld [vmem:[#allocation2 + $0x174] sm:$0xff]
        %v3263 = vld [vmem:[#allocation2 + $0x17c] sm:$0xff]
        %v3264 = vld [vmem:[#allocation2 + $0x184] sm:$0xff]
        %v3265 = vld [vmem:[#allocation2 + $0x18c] sm:$0xf]
        %v3266 = vpack.c.bf16 %v3219, %v3218
        %v3267 = vpack.c.bf16 %v3221, %v3220
        %v3268 = vpack.c.bf16 %v3223, %v3222
        %v3269 = vpack.c.bf16 %v3225, %v3224
        %v3270 = vpack.c.bf16 %v3227, %v3226
        %v3271 = vpack.c.bf16 %v3229, %v3228
        %v3272 = vpack.c.bf16 %v3231, %v3230
        %v3273 = vpack.c.bf16 %v3233, %v3232
        %v3274 = vpack.c.bf16 %v3235, %v3234
        %v3275 = vpack.c.bf16 %v3237, %v3236
        %v3276 = vpack.c.bf16 %v3239, %v3238
        %v3277 = vpack.c.bf16 %v3241, %v3240
        %v3278 = vpack.c.bf16 %v3243, %v3242
        %v3279 = vpack.c.bf16 %v3245, %v3244
        %v3280 = vpack.c.bf16 %v3247, %v3246
        %v3281 = vpack.c.bf16 %v3249, %v3248
        %v3282 = vpack.c.bf16 %v3251, %v3250
        %v3283 = vpack.c.bf16 %v3253, %v3252
        %v3284 = vpack.c.bf16 %v3255, %v3254
        %v3285 = vpack.c.bf16 %v3257, %v3256
        %v3286 = vpack.c.bf16 %v3259, %v3258
        %v3287 = vpack.c.bf16 %v3261, %v3260
        %v3288 = vpack.c.bf16 %v3263, %v3262
        %v3289 = vpack.c.bf16 %v3265, %v3264
        %s3290 = scalar_lea.vmem [#allocation13], 48
        %v3291 = vld [vmem:[%s3290] sm:$0xf]
        %v3292 = vld [vmem:[%s3290 + $0x4] sm:$0xf]
        %v3293 = vld [vmem:[%s3290 + $0x8] sm:$0xf]
        %v3294 = vld [vmem:[%s3290 + $0xc] sm:$0xf]
        %v3299 = vunpack.c.l.b16 %v3291
        %v3300 = vunpack.c.l.b16 %v3292
        %v3301 = vunpack.c.l.b16 %v3293
        %v3302 = vunpack.c.l.b16 %v3294
        %v3303 = vpack.c.b16 %v3300, %v3299
        %v3304 = vpack.c.b16 %v3302, %v3301
        %v3308 = vsel %vm717, %v3266, 0
        %v3311 = vsel %vm717, %v3267, 0
        %v3314 = vsel %vm717, %v3268, 0
        %v3317 = vsel %vm717, %v3269, 0
        %v3320 = vsel %vm717, %v3270, 0
        %v3323 = vsel %vm717, %v3271, 0
        %v3326 = vsel %vm717, %v3272, 0
        %v3329 = vsel %vm717, %v3273, 0
        %v3332 = vsel %vm717, %v3274, 0
        %v3335 = vsel %vm717, %v3275, 0
        %v3338 = vsel %vm717, %v3276, 0
        %v3341 = vsel %vm717, %v3277, 0
        %v3344 = vsel %vm717, %v3278, 0
        %v3347 = vsel %vm717, %v3279, 0
        %v3350 = vsel %vm717, %v3280, 0
        %v3353 = vsel %vm717, %v3281, 0
        %v3356 = vsel %vm717, %v3282, 0
        %v3359 = vsel %vm717, %v3283, 0
        %v3362 = vsel %vm717, %v3284, 0
        %v3365 = vsel %vm717, %v3285, 0
        %v3368 = vsel %vm717, %v3286, 0
        %v3371 = vsel %vm717, %v3287, 0
        %v3374 = vsel %vm717, %v3288, 0
        %v3377 = vsel %vm717, %v3289, 0
        %3379 = vmatprep.subr.bf16.mxu0 0
        %3380 = vmatpush1.bf16.msra.mxu0 %v3303
        %3381 = vmatprep.subr.bf16.mxu0 0
        %3382 = vmatpush1.bf16.msra.mxu0 %v3304
        %3383 = vmatprep.subr.bf16.mxu0 0
        %3384 = vmatpush1.bf16.msra.mxu0 0
        %3385 = vmatprep.subr.bf16.mxu0 0
        %3386 = vmatpush1.bf16.msra.mxu0 0
        %3387 = vmatprep.subr.bf16.mxu0 0
        %3388 = vmatpush1.bf16.msra.mxu0 0
        %3389 = vmatprep.subr.bf16.mxu0 0
        %3390 = vmatpush1.bf16.msra.mxu0 0
        %3391 = vmatprep.subr.bf16.mxu0 0
        %3392 = vmatpush1.bf16.msra.mxu0 0
        %3393 = vmatprep.subr.bf16.mxu0 0
        %3394 = vmatpush1.bf16.msra.mxu0 0
        %3395 = vmatprep.subr.bf16.mxu0 0
        %3396 = vmatpush1.bf16.msra.mxu0 0
        %3397 = vmatprep.subr.bf16.mxu0 0
        %3398 = vmatpush1.bf16.msra.mxu0 0
        %3399 = vmatprep.subr.bf16.mxu0 0
        %3400 = vmatpush1.bf16.msra.mxu0 0
        %3401 = vmatprep.subr.bf16.mxu0 0
        %3402 = vmatpush1.bf16.msra.mxu0 0
        %3403 = vmatprep.subr.bf16.mxu0 0
        %3404 = vmatpush1.bf16.msra.mxu0 0
        %3405 = vmatprep.subr.bf16.mxu0 0
        %3406 = vmatpush1.bf16.msra.mxu0 0
        %3407 = vmatprep.subr.bf16.mxu0 0
        %3408 = vmatpush1.bf16.msra.mxu0 0
        %3409 = vmatprep.subr.bf16.mxu0 0
        %3410 = vmatpush1.bf16.msra.mxu0 0
        %3411 = vmatprep.mubr.bf16.mxu0 0
        %3412 = vmatmul.mubr.bf16.gmra.mrb[0].mxu0 %v3308
        %v3413 = vpop.f32.mrb[0].mxu0
        %v3414 = vadd.f32 0.0, %v3413
        %v3415 = vpop.f32.mrb[0].mxu0
        %v3416 = vpop.f32.mrb[0].mxu0
        %v3417 = vadd.f32 0.0, %v3416
        %v3418 = vpop.f32.mrb[0].mxu0
        %3419 = vmatprep.mubr.bf16.mxu0 0
        %3420 = vmatmul.mubr.bf16.gmra.mrb[0].mxu0 %v3311
        %v3421 = vpop.f32.mrb[0].mxu0
        %v3422 = vadd.f32 0.0, %v3421
        %v3423 = vpop.f32.mrb[0].mxu0
        %v3424 = vpop.f32.mrb[0].mxu0
        %v3425 = vadd.f32 0.0, %v3424
        %v3426 = vpop.f32.mrb[0].mxu0
        %3427 = vmatprep.mubr.bf16.mxu0 0
        %3428 = vmatmul.mubr.bf16.gmra.mrb[0].mxu0 %v3314
        %v3429 = vpop.f32.mrb[0].mxu0
        %v3430 = vadd.f32 0.0, %v3429
        %v3431 = vpop.f32.mrb[0].mxu0
        %v3432 = vpop.f32.mrb[0].mxu0
        %v3433 = vadd.f32 0.0, %v3432
        %v3434 = vpop.f32.mrb[0].mxu0
        %3435 = vmatprep.mubr.bf16.mxu0 0
        %3436 = vmatmul.mubr.bf16.gmra.mrb[0].mxu0 %v3317
        %v3437 = vpop.f32.mrb[0].mxu0
        %v3438 = vadd.f32 0.0, %v3437
        %v3439 = vpop.f32.mrb[0].mxu0
        %v3440 = vpop.f32.mrb[0].mxu0
        %v3441 = vadd.f32 0.0, %v3440
        %v3442 = vpop.f32.mrb[0].mxu0
        %3443 = vmatprep.mubr.bf16.mxu0 0
        %3444 = vmatmul.mubr.bf16.gmra.mrb[0].mxu0 %v3320
        %v3445 = vpop.f32.mrb[0].mxu0
        %v3446 = vadd.f32 0.0, %v3445
        %v3447 = vpop.f32.mrb[0].mxu0
        %v3448 = vpop.f32.mrb[0].mxu0
        %v3449 = vadd.f32 0.0, %v3448
        %v3450 = vpop.f32.mrb[0].mxu0
        %3451 = vmatprep.mubr.bf16.mxu0 0
        %3452 = vmatmul.mubr.bf16.gmra.mrb[0].mxu0 %v3323
        %v3453 = vpop.f32.mrb[0].mxu0
        %v3454 = vadd.f32 0.0, %v3453
        %v3455 = vpop.f32.mrb[0].mxu0
        %v3456 = vpop.f32.mrb[0].mxu0
        %v3457 = vadd.f32 0.0, %v3456
        %v3458 = vpop.f32.mrb[0].mxu0
        %3459 = vmatprep.mubr.bf16.mxu0 0
        %3460 = vmatmul.mubr.bf16.gmra.mrb[0].mxu0 %v3326
        %v3461 = vpop.f32.mrb[0].mxu0
        %v3462 = vadd.f32 0.0, %v3461
        %v3463 = vpop.f32.mrb[0].mxu0
        %v3464 = vpop.f32.mrb[0].mxu0
        %v3465 = vadd.f32 0.0, %v3464
        %v3466 = vpop.f32.mrb[0].mxu0
        %3467 = vmatprep.mubr.bf16.mxu0 0
        %3468 = vmatmul.mubr.bf16.gmra.mrb[0].mxu0 %v3329
        %v3469 = vpop.f32.mrb[0].mxu0
        %v3470 = vadd.f32 0.0, %v3469
        %v3471 = vpop.f32.mrb[0].mxu0
        %v3472 = vpop.f32.mrb[0].mxu0
        %v3473 = vadd.f32 0.0, %v3472
        %v3474 = vpop.f32.mrb[0].mxu0
        %3475 = vmatprep.mubr.bf16.mxu0 0
        %3476 = vmatmul.mubr.bf16.gmra.mrb[0].mxu0 %v3332
        %v3477 = vpop.f32.mrb[0].mxu0
        %v3478 = vadd.f32 0.0, %v3477
        %v3479 = vpop.f32.mrb[0].mxu0
        %v3480 = vpop.f32.mrb[0].mxu0
        %v3481 = vadd.f32 0.0, %v3480
        %v3482 = vpop.f32.mrb[0].mxu0
        %3483 = vmatprep.mubr.bf16.mxu0 0
        %3484 = vmatmul.mubr.bf16.gmra.mrb[0].mxu0 %v3335
        %v3485 = vpop.f32.mrb[0].mxu0
        %v3486 = vadd.f32 0.0, %v3485
        %v3487 = vpop.f32.mrb[0].mxu0
        %v3488 = vpop.f32.mrb[0].mxu0
        %v3489 = vadd.f32 0.0, %v3488
        %v3490 = vpop.f32.mrb[0].mxu0
        %3491 = vmatprep.mubr.bf16.mxu0 0
        %3492 = vmatmul.mubr.bf16.gmra.mrb[0].mxu0 %v3338
        %v3493 = vpop.f32.mrb[0].mxu0
        %v3494 = vadd.f32 0.0, %v3493
        %v3495 = vpop.f32.mrb[0].mxu0
        %v3496 = vpop.f32.mrb[0].mxu0
        %v3497 = vadd.f32 0.0, %v3496
        %v3498 = vpop.f32.mrb[0].mxu0
        %3499 = vmatprep.mubr.bf16.mxu0 0
        %3500 = vmatmul.mubr.bf16.gmra.mrb[0].mxu0 %v3341
        %v3501 = vpop.f32.mrb[0].mxu0
        %v3502 = vadd.f32 0.0, %v3501
        %v3503 = vpop.f32.mrb[0].mxu0
        %v3504 = vpop.f32.mrb[0].mxu0
        %v3505 = vadd.f32 0.0, %v3504
        %v3506 = vpop.f32.mrb[0].mxu0
        %3507 = vmatprep.mubr.bf16.mxu0 0
        %3508 = vmatmul.mubr.bf16.gmra.mrb[0].mxu0 %v3344
        %v3509 = vpop.f32.mrb[0].mxu0
        %v3510 = vadd.f32 0.0, %v3509
        %v3511 = vpop.f32.mrb[0].mxu0
        %v3512 = vpop.f32.mrb[0].mxu0
        %v3513 = vadd.f32 0.0, %v3512
        %v3514 = vpop.f32.mrb[0].mxu0
        %3515 = vmatprep.mubr.bf16.mxu0 0
        %3516 = vmatmul.mubr.bf16.gmra.mrb[0].mxu0 %v3347
        %v3517 = vpop.f32.mrb[0].mxu0
        %v3518 = vadd.f32 0.0, %v3517
        %v3519 = vpop.f32.mrb[0].mxu0
        %v3520 = vpop.f32.mrb[0].mxu0
        %v3521 = vadd.f32 0.0, %v3520
        %v3522 = vpop.f32.mrb[0].mxu0
        %3523 = vmatprep.mubr.bf16.mxu0 0
        %3524 = vmatmul.mubr.bf16.gmra.mrb[0].mxu0 %v3350
        %v3525 = vpop.f32.mrb[0].mxu0
        %v3526 = vadd.f32 0.0, %v3525
        %v3527 = vpop.f32.mrb[0].mxu0
        %v3528 = vpop.f32.mrb[0].mxu0
        %v3529 = vadd.f32 0.0, %v3528
        %v3530 = vpop.f32.mrb[0].mxu0
        %3531 = vmatprep.mubr.bf16.mxu0 0
        %3532 = vmatmul.mubr.bf16.gmra.mrb[0].mxu0 %v3353
        %v3533 = vpop.f32.mrb[0].mxu0
        %v3534 = vadd.f32 0.0, %v3533
        %v3535 = vpop.f32.mrb[0].mxu0
        %v3536 = vpop.f32.mrb[0].mxu0
        %v3537 = vadd.f32 0.0, %v3536
        %v3538 = vpop.f32.mrb[0].mxu0
        %3539 = vmatprep.mubr.bf16.mxu0 0
        %3540 = vmatmul.mubr.bf16.gmra.mrb[0].mxu0 %v3356
        %v3541 = vpop.f32.mrb[0].mxu0
        %v3542 = vadd.f32 0.0, %v3541
        %v3543 = vpop.f32.mrb[0].mxu0
        %v3544 = vpop.f32.mrb[0].mxu0
        %v3545 = vadd.f32 0.0, %v3544
        %v3546 = vpop.f32.mrb[0].mxu0
        %3547 = vmatprep.mubr.bf16.mxu0 0
        %3548 = vmatmul.mubr.bf16.gmra.mrb[0].mxu0 %v3359
        %v3549 = vpop.f32.mrb[0].mxu0
        %v3550 = vadd.f32 0.0, %v3549
        %v3551 = vpop.f32.mrb[0].mxu0
        %v3552 = vpop.f32.mrb[0].mxu0
        %v3553 = vadd.f32 0.0, %v3552
        %v3554 = vpop.f32.mrb[0].mxu0
        %3555 = vmatprep.mubr.bf16.mxu0 0
        %3556 = vmatmul.mubr.bf16.gmra.mrb[0].mxu0 %v3362
        %v3557 = vpop.f32.mrb[0].mxu0
        %v3558 = vadd.f32 0.0, %v3557
        %v3559 = vpop.f32.mrb[0].mxu0
        %v3560 = vpop.f32.mrb[0].mxu0
        %v3561 = vadd.f32 0.0, %v3560
        %v3562 = vpop.f32.mrb[0].mxu0
        %3563 = vmatprep.mubr.bf16.mxu0 0
        %3564 = vmatmul.mubr.bf16.gmra.mrb[0].mxu0 %v3365
        %v3565 = vpop.f32.mrb[0].mxu0
        %v3566 = vadd.f32 0.0, %v3565
        %v3567 = vpop.f32.mrb[0].mxu0
        %v3568 = vpop.f32.mrb[0].mxu0
        %v3569 = vadd.f32 0.0, %v3568
        %v3570 = vpop.f32.mrb[0].mxu0
        %3571 = vmatprep.mubr.bf16.mxu0 0
        %3572 = vmatmul.mubr.bf16.gmra.mrb[0].mxu0 %v3368
        %v3573 = vpop.f32.mrb[0].mxu0
        %v3574 = vadd.f32 0.0, %v3573
        %v3575 = vpop.f32.mrb[0].mxu0
        %v3576 = vpop.f32.mrb[0].mxu0
        %v3577 = vadd.f32 0.0, %v3576
        %v3578 = vpop.f32.mrb[0].mxu0
        %3579 = vmatprep.mubr.bf16.mxu0 0
        %3580 = vmatmul.mubr.bf16.gmra.mrb[0].mxu0 %v3371
        %v3581 = vpop.f32.mrb[0].mxu0
        %v3582 = vadd.f32 0.0, %v3581
        %v3583 = vpop.f32.mrb[0].mxu0
        %v3584 = vpop.f32.mrb[0].mxu0
        %v3585 = vadd.f32 0.0, %v3584
        %v3586 = vpop.f32.mrb[0].mxu0
        %3587 = vmatprep.mubr.bf16.mxu0 0
        %3588 = vmatmul.mubr.bf16.gmra.mrb[0].mxu0 %v3374
        %v3589 = vpop.f32.mrb[0].mxu0
        %v3590 = vadd.f32 0.0, %v3589
        %v3591 = vpop.f32.mrb[0].mxu0
        %v3592 = vpop.f32.mrb[0].mxu0
        %v3593 = vadd.f32 0.0, %v3592
        %v3594 = vpop.f32.mrb[0].mxu0
        %3595 = vmatprep.mubr.bf16.mxu0 0
        %3596 = vmatmul.mubr.bf16.gmra.mrb[0].mxu0 %v3377
        %v3597 = vpop.f32.mrb[0].mxu0
        %v3598 = vadd.f32 0.0, %v3597
        %v3599 = vpop.f32.mrb[0].mxu0
        %v3600 = vpop.f32.mrb[0].mxu0
        %v3601 = vadd.f32 0.0, %v3600
        %v3602 = vpop.f32.mrb[0].mxu0
        %3603 = vdwg.mxu0
        %v3604 = vadd.f32 %v3170, %v3414
        %v3605 = vadd.f32 %v3171, %v3417
        %v3606 = vadd.f32 %v3172, %v3422
        %v3607 = vadd.f32 %v3173, %v3425
        %v3608 = vadd.f32 %v3174, %v3430
        %v3609 = vadd.f32 %v3175, %v3433
        %v3610 = vadd.f32 %v3176, %v3438
        %v3611 = vadd.f32 %v3177, %v3441
        %v3612 = vadd.f32 %v3178, %v3446
        %v3613 = vadd.f32 %v3179, %v3449
        %v3614 = vadd.f32 %v3180, %v3454
        %v3615 = vadd.f32 %v3181, %v3457
        %v3616 = vadd.f32 %v3182, %v3462
        %v3617 = vadd.f32 %v3183, %v3465
        %v3618 = vadd.f32 %v3184, %v3470
        %v3619 = vadd.f32 %v3185, %v3473
        %v3620 = vadd.f32 %v3186, %v3478
        %v3621 = vadd.f32 %v3187, %v3481
        %v3622 = vadd.f32 %v3188, %v3486
        %v3623 = vadd.f32 %v3189, %v3489
        %v3624 = vadd.f32 %v3190, %v3494
        %v3625 = vadd.f32 %v3191, %v3497
        %v3626 = vadd.f32 %v3192, %v3502
        %v3627 = vadd.f32 %v3193, %v3505
        %v3628 = vadd.f32 %v3194, %v3510
        %v3629 = vadd.f32 %v3195, %v3513
        %v3630 = vadd.f32 %v3196, %v3518
        %v3631 = vadd.f32 %v3197, %v3521
        %v3632 = vadd.f32 %v3198, %v3526
        %v3633 = vadd.f32 %v3199, %v3529
        %v3634 = vadd.f32 %v3200, %v3534
        %v3635 = vadd.f32 %v3201, %v3537
        %v3636 = vadd.f32 %v3202, %v3542
        %v3637 = vadd.f32 %v3203, %v3545
        %v3638 = vadd.f32 %v3204, %v3550
        %v3639 = vadd.f32 %v3205, %v3553
        %v3640 = vadd.f32 %v3206, %v3558
        %v3641 = vadd.f32 %v3207, %v3561
        %v3642 = vadd.f32 %v3208, %v3566
        %v3643 = vadd.f32 %v3209, %v3569
        %v3644 = vadd.f32 %v3210, %v3574
        %v3645 = vadd.f32 %v3211, %v3577
        %v3646 = vadd.f32 %v3212, %v3582
        %v3647 = vadd.f32 %v3213, %v3585
        %v3648 = vadd.f32 %v3214, %v3590
        %v3649 = vadd.f32 %v3215, %v3593
        %v3650 = vadd.f32 %v3216, %v3598
        %v3651 = vadd.f32 %v3217, %v3601
        %v3652 = vld [vmem:[#allocation2 + $0x15] sm:$0xff]
        %v3653 = vld [vmem:[#allocation2 + $0x1d] sm:$0xff]
        %v3654 = vld [vmem:[#allocation2 + $0x25] sm:$0xff]
        %v3655 = vld [vmem:[#allocation2 + $0x2d] sm:$0xff]
        %v3656 = vld [vmem:[#allocation2 + $0x35] sm:$0xff]
        %v3657 = vld [vmem:[#allocation2 + $0x3d] sm:$0xff]
        %v3658 = vld [vmem:[#allocation2 + $0x45] sm:$0xff]
        %v3659 = vld [vmem:[#allocation2 + $0x4d] sm:$0xff]
        %v3660 = vld [vmem:[#allocation2 + $0x55] sm:$0xff]
        %v3661 = vld [vmem:[#allocation2 + $0x5d] sm:$0xff]
        %v3662 = vld [vmem:[#allocation2 + $0x65] sm:$0xff]
        %v3663 = vld [vmem:[#allocation2 + $0x6d] sm:$0xff]
        %v3664 = vld [vmem:[#allocation2 + $0x75] sm:$0xff]
        %v3665 = vld [vmem:[#allocation2 + $0x7d] sm:$0xff]
        %v3666 = vld [vmem:[#allocation2 + $0x85] sm:$0xff]
        %v3667 = vld [vmem:[#allocation2 + $0x8d] sm:$0xff]
        %v3668 = vld [vmem:[#allocation2 + $0x95] sm:$0xff]
        %v3669 = vld [vmem:[#allocation2 + $0x9d] sm:$0xff]
        %v3670 = vld [vmem:[#allocation2 + $0xa5] sm:$0xff]
        %v3671 = vld [vmem:[#allocation2 + $0xad] sm:$0xff]
        %v3672 = vld [vmem:[#allocation2 + $0xb5] sm:$0xff]
        %v3673 = vld [vmem:[#allocation2 + $0xbd] sm:$0xff]
        %v3674 = vld [vmem:[#allocation2 + $0xc5] sm:$0xff]
        %v3675 = vld [vmem:[#allocation2 + $0xcd] sm:$0xff]
        %v3676 = vld [vmem:[#allocation2 + $0xd5] sm:$0xff]
        %v3677 = vld [vmem:[#allocation2 + $0xdd] sm:$0xff]
        %v3678 = vld [vmem:[#allocation2 + $0xe5] sm:$0xff]
        %v3679 = vld [vmem:[#allocation2 + $0xed] sm:$0xff]
        %v3680 = vld [vmem:[#allocation2 + $0xf5] sm:$0xff]
        %v3681 = vld [vmem:[#allocation2 + $0xfd] sm:$0xff]
        %v3682 = vld [vmem:[#allocation2 + $0x105] sm:$0xff]
        %v3683 = vld [vmem:[#allocation2 + $0x10d] sm:$0xff]
        %v3684 = vld [vmem:[#allocation2 + $0x115] sm:$0xff]
        %v3685 = vld [vmem:[#allocation2 + $0x11d] sm:$0xff]
        %v3686 = vld [vmem:[#allocation2 + $0x125] sm:$0xff]
        %v3687 = vld [vmem:[#allocation2 + $0x12d] sm:$0xff]
        %v3688 = vld [vmem:[#allocation2 + $0x135] sm:$0xff]
        %v3689 = vld [vmem:[#allocation2 + $0x13d] sm:$0xff]
        %v3690 = vld [vmem:[#allocation2 + $0x145] sm:$0xff]
        %v3691 = vld [vmem:[#allocation2 + $0x14d] sm:$0xff]
        %v3692 = vld [vmem:[#allocation2 + $0x155] sm:$0xff]
        %v3693 = vld [vmem:[#allocation2 + $0x15d] sm:$0xff]
        %v3694 = vld [vmem:[#allocation2 + $0x165] sm:$0xff]
        %v3695 = vld [vmem:[#allocation2 + $0x16d] sm:$0xff]
        %v3696 = vld [vmem:[#allocation2 + $0x175] sm:$0xff]
        %v3697 = vld [vmem:[#allocation2 + $0x17d] sm:$0xff]
        %v3698 = vld [vmem:[#allocation2 + $0x185] sm:$0xff]
        %v3699 = vld [vmem:[#allocation2 + $0x18d] sm:$0xf]
        %v3700 = vpack.c.bf16 %v3653, %v3652
        %v3701 = vpack.c.bf16 %v3655, %v3654
        %v3702 = vpack.c.bf16 %v3657, %v3656
        %v3703 = vpack.c.bf16 %v3659, %v3658
        %v3704 = vpack.c.bf16 %v3661, %v3660
        %v3705 = vpack.c.bf16 %v3663, %v3662
        %v3706 = vpack.c.bf16 %v3665, %v3664
        %v3707 = vpack.c.bf16 %v3667, %v3666
        %v3708 = vpack.c.bf16 %v3669, %v3668
        %v3709 = vpack.c.bf16 %v3671, %v3670
        %v3710 = vpack.c.bf16 %v3673, %v3672
        %v3711 = vpack.c.bf16 %v3675, %v3674
        %v3712 = vpack.c.bf16 %v3677, %v3676
        %v3713 = vpack.c.bf16 %v3679, %v3678
        %v3714 = vpack.c.bf16 %v3681, %v3680
        %v3715 = vpack.c.bf16 %v3683, %v3682
        %v3716 = vpack.c.bf16 %v3685, %v3684
        %v3717 = vpack.c.bf16 %v3687, %v3686
        %v3718 = vpack.c.bf16 %v3689, %v3688
        %v3719 = vpack.c.bf16 %v3691, %v3690
        %v3720 = vpack.c.bf16 %v3693, %v3692
        %v3721 = vpack.c.bf16 %v3695, %v3694
        %v3722 = vpack.c.bf16 %v3697, %v3696
        %v3723 = vpack.c.bf16 %v3699, %v3698
        %s3724 = scalar_lea.vmem [#allocation13], 64
        %v3725 = vld [vmem:[%s3724] sm:$0xf]
        %v3726 = vld [vmem:[%s3724 + $0x4] sm:$0xf]
        %v3727 = vld [vmem:[%s3724 + $0x8] sm:$0xf]
        %v3728 = vld [vmem:[%s3724 + $0xc] sm:$0xf]
        %v3733 = vunpack.c.l.b16 %v3725
        %v3734 = vunpack.c.l.b16 %v3726
        %v3735 = vunpack.c.l.b16 %v3727
        %v3736 = vunpack.c.l.b16 %v3728
        %v3737 = vpack.c.b16 %v3734, %v3733
        %v3738 = vpack.c.b16 %v3736, %v3735
        %v3742 = vsel %vm717, %v3700, 0
        %v3745 = vsel %vm717, %v3701, 0
        %v3748 = vsel %vm717, %v3702, 0
        %v3751 = vsel %vm717, %v3703, 0
        %v3754 = vsel %vm717, %v3704, 0
        %v3757 = vsel %vm717, %v3705, 0
        %v3760 = vsel %vm717, %v3706, 0
        %v3763 = vsel %vm717, %v3707, 0
        %v3766 = vsel %vm717, %v3708, 0
        %v3769 = vsel %vm717, %v3709, 0
        %v3772 = vsel %vm717, %v3710, 0
        %v3775 = vsel %vm717, %v3711, 0
        %v3778 = vsel %vm717, %v3712, 0
        %v3781 = vsel %vm717, %v3713, 0
        %v3784 = vsel %vm717, %v3714, 0
        %v3787 = vsel %vm717, %v3715, 0
        %v3790 = vsel %vm717, %v3716, 0
        %v3793 = vsel %vm717, %v3717, 0
        %v3796 = vsel %vm717, %v3718, 0
        %v3799 = vsel %vm717, %v3719, 0
        %v3802 = vsel %vm717, %v3720, 0
        %v3805 = vsel %vm717, %v3721, 0
        %v3808 = vsel %vm717, %v3722, 0
        %v3811 = vsel %vm717, %v3723, 0
        %3813 = vmatprep.subr.bf16.mxu0 0
        %3814 = vmatpush1.bf16.msra.mxu0 %v3737
        %3815 = vmatprep.subr.bf16.mxu0 0
        %3816 = vmatpush1.bf16.msra.mxu0 %v3738
        %3817 = vmatprep.subr.bf16.mxu0 0
        %3818 = vmatpush1.bf16.msra.mxu0 0
        %3819 = vmatprep.subr.bf16.mxu0 0
        %3820 = vmatpush1.bf16.msra.mxu0 0
        %3821 = vmatprep.subr.bf16.mxu0 0
        %3822 = vmatpush1.bf16.msra.mxu0 0
        %3823 = vmatprep.subr.bf16.mxu0 0
        %3824 = vmatpush1.bf16.msra.mxu0 0
        %3825 = vmatprep.subr.bf16.mxu0 0
        %3826 = vmatpush1.bf16.msra.mxu0 0
        %3827 = vmatprep.subr.bf16.mxu0 0
        %3828 = vmatpush1.bf16.msra.mxu0 0
        %3829 = vmatprep.subr.bf16.mxu0 0
        %3830 = vmatpush1.bf16.msra.mxu0 0
        %3831 = vmatprep.subr.bf16.mxu0 0
        %3832 = vmatpush1.bf16.msra.mxu0 0
        %3833 = vmatprep.subr.bf16.mxu0 0
        %3834 = vmatpush1.bf16.msra.mxu0 0
        %3835 = vmatprep.subr.bf16.mxu0 0
        %3836 = vmatpush1.bf16.msra.mxu0 0
        %3837 = vmatprep.subr.bf16.mxu0 0
        %3838 = vmatpush1.bf16.msra.mxu0 0
        %3839 = vmatprep.subr.bf16.mxu0 0
        %3840 = vmatpush1.bf16.msra.mxu0 0
        %3841 = vmatprep.subr.bf16.mxu0 0
        %3842 = vmatpush1.bf16.msra.mxu0 0
        %3843 = vmatprep.subr.bf16.mxu0 0
        %3844 = vmatpush1.bf16.msra.mxu0 0
        %3845 = vmatprep.mubr.bf16.mxu0 0
        %3846 = vmatmul.mubr.bf16.gmra.mrb[0].mxu0 %v3742
        %v3847 = vpop.f32.mrb[0].mxu0
        %v3848 = vadd.f32 0.0, %v3847
        %v3849 = vpop.f32.mrb[0].mxu0
        %v3850 = vpop.f32.mrb[0].mxu0
        %v3851 = vadd.f32 0.0, %v3850
        %v3852 = vpop.f32.mrb[0].mxu0
        %3853 = vmatprep.mubr.bf16.mxu0 0
        %3854 = vmatmul.mubr.bf16.gmra.mrb[0].mxu0 %v3745
        %v3855 = vpop.f32.mrb[0].mxu0
        %v3856 = vadd.f32 0.0, %v3855
        %v3857 = vpop.f32.mrb[0].mxu0
        %v3858 = vpop.f32.mrb[0].mxu0
        %v3859 = vadd.f32 0.0, %v3858
        %v3860 = vpop.f32.mrb[0].mxu0
        %3861 = vmatprep.mubr.bf16.mxu0 0
        %3862 = vmatmul.mubr.bf16.gmra.mrb[0].mxu0 %v3748
        %v3863 = vpop.f32.mrb[0].mxu0
        %v3864 = vadd.f32 0.0, %v3863
        %v3865 = vpop.f32.mrb[0].mxu0
        %v3866 = vpop.f32.mrb[0].mxu0
        %v3867 = vadd.f32 0.0, %v3866
        %v3868 = vpop.f32.mrb[0].mxu0
        %3869 = vmatprep.mubr.bf16.mxu0 0
        %3870 = vmatmul.mubr.bf16.gmra.mrb[0].mxu0 %v3751
        %v3871 = vpop.f32.mrb[0].mxu0
        %v3872 = vadd.f32 0.0, %v3871
        %v3873 = vpop.f32.mrb[0].mxu0
        %v3874 = vpop.f32.mrb[0].mxu0
        %v3875 = vadd.f32 0.0, %v3874
        %v3876 = vpop.f32.mrb[0].mxu0
        %3877 = vmatprep.mubr.bf16.mxu0 0
        %3878 = vmatmul.mubr.bf16.gmra.mrb[0].mxu0 %v3754
        %v3879 = vpop.f32.mrb[0].mxu0
        %v3880 = vadd.f32 0.0, %v3879
        %v3881 = vpop.f32.mrb[0].mxu0
        %v3882 = vpop.f32.mrb[0].mxu0
        %v3883 = vadd.f32 0.0, %v3882
        %v3884 = vpop.f32.mrb[0].mxu0
        %3885 = vmatprep.mubr.bf16.mxu0 0
        %3886 = vmatmul.mubr.bf16.gmra.mrb[0].mxu0 %v3757
        %v3887 = vpop.f32.mrb[0].mxu0
        %v3888 = vadd.f32 0.0, %v3887
        %v3889 = vpop.f32.mrb[0].mxu0
        %v3890 = vpop.f32.mrb[0].mxu0
        %v3891 = vadd.f32 0.0, %v3890
        %v3892 = vpop.f32.mrb[0].mxu0
        %3893 = vmatprep.mubr.bf16.mxu0 0
        %3894 = vmatmul.mubr.bf16.gmra.mrb[0].mxu0 %v3760
        %v3895 = vpop.f32.mrb[0].mxu0
        %v3896 = vadd.f32 0.0, %v3895
        %v3897 = vpop.f32.mrb[0].mxu0
        %v3898 = vpop.f32.mrb[0].mxu0
        %v3899 = vadd.f32 0.0, %v3898
        %v3900 = vpop.f32.mrb[0].mxu0
        %3901 = vmatprep.mubr.bf16.mxu0 0
        %3902 = vmatmul.mubr.bf16.gmra.mrb[0].mxu0 %v3763
        %v3903 = vpop.f32.mrb[0].mxu0
        %v3904 = vadd.f32 0.0, %v3903
        %v3905 = vpop.f32.mrb[0].mxu0
        %v3906 = vpop.f32.mrb[0].mxu0
        %v3907 = vadd.f32 0.0, %v3906
        %v3908 = vpop.f32.mrb[0].mxu0
        %3909 = vmatprep.mubr.bf16.mxu0 0
        %3910 = vmatmul.mubr.bf16.gmra.mrb[0].mxu0 %v3766
        %v3911 = vpop.f32.mrb[0].mxu0
        %v3912 = vadd.f32 0.0, %v3911
        %v3913 = vpop.f32.mrb[0].mxu0
        %v3914 = vpop.f32.mrb[0].mxu0
        %v3915 = vadd.f32 0.0, %v3914
        %v3916 = vpop.f32.mrb[0].mxu0
        %3917 = vmatprep.mubr.bf16.mxu0 0
        %3918 = vmatmul.mubr.bf16.gmra.mrb[0].mxu0 %v3769
        %v3919 = vpop.f32.mrb[0].mxu0
        %v3920 = vadd.f32 0.0, %v3919
        %v3921 = vpop.f32.mrb[0].mxu0
        %v3922 = vpop.f32.mrb[0].mxu0
        %v3923 = vadd.f32 0.0, %v3922
        %v3924 = vpop.f32.mrb[0].mxu0
        %3925 = vmatprep.mubr.bf16.mxu0 0
        %3926 = vmatmul.mubr.bf16.gmra.mrb[0].mxu0 %v3772
        %v3927 = vpop.f32.mrb[0].mxu0
        %v3928 = vadd.f32 0.0, %v3927
        %v3929 = vpop.f32.mrb[0].mxu0
        %v3930 = vpop.f32.mrb[0].mxu0
        %v3931 = vadd.f32 0.0, %v3930
        %v3932 = vpop.f32.mrb[0].mxu0
        %3933 = vmatprep.mubr.bf16.mxu0 0
        %3934 = vmatmul.mubr.bf16.gmra.mrb[0].mxu0 %v3775
        %v3935 = vpop.f32.mrb[0].mxu0
        %v3936 = vadd.f32 0.0, %v3935
        %v3937 = vpop.f32.mrb[0].mxu0
        %v3938 = vpop.f32.mrb[0].mxu0
        %v3939 = vadd.f32 0.0, %v3938
        %v3940 = vpop.f32.mrb[0].mxu0
        %3941 = vmatprep.mubr.bf16.mxu0 0
        %3942 = vmatmul.mubr.bf16.gmra.mrb[0].mxu0 %v3778
        %v3943 = vpop.f32.mrb[0].mxu0
        %v3944 = vadd.f32 0.0, %v3943
        %v3945 = vpop.f32.mrb[0].mxu0
        %v3946 = vpop.f32.mrb[0].mxu0
        %v3947 = vadd.f32 0.0, %v3946
        %v3948 = vpop.f32.mrb[0].mxu0
        %3949 = vmatprep.mubr.bf16.mxu0 0
        %3950 = vmatmul.mubr.bf16.gmra.mrb[0].mxu0 %v3781
        %v3951 = vpop.f32.mrb[0].mxu0
        %v3952 = vadd.f32 0.0, %v3951
        %v3953 = vpop.f32.mrb[0].mxu0
        %v3954 = vpop.f32.mrb[0].mxu0
        %v3955 = vadd.f32 0.0, %v3954
        %v3956 = vpop.f32.mrb[0].mxu0
        %3957 = vmatprep.mubr.bf16.mxu0 0
        %3958 = vmatmul.mubr.bf16.gmra.mrb[0].mxu0 %v3784
        %v3959 = vpop.f32.mrb[0].mxu0
        %v3960 = vadd.f32 0.0, %v3959
        %v3961 = vpop.f32.mrb[0].mxu0
        %v3962 = vpop.f32.mrb[0].mxu0
        %v3963 = vadd.f32 0.0, %v3962
        %v3964 = vpop.f32.mrb[0].mxu0
        %3965 = vmatprep.mubr.bf16.mxu0 0
        %3966 = vmatmul.mubr.bf16.gmra.mrb[0].mxu0 %v3787
        %v3967 = vpop.f32.mrb[0].mxu0
        %v3968 = vadd.f32 0.0, %v3967
        %v3969 = vpop.f32.mrb[0].mxu0
        %v3970 = vpop.f32.mrb[0].mxu0
        %v3971 = vadd.f32 0.0, %v3970
        %v3972 = vpop.f32.mrb[0].mxu0
        %3973 = vmatprep.mubr.bf16.mxu0 0
        %3974 = vmatmul.mubr.bf16.gmra.mrb[0].mxu0 %v3790
        %v3975 = vpop.f32.mrb[0].mxu0
        %v3976 = vadd.f32 0.0, %v3975
        %v3977 = vpop.f32.mrb[0].mxu0
        %v3978 = vpop.f32.mrb[0].mxu0
        %v3979 = vadd.f32 0.0, %v3978
        %v3980 = vpop.f32.mrb[0].mxu0
        %3981 = vmatprep.mubr.bf16.mxu0 0
        %3982 = vmatmul.mubr.bf16.gmra.mrb[0].mxu0 %v3793
        %v3983 = vpop.f32.mrb[0].mxu0
        %v3984 = vadd.f32 0.0, %v3983
        %v3985 = vpop.f32.mrb[0].mxu0
        %v3986 = vpop.f32.mrb[0].mxu0
        %v3987 = vadd.f32 0.0, %v3986
        %v3988 = vpop.f32.mrb[0].mxu0
        %3989 = vmatprep.mubr.bf16.mxu0 0
        %3990 = vmatmul.mubr.bf16.gmra.mrb[0].mxu0 %v3796
        %v3991 = vpop.f32.mrb[0].mxu0
        %v3992 = vadd.f32 0.0, %v3991
        %v3993 = vpop.f32.mrb[0].mxu0
        %v3994 = vpop.f32.mrb[0].mxu0
        %v3995 = vadd.f32 0.0, %v3994
        %v3996 = vpop.f32.mrb[0].mxu0
        %3997 = vmatprep.mubr.bf16.mxu0 0
        %3998 = vmatmul.mubr.bf16.gmra.mrb[0].mxu0 %v3799
        %v3999 = vpop.f32.mrb[0].mxu0
        %v4000 = vadd.f32 0.0, %v3999
        %v4001 = vpop.f32.mrb[0].mxu0
        %v4002 = vpop.f32.mrb[0].mxu0
        %v4003 = vadd.f32 0.0, %v4002
        %v4004 = vpop.f32.mrb[0].mxu0
        %4005 = vmatprep.mubr.bf16.mxu0 0
        %4006 = vmatmul.mubr.bf16.gmra.mrb[0].mxu0 %v3802
        %v4007 = vpop.f32.mrb[0].mxu0
        %v4008 = vadd.f32 0.0, %v4007
        %v4009 = vpop.f32.mrb[0].mxu0
        %v4010 = vpop.f32.mrb[0].mxu0
        %v4011 = vadd.f32 0.0, %v4010
        %v4012 = vpop.f32.mrb[0].mxu0
        %4013 = vmatprep.mubr.bf16.mxu0 0
        %4014 = vmatmul.mubr.bf16.gmra.mrb[0].mxu0 %v3805
        %v4015 = vpop.f32.mrb[0].mxu0
        %v4016 = vadd.f32 0.0, %v4015
        %v4017 = vpop.f32.mrb[0].mxu0
        %v4018 = vpop.f32.mrb[0].mxu0
        %v4019 = vadd.f32 0.0, %v4018
        %v4020 = vpop.f32.mrb[0].mxu0
        %4021 = vmatprep.mubr.bf16.mxu0 0
        %4022 = vmatmul.mubr.bf16.gmra.mrb[0].mxu0 %v3808
        %v4023 = vpop.f32.mrb[0].mxu0
        %v4024 = vadd.f32 0.0, %v4023
        %v4025 = vpop.f32.mrb[0].mxu0
        %v4026 = vpop.f32.mrb[0].mxu0
        %v4027 = vadd.f32 0.0, %v4026
        %v4028 = vpop.f32.mrb[0].mxu0
        %4029 = vmatprep.mubr.bf16.mxu0 0
        %4030 = vmatmul.mubr.bf16.gmra.mrb[0].mxu0 %v3811
        %v4031 = vpop.f32.mrb[0].mxu0
        %v4032 = vadd.f32 0.0, %v4031
        %v4033 = vpop.f32.mrb[0].mxu0
        %v4034 = vpop.f32.mrb[0].mxu0
        %v4035 = vadd.f32 0.0, %v4034
        %v4036 = vpop.f32.mrb[0].mxu0
        %4037 = vdwg.mxu0
        %v4038 = vadd.f32 %v3604, %v3848
        %v4039 = vadd.f32 %v3605, %v3851
        %v4040 = vadd.f32 %v3606, %v3856
        %v4041 = vadd.f32 %v3607, %v3859
        %v4042 = vadd.f32 %v3608, %v3864
        %v4043 = vadd.f32 %v3609, %v3867
        %v4044 = vadd.f32 %v3610, %v3872
        %v4045 = vadd.f32 %v3611, %v3875
        %v4046 = vadd.f32 %v3612, %v3880
        %v4047 = vadd.f32 %v3613, %v3883
        %v4048 = vadd.f32 %v3614, %v3888
        %v4049 = vadd.f32 %v3615, %v3891
        %v4050 = vadd.f32 %v3616, %v3896
        %v4051 = vadd.f32 %v3617, %v3899
        %v4052 = vadd.f32 %v3618, %v3904
        %v4053 = vadd.f32 %v3619, %v3907
        %v4054 = vadd.f32 %v3620, %v3912
        %v4055 = vadd.f32 %v3621, %v3915
        %v4056 = vadd.f32 %v3622, %v3920
        %v4057 = vadd.f32 %v3623, %v3923
        %v4058 = vadd.f32 %v3624, %v3928
        %v4059 = vadd.f32 %v3625, %v3931
        %v4060 = vadd.f32 %v3626, %v3936
        %v4061 = vadd.f32 %v3627, %v3939
        %v4062 = vadd.f32 %v3628, %v3944
        %v4063 = vadd.f32 %v3629, %v3947
        %v4064 = vadd.f32 %v3630, %v3952
        %v4065 = vadd.f32 %v3631, %v3955
        %v4066 = vadd.f32 %v3632, %v3960
        %v4067 = vadd.f32 %v3633, %v3963
        %v4068 = vadd.f32 %v3634, %v3968
        %v4069 = vadd.f32 %v3635, %v3971
        %v4070 = vadd.f32 %v3636, %v3976
        %v4071 = vadd.f32 %v3637, %v3979
        %v4072 = vadd.f32 %v3638, %v3984
        %v4073 = vadd.f32 %v3639, %v3987
        %v4074 = vadd.f32 %v3640, %v3992
        %v4075 = vadd.f32 %v3641, %v3995
        %v4076 = vadd.f32 %v3642, %v4000
        %v4077 = vadd.f32 %v3643, %v4003
        %v4078 = vadd.f32 %v3644, %v4008
        %v4079 = vadd.f32 %v3645, %v4011
        %v4080 = vadd.f32 %v3646, %v4016
        %v4081 = vadd.f32 %v3647, %v4019
        %v4082 = vadd.f32 %v3648, %v4024
        %v4083 = vadd.f32 %v3649, %v4027
        %v4084 = vadd.f32 %v3650, %v4032
        %v4085 = vadd.f32 %v3651, %v4035
        %v4086 = vld [vmem:[#allocation2 + $0x16] sm:$0xff]
        %v4087 = vld [vmem:[#allocation2 + $0x1e] sm:$0xff]
        %v4088 = vld [vmem:[#allocation2 + $0x26] sm:$0xff]
        %v4089 = vld [vmem:[#allocation2 + $0x2e] sm:$0xff]
        %v4090 = vld [vmem:[#allocation2 + $0x36] sm:$0xff]
        %v4091 = vld [vmem:[#allocation2 + $0x3e] sm:$0xff]
        %v4092 = vld [vmem:[#allocation2 + $0x46] sm:$0xff]
        %v4093 = vld [vmem:[#allocation2 + $0x4e] sm:$0xff]
        %v4094 = vld [vmem:[#allocation2 + $0x56] sm:$0xff]
        %v4095 = vld [vmem:[#allocation2 + $0x5e] sm:$0xff]
        %v4096 = vld [vmem:[#allocation2 + $0x66] sm:$0xff]
        %v4097 = vld [vmem:[#allocation2 + $0x6e] sm:$0xff]
        %v4098 = vld [vmem:[#allocation2 + $0x76] sm:$0xff]
        %v4099 = vld [vmem:[#allocation2 + $0x7e] sm:$0xff]
        %v4100 = vld [vmem:[#allocation2 + $0x86] sm:$0xff]
        %v4101 = vld [vmem:[#allocation2 + $0x8e] sm:$0xff]
        %v4102 = vld [vmem:[#allocation2 + $0x96] sm:$0xff]
        %v4103 = vld [vmem:[#allocation2 + $0x9e] sm:$0xff]
        %v4104 = vld [vmem:[#allocation2 + $0xa6] sm:$0xff]
        %v4105 = vld [vmem:[#allocation2 + $0xae] sm:$0xff]
        %v4106 = vld [vmem:[#allocation2 + $0xb6] sm:$0xff]
        %v4107 = vld [vmem:[#allocation2 + $0xbe] sm:$0xff]
        %v4108 = vld [vmem:[#allocation2 + $0xc6] sm:$0xff]
        %v4109 = vld [vmem:[#allocation2 + $0xce] sm:$0xff]
        %v4110 = vld [vmem:[#allocation2 + $0xd6] sm:$0xff]
        %v4111 = vld [vmem:[#allocation2 + $0xde] sm:$0xff]
        %v4112 = vld [vmem:[#allocation2 + $0xe6] sm:$0xff]
        %v4113 = vld [vmem:[#allocation2 + $0xee] sm:$0xff]
        %v4114 = vld [vmem:[#allocation2 + $0xf6] sm:$0xff]
        %v4115 = vld [vmem:[#allocation2 + $0xfe] sm:$0xff]
        %v4116 = vld [vmem:[#allocation2 + $0x106] sm:$0xff]
        %v4117 = vld [vmem:[#allocation2 + $0x10e] sm:$0xff]
        %v4118 = vld [vmem:[#allocation2 + $0x116] sm:$0xff]
        %v4119 = vld [vmem:[#allocation2 + $0x11e] sm:$0xff]
        %v4120 = vld [vmem:[#allocation2 + $0x126] sm:$0xff]
        %v4121 = vld [vmem:[#allocation2 + $0x12e] sm:$0xff]
        %v4122 = vld [vmem:[#allocation2 + $0x136] sm:$0xff]
        %v4123 = vld [vmem:[#allocation2 + $0x13e] sm:$0xff]
        %v4124 = vld [vmem:[#allocation2 + $0x146] sm:$0xff]
        %v4125 = vld [vmem:[#allocation2 + $0x14e] sm:$0xff]
        %v4126 = vld [vmem:[#allocation2 + $0x156] sm:$0xff]
        %v4127 = vld [vmem:[#allocation2 + $0x15e] sm:$0xff]
        %v4128 = vld [vmem:[#allocation2 + $0x166] sm:$0xff]
        %v4129 = vld [vmem:[#allocation2 + $0x16e] sm:$0xff]
        %v4130 = vld [vmem:[#allocation2 + $0x176] sm:$0xff]
        %v4131 = vld [vmem:[#allocation2 + $0x17e] sm:$0xff]
        %v4132 = vld [vmem:[#allocation2 + $0x186] sm:$0xff]
        %v4133 = vld [vmem:[#allocation2 + $0x18e] sm:$0xf]
        %v4134 = vpack.c.bf16 %v4087, %v4086
        %v4135 = vpack.c.bf16 %v4089, %v4088
        %v4136 = vpack.c.bf16 %v4091, %v4090
        %v4137 = vpack.c.bf16 %v4093, %v4092
        %v4138 = vpack.c.bf16 %v4095, %v4094
        %v4139 = vpack.c.bf16 %v4097, %v4096
        %v4140 = vpack.c.bf16 %v4099, %v4098
        %v4141 = vpack.c.bf16 %v4101, %v4100
        %v4142 = vpack.c.bf16 %v4103, %v4102
        %v4143 = vpack.c.bf16 %v4105, %v4104
        %v4144 = vpack.c.bf16 %v4107, %v4106
        %v4145 = vpack.c.bf16 %v4109, %v4108
        %v4146 = vpack.c.bf16 %v4111, %v4110
        %v4147 = vpack.c.bf16 %v4113, %v4112
        %v4148 = vpack.c.bf16 %v4115, %v4114
        %v4149 = vpack.c.bf16 %v4117, %v4116
        %v4150 = vpack.c.bf16 %v4119, %v4118
        %v4151 = vpack.c.bf16 %v4121, %v4120
        %v4152 = vpack.c.bf16 %v4123, %v4122
        %v4153 = vpack.c.bf16 %v4125, %v4124
        %v4154 = vpack.c.bf16 %v4127, %v4126
        %v4155 = vpack.c.bf16 %v4129, %v4128
        %v4156 = vpack.c.bf16 %v4131, %v4130
        %v4157 = vpack.c.bf16 %v4133, %v4132
        %s4158 = scalar_lea.vmem [#allocation13], 80
        %v4159 = vld [vmem:[%s4158] sm:$0xf]
        %v4160 = vld [vmem:[%s4158 + $0x4] sm:$0xf]
        %v4161 = vld [vmem:[%s4158 + $0x8] sm:$0xf]
        %v4162 = vld [vmem:[%s4158 + $0xc] sm:$0xf]
        %v4167 = vunpack.c.l.b16 %v4159
        %v4168 = vunpack.c.l.b16 %v4160
        %v4169 = vunpack.c.l.b16 %v4161
        %v4170 = vunpack.c.l.b16 %v4162
        %v4171 = vpack.c.b16 %v4168, %v4167
        %v4172 = vpack.c.b16 %v4170, %v4169
        %v4176 = vsel %vm717, %v4134, 0
        %v4179 = vsel %vm717, %v4135, 0
        %v4182 = vsel %vm717, %v4136, 0
        %v4185 = vsel %vm717, %v4137, 0
        %v4188 = vsel %vm717, %v4138, 0
        %v4191 = vsel %vm717, %v4139, 0
        %v4194 = vsel %vm717, %v4140, 0
        %v4197 = vsel %vm717, %v4141, 0
        %v4200 = vsel %vm717, %v4142, 0
        %v4203 = vsel %vm717, %v4143, 0
        %v4206 = vsel %vm717, %v4144, 0
        %v4209 = vsel %vm717, %v4145, 0
        %v4212 = vsel %vm717, %v4146, 0
        %v4215 = vsel %vm717, %v4147, 0
        %v4218 = vsel %vm717, %v4148, 0
        %v4221 = vsel %vm717, %v4149, 0
        %v4224 = vsel %vm717, %v4150, 0
        %v4227 = vsel %vm717, %v4151, 0
        %v4230 = vsel %vm717, %v4152, 0
        %v4233 = vsel %vm717, %v4153, 0
        %v4236 = vsel %vm717, %v4154, 0
        %v4239 = vsel %vm717, %v4155, 0
        %v4242 = vsel %vm717, %v4156, 0
        %v4245 = vsel %vm717, %v4157, 0
        %4247 = vmatprep.subr.bf16.mxu0 0
        %4248 = vmatpush1.bf16.msra.mxu0 %v4171
        %4249 = vmatprep.subr.bf16.mxu0 0
        %4250 = vmatpush1.bf16.msra.mxu0 %v4172
        %4251 = vmatprep.subr.bf16.mxu0 0
        %4252 = vmatpush1.bf16.msra.mxu0 0
        %4253 = vmatprep.subr.bf16.mxu0 0
        %4254 = vmatpush1.bf16.msra.mxu0 0
        %4255 = vmatprep.subr.bf16.mxu0 0
        %4256 = vmatpush1.bf16.msra.mxu0 0
        %4257 = vmatprep.subr.bf16.mxu0 0
        %4258 = vmatpush1.bf16.msra.mxu0 0
        %4259 = vmatprep.subr.bf16.mxu0 0
        %4260 = vmatpush1.bf16.msra.mxu0 0
        %4261 = vmatprep.subr.bf16.mxu0 0
        %4262 = vmatpush1.bf16.msra.mxu0 0
        %4263 = vmatprep.subr.bf16.mxu0 0
        %4264 = vmatpush1.bf16.msra.mxu0 0
        %4265 = vmatprep.subr.bf16.mxu0 0
        %4266 = vmatpush1.bf16.msra.mxu0 0
        %4267 = vmatprep.subr.bf16.mxu0 0
        %4268 = vmatpush1.bf16.msra.mxu0 0
        %4269 = vmatprep.subr.bf16.mxu0 0
        %4270 = vmatpush1.bf16.msra.mxu0 0
        %4271 = vmatprep.subr.bf16.mxu0 0
        %4272 = vmatpush1.bf16.msra.mxu0 0
        %4273 = vmatprep.subr.bf16.mxu0 0
        %4274 = vmatpush1.bf16.msra.mxu0 0
        %4275 = vmatprep.subr.bf16.mxu0 0
        %4276 = vmatpush1.bf16.msra.mxu0 0
        %4277 = vmatprep.subr.bf16.mxu0 0
        %4278 = vmatpush1.bf16.msra.mxu0 0
        %4279 = vmatprep.mubr.bf16.mxu0 0
        %4280 = vmatmul.mubr.bf16.gmra.mrb[0].mxu0 %v4176
        %v4281 = vpop.f32.mrb[0].mxu0
        %v4282 = vadd.f32 0.0, %v4281
        %v4283 = vpop.f32.mrb[0].mxu0
        %v4284 = vpop.f32.mrb[0].mxu0
        %v4285 = vadd.f32 0.0, %v4284
        %v4286 = vpop.f32.mrb[0].mxu0
        %4287 = vmatprep.mubr.bf16.mxu0 0
        %4288 = vmatmul.mubr.bf16.gmra.mrb[0].mxu0 %v4179
        %v4289 = vpop.f32.mrb[0].mxu0
        %v4290 = vadd.f32 0.0, %v4289
        %v4291 = vpop.f32.mrb[0].mxu0
        %v4292 = vpop.f32.mrb[0].mxu0
        %v4293 = vadd.f32 0.0, %v4292
        %v4294 = vpop.f32.mrb[0].mxu0
        %4295 = vmatprep.mubr.bf16.mxu0 0
        %4296 = vmatmul.mubr.bf16.gmra.mrb[0].mxu0 %v4182
        %v4297 = vpop.f32.mrb[0].mxu0
        %v4298 = vadd.f32 0.0, %v4297
        %v4299 = vpop.f32.mrb[0].mxu0
        %v4300 = vpop.f32.mrb[0].mxu0
        %v4301 = vadd.f32 0.0, %v4300
        %v4302 = vpop.f32.mrb[0].mxu0
        %4303 = vmatprep.mubr.bf16.mxu0 0
        %4304 = vmatmul.mubr.bf16.gmra.mrb[0].mxu0 %v4185
        %v4305 = vpop.f32.mrb[0].mxu0
        %v4306 = vadd.f32 0.0, %v4305
        %v4307 = vpop.f32.mrb[0].mxu0
        %v4308 = vpop.f32.mrb[0].mxu0
        %v4309 = vadd.f32 0.0, %v4308
        %v4310 = vpop.f32.mrb[0].mxu0
        %4311 = vmatprep.mubr.bf16.mxu0 0
        %4312 = vmatmul.mubr.bf16.gmra.mrb[0].mxu0 %v4188
        %v4313 = vpop.f32.mrb[0].mxu0
        %v4314 = vadd.f32 0.0, %v4313
        %v4315 = vpop.f32.mrb[0].mxu0
        %v4316 = vpop.f32.mrb[0].mxu0
        %v4317 = vadd.f32 0.0, %v4316
        %v4318 = vpop.f32.mrb[0].mxu0
        %4319 = vmatprep.mubr.bf16.mxu0 0
        %4320 = vmatmul.mubr.bf16.gmra.mrb[0].mxu0 %v4191
        %v4321 = vpop.f32.mrb[0].mxu0
        %v4322 = vadd.f32 0.0, %v4321
        %v4323 = vpop.f32.mrb[0].mxu0
        %v4324 = vpop.f32.mrb[0].mxu0
        %v4325 = vadd.f32 0.0, %v4324
        %v4326 = vpop.f32.mrb[0].mxu0
        %4327 = vmatprep.mubr.bf16.mxu0 0
        %4328 = vmatmul.mubr.bf16.gmra.mrb[0].mxu0 %v4194
        %v4329 = vpop.f32.mrb[0].mxu0
        %v4330 = vadd.f32 0.0, %v4329
        %v4331 = vpop.f32.mrb[0].mxu0
        %v4332 = vpop.f32.mrb[0].mxu0
        %v4333 = vadd.f32 0.0, %v4332
        %v4334 = vpop.f32.mrb[0].mxu0
        %4335 = vmatprep.mubr.bf16.mxu0 0
        %4336 = vmatmul.mubr.bf16.gmra.mrb[0].mxu0 %v4197
        %v4337 = vpop.f32.mrb[0].mxu0
        %v4338 = vadd.f32 0.0, %v4337
        %v4339 = vpop.f32.mrb[0].mxu0
        %v4340 = vpop.f32.mrb[0].mxu0
        %v4341 = vadd.f32 0.0, %v4340
        %v4342 = vpop.f32.mrb[0].mxu0
        %4343 = vmatprep.mubr.bf16.mxu0 0
        %4344 = vmatmul.mubr.bf16.gmra.mrb[0].mxu0 %v4200
        %v4345 = vpop.f32.mrb[0].mxu0
        %v4346 = vadd.f32 0.0, %v4345
        %v4347 = vpop.f32.mrb[0].mxu0
        %v4348 = vpop.f32.mrb[0].mxu0
        %v4349 = vadd.f32 0.0, %v4348
        %v4350 = vpop.f32.mrb[0].mxu0
        %4351 = vmatprep.mubr.bf16.mxu0 0
        %4352 = vmatmul.mubr.bf16.gmra.mrb[0].mxu0 %v4203
        %v4353 = vpop.f32.mrb[0].mxu0
        %v4354 = vadd.f32 0.0, %v4353
        %v4355 = vpop.f32.mrb[0].mxu0
        %v4356 = vpop.f32.mrb[0].mxu0
        %v4357 = vadd.f32 0.0, %v4356
        %v4358 = vpop.f32.mrb[0].mxu0
        %4359 = vmatprep.mubr.bf16.mxu0 0
        %4360 = vmatmul.mubr.bf16.gmra.mrb[0].mxu0 %v4206
        %v4361 = vpop.f32.mrb[0].mxu0
        %v4362 = vadd.f32 0.0, %v4361
        %v4363 = vpop.f32.mrb[0].mxu0
        %v4364 = vpop.f32.mrb[0].mxu0
        %v4365 = vadd.f32 0.0, %v4364
        %v4366 = vpop.f32.mrb[0].mxu0
        %4367 = vmatprep.mubr.bf16.mxu0 0
        %4368 = vmatmul.mubr.bf16.gmra.mrb[0].mxu0 %v4209
        %v4369 = vpop.f32.mrb[0].mxu0
        %v4370 = vadd.f32 0.0, %v4369
        %v4371 = vpop.f32.mrb[0].mxu0
        %v4372 = vpop.f32.mrb[0].mxu0
        %v4373 = vadd.f32 0.0, %v4372
        %v4374 = vpop.f32.mrb[0].mxu0
        %4375 = vmatprep.mubr.bf16.mxu0 0
        %4376 = vmatmul.mubr.bf16.gmra.mrb[0].mxu0 %v4212
        %v4377 = vpop.f32.mrb[0].mxu0
        %v4378 = vadd.f32 0.0, %v4377
        %v4379 = vpop.f32.mrb[0].mxu0
        %v4380 = vpop.f32.mrb[0].mxu0
        %v4381 = vadd.f32 0.0, %v4380
        %v4382 = vpop.f32.mrb[0].mxu0
        %4383 = vmatprep.mubr.bf16.mxu0 0
        %4384 = vmatmul.mubr.bf16.gmra.mrb[0].mxu0 %v4215
        %v4385 = vpop.f32.mrb[0].mxu0
        %v4386 = vadd.f32 0.0, %v4385
        %v4387 = vpop.f32.mrb[0].mxu0
        %v4388 = vpop.f32.mrb[0].mxu0
        %v4389 = vadd.f32 0.0, %v4388
        %v4390 = vpop.f32.mrb[0].mxu0
        %4391 = vmatprep.mubr.bf16.mxu0 0
        %4392 = vmatmul.mubr.bf16.gmra.mrb[0].mxu0 %v4218
        %v4393 = vpop.f32.mrb[0].mxu0
        %v4394 = vadd.f32 0.0, %v4393
        %v4395 = vpop.f32.mrb[0].mxu0
        %v4396 = vpop.f32.mrb[0].mxu0
        %v4397 = vadd.f32 0.0, %v4396
        %v4398 = vpop.f32.mrb[0].mxu0
        %4399 = vmatprep.mubr.bf16.mxu0 0
        %4400 = vmatmul.mubr.bf16.gmra.mrb[0].mxu0 %v4221
        %v4401 = vpop.f32.mrb[0].mxu0
        %v4402 = vadd.f32 0.0, %v4401
        %v4403 = vpop.f32.mrb[0].mxu0
        %v4404 = vpop.f32.mrb[0].mxu0
        %v4405 = vadd.f32 0.0, %v4404
        %v4406 = vpop.f32.mrb[0].mxu0
        %4407 = vmatprep.mubr.bf16.mxu0 0
        %4408 = vmatmul.mubr.bf16.gmra.mrb[0].mxu0 %v4224
        %v4409 = vpop.f32.mrb[0].mxu0
        %v4410 = vadd.f32 0.0, %v4409
        %v4411 = vpop.f32.mrb[0].mxu0
        %v4412 = vpop.f32.mrb[0].mxu0
        %v4413 = vadd.f32 0.0, %v4412
        %v4414 = vpop.f32.mrb[0].mxu0
        %4415 = vmatprep.mubr.bf16.mxu0 0
        %4416 = vmatmul.mubr.bf16.gmra.mrb[0].mxu0 %v4227
        %v4417 = vpop.f32.mrb[0].mxu0
        %v4418 = vadd.f32 0.0, %v4417
        %v4419 = vpop.f32.mrb[0].mxu0
        %v4420 = vpop.f32.mrb[0].mxu0
        %v4421 = vadd.f32 0.0, %v4420
        %v4422 = vpop.f32.mrb[0].mxu0
        %4423 = vmatprep.mubr.bf16.mxu0 0
        %4424 = vmatmul.mubr.bf16.gmra.mrb[0].mxu0 %v4230
        %v4425 = vpop.f32.mrb[0].mxu0
        %v4426 = vadd.f32 0.0, %v4425
        %v4427 = vpop.f32.mrb[0].mxu0
        %v4428 = vpop.f32.mrb[0].mxu0
        %v4429 = vadd.f32 0.0, %v4428
        %v4430 = vpop.f32.mrb[0].mxu0
        %4431 = vmatprep.mubr.bf16.mxu0 0
        %4432 = vmatmul.mubr.bf16.gmra.mrb[0].mxu0 %v4233
        %v4433 = vpop.f32.mrb[0].mxu0
        %v4434 = vadd.f32 0.0, %v4433
        %v4435 = vpop.f32.mrb[0].mxu0
        %v4436 = vpop.f32.mrb[0].mxu0
        %v4437 = vadd.f32 0.0, %v4436
        %v4438 = vpop.f32.mrb[0].mxu0
        %4439 = vmatprep.mubr.bf16.mxu0 0
        %4440 = vmatmul.mubr.bf16.gmra.mrb[0].mxu0 %v4236
        %v4441 = vpop.f32.mrb[0].mxu0
        %v4442 = vadd.f32 0.0, %v4441
        %v4443 = vpop.f32.mrb[0].mxu0
        %v4444 = vpop.f32.mrb[0].mxu0
        %v4445 = vadd.f32 0.0, %v4444
        %v4446 = vpop.f32.mrb[0].mxu0
        %4447 = vmatprep.mubr.bf16.mxu0 0
        %4448 = vmatmul.mubr.bf16.gmra.mrb[0].mxu0 %v4239
        %v4449 = vpop.f32.mrb[0].mxu0
        %v4450 = vadd.f32 0.0, %v4449
        %v4451 = vpop.f32.mrb[0].mxu0
        %v4452 = vpop.f32.mrb[0].mxu0
        %v4453 = vadd.f32 0.0, %v4452
        %v4454 = vpop.f32.mrb[0].mxu0
        %4455 = vmatprep.mubr.bf16.mxu0 0
        %4456 = vmatmul.mubr.bf16.gmra.mrb[0].mxu0 %v4242
        %v4457 = vpop.f32.mrb[0].mxu0
        %v4458 = vadd.f32 0.0, %v4457
        %v4459 = vpop.f32.mrb[0].mxu0
        %v4460 = vpop.f32.mrb[0].mxu0
        %v4461 = vadd.f32 0.0, %v4460
        %v4462 = vpop.f32.mrb[0].mxu0
        %4463 = vmatprep.mubr.bf16.mxu0 0
        %4464 = vmatmul.mubr.bf16.gmra.mrb[0].mxu0 %v4245
        %v4465 = vpop.f32.mrb[0].mxu0
        %v4466 = vadd.f32 0.0, %v4465
        %v4467 = vpop.f32.mrb[0].mxu0
        %v4468 = vpop.f32.mrb[0].mxu0
        %v4469 = vadd.f32 0.0, %v4468
        %v4470 = vpop.f32.mrb[0].mxu0
        %4471 = vdwg.mxu0
        %v4472 = vadd.f32 %v4038, %v4282
        %v4473 = vadd.f32 %v4039, %v4285
        %v4474 = vadd.f32 %v4040, %v4290
        %v4475 = vadd.f32 %v4041, %v4293
        %v4476 = vadd.f32 %v4042, %v4298
        %v4477 = vadd.f32 %v4043, %v4301
        %v4478 = vadd.f32 %v4044, %v4306
        %v4479 = vadd.f32 %v4045, %v4309
        %v4480 = vadd.f32 %v4046, %v4314
        %v4481 = vadd.f32 %v4047, %v4317
        %v4482 = vadd.f32 %v4048, %v4322
        %v4483 = vadd.f32 %v4049, %v4325
        %v4484 = vadd.f32 %v4050, %v4330
        %v4485 = vadd.f32 %v4051, %v4333
        %v4486 = vadd.f32 %v4052, %v4338
        %v4487 = vadd.f32 %v4053, %v4341
        %v4488 = vadd.f32 %v4054, %v4346
        %v4489 = vadd.f32 %v4055, %v4349
        %v4490 = vadd.f32 %v4056, %v4354
        %v4491 = vadd.f32 %v4057, %v4357
        %v4492 = vadd.f32 %v4058, %v4362
        %v4493 = vadd.f32 %v4059, %v4365
        %v4494 = vadd.f32 %v4060, %v4370
        %v4495 = vadd.f32 %v4061, %v4373
        %v4496 = vadd.f32 %v4062, %v4378
        %v4497 = vadd.f32 %v4063, %v4381
        %v4498 = vadd.f32 %v4064, %v4386
        %v4499 = vadd.f32 %v4065, %v4389
        %v4500 = vadd.f32 %v4066, %v4394
        %v4501 = vadd.f32 %v4067, %v4397
        %v4502 = vadd.f32 %v4068, %v4402
        %v4503 = vadd.f32 %v4069, %v4405
        %v4504 = vadd.f32 %v4070, %v4410
        %v4505 = vadd.f32 %v4071, %v4413
        %v4506 = vadd.f32 %v4072, %v4418
        %v4507 = vadd.f32 %v4073, %v4421
        %v4508 = vadd.f32 %v4074, %v4426
        %v4509 = vadd.f32 %v4075, %v4429
        %v4510 = vadd.f32 %v4076, %v4434
        %v4511 = vadd.f32 %v4077, %v4437
        %v4512 = vadd.f32 %v4078, %v4442
        %v4513 = vadd.f32 %v4079, %v4445
        %v4514 = vadd.f32 %v4080, %v4450
        %v4515 = vadd.f32 %v4081, %v4453
        %v4516 = vadd.f32 %v4082, %v4458
        %v4517 = vadd.f32 %v4083, %v4461
        %v4518 = vadd.f32 %v4084, %v4466
        %v4519 = vadd.f32 %v4085, %v4469
        %v4520 = vld [vmem:[#allocation2 + $0x28] sm:$0xff]
        %v4521 = vld [vmem:[#allocation2 + $0x30] sm:$0xff]
        %v4522 = vld [vmem:[#allocation2 + $0x38] sm:$0xff]
        %v4523 = vld [vmem:[#allocation2 + $0x40] sm:$0xff]
        %v4524 = vld [vmem:[#allocation2 + $0x48] sm:$0xff]
        %v4525 = vld [vmem:[#allocation2 + $0x50] sm:$0xff]
        %v4526 = vld [vmem:[#allocation2 + $0x58] sm:$0xff]
        %v4527 = vld [vmem:[#allocation2 + $0x60] sm:$0xff]
        %v4528 = vld [vmem:[#allocation2 + $0x68] sm:$0xff]
        %v4529 = vld [vmem:[#allocation2 + $0x70] sm:$0xff]
        %v4530 = vld [vmem:[#allocation2 + $0x78] sm:$0xff]
        %v4531 = vld [vmem:[#allocation2 + $0x80] sm:$0xff]
        %v4532 = vld [vmem:[#allocation2 + $0x88] sm:$0xff]
        %v4533 = vld [vmem:[#allocation2 + $0x90] sm:$0xff]
        %v4534 = vld [vmem:[#allocation2 + $0x98] sm:$0xff]
        %v4535 = vld [vmem:[#allocation2 + $0xa0] sm:$0xff]
        %v4536 = vld [vmem:[#allocation2 + $0xa8] sm:$0xff]
        %v4537 = vld [vmem:[#allocation2 + $0xb0] sm:$0xff]
        %v4538 = vld [vmem:[#allocation2 + $0xb8] sm:$0xff]
        %v4539 = vld [vmem:[#allocation2 + $0xc0] sm:$0xff]
        %v4540 = vld [vmem:[#allocation2 + $0xc8] sm:$0xff]
        %v4541 = vld [vmem:[#allocation2 + $0xd0] sm:$0xff]
        %v4542 = vld [vmem:[#allocation2 + $0xd8] sm:$0xff]
        %v4543 = vld [vmem:[#allocation2 + $0xe0] sm:$0xff]
        %v4544 = vld [vmem:[#allocation2 + $0xe8] sm:$0xff]
        %v4545 = vld [vmem:[#allocation2 + $0xf0] sm:$0xff]
        %v4546 = vld [vmem:[#allocation2 + $0xf8] sm:$0xff]
        %v4547 = vld [vmem:[#allocation2 + $0x100] sm:$0xff]
        %v4548 = vld [vmem:[#allocation2 + $0x108] sm:$0xff]
        %v4549 = vld [vmem:[#allocation2 + $0x110] sm:$0xff]
        %v4550 = vld [vmem:[#allocation2 + $0x118] sm:$0xff]
        %v4551 = vld [vmem:[#allocation2 + $0x120] sm:$0xff]
        %v4552 = vld [vmem:[#allocation2 + $0x128] sm:$0xff]
        %v4553 = vld [vmem:[#allocation2 + $0x130] sm:$0xff]
        %v4554 = vld [vmem:[#allocation2 + $0x138] sm:$0xff]
        %v4555 = vld [vmem:[#allocation2 + $0x140] sm:$0xff]
        %v4556 = vld [vmem:[#allocation2 + $0x148] sm:$0xff]
        %v4557 = vld [vmem:[#allocation2 + $0x150] sm:$0xff]
        %v4558 = vld [vmem:[#allocation2 + $0x158] sm:$0xff]
        %v4559 = vld [vmem:[#allocation2 + $0x160] sm:$0xff]
        %v4560 = vld [vmem:[#allocation2 + $0x168] sm:$0xff]
        %v4561 = vld [vmem:[#allocation2 + $0x170] sm:$0xff]
        %v4562 = vld [vmem:[#allocation2 + $0x178] sm:$0xff]
        %v4563 = vld [vmem:[#allocation2 + $0x180] sm:$0xff]
        %v4564 = vld [vmem:[#allocation2 + $0x188] sm:$0xff]
        %v4565 = vld [vmem:[#allocation2 + $0x190] sm:$0xff]
        %v4566 = vld [vmem:[#allocation2 + $0x198] sm:$0xff]
        %v4567 = vld [vmem:[#allocation2 + $0x1a0] sm:$0xf]
        %v4568 = vpack.c.bf16 %v4521, %v4520
        %v4569 = vpack.c.bf16 %v4523, %v4522
        %v4570 = vpack.c.bf16 %v4525, %v4524
        %v4571 = vpack.c.bf16 %v4527, %v4526
        %v4572 = vpack.c.bf16 %v4529, %v4528
        %v4573 = vpack.c.bf16 %v4531, %v4530
        %v4574 = vpack.c.bf16 %v4533, %v4532
        %v4575 = vpack.c.bf16 %v4535, %v4534
        %v4576 = vpack.c.bf16 %v4537, %v4536
        %v4577 = vpack.c.bf16 %v4539, %v4538
        %v4578 = vpack.c.bf16 %v4541, %v4540
        %v4579 = vpack.c.bf16 %v4543, %v4542
        %v4580 = vpack.c.bf16 %v4545, %v4544
        %v4581 = vpack.c.bf16 %v4547, %v4546
        %v4582 = vpack.c.bf16 %v4549, %v4548
        %v4583 = vpack.c.bf16 %v4551, %v4550
        %v4584 = vpack.c.bf16 %v4553, %v4552
        %v4585 = vpack.c.bf16 %v4555, %v4554
        %v4586 = vpack.c.bf16 %v4557, %v4556
        %v4587 = vpack.c.bf16 %v4559, %v4558
        %v4588 = vpack.c.bf16 %v4561, %v4560
        %v4589 = vpack.c.bf16 %v4563, %v4562
        %v4590 = vpack.c.bf16 %v4565, %v4564
        %v4591 = vpack.c.bf16 %v4567, %v4566
        %s4592 = scalar_lea.vmem [#allocation13], 96
        %v4593 = vld [vmem:[%s4592] sm:$0xf]
        %v4594 = vld [vmem:[%s4592 + $0x4] sm:$0xf]
        %v4595 = vld [vmem:[%s4592 + $0x8] sm:$0xf]
        %v4596 = vld [vmem:[%s4592 + $0xc] sm:$0xf]
        %v4601 = vunpack.c.l.b16 %v4593
        %v4602 = vunpack.c.l.b16 %v4594
        %v4603 = vunpack.c.l.b16 %v4595
        %v4604 = vunpack.c.l.b16 %v4596
        %v4605 = vpack.c.b16 %v4602, %v4601
        %v4606 = vpack.c.b16 %v4604, %v4603
        %v4610 = vsel %vm717, %v4568, 0
        %v4613 = vsel %vm717, %v4569, 0
        %v4616 = vsel %vm717, %v4570, 0
        %v4619 = vsel %vm717, %v4571, 0
        %v4622 = vsel %vm717, %v4572, 0
        %v4625 = vsel %vm717, %v4573, 0
        %v4628 = vsel %vm717, %v4574, 0
        %v4631 = vsel %vm717, %v4575, 0
        %v4634 = vsel %vm717, %v4576, 0
        %v4637 = vsel %vm717, %v4577, 0
        %v4640 = vsel %vm717, %v4578, 0
        %v4643 = vsel %vm717, %v4579, 0
        %v4646 = vsel %vm717, %v4580, 0
        %v4649 = vsel %vm717, %v4581, 0
        %v4652 = vsel %vm717, %v4582, 0
        %v4655 = vsel %vm717, %v4583, 0
        %v4658 = vsel %vm717, %v4584, 0
        %v4661 = vsel %vm717, %v4585, 0
        %v4664 = vsel %vm717, %v4586, 0
        %v4667 = vsel %vm717, %v4587, 0
        %v4670 = vsel %vm717, %v4588, 0
        %v4673 = vsel %vm717, %v4589, 0
        %v4676 = vsel %vm717, %v4590, 0
        %v4679 = vsel %vm717, %v4591, 0
        %4681 = vmatprep.subr.bf16.mxu0 0
        %4682 = vmatpush1.bf16.msra.mxu0 %v4605
        %4683 = vmatprep.subr.bf16.mxu0 0
        %4684 = vmatpush1.bf16.msra.mxu0 %v4606
        %4685 = vmatprep.subr.bf16.mxu0 0
        %4686 = vmatpush1.bf16.msra.mxu0 0
        %4687 = vmatprep.subr.bf16.mxu0 0
        %4688 = vmatpush1.bf16.msra.mxu0 0
        %4689 = vmatprep.subr.bf16.mxu0 0
        %4690 = vmatpush1.bf16.msra.mxu0 0
        %4691 = vmatprep.subr.bf16.mxu0 0
        %4692 = vmatpush1.bf16.msra.mxu0 0
        %4693 = vmatprep.subr.bf16.mxu0 0
        %4694 = vmatpush1.bf16.msra.mxu0 0
        %4695 = vmatprep.subr.bf16.mxu0 0
        %4696 = vmatpush1.bf16.msra.mxu0 0
        %4697 = vmatprep.subr.bf16.mxu0 0
        %4698 = vmatpush1.bf16.msra.mxu0 0
        %4699 = vmatprep.subr.bf16.mxu0 0
        %4700 = vmatpush1.bf16.msra.mxu0 0
        %4701 = vmatprep.subr.bf16.mxu0 0
        %4702 = vmatpush1.bf16.msra.mxu0 0
        %4703 = vmatprep.subr.bf16.mxu0 0
        %4704 = vmatpush1.bf16.msra.mxu0 0
        %4705 = vmatprep.subr.bf16.mxu0 0
        %4706 = vmatpush1.bf16.msra.mxu0 0
        %4707 = vmatprep.subr.bf16.mxu0 0
        %4708 = vmatpush1.bf16.msra.mxu0 0
        %4709 = vmatprep.subr.bf16.mxu0 0
        %4710 = vmatpush1.bf16.msra.mxu0 0
        %4711 = vmatprep.subr.bf16.mxu0 0
        %4712 = vmatpush1.bf16.msra.mxu0 0
        %4713 = vmatprep.mubr.bf16.mxu0 0
        %4714 = vmatmul.mubr.bf16.gmra.mrb[0].mxu0 %v4610
        %v4715 = vpop.f32.mrb[0].mxu0
        %v4716 = vadd.f32 0.0, %v4715
        %v4717 = vpop.f32.mrb[0].mxu0
        %v4718 = vpop.f32.mrb[0].mxu0
        %v4719 = vadd.f32 0.0, %v4718
        %v4720 = vpop.f32.mrb[0].mxu0
        %4721 = vmatprep.mubr.bf16.mxu0 0
        %4722 = vmatmul.mubr.bf16.gmra.mrb[0].mxu0 %v4613
        %v4723 = vpop.f32.mrb[0].mxu0
        %v4724 = vadd.f32 0.0, %v4723
        %v4725 = vpop.f32.mrb[0].mxu0
        %v4726 = vpop.f32.mrb[0].mxu0
        %v4727 = vadd.f32 0.0, %v4726
        %v4728 = vpop.f32.mrb[0].mxu0
        %4729 = vmatprep.mubr.bf16.mxu0 0
        %4730 = vmatmul.mubr.bf16.gmra.mrb[0].mxu0 %v4616
        %v4731 = vpop.f32.mrb[0].mxu0
        %v4732 = vadd.f32 0.0, %v4731
        %v4733 = vpop.f32.mrb[0].mxu0
        %v4734 = vpop.f32.mrb[0].mxu0
        %v4735 = vadd.f32 0.0, %v4734
        %v4736 = vpop.f32.mrb[0].mxu0
        %4737 = vmatprep.mubr.bf16.mxu0 0
        %4738 = vmatmul.mubr.bf16.gmra.mrb[0].mxu0 %v4619
        %v4739 = vpop.f32.mrb[0].mxu0
        %v4740 = vadd.f32 0.0, %v4739
        %v4741 = vpop.f32.mrb[0].mxu0
        %v4742 = vpop.f32.mrb[0].mxu0
        %v4743 = vadd.f32 0.0, %v4742
        %v4744 = vpop.f32.mrb[0].mxu0
        %4745 = vmatprep.mubr.bf16.mxu0 0
        %4746 = vmatmul.mubr.bf16.gmra.mrb[0].mxu0 %v4622
        %v4747 = vpop.f32.mrb[0].mxu0
        %v4748 = vadd.f32 0.0, %v4747
        %v4749 = vpop.f32.mrb[0].mxu0
        %v4750 = vpop.f32.mrb[0].mxu0
        %v4751 = vadd.f32 0.0, %v4750
        %v4752 = vpop.f32.mrb[0].mxu0
        %4753 = vmatprep.mubr.bf16.mxu0 0
        %4754 = vmatmul.mubr.bf16.gmra.mrb[0].mxu0 %v4625
        %v4755 = vpop.f32.mrb[0].mxu0
        %v4756 = vadd.f32 0.0, %v4755
        %v4757 = vpop.f32.mrb[0].mxu0
        %v4758 = vpop.f32.mrb[0].mxu0
        %v4759 = vadd.f32 0.0, %v4758
        %v4760 = vpop.f32.mrb[0].mxu0
        %4761 = vmatprep.mubr.bf16.mxu0 0
        %4762 = vmatmul.mubr.bf16.gmra.mrb[0].mxu0 %v4628
        %v4763 = vpop.f32.mrb[0].mxu0
        %v4764 = vadd.f32 0.0, %v4763
        %v4765 = vpop.f32.mrb[0].mxu0
        %v4766 = vpop.f32.mrb[0].mxu0
        %v4767 = vadd.f32 0.0, %v4766
        %v4768 = vpop.f32.mrb[0].mxu0
        %4769 = vmatprep.mubr.bf16.mxu0 0
        %4770 = vmatmul.mubr.bf16.gmra.mrb[0].mxu0 %v4631
        %v4771 = vpop.f32.mrb[0].mxu0
        %v4772 = vadd.f32 0.0, %v4771
        %v4773 = vpop.f32.mrb[0].mxu0
        %v4774 = vpop.f32.mrb[0].mxu0
        %v4775 = vadd.f32 0.0, %v4774
        %v4776 = vpop.f32.mrb[0].mxu0
        %4777 = vmatprep.mubr.bf16.mxu0 0
        %4778 = vmatmul.mubr.bf16.gmra.mrb[0].mxu0 %v4634
        %v4779 = vpop.f32.mrb[0].mxu0
        %v4780 = vadd.f32 0.0, %v4779
        %v4781 = vpop.f32.mrb[0].mxu0
        %v4782 = vpop.f32.mrb[0].mxu0
        %v4783 = vadd.f32 0.0, %v4782
        %v4784 = vpop.f32.mrb[0].mxu0
        %4785 = vmatprep.mubr.bf16.mxu0 0
        %4786 = vmatmul.mubr.bf16.gmra.mrb[0].mxu0 %v4637
        %v4787 = vpop.f32.mrb[0].mxu0
        %v4788 = vadd.f32 0.0, %v4787
        %v4789 = vpop.f32.mrb[0].mxu0
        %v4790 = vpop.f32.mrb[0].mxu0
        %v4791 = vadd.f32 0.0, %v4790
        %v4792 = vpop.f32.mrb[0].mxu0
        %4793 = vmatprep.mubr.bf16.mxu0 0
        %4794 = vmatmul.mubr.bf16.gmra.mrb[0].mxu0 %v4640
        %v4795 = vpop.f32.mrb[0].mxu0
        %v4796 = vadd.f32 0.0, %v4795
        %v4797 = vpop.f32.mrb[0].mxu0
        %v4798 = vpop.f32.mrb[0].mxu0
        %v4799 = vadd.f32 0.0, %v4798
        %v4800 = vpop.f32.mrb[0].mxu0
        %4801 = vmatprep.mubr.bf16.mxu0 0
        %4802 = vmatmul.mubr.bf16.gmra.mrb[0].mxu0 %v4643
        %v4803 = vpop.f32.mrb[0].mxu0
        %v4804 = vadd.f32 0.0, %v4803
        %v4805 = vpop.f32.mrb[0].mxu0
        %v4806 = vpop.f32.mrb[0].mxu0
        %v4807 = vadd.f32 0.0, %v4806
        %v4808 = vpop.f32.mrb[0].mxu0
        %4809 = vmatprep.mubr.bf16.mxu0 0
        %4810 = vmatmul.mubr.bf16.gmra.mrb[0].mxu0 %v4646
        %v4811 = vpop.f32.mrb[0].mxu0
        %v4812 = vadd.f32 0.0, %v4811
        %v4813 = vpop.f32.mrb[0].mxu0
        %v4814 = vpop.f32.mrb[0].mxu0
        %v4815 = vadd.f32 0.0, %v4814
        %v4816 = vpop.f32.mrb[0].mxu0
        %4817 = vmatprep.mubr.bf16.mxu0 0
        %4818 = vmatmul.mubr.bf16.gmra.mrb[0].mxu0 %v4649
        %v4819 = vpop.f32.mrb[0].mxu0
        %v4820 = vadd.f32 0.0, %v4819
        %v4821 = vpop.f32.mrb[0].mxu0
        %v4822 = vpop.f32.mrb[0].mxu0
        %v4823 = vadd.f32 0.0, %v4822
        %v4824 = vpop.f32.mrb[0].mxu0
        %4825 = vmatprep.mubr.bf16.mxu0 0
        %4826 = vmatmul.mubr.bf16.gmra.mrb[0].mxu0 %v4652
        %v4827 = vpop.f32.mrb[0].mxu0
        %v4828 = vadd.f32 0.0, %v4827
        %v4829 = vpop.f32.mrb[0].mxu0
        %v4830 = vpop.f32.mrb[0].mxu0
        %v4831 = vadd.f32 0.0, %v4830
        %v4832 = vpop.f32.mrb[0].mxu0
        %4833 = vmatprep.mubr.bf16.mxu0 0
        %4834 = vmatmul.mubr.bf16.gmra.mrb[0].mxu0 %v4655
        %v4835 = vpop.f32.mrb[0].mxu0
        %v4836 = vadd.f32 0.0, %v4835
        %v4837 = vpop.f32.mrb[0].mxu0
        %v4838 = vpop.f32.mrb[0].mxu0
        %v4839 = vadd.f32 0.0, %v4838
        %v4840 = vpop.f32.mrb[0].mxu0
        %4841 = vmatprep.mubr.bf16.mxu0 0
        %4842 = vmatmul.mubr.bf16.gmra.mrb[0].mxu0 %v4658
        %v4843 = vpop.f32.mrb[0].mxu0
        %v4844 = vadd.f32 0.0, %v4843
        %v4845 = vpop.f32.mrb[0].mxu0
        %v4846 = vpop.f32.mrb[0].mxu0
        %v4847 = vadd.f32 0.0, %v4846
        %v4848 = vpop.f32.mrb[0].mxu0
        %4849 = vmatprep.mubr.bf16.mxu0 0
        %4850 = vmatmul.mubr.bf16.gmra.mrb[0].mxu0 %v4661
        %v4851 = vpop.f32.mrb[0].mxu0
        %v4852 = vadd.f32 0.0, %v4851
        %v4853 = vpop.f32.mrb[0].mxu0
        %v4854 = vpop.f32.mrb[0].mxu0
        %v4855 = vadd.f32 0.0, %v4854
        %v4856 = vpop.f32.mrb[0].mxu0
        %4857 = vmatprep.mubr.bf16.mxu0 0
        %4858 = vmatmul.mubr.bf16.gmra.mrb[0].mxu0 %v4664
        %v4859 = vpop.f32.mrb[0].mxu0
        %v4860 = vadd.f32 0.0, %v4859
        %v4861 = vpop.f32.mrb[0].mxu0
        %v4862 = vpop.f32.mrb[0].mxu0
        %v4863 = vadd.f32 0.0, %v4862
        %v4864 = vpop.f32.mrb[0].mxu0
        %4865 = vmatprep.mubr.bf16.mxu0 0
        %4866 = vmatmul.mubr.bf16.gmra.mrb[0].mxu0 %v4667
        %v4867 = vpop.f32.mrb[0].mxu0
        %v4868 = vadd.f32 0.0, %v4867
        %v4869 = vpop.f32.mrb[0].mxu0
        %v4870 = vpop.f32.mrb[0].mxu0
        %v4871 = vadd.f32 0.0, %v4870
        %v4872 = vpop.f32.mrb[0].mxu0
        %4873 = vmatprep.mubr.bf16.mxu0 0
        %4874 = vmatmul.mubr.bf16.gmra.mrb[0].mxu0 %v4670
        %v4875 = vpop.f32.mrb[0].mxu0
        %v4876 = vadd.f32 0.0, %v4875
        %v4877 = vpop.f32.mrb[0].mxu0
        %v4878 = vpop.f32.mrb[0].mxu0
        %v4879 = vadd.f32 0.0, %v4878
        %v4880 = vpop.f32.mrb[0].mxu0
        %4881 = vmatprep.mubr.bf16.mxu0 0
        %4882 = vmatmul.mubr.bf16.gmra.mrb[0].mxu0 %v4673
        %v4883 = vpop.f32.mrb[0].mxu0
        %v4884 = vadd.f32 0.0, %v4883
        %v4885 = vpop.f32.mrb[0].mxu0
        %v4886 = vpop.f32.mrb[0].mxu0
        %v4887 = vadd.f32 0.0, %v4886
        %v4888 = vpop.f32.mrb[0].mxu0
        %4889 = vmatprep.mubr.bf16.mxu0 0
        %4890 = vmatmul.mubr.bf16.gmra.mrb[0].mxu0 %v4676
        %v4891 = vpop.f32.mrb[0].mxu0
        %v4892 = vadd.f32 0.0, %v4891
        %v4893 = vpop.f32.mrb[0].mxu0
        %v4894 = vpop.f32.mrb[0].mxu0
        %v4895 = vadd.f32 0.0, %v4894
        %v4896 = vpop.f32.mrb[0].mxu0
        %4897 = vmatprep.mubr.bf16.mxu0 0
        %4898 = vmatmul.mubr.bf16.gmra.mrb[0].mxu0 %v4679
        %v4899 = vpop.f32.mrb[0].mxu0
        %v4900 = vadd.f32 0.0, %v4899
        %v4901 = vpop.f32.mrb[0].mxu0
        %v4902 = vpop.f32.mrb[0].mxu0
        %v4903 = vadd.f32 0.0, %v4902
        %v4904 = vpop.f32.mrb[0].mxu0
        %4905 = vdwg.mxu0
        %v4906 = vadd.f32 %v4472, %v4716
        %v4907 = vadd.f32 %v4473, %v4719
        %v4908 = vadd.f32 %v4474, %v4724
        %v4909 = vadd.f32 %v4475, %v4727
        %v4910 = vadd.f32 %v4476, %v4732
        %v4911 = vadd.f32 %v4477, %v4735
        %v4912 = vadd.f32 %v4478, %v4740
        %v4913 = vadd.f32 %v4479, %v4743
        %v4914 = vadd.f32 %v4480, %v4748
        %v4915 = vadd.f32 %v4481, %v4751
        %v4916 = vadd.f32 %v4482, %v4756
        %v4917 = vadd.f32 %v4483, %v4759
        %v4918 = vadd.f32 %v4484, %v4764
        %v4919 = vadd.f32 %v4485, %v4767
        %v4920 = vadd.f32 %v4486, %v4772
        %v4921 = vadd.f32 %v4487, %v4775
        %v4922 = vadd.f32 %v4488, %v4780
        %v4923 = vadd.f32 %v4489, %v4783
        %v4924 = vadd.f32 %v4490, %v4788
        %v4925 = vadd.f32 %v4491, %v4791
        %v4926 = vadd.f32 %v4492, %v4796
        %v4927 = vadd.f32 %v4493, %v4799
        %v4928 = vadd.f32 %v4494, %v4804
        %v4929 = vadd.f32 %v4495, %v4807
        %v4930 = vadd.f32 %v4496, %v4812
        %v4931 = vadd.f32 %v4497, %v4815
        %v4932 = vadd.f32 %v4498, %v4820
        %v4933 = vadd.f32 %v4499, %v4823
        %v4934 = vadd.f32 %v4500, %v4828
        %v4935 = vadd.f32 %v4501, %v4831
        %v4936 = vadd.f32 %v4502, %v4836
        %v4937 = vadd.f32 %v4503, %v4839
        %v4938 = vadd.f32 %v4504, %v4844
        %v4939 = vadd.f32 %v4505, %v4847
        %v4940 = vadd.f32 %v4506, %v4852
        %v4941 = vadd.f32 %v4507, %v4855
        %v4942 = vadd.f32 %v4508, %v4860
        %v4943 = vadd.f32 %v4509, %v4863
        %v4944 = vadd.f32 %v4510, %v4868
        %v4945 = vadd.f32 %v4511, %v4871
        %v4946 = vadd.f32 %v4512, %v4876
        %v4947 = vadd.f32 %v4513, %v4879
        %v4948 = vadd.f32 %v4514, %v4884
        %v4949 = vadd.f32 %v4515, %v4887
        %v4950 = vadd.f32 %v4516, %v4892
        %v4951 = vadd.f32 %v4517, %v4895
        %v4952 = vadd.f32 %v4518, %v4900
        %v4953 = vadd.f32 %v4519, %v4903
        %v4954 = vld [vmem:[#allocation2 + $0x29] sm:$0xff]
        %v4955 = vld [vmem:[#allocation2 + $0x31] sm:$0xff]
        %v4956 = vld [vmem:[#allocation2 + $0x39] sm:$0xff]
        %v4957 = vld [vmem:[#allocation2 + $0x41] sm:$0xff]
        %v4958 = vld [vmem:[#allocation2 + $0x49] sm:$0xff]
        %v4959 = vld [vmem:[#allocation2 + $0x51] sm:$0xff]
        %v4960 = vld [vmem:[#allocation2 + $0x59] sm:$0xff]
        %v4961 = vld [vmem:[#allocation2 + $0x61] sm:$0xff]
        %v4962 = vld [vmem:[#allocation2 + $0x69] sm:$0xff]
        %v4963 = vld [vmem:[#allocation2 + $0x71] sm:$0xff]
        %v4964 = vld [vmem:[#allocation2 + $0x79] sm:$0xff]
        %v4965 = vld [vmem:[#allocation2 + $0x81] sm:$0xff]
        %v4966 = vld [vmem:[#allocation2 + $0x89] sm:$0xff]
        %v4967 = vld [vmem:[#allocation2 + $0x91] sm:$0xff]
        %v4968 = vld [vmem:[#allocation2 + $0x99] sm:$0xff]
        %v4969 = vld [vmem:[#allocation2 + $0xa1] sm:$0xff]
        %v4970 = vld [vmem:[#allocation2 + $0xa9] sm:$0xff]
        %v4971 = vld [vmem:[#allocation2 + $0xb1] sm:$0xff]
        %v4972 = vld [vmem:[#allocation2 + $0xb9] sm:$0xff]
        %v4973 = vld [vmem:[#allocation2 + $0xc1] sm:$0xff]
        %v4974 = vld [vmem:[#allocation2 + $0xc9] sm:$0xff]
        %v4975 = vld [vmem:[#allocation2 + $0xd1] sm:$0xff]
        %v4976 = vld [vmem:[#allocation2 + $0xd9] sm:$0xff]
        %v4977 = vld [vmem:[#allocation2 + $0xe1] sm:$0xff]
        %v4978 = vld [vmem:[#allocation2 + $0xe9] sm:$0xff]
        %v4979 = vld [vmem:[#allocation2 + $0xf1] sm:$0xff]
        %v4980 = vld [vmem:[#allocation2 + $0xf9] sm:$0xff]
        %v4981 = vld [vmem:[#allocation2 + $0x101] sm:$0xff]
        %v4982 = vld [vmem:[#allocation2 + $0x109] sm:$0xff]
        %v4983 = vld [vmem:[#allocation2 + $0x111] sm:$0xff]
        %v4984 = vld [vmem:[#allocation2 + $0x119] sm:$0xff]
        %v4985 = vld [vmem:[#allocation2 + $0x121] sm:$0xff]
        %v4986 = vld [vmem:[#allocation2 + $0x129] sm:$0xff]
        %v4987 = vld [vmem:[#allocation2 + $0x131] sm:$0xff]
        %v4988 = vld [vmem:[#allocation2 + $0x139] sm:$0xff]
        %v4989 = vld [vmem:[#allocation2 + $0x141] sm:$0xff]
        %v4990 = vld [vmem:[#allocation2 + $0x149] sm:$0xff]
        %v4991 = vld [vmem:[#allocation2 + $0x151] sm:$0xff]
        %v4992 = vld [vmem:[#allocation2 + $0x159] sm:$0xff]
        %v4993 = vld [vmem:[#allocation2 + $0x161] sm:$0xff]
        %v4994 = vld [vmem:[#allocation2 + $0x169] sm:$0xff]
        %v4995 = vld [vmem:[#allocation2 + $0x171] sm:$0xff]
        %v4996 = vld [vmem:[#allocation2 + $0x179] sm:$0xff]
        %v4997 = vld [vmem:[#allocation2 + $0x181] sm:$0xff]
        %v4998 = vld [vmem:[#allocation2 + $0x189] sm:$0xff]
        %v4999 = vld [vmem:[#allocation2 + $0x191] sm:$0xff]
        %v5000 = vld [vmem:[#allocation2 + $0x199] sm:$0xff]
        %v5001 = vld [vmem:[#allocation2 + $0x1a1] sm:$0xf]
        %v5002 = vpack.c.bf16 %v4955, %v4954
        %v5003 = vpack.c.bf16 %v4957, %v4956
        %v5004 = vpack.c.bf16 %v4959, %v4958
        %v5005 = vpack.c.bf16 %v4961, %v4960
        %v5006 = vpack.c.bf16 %v4963, %v4962
        %v5007 = vpack.c.bf16 %v4965, %v4964
        %v5008 = vpack.c.bf16 %v4967, %v4966
        %v5009 = vpack.c.bf16 %v4969, %v4968
        %v5010 = vpack.c.bf16 %v4971, %v4970
        %v5011 = vpack.c.bf16 %v4973, %v4972
        %v5012 = vpack.c.bf16 %v4975, %v4974
        %v5013 = vpack.c.bf16 %v4977, %v4976
        %v5014 = vpack.c.bf16 %v4979, %v4978
        %v5015 = vpack.c.bf16 %v4981, %v4980
        %v5016 = vpack.c.bf16 %v4983, %v4982
        %v5017 = vpack.c.bf16 %v4985, %v4984
        %v5018 = vpack.c.bf16 %v4987, %v4986
        %v5019 = vpack.c.bf16 %v4989, %v4988
        %v5020 = vpack.c.bf16 %v4991, %v4990
        %v5021 = vpack.c.bf16 %v4993, %v4992
        %v5022 = vpack.c.bf16 %v4995, %v4994
        %v5023 = vpack.c.bf16 %v4997, %v4996
        %v5024 = vpack.c.bf16 %v4999, %v4998
        %v5025 = vpack.c.bf16 %v5001, %v5000
        %s5026 = scalar_lea.vmem [#allocation13], 112
        %v5027 = vld [vmem:[%s5026] sm:$0xf]
        %v5028 = vld [vmem:[%s5026 + $0x4] sm:$0xf]
        %v5029 = vld [vmem:[%s5026 + $0x8] sm:$0xf]
        %v5030 = vld [vmem:[%s5026 + $0xc] sm:$0xf]
        %v5035 = vunpack.c.l.b16 %v5027
        %v5036 = vunpack.c.l.b16 %v5028
        %v5037 = vunpack.c.l.b16 %v5029
        %v5038 = vunpack.c.l.b16 %v5030
        %v5039 = vpack.c.b16 %v5036, %v5035
        %v5040 = vpack.c.b16 %v5038, %v5037
        %v5044 = vsel %vm717, %v5002, 0
        %v5047 = vsel %vm717, %v5003, 0
        %v5050 = vsel %vm717, %v5004, 0
        %v5053 = vsel %vm717, %v5005, 0
        %v5056 = vsel %vm717, %v5006, 0
        %v5059 = vsel %vm717, %v5007, 0
        %v5062 = vsel %vm717, %v5008, 0
        %v5065 = vsel %vm717, %v5009, 0
        %v5068 = vsel %vm717, %v5010, 0
        %v5071 = vsel %vm717, %v5011, 0
        %v5074 = vsel %vm717, %v5012, 0
        %v5077 = vsel %vm717, %v5013, 0
        %v5080 = vsel %vm717, %v5014, 0
        %v5083 = vsel %vm717, %v5015, 0
        %v5086 = vsel %vm717, %v5016, 0
        %v5089 = vsel %vm717, %v5017, 0
        %v5092 = vsel %vm717, %v5018, 0
        %v5095 = vsel %vm717, %v5019, 0
        %v5098 = vsel %vm717, %v5020, 0
        %v5101 = vsel %vm717, %v5021, 0
        %v5104 = vsel %vm717, %v5022, 0
        %v5107 = vsel %vm717, %v5023, 0
        %v5110 = vsel %vm717, %v5024, 0
        %v5113 = vsel %vm717, %v5025, 0
        %5115 = vmatprep.subr.bf16.mxu0 0
        %5116 = vmatpush1.bf16.msra.mxu0 %v5039
        %5117 = vmatprep.subr.bf16.mxu0 0
        %5118 = vmatpush1.bf16.msra.mxu0 %v5040
        %5119 = vmatprep.subr.bf16.mxu0 0
        %5120 = vmatpush1.bf16.msra.mxu0 0
        %5121 = vmatprep.subr.bf16.mxu0 0
        %5122 = vmatpush1.bf16.msra.mxu0 0
        %5123 = vmatprep.subr.bf16.mxu0 0
        %5124 = vmatpush1.bf16.msra.mxu0 0
        %5125 = vmatprep.subr.bf16.mxu0 0
        %5126 = vmatpush1.bf16.msra.mxu0 0
        %5127 = vmatprep.subr.bf16.mxu0 0
        %5128 = vmatpush1.bf16.msra.mxu0 0
        %5129 = vmatprep.subr.bf16.mxu0 0
        %5130 = vmatpush1.bf16.msra.mxu0 0
        %5131 = vmatprep.subr.bf16.mxu0 0
        %5132 = vmatpush1.bf16.msra.mxu0 0
        %5133 = vmatprep.subr.bf16.mxu0 0
        %5134 = vmatpush1.bf16.msra.mxu0 0
        %5135 = vmatprep.subr.bf16.mxu0 0
        %5136 = vmatpush1.bf16.msra.mxu0 0
        %5137 = vmatprep.subr.bf16.mxu0 0
        %5138 = vmatpush1.bf16.msra.mxu0 0
        %5139 = vmatprep.subr.bf16.mxu0 0
        %5140 = vmatpush1.bf16.msra.mxu0 0
        %5141 = vmatprep.subr.bf16.mxu0 0
        %5142 = vmatpush1.bf16.msra.mxu0 0
        %5143 = vmatprep.subr.bf16.mxu0 0
        %5144 = vmatpush1.bf16.msra.mxu0 0
        %5145 = vmatprep.subr.bf16.mxu0 0
        %5146 = vmatpush1.bf16.msra.mxu0 0
        %5147 = vmatprep.mubr.bf16.mxu0 0
        %5148 = vmatmul.mubr.bf16.gmra.mrb[0].mxu0 %v5044
        %v5149 = vpop.f32.mrb[0].mxu0
        %v5150 = vadd.f32 0.0, %v5149
        %v5151 = vpop.f32.mrb[0].mxu0
        %v5152 = vpop.f32.mrb[0].mxu0
        %v5153 = vadd.f32 0.0, %v5152
        %v5154 = vpop.f32.mrb[0].mxu0
        %5155 = vmatprep.mubr.bf16.mxu0 0
        %5156 = vmatmul.mubr.bf16.gmra.mrb[0].mxu0 %v5047
        %v5157 = vpop.f32.mrb[0].mxu0
        %v5158 = vadd.f32 0.0, %v5157
        %v5159 = vpop.f32.mrb[0].mxu0
        %v5160 = vpop.f32.mrb[0].mxu0
        %v5161 = vadd.f32 0.0, %v5160
        %v5162 = vpop.f32.mrb[0].mxu0
        %5163 = vmatprep.mubr.bf16.mxu0 0
        %5164 = vmatmul.mubr.bf16.gmra.mrb[0].mxu0 %v5050
        %v5165 = vpop.f32.mrb[0].mxu0
        %v5166 = vadd.f32 0.0, %v5165
        %v5167 = vpop.f32.mrb[0].mxu0
        %v5168 = vpop.f32.mrb[0].mxu0
        %v5169 = vadd.f32 0.0, %v5168
        %v5170 = vpop.f32.mrb[0].mxu0
        %5171 = vmatprep.mubr.bf16.mxu0 0
        %5172 = vmatmul.mubr.bf16.gmra.mrb[0].mxu0 %v5053
        %v5173 = vpop.f32.mrb[0].mxu0
        %v5174 = vadd.f32 0.0, %v5173
        %v5175 = vpop.f32.mrb[0].mxu0
        %v5176 = vpop.f32.mrb[0].mxu0
        %v5177 = vadd.f32 0.0, %v5176
        %v5178 = vpop.f32.mrb[0].mxu0
        %5179 = vmatprep.mubr.bf16.mxu0 0
        %5180 = vmatmul.mubr.bf16.gmra.mrb[0].mxu0 %v5056
        %v5181 = vpop.f32.mrb[0].mxu0
        %v5182 = vadd.f32 0.0, %v5181
        %v5183 = vpop.f32.mrb[0].mxu0
        %v5184 = vpop.f32.mrb[0].mxu0
        %v5185 = vadd.f32 0.0, %v5184
        %v5186 = vpop.f32.mrb[0].mxu0
        %5187 = vmatprep.mubr.bf16.mxu0 0
        %5188 = vmatmul.mubr.bf16.gmra.mrb[0].mxu0 %v5059
        %v5189 = vpop.f32.mrb[0].mxu0
        %v5190 = vadd.f32 0.0, %v5189
        %v5191 = vpop.f32.mrb[0].mxu0
        %v5192 = vpop.f32.mrb[0].mxu0
        %v5193 = vadd.f32 0.0, %v5192
        %v5194 = vpop.f32.mrb[0].mxu0
        %5195 = vmatprep.mubr.bf16.mxu0 0
        %5196 = vmatmul.mubr.bf16.gmra.mrb[0].mxu0 %v5062
        %v5197 = vpop.f32.mrb[0].mxu0
        %v5198 = vadd.f32 0.0, %v5197
        %v5199 = vpop.f32.mrb[0].mxu0
        %v5200 = vpop.f32.mrb[0].mxu0
        %v5201 = vadd.f32 0.0, %v5200
        %v5202 = vpop.f32.mrb[0].mxu0
        %5203 = vmatprep.mubr.bf16.mxu0 0
        %5204 = vmatmul.mubr.bf16.gmra.mrb[0].mxu0 %v5065
        %v5205 = vpop.f32.mrb[0].mxu0
        %v5206 = vadd.f32 0.0, %v5205
        %v5207 = vpop.f32.mrb[0].mxu0
        %v5208 = vpop.f32.mrb[0].mxu0
        %v5209 = vadd.f32 0.0, %v5208
        %v5210 = vpop.f32.mrb[0].mxu0
        %5211 = vmatprep.mubr.bf16.mxu0 0
        %5212 = vmatmul.mubr.bf16.gmra.mrb[0].mxu0 %v5068
        %v5213 = vpop.f32.mrb[0].mxu0
        %v5214 = vadd.f32 0.0, %v5213
        %v5215 = vpop.f32.mrb[0].mxu0
        %v5216 = vpop.f32.mrb[0].mxu0
        %v5217 = vadd.f32 0.0, %v5216
        %v5218 = vpop.f32.mrb[0].mxu0
        %5219 = vmatprep.mubr.bf16.mxu0 0
        %5220 = vmatmul.mubr.bf16.gmra.mrb[0].mxu0 %v5071
        %v5221 = vpop.f32.mrb[0].mxu0
        %v5222 = vadd.f32 0.0, %v5221
        %v5223 = vpop.f32.mrb[0].mxu0
        %v5224 = vpop.f32.mrb[0].mxu0
        %v5225 = vadd.f32 0.0, %v5224
        %v5226 = vpop.f32.mrb[0].mxu0
        %5227 = vmatprep.mubr.bf16.mxu0 0
        %5228 = vmatmul.mubr.bf16.gmra.mrb[0].mxu0 %v5074
        %v5229 = vpop.f32.mrb[0].mxu0
        %v5230 = vadd.f32 0.0, %v5229
        %v5231 = vpop.f32.mrb[0].mxu0
        %v5232 = vpop.f32.mrb[0].mxu0
        %v5233 = vadd.f32 0.0, %v5232
        %v5234 = vpop.f32.mrb[0].mxu0
        %5235 = vmatprep.mubr.bf16.mxu0 0
        %5236 = vmatmul.mubr.bf16.gmra.mrb[0].mxu0 %v5077
        %v5237 = vpop.f32.mrb[0].mxu0
        %v5238 = vadd.f32 0.0, %v5237
        %v5239 = vpop.f32.mrb[0].mxu0
        %v5240 = vpop.f32.mrb[0].mxu0
        %v5241 = vadd.f32 0.0, %v5240
        %v5242 = vpop.f32.mrb[0].mxu0
        %5243 = vmatprep.mubr.bf16.mxu0 0
        %5244 = vmatmul.mubr.bf16.gmra.mrb[0].mxu0 %v5080
        %v5245 = vpop.f32.mrb[0].mxu0
        %v5246 = vadd.f32 0.0, %v5245
        %v5247 = vpop.f32.mrb[0].mxu0
        %v5248 = vpop.f32.mrb[0].mxu0
        %v5249 = vadd.f32 0.0, %v5248
        %v5250 = vpop.f32.mrb[0].mxu0
        %5251 = vmatprep.mubr.bf16.mxu0 0
        %5252 = vmatmul.mubr.bf16.gmra.mrb[0].mxu0 %v5083
        %v5253 = vpop.f32.mrb[0].mxu0
        %v5254 = vadd.f32 0.0, %v5253
        %v5255 = vpop.f32.mrb[0].mxu0
        %v5256 = vpop.f32.mrb[0].mxu0
        %v5257 = vadd.f32 0.0, %v5256
        %v5258 = vpop.f32.mrb[0].mxu0
        %5259 = vmatprep.mubr.bf16.mxu0 0
        %5260 = vmatmul.mubr.bf16.gmra.mrb[0].mxu0 %v5086
        %v5261 = vpop.f32.mrb[0].mxu0
        %v5262 = vadd.f32 0.0, %v5261
        %v5263 = vpop.f32.mrb[0].mxu0
        %v5264 = vpop.f32.mrb[0].mxu0
        %v5265 = vadd.f32 0.0, %v5264
        %v5266 = vpop.f32.mrb[0].mxu0
        %5267 = vmatprep.mubr.bf16.mxu0 0
        %5268 = vmatmul.mubr.bf16.gmra.mrb[0].mxu0 %v5089
        %v5269 = vpop.f32.mrb[0].mxu0
        %v5270 = vadd.f32 0.0, %v5269
        %v5271 = vpop.f32.mrb[0].mxu0
        %v5272 = vpop.f32.mrb[0].mxu0
        %v5273 = vadd.f32 0.0, %v5272
        %v5274 = vpop.f32.mrb[0].mxu0
        %5275 = vmatprep.mubr.bf16.mxu0 0
        %5276 = vmatmul.mubr.bf16.gmra.mrb[0].mxu0 %v5092
        %v5277 = vpop.f32.mrb[0].mxu0
        %v5278 = vadd.f32 0.0, %v5277
        %v5279 = vpop.f32.mrb[0].mxu0
        %v5280 = vpop.f32.mrb[0].mxu0
        %v5281 = vadd.f32 0.0, %v5280
        %v5282 = vpop.f32.mrb[0].mxu0
        %5283 = vmatprep.mubr.bf16.mxu0 0
        %5284 = vmatmul.mubr.bf16.gmra.mrb[0].mxu0 %v5095
        %v5285 = vpop.f32.mrb[0].mxu0
        %v5286 = vadd.f32 0.0, %v5285
        %v5287 = vpop.f32.mrb[0].mxu0
        %v5288 = vpop.f32.mrb[0].mxu0
        %v5289 = vadd.f32 0.0, %v5288
        %v5290 = vpop.f32.mrb[0].mxu0
        %5291 = vmatprep.mubr.bf16.mxu0 0
        %5292 = vmatmul.mubr.bf16.gmra.mrb[0].mxu0 %v5098
        %v5293 = vpop.f32.mrb[0].mxu0
        %v5294 = vadd.f32 0.0, %v5293
        %v5295 = vpop.f32.mrb[0].mxu0
        %v5296 = vpop.f32.mrb[0].mxu0
        %v5297 = vadd.f32 0.0, %v5296
        %v5298 = vpop.f32.mrb[0].mxu0
        %5299 = vmatprep.mubr.bf16.mxu0 0
        %5300 = vmatmul.mubr.bf16.gmra.mrb[0].mxu0 %v5101
        %v5301 = vpop.f32.mrb[0].mxu0
        %v5302 = vadd.f32 0.0, %v5301
        %v5303 = vpop.f32.mrb[0].mxu0
        %v5304 = vpop.f32.mrb[0].mxu0
        %v5305 = vadd.f32 0.0, %v5304
        %v5306 = vpop.f32.mrb[0].mxu0
        %5307 = vmatprep.mubr.bf16.mxu0 0
        %5308 = vmatmul.mubr.bf16.gmra.mrb[0].mxu0 %v5104
        %v5309 = vpop.f32.mrb[0].mxu0
        %v5310 = vadd.f32 0.0, %v5309
        %v5311 = vpop.f32.mrb[0].mxu0
        %v5312 = vpop.f32.mrb[0].mxu0
        %v5313 = vadd.f32 0.0, %v5312
        %v5314 = vpop.f32.mrb[0].mxu0
        %5315 = vmatprep.mubr.bf16.mxu0 0
        %5316 = vmatmul.mubr.bf16.gmra.mrb[0].mxu0 %v5107
        %v5317 = vpop.f32.mrb[0].mxu0
        %v5318 = vadd.f32 0.0, %v5317
        %v5319 = vpop.f32.mrb[0].mxu0
        %v5320 = vpop.f32.mrb[0].mxu0
        %v5321 = vadd.f32 0.0, %v5320
        %v5322 = vpop.f32.mrb[0].mxu0
        %5323 = vmatprep.mubr.bf16.mxu0 0
        %5324 = vmatmul.mubr.bf16.gmra.mrb[0].mxu0 %v5110
        %v5325 = vpop.f32.mrb[0].mxu0
        %v5326 = vadd.f32 0.0, %v5325
        %v5327 = vpop.f32.mrb[0].mxu0
        %v5328 = vpop.f32.mrb[0].mxu0
        %v5329 = vadd.f32 0.0, %v5328
        %v5330 = vpop.f32.mrb[0].mxu0
        %5331 = vmatprep.mubr.bf16.mxu0 0
        %5332 = vmatmul.mubr.bf16.gmra.mrb[0].mxu0 %v5113
        %v5333 = vpop.f32.mrb[0].mxu0
        %v5334 = vadd.f32 0.0, %v5333
        %v5335 = vpop.f32.mrb[0].mxu0
        %v5336 = vpop.f32.mrb[0].mxu0
        %v5337 = vadd.f32 0.0, %v5336
        %v5338 = vpop.f32.mrb[0].mxu0
        %5339 = vdwg.mxu0
        %v5340 = vadd.f32 %v4906, %v5150
        %v5341 = vadd.f32 %v4907, %v5153
        %v5342 = vadd.f32 %v4908, %v5158
        %v5343 = vadd.f32 %v4909, %v5161
        %v5344 = vadd.f32 %v4910, %v5166
        %v5345 = vadd.f32 %v4911, %v5169
        %v5346 = vadd.f32 %v4912, %v5174
        %v5347 = vadd.f32 %v4913, %v5177
        %v5348 = vadd.f32 %v4914, %v5182
        %v5349 = vadd.f32 %v4915, %v5185
        %v5350 = vadd.f32 %v4916, %v5190
        %v5351 = vadd.f32 %v4917, %v5193
        %v5352 = vadd.f32 %v4918, %v5198
        %v5353 = vadd.f32 %v4919, %v5201
        %v5354 = vadd.f32 %v4920, %v5206
        %v5355 = vadd.f32 %v4921, %v5209
        %v5356 = vadd.f32 %v4922, %v5214
        %v5357 = vadd.f32 %v4923, %v5217
        %v5358 = vadd.f32 %v4924, %v5222
        %v5359 = vadd.f32 %v4925, %v5225
        %v5360 = vadd.f32 %v4926, %v5230
        %v5361 = vadd.f32 %v4927, %v5233
        %v5362 = vadd.f32 %v4928, %v5238
        %v5363 = vadd.f32 %v4929, %v5241
        %v5364 = vadd.f32 %v4930, %v5246
        %v5365 = vadd.f32 %v4931, %v5249
        %v5366 = vadd.f32 %v4932, %v5254
        %v5367 = vadd.f32 %v4933, %v5257
        %v5368 = vadd.f32 %v4934, %v5262
        %v5369 = vadd.f32 %v4935, %v5265
        %v5370 = vadd.f32 %v4936, %v5270
        %v5371 = vadd.f32 %v4937, %v5273
        %v5372 = vadd.f32 %v4938, %v5278
        %v5373 = vadd.f32 %v4939, %v5281
        %v5374 = vadd.f32 %v4940, %v5286
        %v5375 = vadd.f32 %v4941, %v5289
        %v5376 = vadd.f32 %v4942, %v5294
        %v5377 = vadd.f32 %v4943, %v5297
        %v5378 = vadd.f32 %v4944, %v5302
        %v5379 = vadd.f32 %v4945, %v5305
        %v5380 = vadd.f32 %v4946, %v5310
        %v5381 = vadd.f32 %v4947, %v5313
        %v5382 = vadd.f32 %v4948, %v5318
        %v5383 = vadd.f32 %v4949, %v5321
        %v5384 = vadd.f32 %v4950, %v5326
        %v5385 = vadd.f32 %v4951, %v5329
        %v5386 = vadd.f32 %v4952, %v5334
        %v5387 = vadd.f32 %v4953, %v5337
        %v5388 = vld [vmem:[#allocation2 + $0x2a] sm:$0xff]
        %v5389 = vld [vmem:[#allocation2 + $0x32] sm:$0xff]
        %v5390 = vld [vmem:[#allocation2 + $0x3a] sm:$0xff]
        %v5391 = vld [vmem:[#allocation2 + $0x42] sm:$0xff]
        %v5392 = vld [vmem:[#allocation2 + $0x4a] sm:$0xff]
        %v5393 = vld [vmem:[#allocation2 + $0x52] sm:$0xff]
        %v5394 = vld [vmem:[#allocation2 + $0x5a] sm:$0xff]
        %v5395 = vld [vmem:[#allocation2 + $0x62] sm:$0xff]
        %v5396 = vld [vmem:[#allocation2 + $0x6a] sm:$0xff]
        %v5397 = vld [vmem:[#allocation2 + $0x72] sm:$0xff]
        %v5398 = vld [vmem:[#allocation2 + $0x7a] sm:$0xff]
        %v5399 = vld [vmem:[#allocation2 + $0x82] sm:$0xff]
        %v5400 = vld [vmem:[#allocation2 + $0x8a] sm:$0xff]
        %v5401 = vld [vmem:[#allocation2 + $0x92] sm:$0xff]
        %v5402 = vld [vmem:[#allocation2 + $0x9a] sm:$0xff]
        %v5403 = vld [vmem:[#allocation2 + $0xa2] sm:$0xff]
        %v5404 = vld [vmem:[#allocation2 + $0xaa] sm:$0xff]
        %v5405 = vld [vmem:[#allocation2 + $0xb2] sm:$0xff]
        %v5406 = vld [vmem:[#allocation2 + $0xba] sm:$0xff]
        %v5407 = vld [vmem:[#allocation2 + $0xc2] sm:$0xff]
        %v5408 = vld [vmem:[#allocation2 + $0xca] sm:$0xff]
        %v5409 = vld [vmem:[#allocation2 + $0xd2] sm:$0xff]
        %v5410 = vld [vmem:[#allocation2 + $0xda] sm:$0xff]
        %v5411 = vld [vmem:[#allocation2 + $0xe2] sm:$0xff]
        %v5412 = vld [vmem:[#allocation2 + $0xea] sm:$0xff]
        %v5413 = vld [vmem:[#allocation2 + $0xf2] sm:$0xff]
        %v5414 = vld [vmem:[#allocation2 + $0xfa] sm:$0xff]
        %v5415 = vld [vmem:[#allocation2 + $0x102] sm:$0xff]
        %v5416 = vld [vmem:[#allocation2 + $0x10a] sm:$0xff]
        %v5417 = vld [vmem:[#allocation2 + $0x112] sm:$0xff]
        %v5418 = vld [vmem:[#allocation2 + $0x11a] sm:$0xff]
        %v5419 = vld [vmem:[#allocation2 + $0x122] sm:$0xff]
        %v5420 = vld [vmem:[#allocation2 + $0x12a] sm:$0xff]
        %v5421 = vld [vmem:[#allocation2 + $0x132] sm:$0xff]
        %v5422 = vld [vmem:[#allocation2 + $0x13a] sm:$0xff]
        %v5423 = vld [vmem:[#allocation2 + $0x142] sm:$0xff]
        %v5424 = vld [vmem:[#allocation2 + $0x14a] sm:$0xff]
        %v5425 = vld [vmem:[#allocation2 + $0x152] sm:$0xff]
        %v5426 = vld [vmem:[#allocation2 + $0x15a] sm:$0xff]
        %v5427 = vld [vmem:[#allocation2 + $0x162] sm:$0xff]
        %v5428 = vld [vmem:[#allocation2 + $0x16a] sm:$0xff]
        %v5429 = vld [vmem:[#allocation2 + $0x172] sm:$0xff]
        %v5430 = vld [vmem:[#allocation2 + $0x17a] sm:$0xff]
        %v5431 = vld [vmem:[#allocation2 + $0x182] sm:$0xff]
        %v5432 = vld [vmem:[#allocation2 + $0x18a] sm:$0xff]
        %v5433 = vld [vmem:[#allocation2 + $0x192] sm:$0xff]
        %v5434 = vld [vmem:[#allocation2 + $0x19a] sm:$0xff]
        %v5435 = vld [vmem:[#allocation2 + $0x1a2] sm:$0xf]
        %v5436 = vpack.c.bf16 %v5389, %v5388
        %v5437 = vpack.c.bf16 %v5391, %v5390
        %v5438 = vpack.c.bf16 %v5393, %v5392
        %v5439 = vpack.c.bf16 %v5395, %v5394
        %v5440 = vpack.c.bf16 %v5397, %v5396
        %v5441 = vpack.c.bf16 %v5399, %v5398
        %v5442 = vpack.c.bf16 %v5401, %v5400
        %v5443 = vpack.c.bf16 %v5403, %v5402
        %v5444 = vpack.c.bf16 %v5405, %v5404
        %v5445 = vpack.c.bf16 %v5407, %v5406
        %v5446 = vpack.c.bf16 %v5409, %v5408
        %v5447 = vpack.c.bf16 %v5411, %v5410
        %v5448 = vpack.c.bf16 %v5413, %v5412
        %v5449 = vpack.c.bf16 %v5415, %v5414
        %v5450 = vpack.c.bf16 %v5417, %v5416
        %v5451 = vpack.c.bf16 %v5419, %v5418
        %v5452 = vpack.c.bf16 %v5421, %v5420
        %v5453 = vpack.c.bf16 %v5423, %v5422
        %v5454 = vpack.c.bf16 %v5425, %v5424
        %v5455 = vpack.c.bf16 %v5427, %v5426
        %v5456 = vpack.c.bf16 %v5429, %v5428
        %v5457 = vpack.c.bf16 %v5431, %v5430
        %v5458 = vpack.c.bf16 %v5433, %v5432
        %v5459 = vpack.c.bf16 %v5435, %v5434
        %s5460 = scalar_lea.vmem [#allocation13], 128
        %v5461 = vld [vmem:[%s5460] sm:$0xf]
        %v5462 = vld [vmem:[%s5460 + $0x4] sm:$0xf]
        %v5463 = vld [vmem:[%s5460 + $0x8] sm:$0xf]
        %v5464 = vld [vmem:[%s5460 + $0xc] sm:$0xf]
        %v5469 = vunpack.c.l.b16 %v5461
        %v5470 = vunpack.c.l.b16 %v5462
        %v5471 = vunpack.c.l.b16 %v5463
        %v5472 = vunpack.c.l.b16 %v5464
        %v5473 = vpack.c.b16 %v5470, %v5469
        %v5474 = vpack.c.b16 %v5472, %v5471
        %v5478 = vsel %vm717, %v5436, 0
        %v5481 = vsel %vm717, %v5437, 0
        %v5484 = vsel %vm717, %v5438, 0
        %v5487 = vsel %vm717, %v5439, 0
        %v5490 = vsel %vm717, %v5440, 0
        %v5493 = vsel %vm717, %v5441, 0
        %v5496 = vsel %vm717, %v5442, 0
        %v5499 = vsel %vm717, %v5443, 0
        %v5502 = vsel %vm717, %v5444, 0
        %v5505 = vsel %vm717, %v5445, 0
        %v5508 = vsel %vm717, %v5446, 0
        %v5511 = vsel %vm717, %v5447, 0
        %v5514 = vsel %vm717, %v5448, 0
        %v5517 = vsel %vm717, %v5449, 0
        %v5520 = vsel %vm717, %v5450, 0
        %v5523 = vsel %vm717, %v5451, 0
        %v5526 = vsel %vm717, %v5452, 0
        %v5529 = vsel %vm717, %v5453, 0
        %v5532 = vsel %vm717, %v5454, 0
        %v5535 = vsel %vm717, %v5455, 0
        %v5538 = vsel %vm717, %v5456, 0
        %v5541 = vsel %vm717, %v5457, 0
        %v5544 = vsel %vm717, %v5458, 0
        %v5547 = vsel %vm717, %v5459, 0
        %5549 = vmatprep.subr.bf16.mxu0 0
        %5550 = vmatpush1.bf16.msra.mxu0 %v5473
        %5551 = vmatprep.subr.bf16.mxu0 0
        %5552 = vmatpush1.bf16.msra.mxu0 %v5474
        %5553 = vmatprep.subr.bf16.mxu0 0
        %5554 = vmatpush1.bf16.msra.mxu0 0
        %5555 = vmatprep.subr.bf16.mxu0 0
        %5556 = vmatpush1.bf16.msra.mxu0 0
        %5557 = vmatprep.subr.bf16.mxu0 0
        %5558 = vmatpush1.bf16.msra.mxu0 0
        %5559 = vmatprep.subr.bf16.mxu0 0
        %5560 = vmatpush1.bf16.msra.mxu0 0
        %5561 = vmatprep.subr.bf16.mxu0 0
        %5562 = vmatpush1.bf16.msra.mxu0 0
        %5563 = vmatprep.subr.bf16.mxu0 0
        %5564 = vmatpush1.bf16.msra.mxu0 0
        %5565 = vmatprep.subr.bf16.mxu0 0
        %5566 = vmatpush1.bf16.msra.mxu0 0
        %5567 = vmatprep.subr.bf16.mxu0 0
        %5568 = vmatpush1.bf16.msra.mxu0 0
        %5569 = vmatprep.subr.bf16.mxu0 0
        %5570 = vmatpush1.bf16.msra.mxu0 0
        %5571 = vmatprep.subr.bf16.mxu0 0
        %5572 = vmatpush1.bf16.msra.mxu0 0
        %5573 = vmatprep.subr.bf16.mxu0 0
        %5574 = vmatpush1.bf16.msra.mxu0 0
        %5575 = vmatprep.subr.bf16.mxu0 0
        %5576 = vmatpush1.bf16.msra.mxu0 0
        %5577 = vmatprep.subr.bf16.mxu0 0
        %5578 = vmatpush1.bf16.msra.mxu0 0
        %5579 = vmatprep.subr.bf16.mxu0 0
        %5580 = vmatpush1.bf16.msra.mxu0 0
        %5581 = vmatprep.mubr.bf16.mxu0 0
        %5582 = vmatmul.mubr.bf16.gmra.mrb[0].mxu0 %v5478
        %v5583 = vpop.f32.mrb[0].mxu0
        %v5584 = vadd.f32 0.0, %v5583
        %v5585 = vpop.f32.mrb[0].mxu0
        %v5586 = vpop.f32.mrb[0].mxu0
        %v5587 = vadd.f32 0.0, %v5586
        %v5588 = vpop.f32.mrb[0].mxu0
        %5589 = vmatprep.mubr.bf16.mxu0 0
        %5590 = vmatmul.mubr.bf16.gmra.mrb[0].mxu0 %v5481
        %v5591 = vpop.f32.mrb[0].mxu0
        %v5592 = vadd.f32 0.0, %v5591
        %v5593 = vpop.f32.mrb[0].mxu0
        %v5594 = vpop.f32.mrb[0].mxu0
        %v5595 = vadd.f32 0.0, %v5594
        %v5596 = vpop.f32.mrb[0].mxu0
        %5597 = vmatprep.mubr.bf16.mxu0 0
        %5598 = vmatmul.mubr.bf16.gmra.mrb[0].mxu0 %v5484
        %v5599 = vpop.f32.mrb[0].mxu0
        %v5600 = vadd.f32 0.0, %v5599
        %v5601 = vpop.f32.mrb[0].mxu0
        %v5602 = vpop.f32.mrb[0].mxu0
        %v5603 = vadd.f32 0.0, %v5602
        %v5604 = vpop.f32.mrb[0].mxu0
        %5605 = vmatprep.mubr.bf16.mxu0 0
        %5606 = vmatmul.mubr.bf16.gmra.mrb[0].mxu0 %v5487
        %v5607 = vpop.f32.mrb[0].mxu0
        %v5608 = vadd.f32 0.0, %v5607
        %v5609 = vpop.f32.mrb[0].mxu0
        %v5610 = vpop.f32.mrb[0].mxu0
        %v5611 = vadd.f32 0.0, %v5610
        %v5612 = vpop.f32.mrb[0].mxu0
        %5613 = vmatprep.mubr.bf16.mxu0 0
        %5614 = vmatmul.mubr.bf16.gmra.mrb[0].mxu0 %v5490
        %v5615 = vpop.f32.mrb[0].mxu0
        %v5616 = vadd.f32 0.0, %v5615
        %v5617 = vpop.f32.mrb[0].mxu0
        %v5618 = vpop.f32.mrb[0].mxu0
        %v5619 = vadd.f32 0.0, %v5618
        %v5620 = vpop.f32.mrb[0].mxu0
        %5621 = vmatprep.mubr.bf16.mxu0 0
        %5622 = vmatmul.mubr.bf16.gmra.mrb[0].mxu0 %v5493
        %v5623 = vpop.f32.mrb[0].mxu0
        %v5624 = vadd.f32 0.0, %v5623
        %v5625 = vpop.f32.mrb[0].mxu0
        %v5626 = vpop.f32.mrb[0].mxu0
        %v5627 = vadd.f32 0.0, %v5626
        %v5628 = vpop.f32.mrb[0].mxu0
        %5629 = vmatprep.mubr.bf16.mxu0 0
        %5630 = vmatmul.mubr.bf16.gmra.mrb[0].mxu0 %v5496
        %v5631 = vpop.f32.mrb[0].mxu0
        %v5632 = vadd.f32 0.0, %v5631
        %v5633 = vpop.f32.mrb[0].mxu0
        %v5634 = vpop.f32.mrb[0].mxu0
        %v5635 = vadd.f32 0.0, %v5634
        %v5636 = vpop.f32.mrb[0].mxu0
        %5637 = vmatprep.mubr.bf16.mxu0 0
        %5638 = vmatmul.mubr.bf16.gmra.mrb[0].mxu0 %v5499
        %v5639 = vpop.f32.mrb[0].mxu0
        %v5640 = vadd.f32 0.0, %v5639
        %v5641 = vpop.f32.mrb[0].mxu0
        %v5642 = vpop.f32.mrb[0].mxu0
        %v5643 = vadd.f32 0.0, %v5642
        %v5644 = vpop.f32.mrb[0].mxu0
        %5645 = vmatprep.mubr.bf16.mxu0 0
        %5646 = vmatmul.mubr.bf16.gmra.mrb[0].mxu0 %v5502
        %v5647 = vpop.f32.mrb[0].mxu0
        %v5648 = vadd.f32 0.0, %v5647
        %v5649 = vpop.f32.mrb[0].mxu0
        %v5650 = vpop.f32.mrb[0].mxu0
        %v5651 = vadd.f32 0.0, %v5650
        %v5652 = vpop.f32.mrb[0].mxu0
        %5653 = vmatprep.mubr.bf16.mxu0 0
        %5654 = vmatmul.mubr.bf16.gmra.mrb[0].mxu0 %v5505
        %v5655 = vpop.f32.mrb[0].mxu0
        %v5656 = vadd.f32 0.0, %v5655
        %v5657 = vpop.f32.mrb[0].mxu0
        %v5658 = vpop.f32.mrb[0].mxu0
        %v5659 = vadd.f32 0.0, %v5658
        %v5660 = vpop.f32.mrb[0].mxu0
        %5661 = vmatprep.mubr.bf16.mxu0 0
        %5662 = vmatmul.mubr.bf16.gmra.mrb[0].mxu0 %v5508
        %v5663 = vpop.f32.mrb[0].mxu0
        %v5664 = vadd.f32 0.0, %v5663
        %v5665 = vpop.f32.mrb[0].mxu0
        %v5666 = vpop.f32.mrb[0].mxu0
        %v5667 = vadd.f32 0.0, %v5666
        %v5668 = vpop.f32.mrb[0].mxu0
        %5669 = vmatprep.mubr.bf16.mxu0 0
        %5670 = vmatmul.mubr.bf16.gmra.mrb[0].mxu0 %v5511
        %v5671 = vpop.f32.mrb[0].mxu0
        %v5672 = vadd.f32 0.0, %v5671
        %v5673 = vpop.f32.mrb[0].mxu0
        %v5674 = vpop.f32.mrb[0].mxu0
        %v5675 = vadd.f32 0.0, %v5674
        %v5676 = vpop.f32.mrb[0].mxu0
        %5677 = vmatprep.mubr.bf16.mxu0 0
        %5678 = vmatmul.mubr.bf16.gmra.mrb[0].mxu0 %v5514
        %v5679 = vpop.f32.mrb[0].mxu0
        %v5680 = vadd.f32 0.0, %v5679
        %v5681 = vpop.f32.mrb[0].mxu0
        %v5682 = vpop.f32.mrb[0].mxu0
        %v5683 = vadd.f32 0.0, %v5682
        %v5684 = vpop.f32.mrb[0].mxu0
        %5685 = vmatprep.mubr.bf16.mxu0 0
        %5686 = vmatmul.mubr.bf16.gmra.mrb[0].mxu0 %v5517
        %v5687 = vpop.f32.mrb[0].mxu0
        %v5688 = vadd.f32 0.0, %v5687
        %v5689 = vpop.f32.mrb[0].mxu0
        %v5690 = vpop.f32.mrb[0].mxu0
        %v5691 = vadd.f32 0.0, %v5690
        %v5692 = vpop.f32.mrb[0].mxu0
        %5693 = vmatprep.mubr.bf16.mxu0 0
        %5694 = vmatmul.mubr.bf16.gmra.mrb[0].mxu0 %v5520
        %v5695 = vpop.f32.mrb[0].mxu0
        %v5696 = vadd.f32 0.0, %v5695
        %v5697 = vpop.f32.mrb[0].mxu0
        %v5698 = vpop.f32.mrb[0].mxu0
        %v5699 = vadd.f32 0.0, %v5698
        %v5700 = vpop.f32.mrb[0].mxu0
        %5701 = vmatprep.mubr.bf16.mxu0 0
        %5702 = vmatmul.mubr.bf16.gmra.mrb[0].mxu0 %v5523
        %v5703 = vpop.f32.mrb[0].mxu0
        %v5704 = vadd.f32 0.0, %v5703
        %v5705 = vpop.f32.mrb[0].mxu0
        %v5706 = vpop.f32.mrb[0].mxu0
        %v5707 = vadd.f32 0.0, %v5706
        %v5708 = vpop.f32.mrb[0].mxu0
        %5709 = vmatprep.mubr.bf16.mxu0 0
        %5710 = vmatmul.mubr.bf16.gmra.mrb[0].mxu0 %v5526
        %v5711 = vpop.f32.mrb[0].mxu0
        %v5712 = vadd.f32 0.0, %v5711
        %v5713 = vpop.f32.mrb[0].mxu0
        %v5714 = vpop.f32.mrb[0].mxu0
        %v5715 = vadd.f32 0.0, %v5714
        %v5716 = vpop.f32.mrb[0].mxu0
        %5717 = vmatprep.mubr.bf16.mxu0 0
        %5718 = vmatmul.mubr.bf16.gmra.mrb[0].mxu0 %v5529
        %v5719 = vpop.f32.mrb[0].mxu0
        %v5720 = vadd.f32 0.0, %v5719
        %v5721 = vpop.f32.mrb[0].mxu0
        %v5722 = vpop.f32.mrb[0].mxu0
        %v5723 = vadd.f32 0.0, %v5722
        %v5724 = vpop.f32.mrb[0].mxu0
        %5725 = vmatprep.mubr.bf16.mxu0 0
        %5726 = vmatmul.mubr.bf16.gmra.mrb[0].mxu0 %v5532
        %v5727 = vpop.f32.mrb[0].mxu0
        %v5728 = vadd.f32 0.0, %v5727
        %v5729 = vpop.f32.mrb[0].mxu0
        %v5730 = vpop.f32.mrb[0].mxu0
        %v5731 = vadd.f32 0.0, %v5730
        %v5732 = vpop.f32.mrb[0].mxu0
        %5733 = vmatprep.mubr.bf16.mxu0 0
        %5734 = vmatmul.mubr.bf16.gmra.mrb[0].mxu0 %v5535
        %v5735 = vpop.f32.mrb[0].mxu0
        %v5736 = vadd.f32 0.0, %v5735
        %v5737 = vpop.f32.mrb[0].mxu0
        %v5738 = vpop.f32.mrb[0].mxu0
        %v5739 = vadd.f32 0.0, %v5738
        %v5740 = vpop.f32.mrb[0].mxu0
        %5741 = vmatprep.mubr.bf16.mxu0 0
        %5742 = vmatmul.mubr.bf16.gmra.mrb[0].mxu0 %v5538
        %v5743 = vpop.f32.mrb[0].mxu0
        %v5744 = vadd.f32 0.0, %v5743
        %v5745 = vpop.f32.mrb[0].mxu0
        %v5746 = vpop.f32.mrb[0].mxu0
        %v5747 = vadd.f32 0.0, %v5746
        %v5748 = vpop.f32.mrb[0].mxu0
        %5749 = vmatprep.mubr.bf16.mxu0 0
        %5750 = vmatmul.mubr.bf16.gmra.mrb[0].mxu0 %v5541
        %v5751 = vpop.f32.mrb[0].mxu0
        %v5752 = vadd.f32 0.0, %v5751
        %v5753 = vpop.f32.mrb[0].mxu0
        %v5754 = vpop.f32.mrb[0].mxu0
        %v5755 = vadd.f32 0.0, %v5754
        %v5756 = vpop.f32.mrb[0].mxu0
        %5757 = vmatprep.mubr.bf16.mxu0 0
        %5758 = vmatmul.mubr.bf16.gmra.mrb[0].mxu0 %v5544
        %v5759 = vpop.f32.mrb[0].mxu0
        %v5760 = vadd.f32 0.0, %v5759
        %v5761 = vpop.f32.mrb[0].mxu0
        %v5762 = vpop.f32.mrb[0].mxu0
        %v5763 = vadd.f32 0.0, %v5762
        %v5764 = vpop.f32.mrb[0].mxu0
        %5765 = vmatprep.mubr.bf16.mxu0 0
        %5766 = vmatmul.mubr.bf16.gmra.mrb[0].mxu0 %v5547
        %v5767 = vpop.f32.mrb[0].mxu0
        %v5768 = vadd.f32 0.0, %v5767
        %v5769 = vpop.f32.mrb[0].mxu0
        %v5770 = vpop.f32.mrb[0].mxu0
        %v5771 = vadd.f32 0.0, %v5770
        %v5772 = vpop.f32.mrb[0].mxu0
        %5773 = vdwg.mxu0
        %v5774 = vadd.f32 %v5340, %v5584
        %v5775 = vadd.f32 %v5341, %v5587
        %v5776 = vadd.f32 %v5342, %v5592
        %v5777 = vadd.f32 %v5343, %v5595
        %v5778 = vadd.f32 %v5344, %v5600
        %v5779 = vadd.f32 %v5345, %v5603
        %v5780 = vadd.f32 %v5346, %v5608
        %v5781 = vadd.f32 %v5347, %v5611
        %v5782 = vadd.f32 %v5348, %v5616
        %v5783 = vadd.f32 %v5349, %v5619
        %v5784 = vadd.f32 %v5350, %v5624
        %v5785 = vadd.f32 %v5351, %v5627
        %v5786 = vadd.f32 %v5352, %v5632
        %v5787 = vadd.f32 %v5353, %v5635
        %v5788 = vadd.f32 %v5354, %v5640
        %v5789 = vadd.f32 %v5355, %v5643
        %v5790 = vadd.f32 %v5356, %v5648
        %v5791 = vadd.f32 %v5357, %v5651
        %v5792 = vadd.f32 %v5358, %v5656
        %v5793 = vadd.f32 %v5359, %v5659
        %v5794 = vadd.f32 %v5360, %v5664
        %v5795 = vadd.f32 %v5361, %v5667
        %v5796 = vadd.f32 %v5362, %v5672
        %v5797 = vadd.f32 %v5363, %v5675
        %v5798 = vadd.f32 %v5364, %v5680
        %v5799 = vadd.f32 %v5365, %v5683
        %v5800 = vadd.f32 %v5366, %v5688
        %v5801 = vadd.f32 %v5367, %v5691
        %v5802 = vadd.f32 %v5368, %v5696
        %v5803 = vadd.f32 %v5369, %v5699
        %v5804 = vadd.f32 %v5370, %v5704
        %v5805 = vadd.f32 %v5371, %v5707
        %v5806 = vadd.f32 %v5372, %v5712
        %v5807 = vadd.f32 %v5373, %v5715
        %v5808 = vadd.f32 %v5374, %v5720
        %v5809 = vadd.f32 %v5375, %v5723
        %v5810 = vadd.f32 %v5376, %v5728
        %v5811 = vadd.f32 %v5377, %v5731
        %v5812 = vadd.f32 %v5378, %v5736
        %v5813 = vadd.f32 %v5379, %v5739
        %v5814 = vadd.f32 %v5380, %v5744
        %v5815 = vadd.f32 %v5381, %v5747
        %v5816 = vadd.f32 %v5382, %v5752
        %v5817 = vadd.f32 %v5383, %v5755
        %v5818 = vadd.f32 %v5384, %v5760
        %v5819 = vadd.f32 %v5385, %v5763
        %v5820 = vadd.f32 %v5386, %v5768
        %v5821 = vadd.f32 %v5387, %v5771
        %v5822 = vld [vmem:[#allocation15] sm:$0x1]
        %v5824 = vlaneseq
        %v5825 = vshrl.u32 %v5824, 7
        %v5826 = vsub.s32 0, %v5825
        %v5827 = vrot.slane %v5822, %v5826
        %v5829 = vadd.f32 %v5774, %v5827
        %v5830 = vadd.f32 %v5775, %v5827
        %v5831 = vadd.f32 %v5776, %v5827
        %v5832 = vadd.f32 %v5777, %v5827
        %v5833 = vadd.f32 %v5778, %v5827
        %v5834 = vadd.f32 %v5779, %v5827
        %v5835 = vadd.f32 %v5780, %v5827
        %v5836 = vadd.f32 %v5781, %v5827
        %v5837 = vadd.f32 %v5782, %v5827
        %v5838 = vadd.f32 %v5783, %v5827
        %v5839 = vadd.f32 %v5784, %v5827
        %v5840 = vadd.f32 %v5785, %v5827
        %v5841 = vadd.f32 %v5786, %v5827
        %v5842 = vadd.f32 %v5787, %v5827
        %v5843 = vadd.f32 %v5788, %v5827
        %v5844 = vadd.f32 %v5789, %v5827
        %v5845 = vadd.f32 %v5790, %v5827
        %v5846 = vadd.f32 %v5791, %v5827
        %v5847 = vadd.f32 %v5792, %v5827
        %v5848 = vadd.f32 %v5793, %v5827
        %v5849 = vadd.f32 %v5794, %v5827
        %v5850 = vadd.f32 %v5795, %v5827
        %v5851 = vadd.f32 %v5796, %v5827
        %v5852 = vadd.f32 %v5797, %v5827
        %v5853 = vadd.f32 %v5798, %v5827
        %v5854 = vadd.f32 %v5799, %v5827
        %v5855 = vadd.f32 %v5800, %v5827
        %v5856 = vadd.f32 %v5801, %v5827
        %v5857 = vadd.f32 %v5802, %v5827
        %v5858 = vadd.f32 %v5803, %v5827
        %v5859 = vadd.f32 %v5804, %v5827
        %v5860 = vadd.f32 %v5805, %v5827
        %v5861 = vadd.f32 %v5806, %v5827
        %v5862 = vadd.f32 %v5807, %v5827
        %v5863 = vadd.f32 %v5808, %v5827
        %v5864 = vadd.f32 %v5809, %v5827
        %v5865 = vadd.f32 %v5810, %v5827
        %v5866 = vadd.f32 %v5811, %v5827
        %v5867 = vadd.f32 %v5812, %v5827
        %v5868 = vadd.f32 %v5813, %v5827
        %v5869 = vadd.f32 %v5814, %v5827
        %v5870 = vadd.f32 %v5815, %v5827
        %v5871 = vadd.f32 %v5816, %v5827
        %v5872 = vadd.f32 %v5817, %v5827
        %v5873 = vadd.f32 %v5818, %v5827
        %v5874 = vadd.f32 %v5819, %v5827
        %v5875 = vadd.f32 %v5820, %v5827
        %v5876 = vadd.f32 %v5821, %v5827
        %v5877 = vld [vmem:[#allocation9] sm:$0xff]
        %v5878 = vld [vmem:[#allocation9 + $0x8] sm:$0xff]
        %v5879 = vld [vmem:[#allocation9 + $0x10] sm:$0xff]
        %v5880 = vld [vmem:[#allocation9 + $0x18] sm:$0xff]
        %v5881 = vld [vmem:[#allocation9 + $0x20] sm:$0xff]
        %v5882 = vld [vmem:[#allocation9 + $0x28] sm:$0xff]
        %v5883 = vld [vmem:[#allocation9 + $0x30] sm:$0xff]
        %v5884 = vld [vmem:[#allocation9 + $0x38] sm:$0xff]
        %v5885 = vld [vmem:[#allocation9 + $0x40] sm:$0xff]
        %v5886 = vld [vmem:[#allocation9 + $0x48] sm:$0xff]
        %v5887 = vld [vmem:[#allocation9 + $0x50] sm:$0xff]
        %v5888 = vld [vmem:[#allocation9 + $0x58] sm:$0xff]
        %v5889 = vld [vmem:[#allocation9 + $0x60] sm:$0xff]
        %v5890 = vld [vmem:[#allocation9 + $0x68] sm:$0xff]
        %v5891 = vld [vmem:[#allocation9 + $0x70] sm:$0xff]
        %v5892 = vld [vmem:[#allocation9 + $0x78] sm:$0xff]
        %v5893 = vld [vmem:[#allocation9 + $0x80] sm:$0xff]
        %v5894 = vld [vmem:[#allocation9 + $0x88] sm:$0xff]
        %v5895 = vld [vmem:[#allocation9 + $0x90] sm:$0xff]
        %v5896 = vld [vmem:[#allocation9 + $0x98] sm:$0xff]
        %v5897 = vld [vmem:[#allocation9 + $0xa0] sm:$0xff]
        %v5898 = vld [vmem:[#allocation9 + $0xa8] sm:$0xff]
        %v5899 = vld [vmem:[#allocation9 + $0xb0] sm:$0xff]
        %v5900 = vld [vmem:[#allocation9 + $0xb8] sm:$0xff]
        %v5901 = vld [vmem:[#allocation9 + $0xc0] sm:$0xff]
        %v5902 = vld [vmem:[#allocation9 + $0xc8] sm:$0xff]
        %v5903 = vld [vmem:[#allocation9 + $0xd0] sm:$0xff]
        %v5904 = vld [vmem:[#allocation9 + $0xd8] sm:$0xff]
        %v5905 = vld [vmem:[#allocation9 + $0xe0] sm:$0xff]
        %v5906 = vld [vmem:[#allocation9 + $0xe8] sm:$0xff]
        %v5907 = vld [vmem:[#allocation9 + $0xf0] sm:$0xff]
        %v5908 = vld [vmem:[#allocation9 + $0xf8] sm:$0xff]
        %v5909 = vld [vmem:[#allocation9 + $0x100] sm:$0xff]
        %v5910 = vld [vmem:[#allocation9 + $0x108] sm:$0xff]
        %v5911 = vld [vmem:[#allocation9 + $0x110] sm:$0xff]
        %v5912 = vld [vmem:[#allocation9 + $0x118] sm:$0xff]
        %v5913 = vld [vmem:[#allocation9 + $0x120] sm:$0xff]
        %v5914 = vld [vmem:[#allocation9 + $0x128] sm:$0xff]
        %v5915 = vld [vmem:[#allocation9 + $0x130] sm:$0xff]
        %v5916 = vld [vmem:[#allocation9 + $0x138] sm:$0xff]
        %v5917 = vld [vmem:[#allocation9 + $0x140] sm:$0xff]
        %v5918 = vld [vmem:[#allocation9 + $0x148] sm:$0xff]
        %v5919 = vld [vmem:[#allocation9 + $0x150] sm:$0xff]
        %v5920 = vld [vmem:[#allocation9 + $0x158] sm:$0xff]
        %v5921 = vld [vmem:[#allocation9 + $0x160] sm:$0xff]
        %v5922 = vld [vmem:[#allocation9 + $0x168] sm:$0xff]
        %v5923 = vld [vmem:[#allocation9 + $0x170] sm:$0xff]
        %v5924 = vld [vmem:[#allocation9 + $0x178] sm:$0xf]
        %5926 = vset.pattern.permute.xlu0 0
        %5927 = vperm.xlu0 %5926, %v5877
        %v5928 = vpop.permute.xlu0 %5927
        %5931 = vset.pattern.permute.xlu0 0
        %5932 = vperm.xlu0 %5931, %v5878
        %v5933 = vpop.permute.xlu0 %5932
        %5936 = vset.pattern.permute.xlu0 0
        %5937 = vperm.xlu0 %5936, %v5879
        %v5938 = vpop.permute.xlu0 %5937
        %5941 = vset.pattern.permute.xlu0 0
        %5942 = vperm.xlu0 %5941, %v5880
        %v5943 = vpop.permute.xlu0 %5942
        %5946 = vset.pattern.permute.xlu0 0
        %5947 = vperm.xlu0 %5946, %v5881
        %v5948 = vpop.permute.xlu0 %5947
        %5951 = vset.pattern.permute.xlu0 0
        %5952 = vperm.xlu0 %5951, %v5882
        %v5953 = vpop.permute.xlu0 %5952
        %5956 = vset.pattern.permute.xlu0 0
        %5957 = vperm.xlu0 %5956, %v5883
        %v5958 = vpop.permute.xlu0 %5957
        %5961 = vset.pattern.permute.xlu0 0
        %5962 = vperm.xlu0 %5961, %v5884
        %v5963 = vpop.permute.xlu0 %5962
        %5966 = vset.pattern.permute.xlu0 0
        %5967 = vperm.xlu0 %5966, %v5885
        %v5968 = vpop.permute.xlu0 %5967
        %5971 = vset.pattern.permute.xlu0 0
        %5972 = vperm.xlu0 %5971, %v5886
        %v5973 = vpop.permute.xlu0 %5972
        %5976 = vset.pattern.permute.xlu0 0
        %5977 = vperm.xlu0 %5976, %v5887
        %v5978 = vpop.permute.xlu0 %5977
        %5981 = vset.pattern.permute.xlu0 0
        %5982 = vperm.xlu0 %5981, %v5888
        %v5983 = vpop.permute.xlu0 %5982
        %5986 = vset.pattern.permute.xlu0 0
        %5987 = vperm.xlu0 %5986, %v5889
        %v5988 = vpop.permute.xlu0 %5987
        %5991 = vset.pattern.permute.xlu0 0
        %5992 = vperm.xlu0 %5991, %v5890
        %v5993 = vpop.permute.xlu0 %5992
        %5996 = vset.pattern.permute.xlu0 0
        %5997 = vperm.xlu0 %5996, %v5891
        %v5998 = vpop.permute.xlu0 %5997
        %6001 = vset.pattern.permute.xlu0 0
        %6002 = vperm.xlu0 %6001, %v5892
        %v6003 = vpop.permute.xlu0 %6002
        %6006 = vset.pattern.permute.xlu0 0
        %6007 = vperm.xlu0 %6006, %v5893
        %v6008 = vpop.permute.xlu0 %6007
        %6011 = vset.pattern.permute.xlu0 0
        %6012 = vperm.xlu0 %6011, %v5894
        %v6013 = vpop.permute.xlu0 %6012
        %6016 = vset.pattern.permute.xlu0 0
        %6017 = vperm.xlu0 %6016, %v5895
        %v6018 = vpop.permute.xlu0 %6017
        %6021 = vset.pattern.permute.xlu0 0
        %6022 = vperm.xlu0 %6021, %v5896
        %v6023 = vpop.permute.xlu0 %6022
        %6026 = vset.pattern.permute.xlu0 0
        %6027 = vperm.xlu0 %6026, %v5897
        %v6028 = vpop.permute.xlu0 %6027
        %6031 = vset.pattern.permute.xlu0 0
        %6032 = vperm.xlu0 %6031, %v5898
        %v6033 = vpop.permute.xlu0 %6032
        %6036 = vset.pattern.permute.xlu0 0
        %6037 = vperm.xlu0 %6036, %v5899
        %v6038 = vpop.permute.xlu0 %6037
        %6041 = vset.pattern.permute.xlu0 0
        %6042 = vperm.xlu0 %6041, %v5900
        %v6043 = vpop.permute.xlu0 %6042
        %6046 = vset.pattern.permute.xlu0 0
        %6047 = vperm.xlu0 %6046, %v5901
        %v6048 = vpop.permute.xlu0 %6047
        %6051 = vset.pattern.permute.xlu0 0
        %6052 = vperm.xlu0 %6051, %v5902
        %v6053 = vpop.permute.xlu0 %6052
        %6056 = vset.pattern.permute.xlu0 0
        %6057 = vperm.xlu0 %6056, %v5903
        %v6058 = vpop.permute.xlu0 %6057
        %6061 = vset.pattern.permute.xlu0 0
        %6062 = vperm.xlu0 %6061, %v5904
        %v6063 = vpop.permute.xlu0 %6062
        %6066 = vset.pattern.permute.xlu0 0
        %6067 = vperm.xlu0 %6066, %v5905
        %v6068 = vpop.permute.xlu0 %6067
        %6071 = vset.pattern.permute.xlu0 0
        %6072 = vperm.xlu0 %6071, %v5906
        %v6073 = vpop.permute.xlu0 %6072
        %6076 = vset.pattern.permute.xlu0 0
        %6077 = vperm.xlu0 %6076, %v5907
        %v6078 = vpop.permute.xlu0 %6077
        %6081 = vset.pattern.permute.xlu0 0
        %6082 = vperm.xlu0 %6081, %v5908
        %v6083 = vpop.permute.xlu0 %6082
        %6086 = vset.pattern.permute.xlu0 0
        %6087 = vperm.xlu0 %6086, %v5909
        %v6088 = vpop.permute.xlu0 %6087
        %6091 = vset.pattern.permute.xlu0 0
        %6092 = vperm.xlu0 %6091, %v5910
        %v6093 = vpop.permute.xlu0 %6092
        %6096 = vset.pattern.permute.xlu0 0
        %6097 = vperm.xlu0 %6096, %v5911
        %v6098 = vpop.permute.xlu0 %6097
        %6101 = vset.pattern.permute.xlu0 0
        %6102 = vperm.xlu0 %6101, %v5912
        %v6103 = vpop.permute.xlu0 %6102
        %6106 = vset.pattern.permute.xlu0 0
        %6107 = vperm.xlu0 %6106, %v5913
        %v6108 = vpop.permute.xlu0 %6107
        %6111 = vset.pattern.permute.xlu0 0
        %6112 = vperm.xlu0 %6111, %v5914
        %v6113 = vpop.permute.xlu0 %6112
        %6116 = vset.pattern.permute.xlu0 0
        %6117 = vperm.xlu0 %6116, %v5915
        %v6118 = vpop.permute.xlu0 %6117
        %6121 = vset.pattern.permute.xlu0 0
        %6122 = vperm.xlu0 %6121, %v5916
        %v6123 = vpop.permute.xlu0 %6122
        %6126 = vset.pattern.permute.xlu0 0
        %6127 = vperm.xlu0 %6126, %v5917
        %v6128 = vpop.permute.xlu0 %6127
        %6131 = vset.pattern.permute.xlu0 0
        %6132 = vperm.xlu0 %6131, %v5918
        %v6133 = vpop.permute.xlu0 %6132
        %6136 = vset.pattern.permute.xlu0 0
        %6137 = vperm.xlu0 %6136, %v5919
        %v6138 = vpop.permute.xlu0 %6137
        %6141 = vset.pattern.permute.xlu0 0
        %6142 = vperm.xlu0 %6141, %v5920
        %v6143 = vpop.permute.xlu0 %6142
        %6146 = vset.pattern.permute.xlu0 0
        %6147 = vperm.xlu0 %6146, %v5921
        %v6148 = vpop.permute.xlu0 %6147
        %6151 = vset.pattern.permute.xlu0 0
        %6152 = vperm.xlu0 %6151, %v5922
        %v6153 = vpop.permute.xlu0 %6152
        %6156 = vset.pattern.permute.xlu0 0
        %6157 = vperm.xlu0 %6156, %v5923
        %v6158 = vpop.permute.xlu0 %6157
        %6161 = vset.pattern.permute.xlu0 0
        %6162 = vperm.xlu0 %6161, %v5924
        %v6163 = vpop.permute.xlu0 %6162
        %v6165 = vmul.f32 %v5829, %v5928
        %v6166 = vmul.f32 %v5830, %v5933
        %v6167 = vmul.f32 %v5831, %v5938
        %v6168 = vmul.f32 %v5832, %v5943
        %v6169 = vmul.f32 %v5833, %v5948
        %v6170 = vmul.f32 %v5834, %v5953
        %v6171 = vmul.f32 %v5835, %v5958
        %v6172 = vmul.f32 %v5836, %v5963
        %v6173 = vmul.f32 %v5837, %v5968
        %v6174 = vmul.f32 %v5838, %v5973
        %v6175 = vmul.f32 %v5839, %v5978
        %v6176 = vmul.f32 %v5840, %v5983
        %v6177 = vmul.f32 %v5841, %v5988
        %v6178 = vmul.f32 %v5842, %v5993
        %v6179 = vmul.f32 %v5843, %v5998
        %v6180 = vmul.f32 %v5844, %v6003
        %v6181 = vmul.f32 %v5845, %v6008
        %v6182 = vmul.f32 %v5846, %v6013
        %v6183 = vmul.f32 %v5847, %v6018
        %v6184 = vmul.f32 %v5848, %v6023
        %v6185 = vmul.f32 %v5849, %v6028
        %v6186 = vmul.f32 %v5850, %v6033
        %v6187 = vmul.f32 %v5851, %v6038
        %v6188 = vmul.f32 %v5852, %v6043
        %v6189 = vmul.f32 %v5853, %v6048
        %v6190 = vmul.f32 %v5854, %v6053
        %v6191 = vmul.f32 %v5855, %v6058
        %v6192 = vmul.f32 %v5856, %v6063
        %v6193 = vmul.f32 %v5857, %v6068
        %v6194 = vmul.f32 %v5858, %v6073
        %v6195 = vmul.f32 %v5859, %v6078
        %v6196 = vmul.f32 %v5860, %v6083
        %v6197 = vmul.f32 %v5861, %v6088
        %v6198 = vmul.f32 %v5862, %v6093
        %v6199 = vmul.f32 %v5863, %v6098
        %v6200 = vmul.f32 %v5864, %v6103
        %v6201 = vmul.f32 %v5865, %v6108
        %v6202 = vmul.f32 %v5866, %v6113
        %v6203 = vmul.f32 %v5867, %v6118
        %v6204 = vmul.f32 %v5868, %v6123
        %v6205 = vmul.f32 %v5869, %v6128
        %v6206 = vmul.f32 %v5870, %v6133
        %v6207 = vmul.f32 %v5871, %v6138
        %v6208 = vmul.f32 %v5872, %v6143
        %v6209 = vmul.f32 %v5873, %v6148
        %v6210 = vmul.f32 %v5874, %v6153
        %v6211 = vmul.f32 %v5875, %v6158
        %v6212 = vmul.f32 %v5876, %v6163
        %vm6213 = vcmask 523264
        %v6214 = vsel %vm6213, %v6165, 0.0
        %v6215 = vsel %vm6213, %v6166, 0.0
        %v6216 = vadd.f32 %v6214, %v6215
        %v6217 = vsel %vm6213, %v6167, 0.0
        %v6218 = vadd.f32 %v6216, %v6217
        %v6219 = vsel %vm6213, %v6168, 0.0
        %v6220 = vadd.f32 %v6218, %v6219
        %v6221 = vsel %vm6213, %v6169, 0.0
        %v6222 = vadd.f32 %v6220, %v6221
        %v6223 = vsel %vm6213, %v6170, 0.0
        %v6224 = vadd.f32 %v6222, %v6223
        %v6225 = vsel %vm6213, %v6171, 0.0
        %v6226 = vadd.f32 %v6224, %v6225
        %v6227 = vsel %vm6213, %v6172, 0.0
        %v6228 = vadd.f32 %v6226, %v6227
        %v6229 = vsel %vm6213, %v6173, 0.0
        %v6230 = vadd.f32 %v6228, %v6229
        %v6231 = vsel %vm6213, %v6174, 0.0
        %v6232 = vadd.f32 %v6230, %v6231
        %v6233 = vsel %vm6213, %v6175, 0.0
        %v6234 = vadd.f32 %v6232, %v6233
        %v6235 = vsel %vm6213, %v6176, 0.0
        %v6236 = vadd.f32 %v6234, %v6235
        %v6237 = vsel %vm6213, %v6177, 0.0
        %v6238 = vadd.f32 %v6236, %v6237
        %v6239 = vsel %vm6213, %v6178, 0.0
        %v6240 = vadd.f32 %v6238, %v6239
        %v6241 = vsel %vm6213, %v6179, 0.0
        %v6242 = vadd.f32 %v6240, %v6241
        %v6243 = vsel %vm6213, %v6180, 0.0
        %v6244 = vadd.f32 %v6242, %v6243
        %v6245 = vsel %vm6213, %v6181, 0.0
        %v6246 = vadd.f32 %v6244, %v6245
        %v6247 = vsel %vm6213, %v6182, 0.0
        %v6248 = vadd.f32 %v6246, %v6247
        %v6249 = vsel %vm6213, %v6183, 0.0
        %v6250 = vadd.f32 %v6248, %v6249
        %v6251 = vsel %vm6213, %v6184, 0.0
        %v6252 = vadd.f32 %v6250, %v6251
        %v6253 = vsel %vm6213, %v6185, 0.0
        %v6254 = vadd.f32 %v6252, %v6253
        %v6255 = vsel %vm6213, %v6186, 0.0
        %v6256 = vadd.f32 %v6254, %v6255
        %v6257 = vsel %vm6213, %v6187, 0.0
        %v6258 = vadd.f32 %v6256, %v6257
        %v6259 = vsel %vm6213, %v6188, 0.0
        %v6260 = vadd.f32 %v6258, %v6259
        %v6261 = vsel %vm6213, %v6189, 0.0
        %v6262 = vadd.f32 %v6260, %v6261
        %v6263 = vsel %vm6213, %v6190, 0.0
        %v6264 = vadd.f32 %v6262, %v6263
        %v6265 = vsel %vm6213, %v6191, 0.0
        %v6266 = vadd.f32 %v6264, %v6265
        %v6267 = vsel %vm6213, %v6192, 0.0
        %v6268 = vadd.f32 %v6266, %v6267
        %v6269 = vsel %vm6213, %v6193, 0.0
        %v6270 = vadd.f32 %v6268, %v6269
        %v6271 = vsel %vm6213, %v6194, 0.0
        %v6272 = vadd.f32 %v6270, %v6271
        %v6273 = vsel %vm6213, %v6195, 0.0
        %v6274 = vadd.f32 %v6272, %v6273
        %v6275 = vsel %vm6213, %v6196, 0.0
        %v6276 = vadd.f32 %v6274, %v6275
        %v6277 = vsel %vm6213, %v6197, 0.0
        %v6278 = vadd.f32 %v6276, %v6277
        %v6279 = vsel %vm6213, %v6198, 0.0
        %v6280 = vadd.f32 %v6278, %v6279
        %v6281 = vsel %vm6213, %v6199, 0.0
        %v6282 = vadd.f32 %v6280, %v6281
        %v6283 = vsel %vm6213, %v6200, 0.0
        %v6284 = vadd.f32 %v6282, %v6283
        %v6285 = vsel %vm6213, %v6201, 0.0
        %v6286 = vadd.f32 %v6284, %v6285
        %v6287 = vsel %vm6213, %v6202, 0.0
        %v6288 = vadd.f32 %v6286, %v6287
        %v6289 = vsel %vm6213, %v6203, 0.0
        %v6290 = vadd.f32 %v6288, %v6289
        %v6291 = vsel %vm6213, %v6204, 0.0
        %v6292 = vadd.f32 %v6290, %v6291
        %v6293 = vsel %vm6213, %v6205, 0.0
        %v6294 = vadd.f32 %v6292, %v6293
        %v6295 = vsel %vm6213, %v6206, 0.0
        %v6296 = vadd.f32 %v6294, %v6295
        %v6297 = vsel %vm6213, %v6207, 0.0
        %v6298 = vadd.f32 %v6296, %v6297
        %v6299 = vsel %vm6213, %v6208, 0.0
        %v6300 = vadd.f32 %v6298, %v6299
        %v6301 = vsel %vm6213, %v6209, 0.0
        %v6302 = vadd.f32 %v6300, %v6301
        %v6303 = vsel %vm6213, %v6210, 0.0
        %v6304 = vadd.f32 %v6302, %v6303
        %v6305 = vsel %vm6213, %v6211, 0.0
        %v6306 = vadd.f32 %v6304, %v6305
        %vm6307 = vcmask 519168
        %v6308 = vsel %vm6307, %v6212, 0.0
        %v6309 = vadd.f32 %v6306, %v6308
        %v6310 = vrot.slane %v6309, 4
        %v6311 = vadd.f32 %v6309, %v6310
        %v6312 = vrot.slane %v6311, 2
        %v6313 = vadd.f32 %v6311, %v6312
        %v6314 = vrot.slane %v6313, 1
        %v6315 = vadd.f32 %v6313, %v6314
        %v6316 = vmul.f32 %v6315, 0.00390625
        %v6317 = vmul.f32 %v6165, %v6165
        %v6318 = vmul.f32 %v6166, %v6166
        %v6319 = vmul.f32 %v6167, %v6167
        %v6320 = vmul.f32 %v6168, %v6168
        %v6321 = vmul.f32 %v6169, %v6169
        %v6322 = vmul.f32 %v6170, %v6170
        %v6323 = vmul.f32 %v6171, %v6171
        %v6324 = vmul.f32 %v6172, %v6172
        %v6325 = vmul.f32 %v6173, %v6173
        %v6326 = vmul.f32 %v6174, %v6174
        %v6327 = vmul.f32 %v6175, %v6175
        %v6328 = vmul.f32 %v6176, %v6176
        %v6329 = vmul.f32 %v6177, %v6177
        %v6330 = vmul.f32 %v6178, %v6178
        %v6331 = vmul.f32 %v6179, %v6179
        %v6332 = vmul.f32 %v6180, %v6180
        %v6333 = vmul.f32 %v6181, %v6181
        %v6334 = vmul.f32 %v6182, %v6182
        %v6335 = vmul.f32 %v6183, %v6183
        %v6336 = vmul.f32 %v6184, %v6184
        %v6337 = vmul.f32 %v6185, %v6185
        %v6338 = vmul.f32 %v6186, %v6186
        %v6339 = vmul.f32 %v6187, %v6187
        %v6340 = vmul.f32 %v6188, %v6188
        %v6341 = vmul.f32 %v6189, %v6189
        %v6342 = vmul.f32 %v6190, %v6190
        %v6343 = vmul.f32 %v6191, %v6191
        %v6344 = vmul.f32 %v6192, %v6192
        %v6345 = vmul.f32 %v6193, %v6193
        %v6346 = vmul.f32 %v6194, %v6194
        %v6347 = vmul.f32 %v6195, %v6195
        %v6348 = vmul.f32 %v6196, %v6196
        %v6349 = vmul.f32 %v6197, %v6197
        %v6350 = vmul.f32 %v6198, %v6198
        %v6351 = vmul.f32 %v6199, %v6199
        %v6352 = vmul.f32 %v6200, %v6200
        %v6353 = vmul.f32 %v6201, %v6201
        %v6354 = vmul.f32 %v6202, %v6202
        %v6355 = vmul.f32 %v6203, %v6203
        %v6356 = vmul.f32 %v6204, %v6204
        %v6357 = vmul.f32 %v6205, %v6205
        %v6358 = vmul.f32 %v6206, %v6206
        %v6359 = vmul.f32 %v6207, %v6207
        %v6360 = vmul.f32 %v6208, %v6208
        %v6361 = vmul.f32 %v6209, %v6209
        %v6362 = vmul.f32 %v6210, %v6210
        %v6363 = vmul.f32 %v6211, %v6211
        %v6364 = vmul.f32 %v6212, %v6212
        %v6365 = vsel %vm6213, %v6317, 0.0
        %v6366 = vsel %vm6213, %v6318, 0.0
        %v6367 = vadd.f32 %v6365, %v6366
        %v6368 = vsel %vm6213, %v6319, 0.0
        %v6369 = vadd.f32 %v6367, %v6368
        %v6370 = vsel %vm6213, %v6320, 0.0
        %v6371 = vadd.f32 %v6369, %v6370
        %v6372 = vsel %vm6213, %v6321, 0.0
        %v6373 = vadd.f32 %v6371, %v6372
        %v6374 = vsel %vm6213, %v6322, 0.0
        %v6375 = vadd.f32 %v6373, %v6374
        %v6376 = vsel %vm6213, %v6323, 0.0
        %v6377 = vadd.f32 %v6375, %v6376
        %v6378 = vsel %vm6213, %v6324, 0.0
        %v6379 = vadd.f32 %v6377, %v6378
        %v6380 = vsel %vm6213, %v6325, 0.0
        %v6381 = vadd.f32 %v6379, %v6380
        %v6382 = vsel %vm6213, %v6326, 0.0
        %v6383 = vadd.f32 %v6381, %v6382
        %v6384 = vsel %vm6213, %v6327, 0.0
        %v6385 = vadd.f32 %v6383, %v6384
        %v6386 = vsel %vm6213, %v6328, 0.0
        %v6387 = vadd.f32 %v6385, %v6386
        %v6388 = vsel %vm6213, %v6329, 0.0
        %v6389 = vadd.f32 %v6387, %v6388
        %v6390 = vsel %vm6213, %v6330, 0.0
        %v6391 = vadd.f32 %v6389, %v6390
        %v6392 = vsel %vm6213, %v6331, 0.0
        %v6393 = vadd.f32 %v6391, %v6392
        %v6394 = vsel %vm6213, %v6332, 0.0
        %v6395 = vadd.f32 %v6393, %v6394
        %v6396 = vsel %vm6213, %v6333, 0.0
        %v6397 = vadd.f32 %v6395, %v6396
        %v6398 = vsel %vm6213, %v6334, 0.0
        %v6399 = vadd.f32 %v6397, %v6398
        %v6400 = vsel %vm6213, %v6335, 0.0
        %v6401 = vadd.f32 %v6399, %v6400
        %v6402 = vsel %vm6213, %v6336, 0.0
        %v6403 = vadd.f32 %v6401, %v6402
        %v6404 = vsel %vm6213, %v6337, 0.0
        %v6405 = vadd.f32 %v6403, %v6404
        %v6406 = vsel %vm6213, %v6338, 0.0
        %v6407 = vadd.f32 %v6405, %v6406
        %v6408 = vsel %vm6213, %v6339, 0.0
        %v6409 = vadd.f32 %v6407, %v6408
        %v6410 = vsel %vm6213, %v6340, 0.0
        %v6411 = vadd.f32 %v6409, %v6410
        %v6412 = vsel %vm6213, %v6341, 0.0
        %v6413 = vadd.f32 %v6411, %v6412
        %v6414 = vsel %vm6213, %v6342, 0.0
        %v6415 = vadd.f32 %v6413, %v6414
        %v6416 = vsel %vm6213, %v6343, 0.0
        %v6417 = vadd.f32 %v6415, %v6416
        %v6418 = vsel %vm6213, %v6344, 0.0
        %v6419 = vadd.f32 %v6417, %v6418
        %v6420 = vsel %vm6213, %v6345, 0.0
        %v6421 = vadd.f32 %v6419, %v6420
        %v6422 = vsel %vm6213, %v6346, 0.0
        %v6423 = vadd.f32 %v6421, %v6422
        %v6424 = vsel %vm6213, %v6347, 0.0
        %v6425 = vadd.f32 %v6423, %v6424
        %v6426 = vsel %vm6213, %v6348, 0.0
        %v6427 = vadd.f32 %v6425, %v6426
        %v6428 = vsel %vm6213, %v6349, 0.0
        %v6429 = vadd.f32 %v6427, %v6428
        %v6430 = vsel %vm6213, %v6350, 0.0
        %v6431 = vadd.f32 %v6429, %v6430
        %v6432 = vsel %vm6213, %v6351, 0.0
        %v6433 = vadd.f32 %v6431, %v6432
        %v6434 = vsel %vm6213, %v6352, 0.0
        %v6435 = vadd.f32 %v6433, %v6434
        %v6436 = vsel %vm6213, %v6353, 0.0
        %v6437 = vadd.f32 %v6435, %v6436
        %v6438 = vsel %vm6213, %v6354, 0.0
        %v6439 = vadd.f32 %v6437, %v6438
        %v6440 = vsel %vm6213, %v6355, 0.0
        %v6441 = vadd.f32 %v6439, %v6440
        %v6442 = vsel %vm6213, %v6356, 0.0
        %v6443 = vadd.f32 %v6441, %v6442
        %v6444 = vsel %vm6213, %v6357, 0.0
        %v6445 = vadd.f32 %v6443, %v6444
        %v6446 = vsel %vm6213, %v6358, 0.0
        %v6447 = vadd.f32 %v6445, %v6446
        %v6448 = vsel %vm6213, %v6359, 0.0
        %v6449 = vadd.f32 %v6447, %v6448
        %v6450 = vsel %vm6213, %v6360, 0.0
        %v6451 = vadd.f32 %v6449, %v6450
        %v6452 = vsel %vm6213, %v6361, 0.0
        %v6453 = vadd.f32 %v6451, %v6452
        %v6454 = vsel %vm6213, %v6362, 0.0
        %v6455 = vadd.f32 %v6453, %v6454
        %v6456 = vsel %vm6213, %v6363, 0.0
        %v6457 = vadd.f32 %v6455, %v6456
        %v6458 = vsel %vm6307, %v6364, 0.0
        %v6459 = vadd.f32 %v6457, %v6458
        %v6460 = vrot.slane %v6459, 4
        %v6461 = vadd.f32 %v6459, %v6460
        %v6462 = vrot.slane %v6461, 2
        %v6463 = vadd.f32 %v6461, %v6462
        %v6464 = vrot.slane %v6463, 1
        %v6465 = vadd.f32 %v6463, %v6464
        %v6466 = vmul.f32 %v6465, 0.00390625
        %v6467 = vld [vmem:[#allocation22] sm:$0xff]
        %v6468 = vld [vmem:[#allocation22 + $0x8] sm:$0xff]
        %v6469 = vld [vmem:[#allocation22 + $0x10] sm:$0xff]
        %v6470 = vld [vmem:[#allocation22 + $0x18] sm:$0xff]
        %v6471 = vld [vmem:[#allocation22 + $0x20] sm:$0xff]
        %v6472 = vld [vmem:[#allocation22 + $0x28] sm:$0xff]
        %v6473 = vld [vmem:[#allocation22 + $0x30] sm:$0xff]
        %v6474 = vld [vmem:[#allocation22 + $0x38] sm:$0xff]
        %v6476 = vsel %vm6213, %v6316, 0
        %6478 = vmatprep.subr.mxu0 0.0
        %6479 = vmatpush1.msra.mxu0 %v6467
        %6480 = vmatprep.subr.mxu0 0.0
        %6481 = vmatpush1.msra.mxu0 %v6468
        %6482 = vmatprep.subr.mxu0 0.0
        %6483 = vmatpush1.msra.mxu0 %v6469
        %6484 = vmatprep.subr.mxu0 0.0
        %6485 = vmatpush1.msra.mxu0 %v6470
        %6486 = vmatprep.subr.mxu0 0.0
        %6487 = vmatpush1.msra.mxu0 %v6471
        %6488 = vmatprep.subr.mxu0 0.0
        %6489 = vmatpush1.msra.mxu0 %v6472
        %6490 = vmatprep.subr.mxu0 0.0
        %6491 = vmatpush1.msra.mxu0 %v6473
        %6492 = vmatprep.subr.mxu0 0.0
        %6493 = vmatpush1.msra.mxu0 %v6474
        %6494 = vmatprep.subr.mxu0 0.0
        %6495 = vmatpush1.msra.mxu0 0.0
        %6496 = vmatprep.subr.mxu0 0.0
        %6497 = vmatpush1.msra.mxu0 0.0
        %6498 = vmatprep.subr.mxu0 0.0
        %6499 = vmatpush1.msra.mxu0 0.0
        %6500 = vmatprep.subr.mxu0 0.0
        %6501 = vmatpush1.msra.mxu0 0.0
        %6502 = vmatprep.subr.mxu0 0.0
        %6503 = vmatpush1.msra.mxu0 0.0
        %6504 = vmatprep.subr.mxu0 0.0
        %6505 = vmatpush1.msra.mxu0 0.0
        %6506 = vmatprep.subr.mxu0 0.0
        %6507 = vmatpush1.msra.mxu0 0.0
        %6508 = vmatprep.subr.mxu0 0.0
        %6509 = vmatpush1.msra.mxu0 0.0
        %6510 = vmatprep.subr.mxu0 0.0
        %6511 = vmatpush1.msra.mxu0 0.0
        %6512 = vmatprep.subr.mxu0 0.0
        %6513 = vmatpush1.msra.mxu0 0.0
        %6514 = vmatprep.subr.mxu0 0.0
        %6515 = vmatpush1.msra.mxu0 0.0
        %6516 = vmatprep.subr.mxu0 0.0
        %6517 = vmatpush1.msra.mxu0 0.0
        %6518 = vmatprep.subr.mxu0 0.0
        %6519 = vmatpush1.msra.mxu0 0.0
        %6520 = vmatprep.subr.mxu0 0.0
        %6521 = vmatpush1.msra.mxu0 0.0
        %6522 = vmatprep.subr.mxu0 0.0
        %6523 = vmatpush1.msra.mxu0 0.0
        %6524 = vmatprep.subr.mxu0 0.0
        %6525 = vmatpush1.msra.mxu0 0.0
        %6526 = vmatprep.subr.mxu0 0.0
        %6527 = vmatpush1.msra.mxu0 0.0
        %6528 = vmatprep.subr.mxu0 0.0
        %6529 = vmatpush1.msra.mxu0 0.0
        %6530 = vmatprep.subr.mxu0 0.0
        %6531 = vmatpush1.msra.mxu0 0.0
        %6532 = vmatprep.subr.mxu0 0.0
        %6533 = vmatpush1.msra.mxu0 0.0
        %6534 = vmatprep.subr.mxu0 0.0
        %6535 = vmatpush1.msra.mxu0 0.0
        %6536 = vmatprep.subr.mxu0 0.0
        %6537 = vmatpush1.msra.mxu0 0.0
        %6538 = vmatprep.subr.mxu0 0.0
        %6539 = vmatpush1.msra.mxu0 0.0
        %6540 = vmatprep.subr.mxu0 0.0
        %6541 = vmatpush1.msra.mxu0 0.0
        %6542 = vmatprep.mubr.f32.mxu0 0.0
        %6543 = vmatmul.mubr.f32.gmra.mrb[0].mxu0 %v6476
        %v6544 = vpop.f32.mrb[0].mxu0
        %v6545 = vadd.f32 0.0, %v6544
        %v6546 = vpop.f32.mrb[0].mxu0
        %6547 = vdwg.mxu0
        %v6549 = vsel %vm6213, %v6466, 0
        %6551 = vmatprep.subr.mxu0 0.0
        %6552 = vmatpush1.msra.mxu0 %v6467
        %6553 = vmatprep.subr.mxu0 0.0
        %6554 = vmatpush1.msra.mxu0 %v6468
        %6555 = vmatprep.subr.mxu0 0.0
        %6556 = vmatpush1.msra.mxu0 %v6469
        %6557 = vmatprep.subr.mxu0 0.0
        %6558 = vmatpush1.msra.mxu0 %v6470
        %6559 = vmatprep.subr.mxu0 0.0
        %6560 = vmatpush1.msra.mxu0 %v6471
        %6561 = vmatprep.subr.mxu0 0.0
        %6562 = vmatpush1.msra.mxu0 %v6472
        %6563 = vmatprep.subr.mxu0 0.0
        %6564 = vmatpush1.msra.mxu0 %v6473
        %6565 = vmatprep.subr.mxu0 0.0
        %6566 = vmatpush1.msra.mxu0 %v6474
        %6567 = vmatprep.subr.mxu0 0.0
        %6568 = vmatpush1.msra.mxu0 0.0
        %6569 = vmatprep.subr.mxu0 0.0
        %6570 = vmatpush1.msra.mxu0 0.0
        %6571 = vmatprep.subr.mxu0 0.0
        %6572 = vmatpush1.msra.mxu0 0.0
        %6573 = vmatprep.subr.mxu0 0.0
        %6574 = vmatpush1.msra.mxu0 0.0
        %6575 = vmatprep.subr.mxu0 0.0
        %6576 = vmatpush1.msra.mxu0 0.0
        %6577 = vmatprep.subr.mxu0 0.0
        %6578 = vmatpush1.msra.mxu0 0.0
        %6579 = vmatprep.subr.mxu0 0.0
        %6580 = vmatpush1.msra.mxu0 0.0
        %6581 = vmatprep.subr.mxu0 0.0
        %6582 = vmatpush1.msra.mxu0 0.0
        %6583 = vmatprep.subr.mxu0 0.0
        %6584 = vmatpush1.msra.mxu0 0.0
        %6585 = vmatprep.subr.mxu0 0.0
        %6586 = vmatpush1.msra.mxu0 0.0
        %6587 = vmatprep.subr.mxu0 0.0
        %6588 = vmatpush1.msra.mxu0 0.0
        %6589 = vmatprep.subr.mxu0 0.0
        %6590 = vmatpush1.msra.mxu0 0.0
        %6591 = vmatprep.subr.mxu0 0.0
        %6592 = vmatpush1.msra.mxu0 0.0
        %6593 = vmatprep.subr.mxu0 0.0
        %6594 = vmatpush1.msra.mxu0 0.0
        %6595 = vmatprep.subr.mxu0 0.0
        %6596 = vmatpush1.msra.mxu0 0.0
        %6597 = vmatprep.subr.mxu0 0.0
        %6598 = vmatpush1.msra.mxu0 0.0
        %6599 = vmatprep.subr.mxu0 0.0
        %6600 = vmatpush1.msra.mxu0 0.0
        %6601 = vmatprep.subr.mxu0 0.0
        %6602 = vmatpush1.msra.mxu0 0.0
        %6603 = vmatprep.subr.mxu0 0.0
        %6604 = vmatpush1.msra.mxu0 0.0
        %6605 = vmatprep.subr.mxu0 0.0
        %6606 = vmatpush1.msra.mxu0 0.0
        %6607 = vmatprep.subr.mxu0 0.0
        %6608 = vmatpush1.msra.mxu0 0.0
        %6609 = vmatprep.subr.mxu0 0.0
        %6610 = vmatpush1.msra.mxu0 0.0
        %6611 = vmatprep.subr.mxu0 0.0
        %6612 = vmatpush1.msra.mxu0 0.0
        %6613 = vmatprep.subr.mxu0 0.0
        %6614 = vmatpush1.msra.mxu0 0.0
        %6615 = vmatprep.mubr.f32.mxu0 0.0
        %6616 = vmatmul.mubr.f32.gmra.mrb[0].mxu0 %v6549
        %v6617 = vpop.f32.mrb[0].mxu0
        %v6618 = vadd.f32 0.0, %v6617
        %v6619 = vpop.f32.mrb[0].mxu0
        %6620 = vdwg.mxu0
        %v6621 = vmul.f32 %v6545, %v6545
        %v6622 = vsub.f32 %v6618, %v6621
        %v6623 = vmax.f32 %v6622, 0.0
        %v6624 = vadd.f32 %v6623, 1e-06
        %v6625 = vrsqrt.pop %v6624
        %v6626 = vlaneseq
        %v6627 = vshrl.u32 %v6626, 7
        %v6628 = vsub.s32 0, %v6627
        %v6629 = vrot.slane %v6545, %v6628
        %v6630 = vsub.f32 %v5829, %v6629
        %v6631 = vsub.f32 %v5830, %v6629
        %v6632 = vsub.f32 %v5831, %v6629
        %v6633 = vsub.f32 %v5832, %v6629
        %v6634 = vsub.f32 %v5833, %v6629
        %v6635 = vsub.f32 %v5834, %v6629
        %v6636 = vsub.f32 %v5835, %v6629
        %v6637 = vsub.f32 %v5836, %v6629
        %v6638 = vsub.f32 %v5837, %v6629
        %v6639 = vsub.f32 %v5838, %v6629
        %v6640 = vsub.f32 %v5839, %v6629
        %v6641 = vsub.f32 %v5840, %v6629
        %v6642 = vsub.f32 %v5841, %v6629
        %v6643 = vsub.f32 %v5842, %v6629
        %v6644 = vsub.f32 %v5843, %v6629
        %v6645 = vsub.f32 %v5844, %v6629
        %v6646 = vsub.f32 %v5845, %v6629
        %v6647 = vsub.f32 %v5846, %v6629
        %v6648 = vsub.f32 %v5847, %v6629
        %v6649 = vsub.f32 %v5848, %v6629
        %v6650 = vsub.f32 %v5849, %v6629
        %v6651 = vsub.f32 %v5850, %v6629
        %v6652 = vsub.f32 %v5851, %v6629
        %v6653 = vsub.f32 %v5852, %v6629
        %v6654 = vsub.f32 %v5853, %v6629
        %v6655 = vsub.f32 %v5854, %v6629
        %v6656 = vsub.f32 %v5855, %v6629
        %v6657 = vsub.f32 %v5856, %v6629
        %v6658 = vsub.f32 %v5857, %v6629
        %v6659 = vsub.f32 %v5858, %v6629
        %v6660 = vsub.f32 %v5859, %v6629
        %v6661 = vsub.f32 %v5860, %v6629
        %v6662 = vsub.f32 %v5861, %v6629
        %v6663 = vsub.f32 %v5862, %v6629
        %v6664 = vsub.f32 %v5863, %v6629
        %v6665 = vsub.f32 %v5864, %v6629
        %v6666 = vsub.f32 %v5865, %v6629
        %v6667 = vsub.f32 %v5866, %v6629
        %v6668 = vsub.f32 %v5867, %v6629
        %v6669 = vsub.f32 %v5868, %v6629
        %v6670 = vsub.f32 %v5869, %v6629
        %v6671 = vsub.f32 %v5870, %v6629
        %v6672 = vsub.f32 %v5871, %v6629
        %v6673 = vsub.f32 %v5872, %v6629
        %v6674 = vsub.f32 %v5873, %v6629
        %v6675 = vsub.f32 %v5874, %v6629
        %v6676 = vsub.f32 %v5875, %v6629
        %v6677 = vsub.f32 %v5876, %v6629
        %v6678 = vld [vmem:[#allocation16] sm:$0x1]
        %v6679 = vmul.f32 %v6625, %v6678
        %v6680 = vlaneseq
        %v6681 = vshrl.u32 %v6680, 7
        %v6682 = vsub.s32 0, %v6681
        %v6683 = vrot.slane %v6679, %v6682
        %v6684 = vmul.f32 %v6630, %v6683
        %v6685 = vmul.f32 %v6631, %v6683
        %v6686 = vmul.f32 %v6632, %v6683
        %v6687 = vmul.f32 %v6633, %v6683
        %v6688 = vmul.f32 %v6634, %v6683
        %v6689 = vmul.f32 %v6635, %v6683
        %v6690 = vmul.f32 %v6636, %v6683
        %v6691 = vmul.f32 %v6637, %v6683
        %v6692 = vmul.f32 %v6638, %v6683
        %v6693 = vmul.f32 %v6639, %v6683
        %v6694 = vmul.f32 %v6640, %v6683
        %v6695 = vmul.f32 %v6641, %v6683
        %v6696 = vmul.f32 %v6642, %v6683
        %v6697 = vmul.f32 %v6643, %v6683
        %v6698 = vmul.f32 %v6644, %v6683
        %v6699 = vmul.f32 %v6645, %v6683
        %v6700 = vmul.f32 %v6646, %v6683
        %v6701 = vmul.f32 %v6647, %v6683
        %v6702 = vmul.f32 %v6648, %v6683
        %v6703 = vmul.f32 %v6649, %v6683
        %v6704 = vmul.f32 %v6650, %v6683
        %v6705 = vmul.f32 %v6651, %v6683
        %v6706 = vmul.f32 %v6652, %v6683
        %v6707 = vmul.f32 %v6653, %v6683
        %v6708 = vmul.f32 %v6654, %v6683
        %v6709 = vmul.f32 %v6655, %v6683
        %v6710 = vmul.f32 %v6656, %v6683
        %v6711 = vmul.f32 %v6657, %v6683
        %v6712 = vmul.f32 %v6658, %v6683
        %v6713 = vmul.f32 %v6659, %v6683
        %v6714 = vmul.f32 %v6660, %v6683
        %v6715 = vmul.f32 %v6661, %v6683
        %v6716 = vmul.f32 %v6662, %v6683
        %v6717 = vmul.f32 %v6663, %v6683
        %v6718 = vmul.f32 %v6664, %v6683
        %v6719 = vmul.f32 %v6665, %v6683
        %v6720 = vmul.f32 %v6666, %v6683
        %v6721 = vmul.f32 %v6667, %v6683
        %v6722 = vmul.f32 %v6668, %v6683
        %v6723 = vmul.f32 %v6669, %v6683
        %v6724 = vmul.f32 %v6670, %v6683
        %v6725 = vmul.f32 %v6671, %v6683
        %v6726 = vmul.f32 %v6672, %v6683
        %v6727 = vmul.f32 %v6673, %v6683
        %v6728 = vmul.f32 %v6674, %v6683
        %v6729 = vmul.f32 %v6675, %v6683
        %v6730 = vmul.f32 %v6676, %v6683
        %v6731 = vmul.f32 %v6677, %v6683
        %v6732 = vld [vmem:[#allocation18] sm:$0x1]
        %v6734 = vlaneseq
        %v6735 = vshrl.u32 %v6734, 7
        %v6736 = vsub.s32 0, %v6735
        %v6737 = vrot.slane %v6732, %v6736
        %v6739 = vadd.f32 %v6684, %v6737
        %v6740 = vadd.f32 %v6685, %v6737
        %v6741 = vadd.f32 %v6686, %v6737
        %v6742 = vadd.f32 %v6687, %v6737
        %v6743 = vadd.f32 %v6688, %v6737
        %v6744 = vadd.f32 %v6689, %v6737
        %v6745 = vadd.f32 %v6690, %v6737
        %v6746 = vadd.f32 %v6691, %v6737
        %v6747 = vadd.f32 %v6692, %v6737
        %v6748 = vadd.f32 %v6693, %v6737
        %v6749 = vadd.f32 %v6694, %v6737
        %v6750 = vadd.f32 %v6695, %v6737
        %v6751 = vadd.f32 %v6696, %v6737
        %v6752 = vadd.f32 %v6697, %v6737
        %v6753 = vadd.f32 %v6698, %v6737
        %v6754 = vadd.f32 %v6699, %v6737
        %v6755 = vadd.f32 %v6700, %v6737
        %v6756 = vadd.f32 %v6701, %v6737
        %v6757 = vadd.f32 %v6702, %v6737
        %v6758 = vadd.f32 %v6703, %v6737
        %v6759 = vadd.f32 %v6704, %v6737
        %v6760 = vadd.f32 %v6705, %v6737
        %v6761 = vadd.f32 %v6706, %v6737
        %v6762 = vadd.f32 %v6707, %v6737
        %v6763 = vadd.f32 %v6708, %v6737
        %v6764 = vadd.f32 %v6709, %v6737
        %v6765 = vadd.f32 %v6710, %v6737
        %v6766 = vadd.f32 %v6711, %v6737
        %v6767 = vadd.f32 %v6712, %v6737
        %v6768 = vadd.f32 %v6713, %v6737
        %v6769 = vadd.f32 %v6714, %v6737
        %v6770 = vadd.f32 %v6715, %v6737
        %v6771 = vadd.f32 %v6716, %v6737
        %v6772 = vadd.f32 %v6717, %v6737
        %v6773 = vadd.f32 %v6718, %v6737
        %v6774 = vadd.f32 %v6719, %v6737
        %v6775 = vadd.f32 %v6720, %v6737
        %v6776 = vadd.f32 %v6721, %v6737
        %v6777 = vadd.f32 %v6722, %v6737
        %v6778 = vadd.f32 %v6723, %v6737
        %v6779 = vadd.f32 %v6724, %v6737
        %v6780 = vadd.f32 %v6725, %v6737
        %v6781 = vadd.f32 %v6726, %v6737
        %v6782 = vadd.f32 %v6727, %v6737
        %v6783 = vadd.f32 %v6728, %v6737
        %v6784 = vadd.f32 %v6729, %v6737
        %v6785 = vadd.f32 %v6730, %v6737
        %v6786 = vadd.f32 %v6731, %v6737
        %v6787 = vxor.u32 %v6739, 2147483648
        %v6788 = vxor.u32 %v6740, 2147483648
        %v6789 = vxor.u32 %v6741, 2147483648
        %v6790 = vxor.u32 %v6742, 2147483648
        %v6791 = vxor.u32 %v6743, 2147483648
        %v6792 = vxor.u32 %v6744, 2147483648
        %v6793 = vxor.u32 %v6745, 2147483648
        %v6794 = vxor.u32 %v6746, 2147483648
        %v6795 = vxor.u32 %v6747, 2147483648
        %v6796 = vxor.u32 %v6748, 2147483648
        %v6797 = vxor.u32 %v6749, 2147483648
        %v6798 = vxor.u32 %v6750, 2147483648
        %v6799 = vxor.u32 %v6751, 2147483648
        %v6800 = vxor.u32 %v6752, 2147483648
        %v6801 = vxor.u32 %v6753, 2147483648
        %v6802 = vxor.u32 %v6754, 2147483648
        %v6803 = vxor.u32 %v6755, 2147483648
        %v6804 = vxor.u32 %v6756, 2147483648
        %v6805 = vxor.u32 %v6757, 2147483648
        %v6806 = vxor.u32 %v6758, 2147483648
        %v6807 = vxor.u32 %v6759, 2147483648
        %v6808 = vxor.u32 %v6760, 2147483648
        %v6809 = vxor.u32 %v6761, 2147483648
        %v6810 = vxor.u32 %v6762, 2147483648
        %v6811 = vxor.u32 %v6763, 2147483648
        %v6812 = vxor.u32 %v6764, 2147483648
        %v6813 = vxor.u32 %v6765, 2147483648
        %v6814 = vxor.u32 %v6766, 2147483648
        %v6815 = vxor.u32 %v6767, 2147483648
        %v6816 = vxor.u32 %v6768, 2147483648
        %v6817 = vxor.u32 %v6769, 2147483648
        %v6818 = vxor.u32 %v6770, 2147483648
        %v6819 = vxor.u32 %v6771, 2147483648
        %v6820 = vxor.u32 %v6772, 2147483648
        %v6821 = vxor.u32 %v6773, 2147483648
        %v6822 = vxor.u32 %v6774, 2147483648
        %v6823 = vxor.u32 %v6775, 2147483648
        %v6824 = vxor.u32 %v6776, 2147483648
        %v6825 = vxor.u32 %v6777, 2147483648
        %v6826 = vxor.u32 %v6778, 2147483648
        %v6827 = vxor.u32 %v6779, 2147483648
        %v6828 = vxor.u32 %v6780, 2147483648
        %v6829 = vxor.u32 %v6781, 2147483648
        %v6830 = vxor.u32 %v6782, 2147483648
        %v6831 = vxor.u32 %v6783, 2147483648
        %v6832 = vxor.u32 %v6784, 2147483648
        %v6833 = vxor.u32 %v6785, 2147483648
        %v6834 = vxor.u32 %v6786, 2147483648
        %v6835 = vmul.f32 %v6787, 1.442695
        %v6836 = vpow.pop %v6835
        %v6837 = vmul.f32 %v6788, 1.442695
        %v6838 = vpow.pop %v6837
        %v6839 = vmul.f32 %v6789, 1.442695
        %v6840 = vpow.pop %v6839
        %v6841 = vmul.f32 %v6790, 1.442695
        %v6842 = vpow.pop %v6841
        %v6843 = vmul.f32 %v6791, 1.442695
        %v6844 = vpow.pop %v6843
        %v6845 = vmul.f32 %v6792, 1.442695
        %v6846 = vpow.pop %v6845
        %v6847 = vmul.f32 %v6793, 1.442695
        %v6848 = vpow.pop %v6847
        %v6849 = vmul.f32 %v6794, 1.442695
        %v6850 = vpow.pop %v6849
        %v6851 = vmul.f32 %v6795, 1.442695
        %v6852 = vpow.pop %v6851
        %v6853 = vmul.f32 %v6796, 1.442695
        %v6854 = vpow.pop %v6853
        %v6855 = vmul.f32 %v6797, 1.442695
        %v6856 = vpow.pop %v6855
        %v6857 = vmul.f32 %v6798, 1.442695
        %v6858 = vpow.pop %v6857
        %v6859 = vmul.f32 %v6799, 1.442695
        %v6860 = vpow.pop %v6859
        %v6861 = vmul.f32 %v6800, 1.442695
        %v6862 = vpow.pop %v6861
        %v6863 = vmul.f32 %v6801, 1.442695
        %v6864 = vpow.pop %v6863
        %v6865 = vmul.f32 %v6802, 1.442695
        %v6866 = vpow.pop %v6865
        %v6867 = vmul.f32 %v6803, 1.442695
        %v6868 = vpow.pop %v6867
        %v6869 = vmul.f32 %v6804, 1.442695
        %v6870 = vpow.pop %v6869
        %v6871 = vmul.f32 %v6805, 1.442695
        %v6872 = vpow.pop %v6871
        %v6873 = vmul.f32 %v6806, 1.442695
        %v6874 = vpow.pop %v6873
        %v6875 = vmul.f32 %v6807, 1.442695
        %v6876 = vpow.pop %v6875
        %v6877 = vmul.f32 %v6808, 1.442695
        %v6878 = vpow.pop %v6877
        %v6879 = vmul.f32 %v6809, 1.442695
        %v6880 = vpow.pop %v6879
        %v6881 = vmul.f32 %v6810, 1.442695
        %v6882 = vpow.pop %v6881
        %v6883 = vmul.f32 %v6811, 1.442695
        %v6884 = vpow.pop %v6883
        %v6885 = vmul.f32 %v6812, 1.442695
        %v6886 = vpow.pop %v6885
        %v6887 = vmul.f32 %v6813, 1.442695
        %v6888 = vpow.pop %v6887
        %v6889 = vmul.f32 %v6814, 1.442695
        %v6890 = vpow.pop %v6889
        %v6891 = vmul.f32 %v6815, 1.442695
        %v6892 = vpow.pop %v6891
        %v6893 = vmul.f32 %v6816, 1.442695
        %v6894 = vpow.pop %v6893
        %v6895 = vmul.f32 %v6817, 1.442695
        %v6896 = vpow.pop %v6895
        %v6897 = vmul.f32 %v6818, 1.442695
        %v6898 = vpow.pop %v6897
        %v6899 = vmul.f32 %v6819, 1.442695
        %v6900 = vpow.pop %v6899
        %v6901 = vmul.f32 %v6820, 1.442695
        %v6902 = vpow.pop %v6901
        %v6903 = vmul.f32 %v6821, 1.442695
        %v6904 = vpow.pop %v6903
        %v6905 = vmul.f32 %v6822, 1.442695
        %v6906 = vpow.pop %v6905
        %v6907 = vmul.f32 %v6823, 1.442695
        %v6908 = vpow.pop %v6907
        %v6909 = vmul.f32 %v6824, 1.442695
        %v6910 = vpow.pop %v6909
        %v6911 = vmul.f32 %v6825, 1.442695
        %v6912 = vpow.pop %v6911
        %v6913 = vmul.f32 %v6826, 1.442695
        %v6914 = vpow.pop %v6913
        %v6915 = vmul.f32 %v6827, 1.442695
        %v6916 = vpow.pop %v6915
        %v6917 = vmul.f32 %v6828, 1.442695
        %v6918 = vpow.pop %v6917
        %v6919 = vmul.f32 %v6829, 1.442695
        %v6920 = vpow.pop %v6919
        %v6921 = vmul.f32 %v6830, 1.442695
        %v6922 = vpow.pop %v6921
        %v6923 = vmul.f32 %v6831, 1.442695
        %v6924 = vpow.pop %v6923
        %v6925 = vmul.f32 %v6832, 1.442695
        %v6926 = vpow.pop %v6925
        %v6927 = vmul.f32 %v6833, 1.442695
        %v6928 = vpow.pop %v6927
        %v6929 = vmul.f32 %v6834, 1.442695
        %v6930 = vpow.pop %v6929
        %v6931 = vadd.f32 %v6836, 1.0
        %v6932 = vadd.f32 %v6838, 1.0
        %v6933 = vadd.f32 %v6840, 1.0
        %v6934 = vadd.f32 %v6842, 1.0
        %v6935 = vadd.f32 %v6844, 1.0
        %v6936 = vadd.f32 %v6846, 1.0
        %v6937 = vadd.f32 %v6848, 1.0
        %v6938 = vadd.f32 %v6850, 1.0
        %v6939 = vadd.f32 %v6852, 1.0
        %v6940 = vadd.f32 %v6854, 1.0
        %v6941 = vadd.f32 %v6856, 1.0
        %v6942 = vadd.f32 %v6858, 1.0
        %v6943 = vadd.f32 %v6860, 1.0
        %v6944 = vadd.f32 %v6862, 1.0
        %v6945 = vadd.f32 %v6864, 1.0
        %v6946 = vadd.f32 %v6866, 1.0
        %v6947 = vadd.f32 %v6868, 1.0
        %v6948 = vadd.f32 %v6870, 1.0
        %v6949 = vadd.f32 %v6872, 1.0
        %v6950 = vadd.f32 %v6874, 1.0
        %v6951 = vadd.f32 %v6876, 1.0
        %v6952 = vadd.f32 %v6878, 1.0
        %v6953 = vadd.f32 %v6880, 1.0
        %v6954 = vadd.f32 %v6882, 1.0
        %v6955 = vadd.f32 %v6884, 1.0
        %v6956 = vadd.f32 %v6886, 1.0
        %v6957 = vadd.f32 %v6888, 1.0
        %v6958 = vadd.f32 %v6890, 1.0
        %v6959 = vadd.f32 %v6892, 1.0
        %v6960 = vadd.f32 %v6894, 1.0
        %v6961 = vadd.f32 %v6896, 1.0
        %v6962 = vadd.f32 %v6898, 1.0
        %v6963 = vadd.f32 %v6900, 1.0
        %v6964 = vadd.f32 %v6902, 1.0
        %v6965 = vadd.f32 %v6904, 1.0
        %v6966 = vadd.f32 %v6906, 1.0
        %v6967 = vadd.f32 %v6908, 1.0
        %v6968 = vadd.f32 %v6910, 1.0
        %v6969 = vadd.f32 %v6912, 1.0
        %v6970 = vadd.f32 %v6914, 1.0
        %v6971 = vadd.f32 %v6916, 1.0
        %v6972 = vadd.f32 %v6918, 1.0
        %v6973 = vadd.f32 %v6920, 1.0
        %v6974 = vadd.f32 %v6922, 1.0
        %v6975 = vadd.f32 %v6924, 1.0
        %v6976 = vadd.f32 %v6926, 1.0
        %v6977 = vadd.f32 %v6928, 1.0
        %v6978 = vadd.f32 %v6930, 1.0
        %v6979 = vrcp.pop %v6931
        %v6980 = vmul.f32 1.0, %v6979
        %v6981 = vrcp.pop %v6932
        %v6982 = vmul.f32 1.0, %v6981
        %v6983 = vrcp.pop %v6933
        %v6984 = vmul.f32 1.0, %v6983
        %v6985 = vrcp.pop %v6934
        %v6986 = vmul.f32 1.0, %v6985
        %v6987 = vrcp.pop %v6935
        %v6988 = vmul.f32 1.0, %v6987
        %v6989 = vrcp.pop %v6936
        %v6990 = vmul.f32 1.0, %v6989
        %v6991 = vrcp.pop %v6937
        %v6992 = vmul.f32 1.0, %v6991
        %v6993 = vrcp.pop %v6938
        %v6994 = vmul.f32 1.0, %v6993
        %v6995 = vrcp.pop %v6939
        %v6996 = vmul.f32 1.0, %v6995
        %v6997 = vrcp.pop %v6940
        %v6998 = vmul.f32 1.0, %v6997
        %v6999 = vrcp.pop %v6941
        %v7000 = vmul.f32 1.0, %v6999
        %v7001 = vrcp.pop %v6942
        %v7002 = vmul.f32 1.0, %v7001
        %v7003 = vrcp.pop %v6943
        %v7004 = vmul.f32 1.0, %v7003
        %v7005 = vrcp.pop %v6944
        %v7006 = vmul.f32 1.0, %v7005
        %v7007 = vrcp.pop %v6945
        %v7008 = vmul.f32 1.0, %v7007
        %v7009 = vrcp.pop %v6946
        %v7010 = vmul.f32 1.0, %v7009
        %v7011 = vrcp.pop %v6947
        %v7012 = vmul.f32 1.0, %v7011
        %v7013 = vrcp.pop %v6948
        %v7014 = vmul.f32 1.0, %v7013
        %v7015 = vrcp.pop %v6949
        %v7016 = vmul.f32 1.0, %v7015
        %v7017 = vrcp.pop %v6950
        %v7018 = vmul.f32 1.0, %v7017
        %v7019 = vrcp.pop %v6951
        %v7020 = vmul.f32 1.0, %v7019
        %v7021 = vrcp.pop %v6952
        %v7022 = vmul.f32 1.0, %v7021
        %v7023 = vrcp.pop %v6953
        %v7024 = vmul.f32 1.0, %v7023
        %v7025 = vrcp.pop %v6954
        %v7026 = vmul.f32 1.0, %v7025
        %v7027 = vrcp.pop %v6955
        %v7028 = vmul.f32 1.0, %v7027
        %v7029 = vrcp.pop %v6956
        %v7030 = vmul.f32 1.0, %v7029
        %v7031 = vrcp.pop %v6957
        %v7032 = vmul.f32 1.0, %v7031
        %v7033 = vrcp.pop %v6958
        %v7034 = vmul.f32 1.0, %v7033
        %v7035 = vrcp.pop %v6959
        %v7036 = vmul.f32 1.0, %v7035
        %v7037 = vrcp.pop %v6960
        %v7038 = vmul.f32 1.0, %v7037
        %v7039 = vrcp.pop %v6961
        %v7040 = vmul.f32 1.0, %v7039
        %v7041 = vrcp.pop %v6962
        %v7042 = vmul.f32 1.0, %v7041
        %v7043 = vrcp.pop %v6963
        %v7044 = vmul.f32 1.0, %v7043
        %v7045 = vrcp.pop %v6964
        %v7046 = vmul.f32 1.0, %v7045
        %v7047 = vrcp.pop %v6965
        %v7048 = vmul.f32 1.0, %v7047
        %v7049 = vrcp.pop %v6966
        %v7050 = vmul.f32 1.0, %v7049
        %v7051 = vrcp.pop %v6967
        %v7052 = vmul.f32 1.0, %v7051
        %v7053 = vrcp.pop %v6968
        %v7054 = vmul.f32 1.0, %v7053
        %v7055 = vrcp.pop %v6969
        %v7056 = vmul.f32 1.0, %v7055
        %v7057 = vrcp.pop %v6970
        %v7058 = vmul.f32 1.0, %v7057
        %v7059 = vrcp.pop %v6971
        %v7060 = vmul.f32 1.0, %v7059
        %v7061 = vrcp.pop %v6972
        %v7062 = vmul.f32 1.0, %v7061
        %v7063 = vrcp.pop %v6973
        %v7064 = vmul.f32 1.0, %v7063
        %v7065 = vrcp.pop %v6974
        %v7066 = vmul.f32 1.0, %v7065
        %v7067 = vrcp.pop %v6975
        %v7068 = vmul.f32 1.0, %v7067
        %v7069 = vrcp.pop %v6976
        %v7070 = vmul.f32 1.0, %v7069
        %v7071 = vrcp.pop %v6977
        %v7072 = vmul.f32 1.0, %v7071
        %v7073 = vrcp.pop %v6978
        %v7074 = vmul.f32 1.0, %v7073
        %v7075 = vmul.f32 %v6739, %v6980
        %v7076 = vmul.f32 %v6740, %v6982
        %v7077 = vmul.f32 %v6741, %v6984
        %v7078 = vmul.f32 %v6742, %v6986
        %v7079 = vmul.f32 %v6743, %v6988
        %v7080 = vmul.f32 %v6744, %v6990
        %v7081 = vmul.f32 %v6745, %v6992
        %v7082 = vmul.f32 %v6746, %v6994
        %v7083 = vmul.f32 %v6747, %v6996
        %v7084 = vmul.f32 %v6748, %v6998
        %v7085 = vmul.f32 %v6749, %v7000
        %v7086 = vmul.f32 %v6750, %v7002
        %v7087 = vmul.f32 %v6751, %v7004
        %v7088 = vmul.f32 %v6752, %v7006
        %v7089 = vmul.f32 %v6753, %v7008
        %v7090 = vmul.f32 %v6754, %v7010
        %v7091 = vmul.f32 %v6755, %v7012
        %v7092 = vmul.f32 %v6756, %v7014
        %v7093 = vmul.f32 %v6757, %v7016
        %v7094 = vmul.f32 %v6758, %v7018
        %v7095 = vmul.f32 %v6759, %v7020
        %v7096 = vmul.f32 %v6760, %v7022
        %v7097 = vmul.f32 %v6761, %v7024
        %v7098 = vmul.f32 %v6762, %v7026
        %v7099 = vmul.f32 %v6763, %v7028
        %v7100 = vmul.f32 %v6764, %v7030
        %v7101 = vmul.f32 %v6765, %v7032
        %v7102 = vmul.f32 %v6766, %v7034
        %v7103 = vmul.f32 %v6767, %v7036
        %v7104 = vmul.f32 %v6768, %v7038
        %v7105 = vmul.f32 %v6769, %v7040
        %v7106 = vmul.f32 %v6770, %v7042
        %v7107 = vmul.f32 %v6771, %v7044
        %v7108 = vmul.f32 %v6772, %v7046
        %v7109 = vmul.f32 %v6773, %v7048
        %v7110 = vmul.f32 %v6774, %v7050
        %v7111 = vmul.f32 %v6775, %v7052
        %v7112 = vmul.f32 %v6776, %v7054
        %v7113 = vmul.f32 %v6777, %v7056
        %v7114 = vmul.f32 %v6778, %v7058
        %v7115 = vmul.f32 %v6779, %v7060
        %v7116 = vmul.f32 %v6780, %v7062
        %v7117 = vmul.f32 %v6781, %v7064
        %v7118 = vmul.f32 %v6782, %v7066
        %v7119 = vmul.f32 %v6783, %v7068
        %v7120 = vmul.f32 %v6784, %v7070
        %v7121 = vmul.f32 %v6785, %v7072
        %v7122 = vmul.f32 %v6786, %v7074
        %v7123 = vmul.f32 %v7075, %v5928
        %v7124 = vmul.f32 %v7076, %v5933
        %v7125 = vmul.f32 %v7077, %v5938
        %v7126 = vmul.f32 %v7078, %v5943
        %v7127 = vmul.f32 %v7079, %v5948
        %v7128 = vmul.f32 %v7080, %v5953
        %v7129 = vmul.f32 %v7081, %v5958
        %v7130 = vmul.f32 %v7082, %v5963
        %v7131 = vmul.f32 %v7083, %v5968
        %v7132 = vmul.f32 %v7084, %v5973
        %v7133 = vmul.f32 %v7085, %v5978
        %v7134 = vmul.f32 %v7086, %v5983
        %v7135 = vmul.f32 %v7087, %v5988
        %v7136 = vmul.f32 %v7088, %v5993
        %v7137 = vmul.f32 %v7089, %v5998
        %v7138 = vmul.f32 %v7090, %v6003
        %v7139 = vmul.f32 %v7091, %v6008
        %v7140 = vmul.f32 %v7092, %v6013
        %v7141 = vmul.f32 %v7093, %v6018
        %v7142 = vmul.f32 %v7094, %v6023
        %v7143 = vmul.f32 %v7095, %v6028
        %v7144 = vmul.f32 %v7096, %v6033
        %v7145 = vmul.f32 %v7097, %v6038
        %v7146 = vmul.f32 %v7098, %v6043
        %v7147 = vmul.f32 %v7099, %v6048
        %v7148 = vmul.f32 %v7100, %v6053
        %v7149 = vmul.f32 %v7101, %v6058
        %v7150 = vmul.f32 %v7102, %v6063
        %v7151 = vmul.f32 %v7103, %v6068
        %v7152 = vmul.f32 %v7104, %v6073
        %v7153 = vmul.f32 %v7105, %v6078
        %v7154 = vmul.f32 %v7106, %v6083
        %v7155 = vmul.f32 %v7107, %v6088
        %v7156 = vmul.f32 %v7108, %v6093
        %v7157 = vmul.f32 %v7109, %v6098
        %v7158 = vmul.f32 %v7110, %v6103
        %v7159 = vmul.f32 %v7111, %v6108
        %v7160 = vmul.f32 %v7112, %v6113
        %v7161 = vmul.f32 %v7113, %v6118
        %v7162 = vmul.f32 %v7114, %v6123
        %v7163 = vmul.f32 %v7115, %v6128
        %v7164 = vmul.f32 %v7116, %v6133
        %v7165 = vmul.f32 %v7117, %v6138
        %v7166 = vmul.f32 %v7118, %v6143
        %v7167 = vmul.f32 %v7119, %v6148
        %v7168 = vmul.f32 %v7120, %v6153
        %v7169 = vmul.f32 %v7121, %v6158
        %v7170 = vmul.f32 %v7122, %v6163
        %7171 = vst.msk [vmem:[#allocation3] sm:$0xff] %vm6213, %v7123
        %7172 = vst.msk [vmem:[#allocation3 + $0x8] sm:$0xff] %vm6213, %v7124
        %7173 = vst.msk [vmem:[#allocation3 + $0x10] sm:$0xff] %vm6213, %v7125
        %7174 = vst.msk [vmem:[#allocation3 + $0x18] sm:$0xff] %vm6213, %v7126
        %7175 = vst.msk [vmem:[#allocation3 + $0x20] sm:$0xff] %vm6213, %v7127
        %7176 = vst.msk [vmem:[#allocation3 + $0x28] sm:$0xff] %vm6213, %v7128
        %7177 = vst.msk [vmem:[#allocation3 + $0x30] sm:$0xff] %vm6213, %v7129
        %7178 = vst.msk [vmem:[#allocation3 + $0x38] sm:$0xff] %vm6213, %v7130
        %7179 = vst.msk [vmem:[#allocation3 + $0x40] sm:$0xff] %vm6213, %v7131
        %7180 = vst.msk [vmem:[#allocation3 + $0x48] sm:$0xff] %vm6213, %v7132
        %7181 = vst.msk [vmem:[#allocation3 + $0x50] sm:$0xff] %vm6213, %v7133
        %7182 = vst.msk [vmem:[#allocation3 + $0x58] sm:$0xff] %vm6213, %v7134
        %7183 = vst.msk [vmem:[#allocation3 + $0x60] sm:$0xff] %vm6213, %v7135
        %7184 = vst.msk [vmem:[#allocation3 + $0x68] sm:$0xff] %vm6213, %v7136
        %7185 = vst.msk [vmem:[#allocation3 + $0x70] sm:$0xff] %vm6213, %v7137
        %7186 = vst.msk [vmem:[#allocation3 + $0x78] sm:$0xff] %vm6213, %v7138
        %7187 = vst.msk [vmem:[#allocation3 + $0x80] sm:$0xff] %vm6213, %v7139
        %7188 = vst.msk [vmem:[#allocation3 + $0x88] sm:$0xff] %vm6213, %v7140
        %7189 = vst.msk [vmem:[#allocation3 + $0x90] sm:$0xff] %vm6213, %v7141
        %7190 = vst.msk [vmem:[#allocation3 + $0x98] sm:$0xff] %vm6213, %v7142
        %7191 = vst.msk [vmem:[#allocation3 + $0xa0] sm:$0xff] %vm6213, %v7143
        %7192 = vst.msk [vmem:[#allocation3 + $0xa8] sm:$0xff] %vm6213, %v7144
        %7193 = vst.msk [vmem:[#allocation3 + $0xb0] sm:$0xff] %vm6213, %v7145
        %7194 = vst.msk [vmem:[#allocation3 + $0xb8] sm:$0xff] %vm6213, %v7146
        %7195 = vst.msk [vmem:[#allocation3 + $0xc0] sm:$0xff] %vm6213, %v7147
        %7196 = vst.msk [vmem:[#allocation3 + $0xc8] sm:$0xff] %vm6213, %v7148
        %7197 = vst.msk [vmem:[#allocation3 + $0xd0] sm:$0xff] %vm6213, %v7149
        %7198 = vst.msk [vmem:[#allocation3 + $0xd8] sm:$0xff] %vm6213, %v7150
        %7199 = vst.msk [vmem:[#allocation3 + $0xe0] sm:$0xff] %vm6213, %v7151
        %7200 = vst.msk [vmem:[#allocation3 + $0xe8] sm:$0xff] %vm6213, %v7152
        %7201 = vst.msk [vmem:[#allocation3 + $0xf0] sm:$0xff] %vm6213, %v7153
        %7202 = vst.msk [vmem:[#allocation3 + $0xf8] sm:$0xff] %vm6213, %v7154
        %7203 = vst.msk [vmem:[#allocation3 + $0x100] sm:$0xff] %vm6213, %v7155
        %7204 = vst.msk [vmem:[#allocation3 + $0x108] sm:$0xff] %vm6213, %v7156
        %7205 = vst.msk [vmem:[#allocation3 + $0x110] sm:$0xff] %vm6213, %v7157
        %7206 = vst.msk [vmem:[#allocation3 + $0x118] sm:$0xff] %vm6213, %v7158
        %7207 = vst.msk [vmem:[#allocation3 + $0x120] sm:$0xff] %vm6213, %v7159
        %7208 = vst.msk [vmem:[#allocation3 + $0x128] sm:$0xff] %vm6213, %v7160
        %7209 = vst.msk [vmem:[#allocation3 + $0x130] sm:$0xff] %vm6213, %v7161
        %7210 = vst.msk [vmem:[#allocation3 + $0x138] sm:$0xff] %vm6213, %v7162
        %7211 = vst.msk [vmem:[#allocation3 + $0x140] sm:$0xff] %vm6213, %v7163
        %7212 = vst.msk [vmem:[#allocation3 + $0x148] sm:$0xff] %vm6213, %v7164
        %7213 = vst.msk [vmem:[#allocation3 + $0x150] sm:$0xff] %vm6213, %v7165
        %7214 = vst.msk [vmem:[#allocation3 + $0x158] sm:$0xff] %vm6213, %v7166
        %7215 = vst.msk [vmem:[#allocation3 + $0x160] sm:$0xff] %vm6213, %v7167
        %7216 = vst.msk [vmem:[#allocation3 + $0x168] sm:$0xff] %vm6213, %v7168
        %7217 = vst.msk [vmem:[#allocation3 + $0x170] sm:$0xff] %vm6213, %v7169
        %7218 = vst.msk [vmem:[#allocation3 + $0x178] sm:$0xf] %vm6307, %v7170
        %v7219 = vld [vmem:[#allocation3] sm:$0xff]
        %v7220 = vld [vmem:[#allocation3 + $0x8] sm:$0xff]
        %v7221 = vld [vmem:[#allocation3 + $0x10] sm:$0xff]
        %v7222 = vld [vmem:[#allocation3 + $0x18] sm:$0xff]
        %v7223 = vld [vmem:[#allocation3 + $0x20] sm:$0xff]
        %v7224 = vld [vmem:[#allocation3 + $0x28] sm:$0xff]
        %v7225 = vld [vmem:[#allocation3 + $0x30] sm:$0xff]
        %v7226 = vld [vmem:[#allocation3 + $0x38] sm:$0xff]
        %v7227 = vld [vmem:[#allocation3 + $0x40] sm:$0xff]
        %v7228 = vld [vmem:[#allocation3 + $0x48] sm:$0xff]
        %v7229 = vld [vmem:[#allocation3 + $0x50] sm:$0xff]
        %v7230 = vld [vmem:[#allocation3 + $0x58] sm:$0xff]
        %v7231 = vld [vmem:[#allocation3 + $0x60] sm:$0xff]
        %v7232 = vld [vmem:[#allocation3 + $0x68] sm:$0xff]
        %v7233 = vld [vmem:[#allocation3 + $0x70] sm:$0xff]
        %v7234 = vld [vmem:[#allocation3 + $0x78] sm:$0xff]
        %v7235 = vld [vmem:[#allocation3 + $0x80] sm:$0xff]
        %v7236 = vld [vmem:[#allocation3 + $0x88] sm:$0xff]
        %v7237 = vld [vmem:[#allocation3 + $0x90] sm:$0xff]
        %v7238 = vld [vmem:[#allocation3 + $0x98] sm:$0xff]
        %v7239 = vld [vmem:[#allocation3 + $0xa0] sm:$0xff]
        %v7240 = vld [vmem:[#allocation3 + $0xa8] sm:$0xff]
        %v7241 = vld [vmem:[#allocation3 + $0xb0] sm:$0xff]
        %v7242 = vld [vmem:[#allocation3 + $0xb8] sm:$0xff]
        %v7243 = vld [vmem:[#allocation3 + $0xc0] sm:$0xff]
        %v7244 = vld [vmem:[#allocation3 + $0xc8] sm:$0xff]
        %v7245 = vld [vmem:[#allocation3 + $0xd0] sm:$0xff]
        %v7246 = vld [vmem:[#allocation3 + $0xd8] sm:$0xff]
        %v7247 = vld [vmem:[#allocation3 + $0xe0] sm:$0xff]
        %v7248 = vld [vmem:[#allocation3 + $0xe8] sm:$0xff]
        %v7249 = vld [vmem:[#allocation3 + $0xf0] sm:$0xff]
        %v7250 = vld [vmem:[#allocation3 + $0xf8] sm:$0xff]
        %v7251 = vld [vmem:[#allocation3 + $0x100] sm:$0xff]
        %v7252 = vld [vmem:[#allocation3 + $0x108] sm:$0xff]
        %v7253 = vld [vmem:[#allocation3 + $0x110] sm:$0xff]
        %v7254 = vld [vmem:[#allocation3 + $0x118] sm:$0xff]
        %v7255 = vld [vmem:[#allocation3 + $0x120] sm:$0xff]
        %v7256 = vld [vmem:[#allocation3 + $0x128] sm:$0xff]
        %v7257 = vld [vmem:[#allocation3 + $0x130] sm:$0xff]
        %v7258 = vld [vmem:[#allocation3 + $0x138] sm:$0xff]
        %v7259 = vpack.c.bf16 %v7220, %v7219
        %v7260 = vpack.c.bf16 %v7222, %v7221
        %v7261 = vpack.c.bf16 %v7224, %v7223
        %v7262 = vpack.c.bf16 %v7226, %v7225
        %v7263 = vpack.c.bf16 %v7228, %v7227
        %v7264 = vpack.c.bf16 %v7230, %v7229
        %v7265 = vpack.c.bf16 %v7232, %v7231
        %v7266 = vpack.c.bf16 %v7234, %v7233
        %v7267 = vpack.c.bf16 %v7236, %v7235
        %v7268 = vpack.c.bf16 %v7238, %v7237
        %v7269 = vpack.c.bf16 %v7240, %v7239
        %v7270 = vpack.c.bf16 %v7242, %v7241
        %v7271 = vpack.c.bf16 %v7244, %v7243
        %v7272 = vpack.c.bf16 %v7246, %v7245
        %v7273 = vpack.c.bf16 %v7248, %v7247
        %v7274 = vpack.c.bf16 %v7250, %v7249
        %v7275 = vpack.c.bf16 %v7252, %v7251
        %v7276 = vpack.c.bf16 %v7254, %v7253
        %v7277 = vpack.c.bf16 %v7256, %v7255
        %v7278 = vpack.c.bf16 %v7258, %v7257
        %v7279 = vld [vmem:[#allocation19] sm:$0xf]
        %v7280 = vld [vmem:[#allocation19 + $0x4] sm:$0xf]
        %v7281 = vld [vmem:[#allocation19 + $0x8] sm:$0xf]
        %v7282 = vld [vmem:[#allocation19 + $0xc] sm:$0xf]
        %v7283 = vld [vmem:[#allocation19 + $0x10] sm:$0xf]
        %v7284 = vld [vmem:[#allocation19 + $0x14] sm:$0xf]
        %v7285 = vld [vmem:[#allocation19 + $0x18] sm:$0xf]
        %v7286 = vld [vmem:[#allocation19 + $0x1c] sm:$0xf]
        %v7287 = vld [vmem:[#allocation3 + $0x1] sm:$0xff]
        %v7288 = vld [vmem:[#allocation3 + $0x9] sm:$0xff]
        %v7289 = vld [vmem:[#allocation3 + $0x11] sm:$0xff]
        %v7290 = vld [vmem:[#allocation3 + $0x19] sm:$0xff]
        %v7291 = vld [vmem:[#allocation3 + $0x21] sm:$0xff]
        %v7292 = vld [vmem:[#allocation3 + $0x29] sm:$0xff]
        %v7293 = vld [vmem:[#allocation3 + $0x31] sm:$0xff]
        %v7294 = vld [vmem:[#allocation3 + $0x39] sm:$0xff]
        %v7295 = vld [vmem:[#allocation3 + $0x41] sm:$0xff]
        %v7296 = vld [vmem:[#allocation3 + $0x49] sm:$0xff]
        %v7297 = vld [vmem:[#allocation3 + $0x51] sm:$0xff]
        %v7298 = vld [vmem:[#allocation3 + $0x59] sm:$0xff]
        %v7299 = vld [vmem:[#allocation3 + $0x61] sm:$0xff]
        %v7300 = vld [vmem:[#allocation3 + $0x69] sm:$0xff]
        %v7301 = vld [vmem:[#allocation3 + $0x71] sm:$0xff]
        %v7302 = vld [vmem:[#allocation3 + $0x79] sm:$0xff]
        %v7303 = vld [vmem:[#allocation3 + $0x81] sm:$0xff]
        %v7304 = vld [vmem:[#allocation3 + $0x89] sm:$0xff]
        %v7305 = vld [vmem:[#allocation3 + $0x91] sm:$0xff]
        %v7306 = vld [vmem:[#allocation3 + $0x99] sm:$0xff]
        %v7307 = vld [vmem:[#allocation3 + $0xa1] sm:$0xff]
        %v7308 = vld [vmem:[#allocation3 + $0xa9] sm:$0xff]
        %v7309 = vld [vmem:[#allocation3 + $0xb1] sm:$0xff]
        %v7310 = vld [vmem:[#allocation3 + $0xb9] sm:$0xff]
        %v7311 = vld [vmem:[#allocation3 + $0xc1] sm:$0xff]
        %v7312 = vld [vmem:[#allocation3 + $0xc9] sm:$0xff]
        %v7313 = vld [vmem:[#allocation3 + $0xd1] sm:$0xff]
        %v7314 = vld [vmem:[#allocation3 + $0xd9] sm:$0xff]
        %v7315 = vld [vmem:[#allocation3 + $0xe1] sm:$0xff]
        %v7316 = vld [vmem:[#allocation3 + $0xe9] sm:$0xff]
        %v7317 = vld [vmem:[#allocation3 + $0xf1] sm:$0xff]
        %v7318 = vld [vmem:[#allocation3 + $0xf9] sm:$0xff]
        %v7319 = vld [vmem:[#allocation3 + $0x101] sm:$0xff]
        %v7320 = vld [vmem:[#allocation3 + $0x109] sm:$0xff]
        %v7321 = vld [vmem:[#allocation3 + $0x111] sm:$0xff]
        %v7322 = vld [vmem:[#allocation3 + $0x119] sm:$0xff]
        %v7323 = vld [vmem:[#allocation3 + $0x121] sm:$0xff]
        %v7324 = vld [vmem:[#allocation3 + $0x129] sm:$0xff]
        %v7325 = vld [vmem:[#allocation3 + $0x131] sm:$0xff]
        %v7326 = vld [vmem:[#allocation3 + $0x139] sm:$0xff]
        %v7327 = vpack.c.bf16 %v7288, %v7287
        %v7328 = vpack.c.bf16 %v7290, %v7289
        %v7329 = vpack.c.bf16 %v7292, %v7291
        %v7330 = vpack.c.bf16 %v7294, %v7293
        %v7331 = vpack.c.bf16 %v7296, %v7295
        %v7332 = vpack.c.bf16 %v7298, %v7297
        %v7333 = vpack.c.bf16 %v7300, %v7299
        %v7334 = vpack.c.bf16 %v7302, %v7301
        %v7335 = vpack.c.bf16 %v7304, %v7303
        %v7336 = vpack.c.bf16 %v7306, %v7305
        %v7337 = vpack.c.bf16 %v7308, %v7307
        %v7338 = vpack.c.bf16 %v7310, %v7309
        %v7339 = vpack.c.bf16 %v7312, %v7311
        %v7340 = vpack.c.bf16 %v7314, %v7313
        %v7341 = vpack.c.bf16 %v7316, %v7315
        %v7342 = vpack.c.bf16 %v7318, %v7317
        %v7343 = vpack.c.bf16 %v7320, %v7319
        %v7344 = vpack.c.bf16 %v7322, %v7321
        %v7345 = vpack.c.bf16 %v7324, %v7323
        %v7346 = vpack.c.bf16 %v7326, %v7325
        %s7347 = scalar_lea.vmem [#allocation19], 32
        %v7348 = vld [vmem:[%s7347] sm:$0xf]
        %v7349 = vld [vmem:[%s7347 + $0x4] sm:$0xf]
        %v7350 = vld [vmem:[%s7347 + $0x8] sm:$0xf]
        %v7351 = vld [vmem:[%s7347 + $0xc] sm:$0xf]
        %v7352 = vld [vmem:[%s7347 + $0x10] sm:$0xf]
        %v7353 = vld [vmem:[%s7347 + $0x14] sm:$0xf]
        %v7354 = vld [vmem:[%s7347 + $0x18] sm:$0xf]
        %v7355 = vld [vmem:[%s7347 + $0x1c] sm:$0xf]
        %v7364 = vunpack.c.l.b16 %v7348
        %v7365 = vunpack.c.l.b16 %v7349
        %v7366 = vunpack.c.l.b16 %v7350
        %v7367 = vunpack.c.l.b16 %v7351
        %v7368 = vunpack.c.l.b16 %v7352
        %v7369 = vunpack.c.l.b16 %v7353
        %v7370 = vunpack.c.l.b16 %v7354
        %v7371 = vunpack.c.l.b16 %v7355
        %v7372 = vpack.c.b16 %v7365, %v7364
        %v7373 = vpack.c.b16 %v7367, %v7366
        %v7374 = vpack.c.b16 %v7369, %v7368
        %v7375 = vpack.c.b16 %v7371, %v7370
        %v7381 = vsel %vm6213, %v7327, 0
        %v7384 = vsel %vm6213, %v7328, 0
        %v7387 = vsel %vm6213, %v7329, 0
        %v7390 = vsel %vm6213, %v7330, 0
        %v7393 = vsel %vm6213, %v7331, 0
        %v7396 = vsel %vm6213, %v7332, 0
        %v7399 = vsel %vm6213, %v7333, 0
        %v7402 = vsel %vm6213, %v7334, 0
        %v7405 = vsel %vm6213, %v7335, 0
        %v7408 = vsel %vm6213, %v7336, 0
        %v7411 = vsel %vm6213, %v7337, 0
        %v7414 = vsel %vm6213, %v7338, 0
        %v7417 = vsel %vm6213, %v7339, 0
        %v7420 = vsel %vm6213, %v7340, 0
        %v7423 = vsel %vm6213, %v7341, 0
        %v7426 = vsel %vm6213, %v7342, 0
        %v7429 = vsel %vm6213, %v7343, 0
        %v7432 = vsel %vm6213, %v7344, 0
        %v7435 = vsel %vm6213, %v7345, 0
        %v7438 = vsel %vm6213, %v7346, 0
        %7440 = vmatprep.subr.bf16.mxu0 0
        %7441 = vmatpush1.bf16.msra.mxu0 %v7372
        %7442 = vmatprep.subr.bf16.mxu0 0
        %7443 = vmatpush1.bf16.msra.mxu0 %v7373
        %7444 = vmatprep.subr.bf16.mxu0 0
        %7445 = vmatpush1.bf16.msra.mxu0 %v7374
        %7446 = vmatprep.subr.bf16.mxu0 0
        %7447 = vmatpush1.bf16.msra.mxu0 %v7375
        %7448 = vmatprep.subr.bf16.mxu0 0
        %7449 = vmatpush1.bf16.msra.mxu0 0
        %7450 = vmatprep.subr.bf16.mxu0 0
        %7451 = vmatpush1.bf16.msra.mxu0 0
        %7452 = vmatprep.subr.bf16.mxu0 0
        %7453 = vmatpush1.bf16.msra.mxu0 0
        %7454 = vmatprep.subr.bf16.mxu0 0
        %7455 = vmatpush1.bf16.msra.mxu0 0
        %7456 = vmatprep.subr.bf16.mxu0 0
        %7457 = vmatpush1.bf16.msra.mxu0 0
        %7458 = vmatprep.subr.bf16.mxu0 0
        %7459 = vmatpush1.bf16.msra.mxu0 0
        %7460 = vmatprep.subr.bf16.mxu0 0
        %7461 = vmatpush1.bf16.msra.mxu0 0
        %7462 = vmatprep.subr.bf16.mxu0 0
        %7463 = vmatpush1.bf16.msra.mxu0 0
        %7464 = vmatprep.subr.bf16.mxu0 0
        %7465 = vmatpush1.bf16.msra.mxu0 0
        %7466 = vmatprep.subr.bf16.mxu0 0
        %7467 = vmatpush1.bf16.msra.mxu0 0
        %7468 = vmatprep.subr.bf16.mxu0 0
        %7469 = vmatpush1.bf16.msra.mxu0 0
        %7470 = vmatprep.subr.bf16.mxu0 0
        %7471 = vmatpush1.bf16.msra.mxu0 0
        %7472 = vmatprep.mubr.bf16.mxu0 0
        %7473 = vmatmul.mubr.bf16.gmra.mrb[0].mxu0 %v7381
        %v7474 = vpop.f32.mrb[0].mxu0
        %v7475 = vadd.f32 0.0, %v7474
        %v7476 = vpop.f32.mrb[0].mxu0
        %v7477 = vpop.f32.mrb[0].mxu0
        %v7478 = vadd.f32 0.0, %v7477
        %v7479 = vpop.f32.mrb[0].mxu0
        %7480 = vmatprep.mubr.bf16.mxu0 0
        %7481 = vmatmul.mubr.bf16.gmra.mrb[0].mxu0 %v7384
        %v7482 = vpop.f32.mrb[0].mxu0
        %v7483 = vadd.f32 0.0, %v7482
        %v7484 = vpop.f32.mrb[0].mxu0
        %v7485 = vpop.f32.mrb[0].mxu0
        %v7486 = vadd.f32 0.0, %v7485
        %v7487 = vpop.f32.mrb[0].mxu0
        %7488 = vmatprep.mubr.bf16.mxu0 0
        %7489 = vmatmul.mubr.bf16.gmra.mrb[0].mxu0 %v7387
        %v7490 = vpop.f32.mrb[0].mxu0
        %v7491 = vadd.f32 0.0, %v7490
        %v7492 = vpop.f32.mrb[0].mxu0
        %v7493 = vpop.f32.mrb[0].mxu0
        %v7494 = vadd.f32 0.0, %v7493
        %v7495 = vpop.f32.mrb[0].mxu0
        %7496 = vmatprep.mubr.bf16.mxu0 0
        %7497 = vmatmul.mubr.bf16.gmra.mrb[0].mxu0 %v7390
        %v7498 = vpop.f32.mrb[0].mxu0
        %v7499 = vadd.f32 0.0, %v7498
        %v7500 = vpop.f32.mrb[0].mxu0
        %v7501 = vpop.f32.mrb[0].mxu0
        %v7502 = vadd.f32 0.0, %v7501
        %v7503 = vpop.f32.mrb[0].mxu0
        %7504 = vmatprep.mubr.bf16.mxu0 0
        %7505 = vmatmul.mubr.bf16.gmra.mrb[0].mxu0 %v7393
        %v7506 = vpop.f32.mrb[0].mxu0
        %v7507 = vadd.f32 0.0, %v7506
        %v7508 = vpop.f32.mrb[0].mxu0
        %v7509 = vpop.f32.mrb[0].mxu0
        %v7510 = vadd.f32 0.0, %v7509
        %v7511 = vpop.f32.mrb[0].mxu0
        %7512 = vmatprep.mubr.bf16.mxu0 0
        %7513 = vmatmul.mubr.bf16.gmra.mrb[0].mxu0 %v7396
        %v7514 = vpop.f32.mrb[0].mxu0
        %v7515 = vadd.f32 0.0, %v7514
        %v7516 = vpop.f32.mrb[0].mxu0
        %v7517 = vpop.f32.mrb[0].mxu0
        %v7518 = vadd.f32 0.0, %v7517
        %v7519 = vpop.f32.mrb[0].mxu0
        %7520 = vmatprep.mubr.bf16.mxu0 0
        %7521 = vmatmul.mubr.bf16.gmra.mrb[0].mxu0 %v7399
        %v7522 = vpop.f32.mrb[0].mxu0
        %v7523 = vadd.f32 0.0, %v7522
        %v7524 = vpop.f32.mrb[0].mxu0
        %v7525 = vpop.f32.mrb[0].mxu0
        %v7526 = vadd.f32 0.0, %v7525
        %v7527 = vpop.f32.mrb[0].mxu0
        %7528 = vmatprep.mubr.bf16.mxu0 0
        %7529 = vmatmul.mubr.bf16.gmra.mrb[0].mxu0 %v7402
        %v7530 = vpop.f32.mrb[0].mxu0
        %v7531 = vadd.f32 0.0, %v7530
        %v7532 = vpop.f32.mrb[0].mxu0
        %v7533 = vpop.f32.mrb[0].mxu0
        %v7534 = vadd.f32 0.0, %v7533
        %v7535 = vpop.f32.mrb[0].mxu0
        %7536 = vmatprep.mubr.bf16.mxu0 0
        %7537 = vmatmul.mubr.bf16.gmra.mrb[0].mxu0 %v7405
        %v7538 = vpop.f32.mrb[0].mxu0
        %v7539 = vadd.f32 0.0, %v7538
        %v7540 = vpop.f32.mrb[0].mxu0
        %v7541 = vpop.f32.mrb[0].mxu0
        %v7542 = vadd.f32 0.0, %v7541
        %v7543 = vpop.f32.mrb[0].mxu0
        %7544 = vmatprep.mubr.bf16.mxu0 0
        %7545 = vmatmul.mubr.bf16.gmra.mrb[0].mxu0 %v7408
        %v7546 = vpop.f32.mrb[0].mxu0
        %v7547 = vadd.f32 0.0, %v7546
        %v7548 = vpop.f32.mrb[0].mxu0
        %v7549 = vpop.f32.mrb[0].mxu0
        %v7550 = vadd.f32 0.0, %v7549
        %v7551 = vpop.f32.mrb[0].mxu0
        %7552 = vmatprep.mubr.bf16.mxu0 0
        %7553 = vmatmul.mubr.bf16.gmra.mrb[0].mxu0 %v7411
        %v7554 = vpop.f32.mrb[0].mxu0
        %v7555 = vadd.f32 0.0, %v7554
        %v7556 = vpop.f32.mrb[0].mxu0
        %v7557 = vpop.f32.mrb[0].mxu0
        %v7558 = vadd.f32 0.0, %v7557
        %v7559 = vpop.f32.mrb[0].mxu0
        %7560 = vmatprep.mubr.bf16.mxu0 0
        %7561 = vmatmul.mubr.bf16.gmra.mrb[0].mxu0 %v7414
        %v7562 = vpop.f32.mrb[0].mxu0
        %v7563 = vadd.f32 0.0, %v7562
        %v7564 = vpop.f32.mrb[0].mxu0
        %v7565 = vpop.f32.mrb[0].mxu0
        %v7566 = vadd.f32 0.0, %v7565
        %v7567 = vpop.f32.mrb[0].mxu0
        %7568 = vmatprep.mubr.bf16.mxu0 0
        %7569 = vmatmul.mubr.bf16.gmra.mrb[0].mxu0 %v7417
        %v7570 = vpop.f32.mrb[0].mxu0
        %v7571 = vadd.f32 0.0, %v7570
        %v7572 = vpop.f32.mrb[0].mxu0
        %v7573 = vpop.f32.mrb[0].mxu0
        %v7574 = vadd.f32 0.0, %v7573
        %v7575 = vpop.f32.mrb[0].mxu0
        %7576 = vmatprep.mubr.bf16.mxu0 0
        %7577 = vmatmul.mubr.bf16.gmra.mrb[0].mxu0 %v7420
        %v7578 = vpop.f32.mrb[0].mxu0
        %v7579 = vadd.f32 0.0, %v7578
        %v7580 = vpop.f32.mrb[0].mxu0
        %v7581 = vpop.f32.mrb[0].mxu0
        %v7582 = vadd.f32 0.0, %v7581
        %v7583 = vpop.f32.mrb[0].mxu0
        %7584 = vmatprep.mubr.bf16.mxu0 0
        %7585 = vmatmul.mubr.bf16.gmra.mrb[0].mxu0 %v7423
        %v7586 = vpop.f32.mrb[0].mxu0
        %v7587 = vadd.f32 0.0, %v7586
        %v7588 = vpop.f32.mrb[0].mxu0
        %v7589 = vpop.f32.mrb[0].mxu0
        %v7590 = vadd.f32 0.0, %v7589
        %v7591 = vpop.f32.mrb[0].mxu0
        %7592 = vmatprep.mubr.bf16.mxu0 0
        %7593 = vmatmul.mubr.bf16.gmra.mrb[0].mxu0 %v7426
        %v7594 = vpop.f32.mrb[0].mxu0
        %v7595 = vadd.f32 0.0, %v7594
        %v7596 = vpop.f32.mrb[0].mxu0
        %v7597 = vpop.f32.mrb[0].mxu0
        %v7598 = vadd.f32 0.0, %v7597
        %v7599 = vpop.f32.mrb[0].mxu0
        %7600 = vmatprep.mubr.bf16.mxu0 0
        %7601 = vmatmul.mubr.bf16.gmra.mrb[0].mxu0 %v7429
        %v7602 = vpop.f32.mrb[0].mxu0
        %v7603 = vadd.f32 0.0, %v7602
        %v7604 = vpop.f32.mrb[0].mxu0
        %v7605 = vpop.f32.mrb[0].mxu0
        %v7606 = vadd.f32 0.0, %v7605
        %v7607 = vpop.f32.mrb[0].mxu0
        %7608 = vmatprep.mubr.bf16.mxu0 0
        %7609 = vmatmul.mubr.bf16.gmra.mrb[0].mxu0 %v7432
        %v7610 = vpop.f32.mrb[0].mxu0
        %v7611 = vadd.f32 0.0, %v7610
        %v7612 = vpop.f32.mrb[0].mxu0
        %v7613 = vpop.f32.mrb[0].mxu0
        %v7614 = vadd.f32 0.0, %v7613
        %v7615 = vpop.f32.mrb[0].mxu0
        %7616 = vmatprep.mubr.bf16.mxu0 0
        %7617 = vmatmul.mubr.bf16.gmra.mrb[0].mxu0 %v7435
        %v7618 = vpop.f32.mrb[0].mxu0
        %v7619 = vadd.f32 0.0, %v7618
        %v7620 = vpop.f32.mrb[0].mxu0
        %v7621 = vpop.f32.mrb[0].mxu0
        %v7622 = vadd.f32 0.0, %v7621
        %v7623 = vpop.f32.mrb[0].mxu0
        %7624 = vmatprep.mubr.bf16.mxu0 0
        %7625 = vmatmul.mubr.bf16.gmra.mrb[0].mxu0 %v7438
        %v7626 = vpop.f32.mrb[0].mxu0
        %v7627 = vadd.f32 0.0, %v7626
        %v7628 = vpop.f32.mrb[0].mxu0
        %v7629 = vpop.f32.mrb[0].mxu0
        %v7630 = vadd.f32 0.0, %v7629
        %v7631 = vpop.f32.mrb[0].mxu0
        %7632 = vdwg.mxu0
        %v7641 = vunpack.c.l.b16 %v7279
        %v7642 = vunpack.c.l.b16 %v7280
        %v7643 = vunpack.c.l.b16 %v7281
        %v7644 = vunpack.c.l.b16 %v7282
        %v7645 = vunpack.c.l.b16 %v7283
        %v7646 = vunpack.c.l.b16 %v7284
        %v7647 = vunpack.c.l.b16 %v7285
        %v7648 = vunpack.c.l.b16 %v7286
        %v7649 = vpack.c.b16 %v7642, %v7641
        %v7650 = vpack.c.b16 %v7644, %v7643
        %v7651 = vpack.c.b16 %v7646, %v7645
        %v7652 = vpack.c.b16 %v7648, %v7647
        %v7658 = vsel %vm6213, %v7259, 0
        %v7661 = vsel %vm6213, %v7260, 0
        %v7664 = vsel %vm6213, %v7261, 0
        %v7667 = vsel %vm6213, %v7262, 0
        %v7670 = vsel %vm6213, %v7263, 0
        %v7673 = vsel %vm6213, %v7264, 0
        %v7676 = vsel %vm6213, %v7265, 0
        %v7679 = vsel %vm6213, %v7266, 0
        %v7682 = vsel %vm6213, %v7267, 0
        %v7685 = vsel %vm6213, %v7268, 0
        %v7688 = vsel %vm6213, %v7269, 0
        %v7691 = vsel %vm6213, %v7270, 0
        %v7694 = vsel %vm6213, %v7271, 0
        %v7697 = vsel %vm6213, %v7272, 0
        %v7700 = vsel %vm6213, %v7273, 0
        %v7703 = vsel %vm6213, %v7274, 0
        %v7706 = vsel %vm6213, %v7275, 0
        %v7709 = vsel %vm6213, %v7276, 0
        %v7712 = vsel %vm6213, %v7277, 0
        %v7715 = vsel %vm6213, %v7278, 0
        %7717 = vmatprep.subr.bf16.mxu0 0
        %7718 = vmatpush1.bf16.msra.mxu0 %v7649
        %7719 = vmatprep.subr.bf16.mxu0 0
        %7720 = vmatpush1.bf16.msra.mxu0 %v7650
        %7721 = vmatprep.subr.bf16.mxu0 0
        %7722 = vmatpush1.bf16.msra.mxu0 %v7651
        %7723 = vmatprep.subr.bf16.mxu0 0
        %7724 = vmatpush1.bf16.msra.mxu0 %v7652
        %7725 = vmatprep.subr.bf16.mxu0 0
        %7726 = vmatpush1.bf16.msra.mxu0 0
        %7727 = vmatprep.subr.bf16.mxu0 0
        %7728 = vmatpush1.bf16.msra.mxu0 0
        %7729 = vmatprep.subr.bf16.mxu0 0
        %7730 = vmatpush1.bf16.msra.mxu0 0
        %7731 = vmatprep.subr.bf16.mxu0 0
        %7732 = vmatpush1.bf16.msra.mxu0 0
        %7733 = vmatprep.subr.bf16.mxu0 0
        %7734 = vmatpush1.bf16.msra.mxu0 0
        %7735 = vmatprep.subr.bf16.mxu0 0
        %7736 = vmatpush1.bf16.msra.mxu0 0
        %7737 = vmatprep.subr.bf16.mxu0 0
        %7738 = vmatpush1.bf16.msra.mxu0 0
        %7739 = vmatprep.subr.bf16.mxu0 0
        %7740 = vmatpush1.bf16.msra.mxu0 0
        %7741 = vmatprep.subr.bf16.mxu0 0
        %7742 = vmatpush1.bf16.msra.mxu0 0
        %7743 = vmatprep.subr.bf16.mxu0 0
        %7744 = vmatpush1.bf16.msra.mxu0 0
        %7745 = vmatprep.subr.bf16.mxu0 0
        %7746 = vmatpush1.bf16.msra.mxu0 0
        %7747 = vmatprep.subr.bf16.mxu0 0
        %7748 = vmatpush1.bf16.msra.mxu0 0
        %7749 = vmatprep.mubr.bf16.mxu0 0
        %7750 = vmatmul.mubr.bf16.gmra.mrb[0].mxu0 %v7658
        %v7751 = vpop.f32.mrb[0].mxu0
        %v7752 = vadd.f32 %v7475, %v7751
        %v7753 = vpop.f32.mrb[0].mxu0
        %v7754 = vpop.f32.mrb[0].mxu0
        %v7755 = vadd.f32 %v7478, %v7754
        %v7756 = vpop.f32.mrb[0].mxu0
        %7757 = vmatprep.mubr.bf16.mxu0 0
        %7758 = vmatmul.mubr.bf16.gmra.mrb[0].mxu0 %v7661
        %v7759 = vpop.f32.mrb[0].mxu0
        %v7760 = vadd.f32 %v7483, %v7759
        %v7761 = vpop.f32.mrb[0].mxu0
        %v7762 = vpop.f32.mrb[0].mxu0
        %v7763 = vadd.f32 %v7486, %v7762
        %v7764 = vpop.f32.mrb[0].mxu0
        %7765 = vmatprep.mubr.bf16.mxu0 0
        %7766 = vmatmul.mubr.bf16.gmra.mrb[0].mxu0 %v7664
        %v7767 = vpop.f32.mrb[0].mxu0
        %v7768 = vadd.f32 %v7491, %v7767
        %v7769 = vpop.f32.mrb[0].mxu0
        %v7770 = vpop.f32.mrb[0].mxu0
        %v7771 = vadd.f32 %v7494, %v7770
        %v7772 = vpop.f32.mrb[0].mxu0
        %7773 = vmatprep.mubr.bf16.mxu0 0
        %7774 = vmatmul.mubr.bf16.gmra.mrb[0].mxu0 %v7667
        %v7775 = vpop.f32.mrb[0].mxu0
        %v7776 = vadd.f32 %v7499, %v7775
        %v7777 = vpop.f32.mrb[0].mxu0
        %v7778 = vpop.f32.mrb[0].mxu0
        %v7779 = vadd.f32 %v7502, %v7778
        %v7780 = vpop.f32.mrb[0].mxu0
        %7781 = vmatprep.mubr.bf16.mxu0 0
        %7782 = vmatmul.mubr.bf16.gmra.mrb[0].mxu0 %v7670
        %v7783 = vpop.f32.mrb[0].mxu0
        %v7784 = vadd.f32 %v7507, %v7783
        %v7785 = vpop.f32.mrb[0].mxu0
        %v7786 = vpop.f32.mrb[0].mxu0
        %v7787 = vadd.f32 %v7510, %v7786
        %v7788 = vpop.f32.mrb[0].mxu0
        %7789 = vmatprep.mubr.bf16.mxu0 0
        %7790 = vmatmul.mubr.bf16.gmra.mrb[0].mxu0 %v7673
        %v7791 = vpop.f32.mrb[0].mxu0
        %v7792 = vadd.f32 %v7515, %v7791
        %v7793 = vpop.f32.mrb[0].mxu0
        %v7794 = vpop.f32.mrb[0].mxu0
        %v7795 = vadd.f32 %v7518, %v7794
        %v7796 = vpop.f32.mrb[0].mxu0
        %7797 = vmatprep.mubr.bf16.mxu0 0
        %7798 = vmatmul.mubr.bf16.gmra.mrb[0].mxu0 %v7676
        %v7799 = vpop.f32.mrb[0].mxu0
        %v7800 = vadd.f32 %v7523, %v7799
        %v7801 = vpop.f32.mrb[0].mxu0
        %v7802 = vpop.f32.mrb[0].mxu0
        %v7803 = vadd.f32 %v7526, %v7802
        %v7804 = vpop.f32.mrb[0].mxu0
        %7805 = vmatprep.mubr.bf16.mxu0 0
        %7806 = vmatmul.mubr.bf16.gmra.mrb[0].mxu0 %v7679
        %v7807 = vpop.f32.mrb[0].mxu0
        %v7808 = vadd.f32 %v7531, %v7807
        %v7809 = vpop.f32.mrb[0].mxu0
        %v7810 = vpop.f32.mrb[0].mxu0
        %v7811 = vadd.f32 %v7534, %v7810
        %v7812 = vpop.f32.mrb[0].mxu0
        %7813 = vmatprep.mubr.bf16.mxu0 0
        %7814 = vmatmul.mubr.bf16.gmra.mrb[0].mxu0 %v7682
        %v7815 = vpop.f32.mrb[0].mxu0
        %v7816 = vadd.f32 %v7539, %v7815
        %v7817 = vpop.f32.mrb[0].mxu0
        %v7818 = vpop.f32.mrb[0].mxu0
        %v7819 = vadd.f32 %v7542, %v7818
        %v7820 = vpop.f32.mrb[0].mxu0
        %7821 = vmatprep.mubr.bf16.mxu0 0
        %7822 = vmatmul.mubr.bf16.gmra.mrb[0].mxu0 %v7685
        %v7823 = vpop.f32.mrb[0].mxu0
        %v7824 = vadd.f32 %v7547, %v7823
        %v7825 = vpop.f32.mrb[0].mxu0
        %v7826 = vpop.f32.mrb[0].mxu0
        %v7827 = vadd.f32 %v7550, %v7826
        %v7828 = vpop.f32.mrb[0].mxu0
        %7829 = vmatprep.mubr.bf16.mxu0 0
        %7830 = vmatmul.mubr.bf16.gmra.mrb[0].mxu0 %v7688
        %v7831 = vpop.f32.mrb[0].mxu0
        %v7832 = vadd.f32 %v7555, %v7831
        %v7833 = vpop.f32.mrb[0].mxu0
        %v7834 = vpop.f32.mrb[0].mxu0
        %v7835 = vadd.f32 %v7558, %v7834
        %v7836 = vpop.f32.mrb[0].mxu0
        %7837 = vmatprep.mubr.bf16.mxu0 0
        %7838 = vmatmul.mubr.bf16.gmra.mrb[0].mxu0 %v7691
        %v7839 = vpop.f32.mrb[0].mxu0
        %v7840 = vadd.f32 %v7563, %v7839
        %v7841 = vpop.f32.mrb[0].mxu0
        %v7842 = vpop.f32.mrb[0].mxu0
        %v7843 = vadd.f32 %v7566, %v7842
        %v7844 = vpop.f32.mrb[0].mxu0
        %7845 = vmatprep.mubr.bf16.mxu0 0
        %7846 = vmatmul.mubr.bf16.gmra.mrb[0].mxu0 %v7694
        %v7847 = vpop.f32.mrb[0].mxu0
        %v7848 = vadd.f32 %v7571, %v7847
        %v7849 = vpop.f32.mrb[0].mxu0
        %v7850 = vpop.f32.mrb[0].mxu0
        %v7851 = vadd.f32 %v7574, %v7850
        %v7852 = vpop.f32.mrb[0].mxu0
        %7853 = vmatprep.mubr.bf16.mxu0 0
        %7854 = vmatmul.mubr.bf16.gmra.mrb[0].mxu0 %v7697
        %v7855 = vpop.f32.mrb[0].mxu0
        %v7856 = vadd.f32 %v7579, %v7855
        %v7857 = vpop.f32.mrb[0].mxu0
        %v7858 = vpop.f32.mrb[0].mxu0
        %v7859 = vadd.f32 %v7582, %v7858
        %v7860 = vpop.f32.mrb[0].mxu0
        %7861 = vmatprep.mubr.bf16.mxu0 0
        %7862 = vmatmul.mubr.bf16.gmra.mrb[0].mxu0 %v7700
        %v7863 = vpop.f32.mrb[0].mxu0
        %v7864 = vadd.f32 %v7587, %v7863
        %v7865 = vpop.f32.mrb[0].mxu0
        %v7866 = vpop.f32.mrb[0].mxu0
        %v7867 = vadd.f32 %v7590, %v7866
        %v7868 = vpop.f32.mrb[0].mxu0
        %7869 = vmatprep.mubr.bf16.mxu0 0
        %7870 = vmatmul.mubr.bf16.gmra.mrb[0].mxu0 %v7703
        %v7871 = vpop.f32.mrb[0].mxu0
        %v7872 = vadd.f32 %v7595, %v7871
        %v7873 = vpop.f32.mrb[0].mxu0
        %v7874 = vpop.f32.mrb[0].mxu0
        %v7875 = vadd.f32 %v7598, %v7874
        %v7876 = vpop.f32.mrb[0].mxu0
        %7877 = vmatprep.mubr.bf16.mxu0 0
        %7878 = vmatmul.mubr.bf16.gmra.mrb[0].mxu0 %v7706
        %v7879 = vpop.f32.mrb[0].mxu0
        %v7880 = vadd.f32 %v7603, %v7879
        %v7881 = vpop.f32.mrb[0].mxu0
        %v7882 = vpop.f32.mrb[0].mxu0
        %v7883 = vadd.f32 %v7606, %v7882
        %v7884 = vpop.f32.mrb[0].mxu0
        %7885 = vmatprep.mubr.bf16.mxu0 0
        %7886 = vmatmul.mubr.bf16.gmra.mrb[0].mxu0 %v7709
        %v7887 = vpop.f32.mrb[0].mxu0
        %v7888 = vadd.f32 %v7611, %v7887
        %v7889 = vpop.f32.mrb[0].mxu0
        %v7890 = vpop.f32.mrb[0].mxu0
        %v7891 = vadd.f32 %v7614, %v7890
        %v7892 = vpop.f32.mrb[0].mxu0
        %7893 = vmatprep.mubr.bf16.mxu0 0
        %7894 = vmatmul.mubr.bf16.gmra.mrb[0].mxu0 %v7712
        %v7895 = vpop.f32.mrb[0].mxu0
        %v7896 = vadd.f32 %v7619, %v7895
        %v7897 = vpop.f32.mrb[0].mxu0
        %v7898 = vpop.f32.mrb[0].mxu0
        %v7899 = vadd.f32 %v7622, %v7898
        %v7900 = vpop.f32.mrb[0].mxu0
        %7901 = vmatprep.mubr.bf16.mxu0 0
        %7902 = vmatmul.mubr.bf16.gmra.mrb[0].mxu0 %v7715
        %v7903 = vpop.f32.mrb[0].mxu0
        %v7904 = vadd.f32 %v7627, %v7903
        %v7905 = vpop.f32.mrb[0].mxu0
        %v7906 = vpop.f32.mrb[0].mxu0
        %v7907 = vadd.f32 %v7630, %v7906
        %v7908 = vpop.f32.mrb[0].mxu0
        %7909 = vdwg.mxu0
        %v7910 = vld [vmem:[#allocation3 + $0x2] sm:$0xff]
        %v7911 = vld [vmem:[#allocation3 + $0xa] sm:$0xff]
        %v7912 = vld [vmem:[#allocation3 + $0x12] sm:$0xff]
        %v7913 = vld [vmem:[#allocation3 + $0x1a] sm:$0xff]
        %v7914 = vld [vmem:[#allocation3 + $0x22] sm:$0xff]
        %v7915 = vld [vmem:[#allocation3 + $0x2a] sm:$0xff]
        %v7916 = vld [vmem:[#allocation3 + $0x32] sm:$0xff]
        %v7917 = vld [vmem:[#allocation3 + $0x3a] sm:$0xff]
        %v7918 = vld [vmem:[#allocation3 + $0x42] sm:$0xff]
        %v7919 = vld [vmem:[#allocation3 + $0x4a] sm:$0xff]
        %v7920 = vld [vmem:[#allocation3 + $0x52] sm:$0xff]
        %v7921 = vld [vmem:[#allocation3 + $0x5a] sm:$0xff]
        %v7922 = vld [vmem:[#allocation3 + $0x62] sm:$0xff]
        %v7923 = vld [vmem:[#allocation3 + $0x6a] sm:$0xff]
        %v7924 = vld [vmem:[#allocation3 + $0x72] sm:$0xff]
        %v7925 = vld [vmem:[#allocation3 + $0x7a] sm:$0xff]
        %v7926 = vld [vmem:[#allocation3 + $0x82] sm:$0xff]
        %v7927 = vld [vmem:[#allocation3 + $0x8a] sm:$0xff]
        %v7928 = vld [vmem:[#allocation3 + $0x92] sm:$0xff]
        %v7929 = vld [vmem:[#allocation3 + $0x9a] sm:$0xff]
        %v7930 = vld [vmem:[#allocation3 + $0xa2] sm:$0xff]
        %v7931 = vld [vmem:[#allocation3 + $0xaa] sm:$0xff]
        %v7932 = vld [vmem:[#allocation3 + $0xb2] sm:$0xff]
        %v7933 = vld [vmem:[#allocation3 + $0xba] sm:$0xff]
        %v7934 = vld [vmem:[#allocation3 + $0xc2] sm:$0xff]
        %v7935 = vld [vmem:[#allocation3 + $0xca] sm:$0xff]
        %v7936 = vld [vmem:[#allocation3 + $0xd2] sm:$0xff]
        %v7937 = vld [vmem:[#allocation3 + $0xda] sm:$0xff]
        %v7938 = vld [vmem:[#allocation3 + $0xe2] sm:$0xff]
        %v7939 = vld [vmem:[#allocation3 + $0xea] sm:$0xff]
        %v7940 = vld [vmem:[#allocation3 + $0xf2] sm:$0xff]
        %v7941 = vld [vmem:[#allocation3 + $0xfa] sm:$0xff]
        %v7942 = vld [vmem:[#allocation3 + $0x102] sm:$0xff]
        %v7943 = vld [vmem:[#allocation3 + $0x10a] sm:$0xff]
        %v7944 = vld [vmem:[#allocation3 + $0x112] sm:$0xff]
        %v7945 = vld [vmem:[#allocation3 + $0x11a] sm:$0xff]
        %v7946 = vld [vmem:[#allocation3 + $0x122] sm:$0xff]
        %v7947 = vld [vmem:[#allocation3 + $0x12a] sm:$0xff]
        %v7948 = vld [vmem:[#allocation3 + $0x132] sm:$0xff]
        %v7949 = vld [vmem:[#allocation3 + $0x13a] sm:$0xff]
        %v7950 = vpack.c.bf16 %v7911, %v7910
        %v7951 = vpack.c.bf16 %v7913, %v7912
        %v7952 = vpack.c.bf16 %v7915, %v7914
        %v7953 = vpack.c.bf16 %v7917, %v7916
        %v7954 = vpack.c.bf16 %v7919, %v7918
        %v7955 = vpack.c.bf16 %v7921, %v7920
        %v7956 = vpack.c.bf16 %v7923, %v7922
        %v7957 = vpack.c.bf16 %v7925, %v7924
        %v7958 = vpack.c.bf16 %v7927, %v7926
        %v7959 = vpack.c.bf16 %v7929, %v7928
        %v7960 = vpack.c.bf16 %v7931, %v7930
        %v7961 = vpack.c.bf16 %v7933, %v7932
        %v7962 = vpack.c.bf16 %v7935, %v7934
        %v7963 = vpack.c.bf16 %v7937, %v7936
        %v7964 = vpack.c.bf16 %v7939, %v7938
        %v7965 = vpack.c.bf16 %v7941, %v7940
        %v7966 = vpack.c.bf16 %v7943, %v7942
        %v7967 = vpack.c.bf16 %v7945, %v7944
        %v7968 = vpack.c.bf16 %v7947, %v7946
        %v7969 = vpack.c.bf16 %v7949, %v7948
        %s7970 = scalar_lea.vmem [#allocation19], 64
        %v7971 = vld [vmem:[%s7970] sm:$0xf]
        %v7972 = vld [vmem:[%s7970 + $0x4] sm:$0xf]
        %v7973 = vld [vmem:[%s7970 + $0x8] sm:$0xf]
        %v7974 = vld [vmem:[%s7970 + $0xc] sm:$0xf]
        %v7975 = vld [vmem:[%s7970 + $0x10] sm:$0xf]
        %v7976 = vld [vmem:[%s7970 + $0x14] sm:$0xf]
        %v7977 = vld [vmem:[%s7970 + $0x18] sm:$0xf]
        %v7978 = vld [vmem:[%s7970 + $0x1c] sm:$0xf]
        %v7987 = vunpack.c.l.b16 %v7971
        %v7988 = vunpack.c.l.b16 %v7972
        %v7989 = vunpack.c.l.b16 %v7973
        %v7990 = vunpack.c.l.b16 %v7974
        %v7991 = vunpack.c.l.b16 %v7975
        %v7992 = vunpack.c.l.b16 %v7976
        %v7993 = vunpack.c.l.b16 %v7977
        %v7994 = vunpack.c.l.b16 %v7978
        %v7995 = vpack.c.b16 %v7988, %v7987
        %v7996 = vpack.c.b16 %v7990, %v7989
        %v7997 = vpack.c.b16 %v7992, %v7991
        %v7998 = vpack.c.b16 %v7994, %v7993
        %v8004 = vsel %vm6213, %v7950, 0
        %v8007 = vsel %vm6213, %v7951, 0
        %v8010 = vsel %vm6213, %v7952, 0
        %v8013 = vsel %vm6213, %v7953, 0
        %v8016 = vsel %vm6213, %v7954, 0
        %v8019 = vsel %vm6213, %v7955, 0
        %v8022 = vsel %vm6213, %v7956, 0
        %v8025 = vsel %vm6213, %v7957, 0
        %v8028 = vsel %vm6213, %v7958, 0
        %v8031 = vsel %vm6213, %v7959, 0
        %v8034 = vsel %vm6213, %v7960, 0
        %v8037 = vsel %vm6213, %v7961, 0
        %v8040 = vsel %vm6213, %v7962, 0
        %v8043 = vsel %vm6213, %v7963, 0
        %v8046 = vsel %vm6213, %v7964, 0
        %v8049 = vsel %vm6213, %v7965, 0
        %v8052 = vsel %vm6213, %v7966, 0
        %v8055 = vsel %vm6213, %v7967, 0
        %v8058 = vsel %vm6213, %v7968, 0
        %v8061 = vsel %vm6213, %v7969, 0
        %8063 = vmatprep.subr.bf16.mxu0 0
        %8064 = vmatpush1.bf16.msra.mxu0 %v7995
        %8065 = vmatprep.subr.bf16.mxu0 0
        %8066 = vmatpush1.bf16.msra.mxu0 %v7996
        %8067 = vmatprep.subr.bf16.mxu0 0
        %8068 = vmatpush1.bf16.msra.mxu0 %v7997
        %8069 = vmatprep.subr.bf16.mxu0 0
        %8070 = vmatpush1.bf16.msra.mxu0 %v7998
        %8071 = vmatprep.subr.bf16.mxu0 0
        %8072 = vmatpush1.bf16.msra.mxu0 0
        %8073 = vmatprep.subr.bf16.mxu0 0
        %8074 = vmatpush1.bf16.msra.mxu0 0
        %8075 = vmatprep.subr.bf16.mxu0 0
        %8076 = vmatpush1.bf16.msra.mxu0 0
        %8077 = vmatprep.subr.bf16.mxu0 0
        %8078 = vmatpush1.bf16.msra.mxu0 0
        %8079 = vmatprep.subr.bf16.mxu0 0
        %8080 = vmatpush1.bf16.msra.mxu0 0
        %8081 = vmatprep.subr.bf16.mxu0 0
        %8082 = vmatpush1.bf16.msra.mxu0 0
        %8083 = vmatprep.subr.bf16.mxu0 0
        %8084 = vmatpush1.bf16.msra.mxu0 0
        %8085 = vmatprep.subr.bf16.mxu0 0
        %8086 = vmatpush1.bf16.msra.mxu0 0
        %8087 = vmatprep.subr.bf16.mxu0 0
        %8088 = vmatpush1.bf16.msra.mxu0 0
        %8089 = vmatprep.subr.bf16.mxu0 0
        %8090 = vmatpush1.bf16.msra.mxu0 0
        %8091 = vmatprep.subr.bf16.mxu0 0
        %8092 = vmatpush1.bf16.msra.mxu0 0
        %8093 = vmatprep.subr.bf16.mxu0 0
        %8094 = vmatpush1.bf16.msra.mxu0 0
        %8095 = vmatprep.mubr.bf16.mxu0 0
        %8096 = vmatmul.mubr.bf16.gmra.mrb[0].mxu0 %v8004
        %v8097 = vpop.f32.mrb[0].mxu0
        %v8098 = vadd.f32 0.0, %v8097
        %v8099 = vpop.f32.mrb[0].mxu0
        %v8100 = vpop.f32.mrb[0].mxu0
        %v8101 = vadd.f32 0.0, %v8100
        %v8102 = vpop.f32.mrb[0].mxu0
        %8103 = vmatprep.mubr.bf16.mxu0 0
        %8104 = vmatmul.mubr.bf16.gmra.mrb[0].mxu0 %v8007
        %v8105 = vpop.f32.mrb[0].mxu0
        %v8106 = vadd.f32 0.0, %v8105
        %v8107 = vpop.f32.mrb[0].mxu0
        %v8108 = vpop.f32.mrb[0].mxu0
        %v8109 = vadd.f32 0.0, %v8108
        %v8110 = vpop.f32.mrb[0].mxu0
        %8111 = vmatprep.mubr.bf16.mxu0 0
        %8112 = vmatmul.mubr.bf16.gmra.mrb[0].mxu0 %v8010
        %v8113 = vpop.f32.mrb[0].mxu0
        %v8114 = vadd.f32 0.0, %v8113
        %v8115 = vpop.f32.mrb[0].mxu0
        %v8116 = vpop.f32.mrb[0].mxu0
        %v8117 = vadd.f32 0.0, %v8116
        %v8118 = vpop.f32.mrb[0].mxu0
        %8119 = vmatprep.mubr.bf16.mxu0 0
        %8120 = vmatmul.mubr.bf16.gmra.mrb[0].mxu0 %v8013
        %v8121 = vpop.f32.mrb[0].mxu0
        %v8122 = vadd.f32 0.0, %v8121
        %v8123 = vpop.f32.mrb[0].mxu0
        %v8124 = vpop.f32.mrb[0].mxu0
        %v8125 = vadd.f32 0.0, %v8124
        %v8126 = vpop.f32.mrb[0].mxu0
        %8127 = vmatprep.mubr.bf16.mxu0 0
        %8128 = vmatmul.mubr.bf16.gmra.mrb[0].mxu0 %v8016
        %v8129 = vpop.f32.mrb[0].mxu0
        %v8130 = vadd.f32 0.0, %v8129
        %v8131 = vpop.f32.mrb[0].mxu0
        %v8132 = vpop.f32.mrb[0].mxu0
        %v8133 = vadd.f32 0.0, %v8132
        %v8134 = vpop.f32.mrb[0].mxu0
        %8135 = vmatprep.mubr.bf16.mxu0 0
        %8136 = vmatmul.mubr.bf16.gmra.mrb[0].mxu0 %v8019
        %v8137 = vpop.f32.mrb[0].mxu0
        %v8138 = vadd.f32 0.0, %v8137
        %v8139 = vpop.f32.mrb[0].mxu0
        %v8140 = vpop.f32.mrb[0].mxu0
        %v8141 = vadd.f32 0.0, %v8140
        %v8142 = vpop.f32.mrb[0].mxu0
        %8143 = vmatprep.mubr.bf16.mxu0 0
        %8144 = vmatmul.mubr.bf16.gmra.mrb[0].mxu0 %v8022
        %v8145 = vpop.f32.mrb[0].mxu0
        %v8146 = vadd.f32 0.0, %v8145
        %v8147 = vpop.f32.mrb[0].mxu0
        %v8148 = vpop.f32.mrb[0].mxu0
        %v8149 = vadd.f32 0.0, %v8148
        %v8150 = vpop.f32.mrb[0].mxu0
        %8151 = vmatprep.mubr.bf16.mxu0 0
        %8152 = vmatmul.mubr.bf16.gmra.mrb[0].mxu0 %v8025
        %v8153 = vpop.f32.mrb[0].mxu0
        %v8154 = vadd.f32 0.0, %v8153
        %v8155 = vpop.f32.mrb[0].mxu0
        %v8156 = vpop.f32.mrb[0].mxu0
        %v8157 = vadd.f32 0.0, %v8156
        %v8158 = vpop.f32.mrb[0].mxu0
        %8159 = vmatprep.mubr.bf16.mxu0 0
        %8160 = vmatmul.mubr.bf16.gmra.mrb[0].mxu0 %v8028
        %v8161 = vpop.f32.mrb[0].mxu0
        %v8162 = vadd.f32 0.0, %v8161
        %v8163 = vpop.f32.mrb[0].mxu0
        %v8164 = vpop.f32.mrb[0].mxu0
        %v8165 = vadd.f32 0.0, %v8164
        %v8166 = vpop.f32.mrb[0].mxu0
        %8167 = vmatprep.mubr.bf16.mxu0 0
        %8168 = vmatmul.mubr.bf16.gmra.mrb[0].mxu0 %v8031
        %v8169 = vpop.f32.mrb[0].mxu0
        %v8170 = vadd.f32 0.0, %v8169
        %v8171 = vpop.f32.mrb[0].mxu0
        %v8172 = vpop.f32.mrb[0].mxu0
        %v8173 = vadd.f32 0.0, %v8172
        %v8174 = vpop.f32.mrb[0].mxu0
        %8175 = vmatprep.mubr.bf16.mxu0 0
        %8176 = vmatmul.mubr.bf16.gmra.mrb[0].mxu0 %v8034
        %v8177 = vpop.f32.mrb[0].mxu0
        %v8178 = vadd.f32 0.0, %v8177
        %v8179 = vpop.f32.mrb[0].mxu0
        %v8180 = vpop.f32.mrb[0].mxu0
        %v8181 = vadd.f32 0.0, %v8180
        %v8182 = vpop.f32.mrb[0].mxu0
        %8183 = vmatprep.mubr.bf16.mxu0 0
        %8184 = vmatmul.mubr.bf16.gmra.mrb[0].mxu0 %v8037
        %v8185 = vpop.f32.mrb[0].mxu0
        %v8186 = vadd.f32 0.0, %v8185
        %v8187 = vpop.f32.mrb[0].mxu0
        %v8188 = vpop.f32.mrb[0].mxu0
        %v8189 = vadd.f32 0.0, %v8188
        %v8190 = vpop.f32.mrb[0].mxu0
        %8191 = vmatprep.mubr.bf16.mxu0 0
        %8192 = vmatmul.mubr.bf16.gmra.mrb[0].mxu0 %v8040
        %v8193 = vpop.f32.mrb[0].mxu0
        %v8194 = vadd.f32 0.0, %v8193
        %v8195 = vpop.f32.mrb[0].mxu0
        %v8196 = vpop.f32.mrb[0].mxu0
        %v8197 = vadd.f32 0.0, %v8196
        %v8198 = vpop.f32.mrb[0].mxu0
        %8199 = vmatprep.mubr.bf16.mxu0 0
        %8200 = vmatmul.mubr.bf16.gmra.mrb[0].mxu0 %v8043
        %v8201 = vpop.f32.mrb[0].mxu0
        %v8202 = vadd.f32 0.0, %v8201
        %v8203 = vpop.f32.mrb[0].mxu0
        %v8204 = vpop.f32.mrb[0].mxu0
        %v8205 = vadd.f32 0.0, %v8204
        %v8206 = vpop.f32.mrb[0].mxu0
        %8207 = vmatprep.mubr.bf16.mxu0 0
        %8208 = vmatmul.mubr.bf16.gmra.mrb[0].mxu0 %v8046
        %v8209 = vpop.f32.mrb[0].mxu0
        %v8210 = vadd.f32 0.0, %v8209
        %v8211 = vpop.f32.mrb[0].mxu0
        %v8212 = vpop.f32.mrb[0].mxu0
        %v8213 = vadd.f32 0.0, %v8212
        %v8214 = vpop.f32.mrb[0].mxu0
        %8215 = vmatprep.mubr.bf16.mxu0 0
        %8216 = vmatmul.mubr.bf16.gmra.mrb[0].mxu0 %v8049
        %v8217 = vpop.f32.mrb[0].mxu0
        %v8218 = vadd.f32 0.0, %v8217
        %v8219 = vpop.f32.mrb[0].mxu0
        %v8220 = vpop.f32.mrb[0].mxu0
        %v8221 = vadd.f32 0.0, %v8220
        %v8222 = vpop.f32.mrb[0].mxu0
        %8223 = vmatprep.mubr.bf16.mxu0 0
        %8224 = vmatmul.mubr.bf16.gmra.mrb[0].mxu0 %v8052
        %v8225 = vpop.f32.mrb[0].mxu0
        %v8226 = vadd.f32 0.0, %v8225
        %v8227 = vpop.f32.mrb[0].mxu0
        %v8228 = vpop.f32.mrb[0].mxu0
        %v8229 = vadd.f32 0.0, %v8228
        %v8230 = vpop.f32.mrb[0].mxu0
        %8231 = vmatprep.mubr.bf16.mxu0 0
        %8232 = vmatmul.mubr.bf16.gmra.mrb[0].mxu0 %v8055
        %v8233 = vpop.f32.mrb[0].mxu0
        %v8234 = vadd.f32 0.0, %v8233
        %v8235 = vpop.f32.mrb[0].mxu0
        %v8236 = vpop.f32.mrb[0].mxu0
        %v8237 = vadd.f32 0.0, %v8236
        %v8238 = vpop.f32.mrb[0].mxu0
        %8239 = vmatprep.mubr.bf16.mxu0 0
        %8240 = vmatmul.mubr.bf16.gmra.mrb[0].mxu0 %v8058
        %v8241 = vpop.f32.mrb[0].mxu0
        %v8242 = vadd.f32 0.0, %v8241
        %v8243 = vpop.f32.mrb[0].mxu0
        %v8244 = vpop.f32.mrb[0].mxu0
        %v8245 = vadd.f32 0.0, %v8244
        %v8246 = vpop.f32.mrb[0].mxu0
        %8247 = vmatprep.mubr.bf16.mxu0 0
        %8248 = vmatmul.mubr.bf16.gmra.mrb[0].mxu0 %v8061
        %v8249 = vpop.f32.mrb[0].mxu0
        %v8250 = vadd.f32 0.0, %v8249
        %v8251 = vpop.f32.mrb[0].mxu0
        %v8252 = vpop.f32.mrb[0].mxu0
        %v8253 = vadd.f32 0.0, %v8252
        %v8254 = vpop.f32.mrb[0].mxu0
        %8255 = vdwg.mxu0
        %v8256 = vadd.f32 %v7752, %v8098
        %v8257 = vadd.f32 %v7755, %v8101
        %v8258 = vadd.f32 %v7760, %v8106
        %v8259 = vadd.f32 %v7763, %v8109
        %v8260 = vadd.f32 %v7768, %v8114
        %v8261 = vadd.f32 %v7771, %v8117
        %v8262 = vadd.f32 %v7776, %v8122
        %v8263 = vadd.f32 %v7779, %v8125
        %v8264 = vadd.f32 %v7784, %v8130
        %v8265 = vadd.f32 %v7787, %v8133
        %v8266 = vadd.f32 %v7792, %v8138
        %v8267 = vadd.f32 %v7795, %v8141
        %v8268 = vadd.f32 %v7800, %v8146
        %v8269 = vadd.f32 %v7803, %v8149
        %v8270 = vadd.f32 %v7808, %v8154
        %v8271 = vadd.f32 %v7811, %v8157
        %v8272 = vadd.f32 %v7816, %v8162
        %v8273 = vadd.f32 %v7819, %v8165
        %v8274 = vadd.f32 %v7824, %v8170
        %v8275 = vadd.f32 %v7827, %v8173
        %v8276 = vadd.f32 %v7832, %v8178
        %v8277 = vadd.f32 %v7835, %v8181
        %v8278 = vadd.f32 %v7840, %v8186
        %v8279 = vadd.f32 %v7843, %v8189
        %v8280 = vadd.f32 %v7848, %v8194
        %v8281 = vadd.f32 %v7851, %v8197
        %v8282 = vadd.f32 %v7856, %v8202
        %v8283 = vadd.f32 %v7859, %v8205
        %v8284 = vadd.f32 %v7864, %v8210
        %v8285 = vadd.f32 %v7867, %v8213
        %v8286 = vadd.f32 %v7872, %v8218
        %v8287 = vadd.f32 %v7875, %v8221
        %v8288 = vadd.f32 %v7880, %v8226
        %v8289 = vadd.f32 %v7883, %v8229
        %v8290 = vadd.f32 %v7888, %v8234
        %v8291 = vadd.f32 %v7891, %v8237
        %v8292 = vadd.f32 %v7896, %v8242
        %v8293 = vadd.f32 %v7899, %v8245
        %v8294 = vadd.f32 %v7904, %v8250
        %v8295 = vadd.f32 %v7907, %v8253
        %v8296 = vld [vmem:[#allocation3 + $0x14] sm:$0xff]
        %v8297 = vld [vmem:[#allocation3 + $0x1c] sm:$0xff]
        %v8298 = vld [vmem:[#allocation3 + $0x24] sm:$0xff]
        %v8299 = vld [vmem:[#allocation3 + $0x2c] sm:$0xff]
        %v8300 = vld [vmem:[#allocation3 + $0x34] sm:$0xff]
        %v8301 = vld [vmem:[#allocation3 + $0x3c] sm:$0xff]
        %v8302 = vld [vmem:[#allocation3 + $0x44] sm:$0xff]
        %v8303 = vld [vmem:[#allocation3 + $0x4c] sm:$0xff]
        %v8304 = vld [vmem:[#allocation3 + $0x54] sm:$0xff]
        %v8305 = vld [vmem:[#allocation3 + $0x5c] sm:$0xff]
        %v8306 = vld [vmem:[#allocation3 + $0x64] sm:$0xff]
        %v8307 = vld [vmem:[#allocation3 + $0x6c] sm:$0xff]
        %v8308 = vld [vmem:[#allocation3 + $0x74] sm:$0xff]
        %v8309 = vld [vmem:[#allocation3 + $0x7c] sm:$0xff]
        %v8310 = vld [vmem:[#allocation3 + $0x84] sm:$0xff]
        %v8311 = vld [vmem:[#allocation3 + $0x8c] sm:$0xff]
        %v8312 = vld [vmem:[#allocation3 + $0x94] sm:$0xff]
        %v8313 = vld [vmem:[#allocation3 + $0x9c] sm:$0xff]
        %v8314 = vld [vmem:[#allocation3 + $0xa4] sm:$0xff]
        %v8315 = vld [vmem:[#allocation3 + $0xac] sm:$0xff]
        %v8316 = vld [vmem:[#allocation3 + $0xb4] sm:$0xff]
        %v8317 = vld [vmem:[#allocation3 + $0xbc] sm:$0xff]
        %v8318 = vld [vmem:[#allocation3 + $0xc4] sm:$0xff]
        %v8319 = vld [vmem:[#allocation3 + $0xcc] sm:$0xff]
        %v8320 = vld [vmem:[#allocation3 + $0xd4] sm:$0xff]
        %v8321 = vld [vmem:[#allocation3 + $0xdc] sm:$0xff]
        %v8322 = vld [vmem:[#allocation3 + $0xe4] sm:$0xff]
        %v8323 = vld [vmem:[#allocation3 + $0xec] sm:$0xff]
        %v8324 = vld [vmem:[#allocation3 + $0xf4] sm:$0xff]
        %v8325 = vld [vmem:[#allocation3 + $0xfc] sm:$0xff]
        %v8326 = vld [vmem:[#allocation3 + $0x104] sm:$0xff]
        %v8327 = vld [vmem:[#allocation3 + $0x10c] sm:$0xff]
        %v8328 = vld [vmem:[#allocation3 + $0x114] sm:$0xff]
        %v8329 = vld [vmem:[#allocation3 + $0x11c] sm:$0xff]
        %v8330 = vld [vmem:[#allocation3 + $0x124] sm:$0xff]
        %v8331 = vld [vmem:[#allocation3 + $0x12c] sm:$0xff]
        %v8332 = vld [vmem:[#allocation3 + $0x134] sm:$0xff]
        %v8333 = vld [vmem:[#allocation3 + $0x13c] sm:$0xff]
        %v8334 = vld [vmem:[#allocation3 + $0x144] sm:$0xff]
        %v8335 = vld [vmem:[#allocation3 + $0x14c] sm:$0xff]
        %v8336 = vpack.c.bf16 %v8297, %v8296
        %v8337 = vpack.c.bf16 %v8299, %v8298
        %v8338 = vpack.c.bf16 %v8301, %v8300
        %v8339 = vpack.c.bf16 %v8303, %v8302
        %v8340 = vpack.c.bf16 %v8305, %v8304
        %v8341 = vpack.c.bf16 %v8307, %v8306
        %v8342 = vpack.c.bf16 %v8309, %v8308
        %v8343 = vpack.c.bf16 %v8311, %v8310
        %v8344 = vpack.c.bf16 %v8313, %v8312
        %v8345 = vpack.c.bf16 %v8315, %v8314
        %v8346 = vpack.c.bf16 %v8317, %v8316
        %v8347 = vpack.c.bf16 %v8319, %v8318
        %v8348 = vpack.c.bf16 %v8321, %v8320
        %v8349 = vpack.c.bf16 %v8323, %v8322
        %v8350 = vpack.c.bf16 %v8325, %v8324
        %v8351 = vpack.c.bf16 %v8327, %v8326
        %v8352 = vpack.c.bf16 %v8329, %v8328
        %v8353 = vpack.c.bf16 %v8331, %v8330
        %v8354 = vpack.c.bf16 %v8333, %v8332
        %v8355 = vpack.c.bf16 %v8335, %v8334
        %s8356 = scalar_lea.vmem [#allocation19], 96
        %v8357 = vld [vmem:[%s8356] sm:$0xf]
        %v8358 = vld [vmem:[%s8356 + $0x4] sm:$0xf]
        %v8359 = vld [vmem:[%s8356 + $0x8] sm:$0xf]
        %v8360 = vld [vmem:[%s8356 + $0xc] sm:$0xf]
        %v8361 = vld [vmem:[%s8356 + $0x10] sm:$0xf]
        %v8362 = vld [vmem:[%s8356 + $0x14] sm:$0xf]
        %v8363 = vld [vmem:[%s8356 + $0x18] sm:$0xf]
        %v8364 = vld [vmem:[%s8356 + $0x1c] sm:$0xf]
        %v8373 = vunpack.c.l.b16 %v8357
        %v8374 = vunpack.c.l.b16 %v8358
        %v8375 = vunpack.c.l.b16 %v8359
        %v8376 = vunpack.c.l.b16 %v8360
        %v8377 = vunpack.c.l.b16 %v8361
        %v8378 = vunpack.c.l.b16 %v8362
        %v8379 = vunpack.c.l.b16 %v8363
        %v8380 = vunpack.c.l.b16 %v8364
        %v8381 = vpack.c.b16 %v8374, %v8373
        %v8382 = vpack.c.b16 %v8376, %v8375
        %v8383 = vpack.c.b16 %v8378, %v8377
        %v8384 = vpack.c.b16 %v8380, %v8379
        %v8390 = vsel %vm6213, %v8336, 0
        %v8393 = vsel %vm6213, %v8337, 0
        %v8396 = vsel %vm6213, %v8338, 0
        %v8399 = vsel %vm6213, %v8339, 0
        %v8402 = vsel %vm6213, %v8340, 0
        %v8405 = vsel %vm6213, %v8341, 0
        %v8408 = vsel %vm6213, %v8342, 0
        %v8411 = vsel %vm6213, %v8343, 0
        %v8414 = vsel %vm6213, %v8344, 0
        %v8417 = vsel %vm6213, %v8345, 0
        %v8420 = vsel %vm6213, %v8346, 0
        %v8423 = vsel %vm6213, %v8347, 0
        %v8426 = vsel %vm6213, %v8348, 0
        %v8429 = vsel %vm6213, %v8349, 0
        %v8432 = vsel %vm6213, %v8350, 0
        %v8435 = vsel %vm6213, %v8351, 0
        %v8438 = vsel %vm6213, %v8352, 0
        %v8441 = vsel %vm6213, %v8353, 0
        %v8444 = vsel %vm6213, %v8354, 0
        %v8447 = vsel %vm6213, %v8355, 0
        %8449 = vmatprep.subr.bf16.mxu0 0
        %8450 = vmatpush1.bf16.msra.mxu0 %v8381
        %8451 = vmatprep.subr.bf16.mxu0 0
        %8452 = vmatpush1.bf16.msra.mxu0 %v8382
        %8453 = vmatprep.subr.bf16.mxu0 0
        %8454 = vmatpush1.bf16.msra.mxu0 %v8383
        %8455 = vmatprep.subr.bf16.mxu0 0
        %8456 = vmatpush1.bf16.msra.mxu0 %v8384
        %8457 = vmatprep.subr.bf16.mxu0 0
        %8458 = vmatpush1.bf16.msra.mxu0 0
        %8459 = vmatprep.subr.bf16.mxu0 0
        %8460 = vmatpush1.bf16.msra.mxu0 0
        %8461 = vmatprep.subr.bf16.mxu0 0
        %8462 = vmatpush1.bf16.msra.mxu0 0
        %8463 = vmatprep.subr.bf16.mxu0 0
        %8464 = vmatpush1.bf16.msra.mxu0 0
        %8465 = vmatprep.subr.bf16.mxu0 0
        %8466 = vmatpush1.bf16.msra.mxu0 0
        %8467 = vmatprep.subr.bf16.mxu0 0
        %8468 = vmatpush1.bf16.msra.mxu0 0
        %8469 = vmatprep.subr.bf16.mxu0 0
        %8470 = vmatpush1.bf16.msra.mxu0 0
        %8471 = vmatprep.subr.bf16.mxu0 0
        %8472 = vmatpush1.bf16.msra.mxu0 0
        %8473 = vmatprep.subr.bf16.mxu0 0
        %8474 = vmatpush1.bf16.msra.mxu0 0
        %8475 = vmatprep.subr.bf16.mxu0 0
        %8476 = vmatpush1.bf16.msra.mxu0 0
        %8477 = vmatprep.subr.bf16.mxu0 0
        %8478 = vmatpush1.bf16.msra.mxu0 0
        %8479 = vmatprep.subr.bf16.mxu0 0
        %8480 = vmatpush1.bf16.msra.mxu0 0
        %8481 = vmatprep.mubr.bf16.mxu0 0
        %8482 = vmatmul.mubr.bf16.gmra.mrb[0].mxu0 %v8390
        %v8483 = vpop.f32.mrb[0].mxu0
        %v8484 = vadd.f32 0.0, %v8483
        %v8485 = vpop.f32.mrb[0].mxu0
        %v8486 = vpop.f32.mrb[0].mxu0
        %v8487 = vadd.f32 0.0, %v8486
        %v8488 = vpop.f32.mrb[0].mxu0
        %8489 = vmatprep.mubr.bf16.mxu0 0
        %8490 = vmatmul.mubr.bf16.gmra.mrb[0].mxu0 %v8393
        %v8491 = vpop.f32.mrb[0].mxu0
        %v8492 = vadd.f32 0.0, %v8491
        %v8493 = vpop.f32.mrb[0].mxu0
        %v8494 = vpop.f32.mrb[0].mxu0
        %v8495 = vadd.f32 0.0, %v8494
        %v8496 = vpop.f32.mrb[0].mxu0
        %8497 = vmatprep.mubr.bf16.mxu0 0
        %8498 = vmatmul.mubr.bf16.gmra.mrb[0].mxu0 %v8396
        %v8499 = vpop.f32.mrb[0].mxu0
        %v8500 = vadd.f32 0.0, %v8499
        %v8501 = vpop.f32.mrb[0].mxu0
        %v8502 = vpop.f32.mrb[0].mxu0
        %v8503 = vadd.f32 0.0, %v8502
        %v8504 = vpop.f32.mrb[0].mxu0
        %8505 = vmatprep.mubr.bf16.mxu0 0
        %8506 = vmatmul.mubr.bf16.gmra.mrb[0].mxu0 %v8399
        %v8507 = vpop.f32.mrb[0].mxu0
        %v8508 = vadd.f32 0.0, %v8507
        %v8509 = vpop.f32.mrb[0].mxu0
        %v8510 = vpop.f32.mrb[0].mxu0
        %v8511 = vadd.f32 0.0, %v8510
        %v8512 = vpop.f32.mrb[0].mxu0
        %8513 = vmatprep.mubr.bf16.mxu0 0
        %8514 = vmatmul.mubr.bf16.gmra.mrb[0].mxu0 %v8402
        %v8515 = vpop.f32.mrb[0].mxu0
        %v8516 = vadd.f32 0.0, %v8515
        %v8517 = vpop.f32.mrb[0].mxu0
        %v8518 = vpop.f32.mrb[0].mxu0
        %v8519 = vadd.f32 0.0, %v8518
        %v8520 = vpop.f32.mrb[0].mxu0
        %8521 = vmatprep.mubr.bf16.mxu0 0
        %8522 = vmatmul.mubr.bf16.gmra.mrb[0].mxu0 %v8405
        %v8523 = vpop.f32.mrb[0].mxu0
        %v8524 = vadd.f32 0.0, %v8523
        %v8525 = vpop.f32.mrb[0].mxu0
        %v8526 = vpop.f32.mrb[0].mxu0
        %v8527 = vadd.f32 0.0, %v8526
        %v8528 = vpop.f32.mrb[0].mxu0
        %8529 = vmatprep.mubr.bf16.mxu0 0
        %8530 = vmatmul.mubr.bf16.gmra.mrb[0].mxu0 %v8408
        %v8531 = vpop.f32.mrb[0].mxu0
        %v8532 = vadd.f32 0.0, %v8531
        %v8533 = vpop.f32.mrb[0].mxu0
        %v8534 = vpop.f32.mrb[0].mxu0
        %v8535 = vadd.f32 0.0, %v8534
        %v8536 = vpop.f32.mrb[0].mxu0
        %8537 = vmatprep.mubr.bf16.mxu0 0
        %8538 = vmatmul.mubr.bf16.gmra.mrb[0].mxu0 %v8411
        %v8539 = vpop.f32.mrb[0].mxu0
        %v8540 = vadd.f32 0.0, %v8539
        %v8541 = vpop.f32.mrb[0].mxu0
        %v8542 = vpop.f32.mrb[0].mxu0
        %v8543 = vadd.f32 0.0, %v8542
        %v8544 = vpop.f32.mrb[0].mxu0
        %8545 = vmatprep.mubr.bf16.mxu0 0
        %8546 = vmatmul.mubr.bf16.gmra.mrb[0].mxu0 %v8414
        %v8547 = vpop.f32.mrb[0].mxu0
        %v8548 = vadd.f32 0.0, %v8547
        %v8549 = vpop.f32.mrb[0].mxu0
        %v8550 = vpop.f32.mrb[0].mxu0
        %v8551 = vadd.f32 0.0, %v8550
        %v8552 = vpop.f32.mrb[0].mxu0
        %8553 = vmatprep.mubr.bf16.mxu0 0
        %8554 = vmatmul.mubr.bf16.gmra.mrb[0].mxu0 %v8417
        %v8555 = vpop.f32.mrb[0].mxu0
        %v8556 = vadd.f32 0.0, %v8555
        %v8557 = vpop.f32.mrb[0].mxu0
        %v8558 = vpop.f32.mrb[0].mxu0
        %v8559 = vadd.f32 0.0, %v8558
        %v8560 = vpop.f32.mrb[0].mxu0
        %8561 = vmatprep.mubr.bf16.mxu0 0
        %8562 = vmatmul.mubr.bf16.gmra.mrb[0].mxu0 %v8420
        %v8563 = vpop.f32.mrb[0].mxu0
        %v8564 = vadd.f32 0.0, %v8563
        %v8565 = vpop.f32.mrb[0].mxu0
        %v8566 = vpop.f32.mrb[0].mxu0
        %v8567 = vadd.f32 0.0, %v8566
        %v8568 = vpop.f32.mrb[0].mxu0
        %8569 = vmatprep.mubr.bf16.mxu0 0
        %8570 = vmatmul.mubr.bf16.gmra.mrb[0].mxu0 %v8423
        %v8571 = vpop.f32.mrb[0].mxu0
        %v8572 = vadd.f32 0.0, %v8571
        %v8573 = vpop.f32.mrb[0].mxu0
        %v8574 = vpop.f32.mrb[0].mxu0
        %v8575 = vadd.f32 0.0, %v8574
        %v8576 = vpop.f32.mrb[0].mxu0
        %8577 = vmatprep.mubr.bf16.mxu0 0
        %8578 = vmatmul.mubr.bf16.gmra.mrb[0].mxu0 %v8426
        %v8579 = vpop.f32.mrb[0].mxu0
        %v8580 = vadd.f32 0.0, %v8579
        %v8581 = vpop.f32.mrb[0].mxu0
        %v8582 = vpop.f32.mrb[0].mxu0
        %v8583 = vadd.f32 0.0, %v8582
        %v8584 = vpop.f32.mrb[0].mxu0
        %8585 = vmatprep.mubr.bf16.mxu0 0
        %8586 = vmatmul.mubr.bf16.gmra.mrb[0].mxu0 %v8429
        %v8587 = vpop.f32.mrb[0].mxu0
        %v8588 = vadd.f32 0.0, %v8587
        %v8589 = vpop.f32.mrb[0].mxu0
        %v8590 = vpop.f32.mrb[0].mxu0
        %v8591 = vadd.f32 0.0, %v8590
        %v8592 = vpop.f32.mrb[0].mxu0
        %8593 = vmatprep.mubr.bf16.mxu0 0
        %8594 = vmatmul.mubr.bf16.gmra.mrb[0].mxu0 %v8432
        %v8595 = vpop.f32.mrb[0].mxu0
        %v8596 = vadd.f32 0.0, %v8595
        %v8597 = vpop.f32.mrb[0].mxu0
        %v8598 = vpop.f32.mrb[0].mxu0
        %v8599 = vadd.f32 0.0, %v8598
        %v8600 = vpop.f32.mrb[0].mxu0
        %8601 = vmatprep.mubr.bf16.mxu0 0
        %8602 = vmatmul.mubr.bf16.gmra.mrb[0].mxu0 %v8435
        %v8603 = vpop.f32.mrb[0].mxu0
        %v8604 = vadd.f32 0.0, %v8603
        %v8605 = vpop.f32.mrb[0].mxu0
        %v8606 = vpop.f32.mrb[0].mxu0
        %v8607 = vadd.f32 0.0, %v8606
        %v8608 = vpop.f32.mrb[0].mxu0
        %8609 = vmatprep.mubr.bf16.mxu0 0
        %8610 = vmatmul.mubr.bf16.gmra.mrb[0].mxu0 %v8438
        %v8611 = vpop.f32.mrb[0].mxu0
        %v8612 = vadd.f32 0.0, %v8611
        %v8613 = vpop.f32.mrb[0].mxu0
        %v8614 = vpop.f32.mrb[0].mxu0
        %v8615 = vadd.f32 0.0, %v8614
        %v8616 = vpop.f32.mrb[0].mxu0
        %8617 = vmatprep.mubr.bf16.mxu0 0
        %8618 = vmatmul.mubr.bf16.gmra.mrb[0].mxu0 %v8441
        %v8619 = vpop.f32.mrb[0].mxu0
        %v8620 = vadd.f32 0.0, %v8619
        %v8621 = vpop.f32.mrb[0].mxu0
        %v8622 = vpop.f32.mrb[0].mxu0
        %v8623 = vadd.f32 0.0, %v8622
        %v8624 = vpop.f32.mrb[0].mxu0
        %8625 = vmatprep.mubr.bf16.mxu0 0
        %8626 = vmatmul.mubr.bf16.gmra.mrb[0].mxu0 %v8444
        %v8627 = vpop.f32.mrb[0].mxu0
        %v8628 = vadd.f32 0.0, %v8627
        %v8629 = vpop.f32.mrb[0].mxu0
        %v8630 = vpop.f32.mrb[0].mxu0
        %v8631 = vadd.f32 0.0, %v8630
        %v8632 = vpop.f32.mrb[0].mxu0
        %8633 = vmatprep.mubr.bf16.mxu0 0
        %8634 = vmatmul.mubr.bf16.gmra.mrb[0].mxu0 %v8447
        %v8635 = vpop.f32.mrb[0].mxu0
        %v8636 = vadd.f32 0.0, %v8635
        %v8637 = vpop.f32.mrb[0].mxu0
        %v8638 = vpop.f32.mrb[0].mxu0
        %v8639 = vadd.f32 0.0, %v8638
        %v8640 = vpop.f32.mrb[0].mxu0
        %8641 = vdwg.mxu0
        %v8642 = vadd.f32 %v8256, %v8484
        %v8643 = vadd.f32 %v8257, %v8487
        %v8644 = vadd.f32 %v8258, %v8492
        %v8645 = vadd.f32 %v8259, %v8495
        %v8646 = vadd.f32 %v8260, %v8500
        %v8647 = vadd.f32 %v8261, %v8503
        %v8648 = vadd.f32 %v8262, %v8508
        %v8649 = vadd.f32 %v8263, %v8511
        %v8650 = vadd.f32 %v8264, %v8516
        %v8651 = vadd.f32 %v8265, %v8519
        %v8652 = vadd.f32 %v8266, %v8524
        %v8653 = vadd.f32 %v8267, %v8527
        %v8654 = vadd.f32 %v8268, %v8532
        %v8655 = vadd.f32 %v8269, %v8535
        %v8656 = vadd.f32 %v8270, %v8540
        %v8657 = vadd.f32 %v8271, %v8543
        %v8658 = vadd.f32 %v8272, %v8548
        %v8659 = vadd.f32 %v8273, %v8551
        %v8660 = vadd.f32 %v8274, %v8556
        %v8661 = vadd.f32 %v8275, %v8559
        %v8662 = vadd.f32 %v8276, %v8564
        %v8663 = vadd.f32 %v8277, %v8567
        %v8664 = vadd.f32 %v8278, %v8572
        %v8665 = vadd.f32 %v8279, %v8575
        %v8666 = vadd.f32 %v8280, %v8580
        %v8667 = vadd.f32 %v8281, %v8583
        %v8668 = vadd.f32 %v8282, %v8588
        %v8669 = vadd.f32 %v8283, %v8591
        %v8670 = vadd.f32 %v8284, %v8596
        %v8671 = vadd.f32 %v8285, %v8599
        %v8672 = vadd.f32 %v8286, %v8604
        %v8673 = vadd.f32 %v8287, %v8607
        %v8674 = vadd.f32 %v8288, %v8612
        %v8675 = vadd.f32 %v8289, %v8615
        %v8676 = vadd.f32 %v8290, %v8620
        %v8677 = vadd.f32 %v8291, %v8623
        %v8678 = vadd.f32 %v8292, %v8628
        %v8679 = vadd.f32 %v8293, %v8631
        %v8680 = vadd.f32 %v8294, %v8636
        %v8681 = vadd.f32 %v8295, %v8639
        %v8682 = vld [vmem:[#allocation3 + $0x15] sm:$0xff]
        %v8683 = vld [vmem:[#allocation3 + $0x1d] sm:$0xff]
        %v8684 = vld [vmem:[#allocation3 + $0x25] sm:$0xff]
        %v8685 = vld [vmem:[#allocation3 + $0x2d] sm:$0xff]
        %v8686 = vld [vmem:[#allocation3 + $0x35] sm:$0xff]
        %v8687 = vld [vmem:[#allocation3 + $0x3d] sm:$0xff]
        %v8688 = vld [vmem:[#allocation3 + $0x45] sm:$0xff]
        %v8689 = vld [vmem:[#allocation3 + $0x4d] sm:$0xff]
        %v8690 = vld [vmem:[#allocation3 + $0x55] sm:$0xff]
        %v8691 = vld [vmem:[#allocation3 + $0x5d] sm:$0xff]
        %v8692 = vld [vmem:[#allocation3 + $0x65] sm:$0xff]
        %v8693 = vld [vmem:[#allocation3 + $0x6d] sm:$0xff]
        %v8694 = vld [vmem:[#allocation3 + $0x75] sm:$0xff]
        %v8695 = vld [vmem:[#allocation3 + $0x7d] sm:$0xff]
        %v8696 = vld [vmem:[#allocation3 + $0x85] sm:$0xff]
        %v8697 = vld [vmem:[#allocation3 + $0x8d] sm:$0xff]
        %v8698 = vld [vmem:[#allocation3 + $0x95] sm:$0xff]
        %v8699 = vld [vmem:[#allocation3 + $0x9d] sm:$0xff]
        %v8700 = vld [vmem:[#allocation3 + $0xa5] sm:$0xff]
        %v8701 = vld [vmem:[#allocation3 + $0xad] sm:$0xff]
        %v8702 = vld [vmem:[#allocation3 + $0xb5] sm:$0xff]
        %v8703 = vld [vmem:[#allocation3 + $0xbd] sm:$0xff]
        %v8704 = vld [vmem:[#allocation3 + $0xc5] sm:$0xff]
        %v8705 = vld [vmem:[#allocation3 + $0xcd] sm:$0xff]
        %v8706 = vld [vmem:[#allocation3 + $0xd5] sm:$0xff]
        %v8707 = vld [vmem:[#allocation3 + $0xdd] sm:$0xff]
        %v8708 = vld [vmem:[#allocation3 + $0xe5] sm:$0xff]
        %v8709 = vld [vmem:[#allocation3 + $0xed] sm:$0xff]
        %v8710 = vld [vmem:[#allocation3 + $0xf5] sm:$0xff]
        %v8711 = vld [vmem:[#allocation3 + $0xfd] sm:$0xff]
        %v8712 = vld [vmem:[#allocation3 + $0x105] sm:$0xff]
        %v8713 = vld [vmem:[#allocation3 + $0x10d] sm:$0xff]
        %v8714 = vld [vmem:[#allocation3 + $0x115] sm:$0xff]
        %v8715 = vld [vmem:[#allocation3 + $0x11d] sm:$0xff]
        %v8716 = vld [vmem:[#allocation3 + $0x125] sm:$0xff]
        %v8717 = vld [vmem:[#allocation3 + $0x12d] sm:$0xff]
        %v8718 = vld [vmem:[#allocation3 + $0x135] sm:$0xff]
        %v8719 = vld [vmem:[#allocation3 + $0x13d] sm:$0xff]
        %v8720 = vld [vmem:[#allocation3 + $0x145] sm:$0xff]
        %v8721 = vld [vmem:[#allocation3 + $0x14d] sm:$0xff]
        %v8722 = vpack.c.bf16 %v8683, %v8682
        %v8723 = vpack.c.bf16 %v8685, %v8684
        %v8724 = vpack.c.bf16 %v8687, %v8686
        %v8725 = vpack.c.bf16 %v8689, %v8688
        %v8726 = vpack.c.bf16 %v8691, %v8690
        %v8727 = vpack.c.bf16 %v8693, %v8692
        %v8728 = vpack.c.bf16 %v8695, %v8694
        %v8729 = vpack.c.bf16 %v8697, %v8696
        %v8730 = vpack.c.bf16 %v8699, %v8698
        %v8731 = vpack.c.bf16 %v8701, %v8700
        %v8732 = vpack.c.bf16 %v8703, %v8702
        %v8733 = vpack.c.bf16 %v8705, %v8704
        %v8734 = vpack.c.bf16 %v8707, %v8706
        %v8735 = vpack.c.bf16 %v8709, %v8708
        %v8736 = vpack.c.bf16 %v8711, %v8710
        %v8737 = vpack.c.bf16 %v8713, %v8712
        %v8738 = vpack.c.bf16 %v8715, %v8714
        %v8739 = vpack.c.bf16 %v8717, %v8716
        %v8740 = vpack.c.bf16 %v8719, %v8718
        %v8741 = vpack.c.bf16 %v8721, %v8720
        %s8742 = scalar_lea.vmem [#allocation19], 128
        %v8743 = vld [vmem:[%s8742] sm:$0xf]
        %v8744 = vld [vmem:[%s8742 + $0x4] sm:$0xf]
        %v8745 = vld [vmem:[%s8742 + $0x8] sm:$0xf]
        %v8746 = vld [vmem:[%s8742 + $0xc] sm:$0xf]
        %v8747 = vld [vmem:[%s8742 + $0x10] sm:$0xf]
        %v8748 = vld [vmem:[%s8742 + $0x14] sm:$0xf]
        %v8749 = vld [vmem:[%s8742 + $0x18] sm:$0xf]
        %v8750 = vld [vmem:[%s8742 + $0x1c] sm:$0xf]
        %v8759 = vunpack.c.l.b16 %v8743
        %v8760 = vunpack.c.l.b16 %v8744
        %v8761 = vunpack.c.l.b16 %v8745
        %v8762 = vunpack.c.l.b16 %v8746
        %v8763 = vunpack.c.l.b16 %v8747
        %v8764 = vunpack.c.l.b16 %v8748
        %v8765 = vunpack.c.l.b16 %v8749
        %v8766 = vunpack.c.l.b16 %v8750
        %v8767 = vpack.c.b16 %v8760, %v8759
        %v8768 = vpack.c.b16 %v8762, %v8761
        %v8769 = vpack.c.b16 %v8764, %v8763
        %v8770 = vpack.c.b16 %v8766, %v8765
        %v8776 = vsel %vm6213, %v8722, 0
        %v8779 = vsel %vm6213, %v8723, 0
        %v8782 = vsel %vm6213, %v8724, 0
        %v8785 = vsel %vm6213, %v8725, 0
        %v8788 = vsel %vm6213, %v8726, 0
        %v8791 = vsel %vm6213, %v8727, 0
        %v8794 = vsel %vm6213, %v8728, 0
        %v8797 = vsel %vm6213, %v8729, 0
        %v8800 = vsel %vm6213, %v8730, 0
        %v8803 = vsel %vm6213, %v8731, 0
        %v8806 = vsel %vm6213, %v8732, 0
        %v8809 = vsel %vm6213, %v8733, 0
        %v8812 = vsel %vm6213, %v8734, 0
        %v8815 = vsel %vm6213, %v8735, 0
        %v8818 = vsel %vm6213, %v8736, 0
        %v8821 = vsel %vm6213, %v8737, 0
        %v8824 = vsel %vm6213, %v8738, 0
        %v8827 = vsel %vm6213, %v8739, 0
        %v8830 = vsel %vm6213, %v8740, 0
        %v8833 = vsel %vm6213, %v8741, 0
        %8835 = vmatprep.subr.bf16.mxu0 0
        %8836 = vmatpush1.bf16.msra.mxu0 %v8767
        %8837 = vmatprep.subr.bf16.mxu0 0
        %8838 = vmatpush1.bf16.msra.mxu0 %v8768
        %8839 = vmatprep.subr.bf16.mxu0 0
        %8840 = vmatpush1.bf16.msra.mxu0 %v8769
        %8841 = vmatprep.subr.bf16.mxu0 0
        %8842 = vmatpush1.bf16.msra.mxu0 %v8770
        %8843 = vmatprep.subr.bf16.mxu0 0
        %8844 = vmatpush1.bf16.msra.mxu0 0
        %8845 = vmatprep.subr.bf16.mxu0 0
        %8846 = vmatpush1.bf16.msra.mxu0 0
        %8847 = vmatprep.subr.bf16.mxu0 0
        %8848 = vmatpush1.bf16.msra.mxu0 0
        %8849 = vmatprep.subr.bf16.mxu0 0
        %8850 = vmatpush1.bf16.msra.mxu0 0
        %8851 = vmatprep.subr.bf16.mxu0 0
        %8852 = vmatpush1.bf16.msra.mxu0 0
        %8853 = vmatprep.subr.bf16.mxu0 0
        %8854 = vmatpush1.bf16.msra.mxu0 0
        %8855 = vmatprep.subr.bf16.mxu0 0
        %8856 = vmatpush1.bf16.msra.mxu0 0
        %8857 = vmatprep.subr.bf16.mxu0 0
        %8858 = vmatpush1.bf16.msra.mxu0 0
        %8859 = vmatprep.subr.bf16.mxu0 0
        %8860 = vmatpush1.bf16.msra.mxu0 0
        %8861 = vmatprep.subr.bf16.mxu0 0
        %8862 = vmatpush1.bf16.msra.mxu0 0
        %8863 = vmatprep.subr.bf16.mxu0 0
        %8864 = vmatpush1.bf16.msra.mxu0 0
        %8865 = vmatprep.subr.bf16.mxu0 0
        %8866 = vmatpush1.bf16.msra.mxu0 0
        %8867 = vmatprep.mubr.bf16.mxu0 0
        %8868 = vmatmul.mubr.bf16.gmra.mrb[0].mxu0 %v8776
        %v8869 = vpop.f32.mrb[0].mxu0
        %v8870 = vadd.f32 0.0, %v8869
        %v8871 = vpop.f32.mrb[0].mxu0
        %v8872 = vpop.f32.mrb[0].mxu0
        %v8873 = vadd.f32 0.0, %v8872
        %v8874 = vpop.f32.mrb[0].mxu0
        %8875 = vmatprep.mubr.bf16.mxu0 0
        %8876 = vmatmul.mubr.bf16.gmra.mrb[0].mxu0 %v8779
        %v8877 = vpop.f32.mrb[0].mxu0
        %v8878 = vadd.f32 0.0, %v8877
        %v8879 = vpop.f32.mrb[0].mxu0
        %v8880 = vpop.f32.mrb[0].mxu0
        %v8881 = vadd.f32 0.0, %v8880
        %v8882 = vpop.f32.mrb[0].mxu0
        %8883 = vmatprep.mubr.bf16.mxu0 0
        %8884 = vmatmul.mubr.bf16.gmra.mrb[0].mxu0 %v8782
        %v8885 = vpop.f32.mrb[0].mxu0
        %v8886 = vadd.f32 0.0, %v8885
        %v8887 = vpop.f32.mrb[0].mxu0
        %v8888 = vpop.f32.mrb[0].mxu0
        %v8889 = vadd.f32 0.0, %v8888
        %v8890 = vpop.f32.mrb[0].mxu0
        %8891 = vmatprep.mubr.bf16.mxu0 0
        %8892 = vmatmul.mubr.bf16.gmra.mrb[0].mxu0 %v8785
        %v8893 = vpop.f32.mrb[0].mxu0
        %v8894 = vadd.f32 0.0, %v8893
        %v8895 = vpop.f32.mrb[0].mxu0
        %v8896 = vpop.f32.mrb[0].mxu0
        %v8897 = vadd.f32 0.0, %v8896
        %v8898 = vpop.f32.mrb[0].mxu0
        %8899 = vmatprep.mubr.bf16.mxu0 0
        %8900 = vmatmul.mubr.bf16.gmra.mrb[0].mxu0 %v8788
        %v8901 = vpop.f32.mrb[0].mxu0
        %v8902 = vadd.f32 0.0, %v8901
        %v8903 = vpop.f32.mrb[0].mxu0
        %v8904 = vpop.f32.mrb[0].mxu0
        %v8905 = vadd.f32 0.0, %v8904
        %v8906 = vpop.f32.mrb[0].mxu0
        %8907 = vmatprep.mubr.bf16.mxu0 0
        %8908 = vmatmul.mubr.bf16.gmra.mrb[0].mxu0 %v8791
        %v8909 = vpop.f32.mrb[0].mxu0
        %v8910 = vadd.f32 0.0, %v8909
        %v8911 = vpop.f32.mrb[0].mxu0
        %v8912 = vpop.f32.mrb[0].mxu0
        %v8913 = vadd.f32 0.0, %v8912
        %v8914 = vpop.f32.mrb[0].mxu0
        %8915 = vmatprep.mubr.bf16.mxu0 0
        %8916 = vmatmul.mubr.bf16.gmra.mrb[0].mxu0 %v8794
        %v8917 = vpop.f32.mrb[0].mxu0
        %v8918 = vadd.f32 0.0, %v8917
        %v8919 = vpop.f32.mrb[0].mxu0
        %v8920 = vpop.f32.mrb[0].mxu0
        %v8921 = vadd.f32 0.0, %v8920
        %v8922 = vpop.f32.mrb[0].mxu0
        %8923 = vmatprep.mubr.bf16.mxu0 0
        %8924 = vmatmul.mubr.bf16.gmra.mrb[0].mxu0 %v8797
        %v8925 = vpop.f32.mrb[0].mxu0
        %v8926 = vadd.f32 0.0, %v8925
        %v8927 = vpop.f32.mrb[0].mxu0
        %v8928 = vpop.f32.mrb[0].mxu0
        %v8929 = vadd.f32 0.0, %v8928
        %v8930 = vpop.f32.mrb[0].mxu0
        %8931 = vmatprep.mubr.bf16.mxu0 0
        %8932 = vmatmul.mubr.bf16.gmra.mrb[0].mxu0 %v8800
        %v8933 = vpop.f32.mrb[0].mxu0
        %v8934 = vadd.f32 0.0, %v8933
        %v8935 = vpop.f32.mrb[0].mxu0
        %v8936 = vpop.f32.mrb[0].mxu0
        %v8937 = vadd.f32 0.0, %v8936
        %v8938 = vpop.f32.mrb[0].mxu0
        %8939 = vmatprep.mubr.bf16.mxu0 0
        %8940 = vmatmul.mubr.bf16.gmra.mrb[0].mxu0 %v8803
        %v8941 = vpop.f32.mrb[0].mxu0
        %v8942 = vadd.f32 0.0, %v8941
        %v8943 = vpop.f32.mrb[0].mxu0
        %v8944 = vpop.f32.mrb[0].mxu0
        %v8945 = vadd.f32 0.0, %v8944
        %v8946 = vpop.f32.mrb[0].mxu0
        %8947 = vmatprep.mubr.bf16.mxu0 0
        %8948 = vmatmul.mubr.bf16.gmra.mrb[0].mxu0 %v8806
        %v8949 = vpop.f32.mrb[0].mxu0
        %v8950 = vadd.f32 0.0, %v8949
        %v8951 = vpop.f32.mrb[0].mxu0
        %v8952 = vpop.f32.mrb[0].mxu0
        %v8953 = vadd.f32 0.0, %v8952
        %v8954 = vpop.f32.mrb[0].mxu0
        %8955 = vmatprep.mubr.bf16.mxu0 0
        %8956 = vmatmul.mubr.bf16.gmra.mrb[0].mxu0 %v8809
        %v8957 = vpop.f32.mrb[0].mxu0
        %v8958 = vadd.f32 0.0, %v8957
        %v8959 = vpop.f32.mrb[0].mxu0
        %v8960 = vpop.f32.mrb[0].mxu0
        %v8961 = vadd.f32 0.0, %v8960
        %v8962 = vpop.f32.mrb[0].mxu0
        %8963 = vmatprep.mubr.bf16.mxu0 0
        %8964 = vmatmul.mubr.bf16.gmra.mrb[0].mxu0 %v8812
        %v8965 = vpop.f32.mrb[0].mxu0
        %v8966 = vadd.f32 0.0, %v8965
        %v8967 = vpop.f32.mrb[0].mxu0
        %v8968 = vpop.f32.mrb[0].mxu0
        %v8969 = vadd.f32 0.0, %v8968
        %v8970 = vpop.f32.mrb[0].mxu0
        %8971 = vmatprep.mubr.bf16.mxu0 0
        %8972 = vmatmul.mubr.bf16.gmra.mrb[0].mxu0 %v8815
        %v8973 = vpop.f32.mrb[0].mxu0
        %v8974 = vadd.f32 0.0, %v8973
        %v8975 = vpop.f32.mrb[0].mxu0
        %v8976 = vpop.f32.mrb[0].mxu0
        %v8977 = vadd.f32 0.0, %v8976
        %v8978 = vpop.f32.mrb[0].mxu0
        %8979 = vmatprep.mubr.bf16.mxu0 0
        %8980 = vmatmul.mubr.bf16.gmra.mrb[0].mxu0 %v8818
        %v8981 = vpop.f32.mrb[0].mxu0
        %v8982 = vadd.f32 0.0, %v8981
        %v8983 = vpop.f32.mrb[0].mxu0
        %v8984 = vpop.f32.mrb[0].mxu0
        %v8985 = vadd.f32 0.0, %v8984
        %v8986 = vpop.f32.mrb[0].mxu0
        %8987 = vmatprep.mubr.bf16.mxu0 0
        %8988 = vmatmul.mubr.bf16.gmra.mrb[0].mxu0 %v8821
        %v8989 = vpop.f32.mrb[0].mxu0
        %v8990 = vadd.f32 0.0, %v8989
        %v8991 = vpop.f32.mrb[0].mxu0
        %v8992 = vpop.f32.mrb[0].mxu0
        %v8993 = vadd.f32 0.0, %v8992
        %v8994 = vpop.f32.mrb[0].mxu0
        %8995 = vmatprep.mubr.bf16.mxu0 0
        %8996 = vmatmul.mubr.bf16.gmra.mrb[0].mxu0 %v8824
        %v8997 = vpop.f32.mrb[0].mxu0
        %v8998 = vadd.f32 0.0, %v8997
        %v8999 = vpop.f32.mrb[0].mxu0
        %v9000 = vpop.f32.mrb[0].mxu0
        %v9001 = vadd.f32 0.0, %v9000
        %v9002 = vpop.f32.mrb[0].mxu0
        %9003 = vmatprep.mubr.bf16.mxu0 0
        %9004 = vmatmul.mubr.bf16.gmra.mrb[0].mxu0 %v8827
        %v9005 = vpop.f32.mrb[0].mxu0
        %v9006 = vadd.f32 0.0, %v9005
        %v9007 = vpop.f32.mrb[0].mxu0
        %v9008 = vpop.f32.mrb[0].mxu0
        %v9009 = vadd.f32 0.0, %v9008
        %v9010 = vpop.f32.mrb[0].mxu0
        %9011 = vmatprep.mubr.bf16.mxu0 0
        %9012 = vmatmul.mubr.bf16.gmra.mrb[0].mxu0 %v8830
        %v9013 = vpop.f32.mrb[0].mxu0
        %v9014 = vadd.f32 0.0, %v9013
        %v9015 = vpop.f32.mrb[0].mxu0
        %v9016 = vpop.f32.mrb[0].mxu0
        %v9017 = vadd.f32 0.0, %v9016
        %v9018 = vpop.f32.mrb[0].mxu0
        %9019 = vmatprep.mubr.bf16.mxu0 0
        %9020 = vmatmul.mubr.bf16.gmra.mrb[0].mxu0 %v8833
        %v9021 = vpop.f32.mrb[0].mxu0
        %v9022 = vadd.f32 0.0, %v9021
        %v9023 = vpop.f32.mrb[0].mxu0
        %v9024 = vpop.f32.mrb[0].mxu0
        %v9025 = vadd.f32 0.0, %v9024
        %v9026 = vpop.f32.mrb[0].mxu0
        %9027 = vdwg.mxu0
        %v9028 = vadd.f32 %v8642, %v8870
        %v9029 = vadd.f32 %v8643, %v8873
        %v9030 = vadd.f32 %v8644, %v8878
        %v9031 = vadd.f32 %v8645, %v8881
        %v9032 = vadd.f32 %v8646, %v8886
        %v9033 = vadd.f32 %v8647, %v8889
        %v9034 = vadd.f32 %v8648, %v8894
        %v9035 = vadd.f32 %v8649, %v8897
        %v9036 = vadd.f32 %v8650, %v8902
        %v9037 = vadd.f32 %v8651, %v8905
        %v9038 = vadd.f32 %v8652, %v8910
        %v9039 = vadd.f32 %v8653, %v8913
        %v9040 = vadd.f32 %v8654, %v8918
        %v9041 = vadd.f32 %v8655, %v8921
        %v9042 = vadd.f32 %v8656, %v8926
        %v9043 = vadd.f32 %v8657, %v8929
        %v9044 = vadd.f32 %v8658, %v8934
        %v9045 = vadd.f32 %v8659, %v8937
        %v9046 = vadd.f32 %v8660, %v8942
        %v9047 = vadd.f32 %v8661, %v8945
        %v9048 = vadd.f32 %v8662, %v8950
        %v9049 = vadd.f32 %v8663, %v8953
        %v9050 = vadd.f32 %v8664, %v8958
        %v9051 = vadd.f32 %v8665, %v8961
        %v9052 = vadd.f32 %v8666, %v8966
        %v9053 = vadd.f32 %v8667, %v8969
        %v9054 = vadd.f32 %v8668, %v8974
        %v9055 = vadd.f32 %v8669, %v8977
        %v9056 = vadd.f32 %v8670, %v8982
        %v9057 = vadd.f32 %v8671, %v8985
        %v9058 = vadd.f32 %v8672, %v8990
        %v9059 = vadd.f32 %v8673, %v8993
        %v9060 = vadd.f32 %v8674, %v8998
        %v9061 = vadd.f32 %v8675, %v9001
        %v9062 = vadd.f32 %v8676, %v9006
        %v9063 = vadd.f32 %v8677, %v9009
        %v9064 = vadd.f32 %v8678, %v9014
        %v9065 = vadd.f32 %v8679, %v9017
        %v9066 = vadd.f32 %v8680, %v9022
        %v9067 = vadd.f32 %v8681, %v9025
        %v9068 = vld [vmem:[#allocation3 + $0x16] sm:$0xff]
        %v9069 = vld [vmem:[#allocation3 + $0x1e] sm:$0xff]
        %v9070 = vld [vmem:[#allocation3 + $0x26] sm:$0xff]
        %v9071 = vld [vmem:[#allocation3 + $0x2e] sm:$0xff]
        %v9072 = vld [vmem:[#allocation3 + $0x36] sm:$0xff]
        %v9073 = vld [vmem:[#allocation3 + $0x3e] sm:$0xff]
        %v9074 = vld [vmem:[#allocation3 + $0x46] sm:$0xff]
        %v9075 = vld [vmem:[#allocation3 + $0x4e] sm:$0xff]
        %v9076 = vld [vmem:[#allocation3 + $0x56] sm:$0xff]
        %v9077 = vld [vmem:[#allocation3 + $0x5e] sm:$0xff]
        %v9078 = vld [vmem:[#allocation3 + $0x66] sm:$0xff]
        %v9079 = vld [vmem:[#allocation3 + $0x6e] sm:$0xff]
        %v9080 = vld [vmem:[#allocation3 + $0x76] sm:$0xff]
        %v9081 = vld [vmem:[#allocation3 + $0x7e] sm:$0xff]
        %v9082 = vld [vmem:[#allocation3 + $0x86] sm:$0xff]
        %v9083 = vld [vmem:[#allocation3 + $0x8e] sm:$0xff]
        %v9084 = vld [vmem:[#allocation3 + $0x96] sm:$0xff]
        %v9085 = vld [vmem:[#allocation3 + $0x9e] sm:$0xff]
        %v9086 = vld [vmem:[#allocation3 + $0xa6] sm:$0xff]
        %v9087 = vld [vmem:[#allocation3 + $0xae] sm:$0xff]
        %v9088 = vld [vmem:[#allocation3 + $0xb6] sm:$0xff]
        %v9089 = vld [vmem:[#allocation3 + $0xbe] sm:$0xff]
        %v9090 = vld [vmem:[#allocation3 + $0xc6] sm:$0xff]
        %v9091 = vld [vmem:[#allocation3 + $0xce] sm:$0xff]
        %v9092 = vld [vmem:[#allocation3 + $0xd6] sm:$0xff]
        %v9093 = vld [vmem:[#allocation3 + $0xde] sm:$0xff]
        %v9094 = vld [vmem:[#allocation3 + $0xe6] sm:$0xff]
        %v9095 = vld [vmem:[#allocation3 + $0xee] sm:$0xff]
        %v9096 = vld [vmem:[#allocation3 + $0xf6] sm:$0xff]
        %v9097 = vld [vmem:[#allocation3 + $0xfe] sm:$0xff]
        %v9098 = vld [vmem:[#allocation3 + $0x106] sm:$0xff]
        %v9099 = vld [vmem:[#allocation3 + $0x10e] sm:$0xff]
        %v9100 = vld [vmem:[#allocation3 + $0x116] sm:$0xff]
        %v9101 = vld [vmem:[#allocation3 + $0x11e] sm:$0xff]
        %v9102 = vld [vmem:[#allocation3 + $0x126] sm:$0xff]
        %v9103 = vld [vmem:[#allocation3 + $0x12e] sm:$0xff]
        %v9104 = vld [vmem:[#allocation3 + $0x136] sm:$0xff]
        %v9105 = vld [vmem:[#allocation3 + $0x13e] sm:$0xff]
        %v9106 = vld [vmem:[#allocation3 + $0x146] sm:$0xff]
        %v9107 = vld [vmem:[#allocation3 + $0x14e] sm:$0xff]
        %v9108 = vpack.c.bf16 %v9069, %v9068
        %v9109 = vpack.c.bf16 %v9071, %v9070
        %v9110 = vpack.c.bf16 %v9073, %v9072
        %v9111 = vpack.c.bf16 %v9075, %v9074
        %v9112 = vpack.c.bf16 %v9077, %v9076
        %v9113 = vpack.c.bf16 %v9079, %v9078
        %v9114 = vpack.c.bf16 %v9081, %v9080
        %v9115 = vpack.c.bf16 %v9083, %v9082
        %v9116 = vpack.c.bf16 %v9085, %v9084
        %v9117 = vpack.c.bf16 %v9087, %v9086
        %v9118 = vpack.c.bf16 %v9089, %v9088
        %v9119 = vpack.c.bf16 %v9091, %v9090
        %v9120 = vpack.c.bf16 %v9093, %v9092
        %v9121 = vpack.c.bf16 %v9095, %v9094
        %v9122 = vpack.c.bf16 %v9097, %v9096
        %v9123 = vpack.c.bf16 %v9099, %v9098
        %v9124 = vpack.c.bf16 %v9101, %v9100
        %v9125 = vpack.c.bf16 %v9103, %v9102
        %v9126 = vpack.c.bf16 %v9105, %v9104
        %v9127 = vpack.c.bf16 %v9107, %v9106
        %s9128 = scalar_lea.vmem [#allocation19], 160
        %v9129 = vld [vmem:[%s9128] sm:$0xf]
        %v9130 = vld [vmem:[%s9128 + $0x4] sm:$0xf]
        %v9131 = vld [vmem:[%s9128 + $0x8] sm:$0xf]
        %v9132 = vld [vmem:[%s9128 + $0xc] sm:$0xf]
        %v9133 = vld [vmem:[%s9128 + $0x10] sm:$0xf]
        %v9134 = vld [vmem:[%s9128 + $0x14] sm:$0xf]
        %v9135 = vld [vmem:[%s9128 + $0x18] sm:$0xf]
        %v9136 = vld [vmem:[%s9128 + $0x1c] sm:$0xf]
        %v9145 = vunpack.c.l.b16 %v9129
        %v9146 = vunpack.c.l.b16 %v9130
        %v9147 = vunpack.c.l.b16 %v9131
        %v9148 = vunpack.c.l.b16 %v9132
        %v9149 = vunpack.c.l.b16 %v9133
        %v9150 = vunpack.c.l.b16 %v9134
        %v9151 = vunpack.c.l.b16 %v9135
        %v9152 = vunpack.c.l.b16 %v9136
        %v9153 = vpack.c.b16 %v9146, %v9145
        %v9154 = vpack.c.b16 %v9148, %v9147
        %v9155 = vpack.c.b16 %v9150, %v9149
        %v9156 = vpack.c.b16 %v9152, %v9151
        %v9162 = vsel %vm6213, %v9108, 0
        %v9165 = vsel %vm6213, %v9109, 0
        %v9168 = vsel %vm6213, %v9110, 0
        %v9171 = vsel %vm6213, %v9111, 0
        %v9174 = vsel %vm6213, %v9112, 0
        %v9177 = vsel %vm6213, %v9113, 0
        %v9180 = vsel %vm6213, %v9114, 0
        %v9183 = vsel %vm6213, %v9115, 0
        %v9186 = vsel %vm6213, %v9116, 0
        %v9189 = vsel %vm6213, %v9117, 0
        %v9192 = vsel %vm6213, %v9118, 0
        %v9195 = vsel %vm6213, %v9119, 0
        %v9198 = vsel %vm6213, %v9120, 0
        %v9201 = vsel %vm6213, %v9121, 0
        %v9204 = vsel %vm6213, %v9122, 0
        %v9207 = vsel %vm6213, %v9123, 0
        %v9210 = vsel %vm6213, %v9124, 0
        %v9213 = vsel %vm6213, %v9125, 0
        %v9216 = vsel %vm6213, %v9126, 0
        %v9219 = vsel %vm6213, %v9127, 0
        %9221 = vmatprep.subr.bf16.mxu0 0
        %9222 = vmatpush1.bf16.msra.mxu0 %v9153
        %9223 = vmatprep.subr.bf16.mxu0 0
        %9224 = vmatpush1.bf16.msra.mxu0 %v9154
        %9225 = vmatprep.subr.bf16.mxu0 0
        %9226 = vmatpush1.bf16.msra.mxu0 %v9155
        %9227 = vmatprep.subr.bf16.mxu0 0
        %9228 = vmatpush1.bf16.msra.mxu0 %v9156
        %9229 = vmatprep.subr.bf16.mxu0 0
        %9230 = vmatpush1.bf16.msra.mxu0 0
        %9231 = vmatprep.subr.bf16.mxu0 0
        %9232 = vmatpush1.bf16.msra.mxu0 0
        %9233 = vmatprep.subr.bf16.mxu0 0
        %9234 = vmatpush1.bf16.msra.mxu0 0
        %9235 = vmatprep.subr.bf16.mxu0 0
        %9236 = vmatpush1.bf16.msra.mxu0 0
        %9237 = vmatprep.subr.bf16.mxu0 0
        %9238 = vmatpush1.bf16.msra.mxu0 0
        %9239 = vmatprep.subr.bf16.mxu0 0
        %9240 = vmatpush1.bf16.msra.mxu0 0
        %9241 = vmatprep.subr.bf16.mxu0 0
        %9242 = vmatpush1.bf16.msra.mxu0 0
        %9243 = vmatprep.subr.bf16.mxu0 0
        %9244 = vmatpush1.bf16.msra.mxu0 0
        %9245 = vmatprep.subr.bf16.mxu0 0
        %9246 = vmatpush1.bf16.msra.mxu0 0
        %9247 = vmatprep.subr.bf16.mxu0 0
        %9248 = vmatpush1.bf16.msra.mxu0 0
        %9249 = vmatprep.subr.bf16.mxu0 0
        %9250 = vmatpush1.bf16.msra.mxu0 0
        %9251 = vmatprep.subr.bf16.mxu0 0
        %9252 = vmatpush1.bf16.msra.mxu0 0
        %9253 = vmatprep.mubr.bf16.mxu0 0
        %9254 = vmatmul.mubr.bf16.gmra.mrb[0].mxu0 %v9162
        %v9255 = vpop.f32.mrb[0].mxu0
        %v9256 = vadd.f32 0.0, %v9255
        %v9257 = vpop.f32.mrb[0].mxu0
        %v9258 = vpop.f32.mrb[0].mxu0
        %v9259 = vadd.f32 0.0, %v9258
        %v9260 = vpop.f32.mrb[0].mxu0
        %9261 = vmatprep.mubr.bf16.mxu0 0
        %9262 = vmatmul.mubr.bf16.gmra.mrb[0].mxu0 %v9165
        %v9263 = vpop.f32.mrb[0].mxu0
        %v9264 = vadd.f32 0.0, %v9263
        %v9265 = vpop.f32.mrb[0].mxu0
        %v9266 = vpop.f32.mrb[0].mxu0
        %v9267 = vadd.f32 0.0, %v9266
        %v9268 = vpop.f32.mrb[0].mxu0
        %9269 = vmatprep.mubr.bf16.mxu0 0
        %9270 = vmatmul.mubr.bf16.gmra.mrb[0].mxu0 %v9168
        %v9271 = vpop.f32.mrb[0].mxu0
        %v9272 = vadd.f32 0.0, %v9271
        %v9273 = vpop.f32.mrb[0].mxu0
        %v9274 = vpop.f32.mrb[0].mxu0
        %v9275 = vadd.f32 0.0, %v9274
        %v9276 = vpop.f32.mrb[0].mxu0
        %9277 = vmatprep.mubr.bf16.mxu0 0
        %9278 = vmatmul.mubr.bf16.gmra.mrb[0].mxu0 %v9171
        %v9279 = vpop.f32.mrb[0].mxu0
        %v9280 = vadd.f32 0.0, %v9279
        %v9281 = vpop.f32.mrb[0].mxu0
        %v9282 = vpop.f32.mrb[0].mxu0
        %v9283 = vadd.f32 0.0, %v9282
        %v9284 = vpop.f32.mrb[0].mxu0
        %9285 = vmatprep.mubr.bf16.mxu0 0
        %9286 = vmatmul.mubr.bf16.gmra.mrb[0].mxu0 %v9174
        %v9287 = vpop.f32.mrb[0].mxu0
        %v9288 = vadd.f32 0.0, %v9287
        %v9289 = vpop.f32.mrb[0].mxu0
        %v9290 = vpop.f32.mrb[0].mxu0
        %v9291 = vadd.f32 0.0, %v9290
        %v9292 = vpop.f32.mrb[0].mxu0
        %9293 = vmatprep.mubr.bf16.mxu0 0
        %9294 = vmatmul.mubr.bf16.gmra.mrb[0].mxu0 %v9177
        %v9295 = vpop.f32.mrb[0].mxu0
        %v9296 = vadd.f32 0.0, %v9295
        %v9297 = vpop.f32.mrb[0].mxu0
        %v9298 = vpop.f32.mrb[0].mxu0
        %v9299 = vadd.f32 0.0, %v9298
        %v9300 = vpop.f32.mrb[0].mxu0
        %9301 = vmatprep.mubr.bf16.mxu0 0
        %9302 = vmatmul.mubr.bf16.gmra.mrb[0].mxu0 %v9180
        %v9303 = vpop.f32.mrb[0].mxu0
        %v9304 = vadd.f32 0.0, %v9303
        %v9305 = vpop.f32.mrb[0].mxu0
        %v9306 = vpop.f32.mrb[0].mxu0
        %v9307 = vadd.f32 0.0, %v9306
        %v9308 = vpop.f32.mrb[0].mxu0
        %9309 = vmatprep.mubr.bf16.mxu0 0
        %9310 = vmatmul.mubr.bf16.gmra.mrb[0].mxu0 %v9183
        %v9311 = vpop.f32.mrb[0].mxu0
        %v9312 = vadd.f32 0.0, %v9311
        %v9313 = vpop.f32.mrb[0].mxu0
        %v9314 = vpop.f32.mrb[0].mxu0
        %v9315 = vadd.f32 0.0, %v9314
        %v9316 = vpop.f32.mrb[0].mxu0
        %9317 = vmatprep.mubr.bf16.mxu0 0
        %9318 = vmatmul.mubr.bf16.gmra.mrb[0].mxu0 %v9186
        %v9319 = vpop.f32.mrb[0].mxu0
        %v9320 = vadd.f32 0.0, %v9319
        %v9321 = vpop.f32.mrb[0].mxu0
        %v9322 = vpop.f32.mrb[0].mxu0
        %v9323 = vadd.f32 0.0, %v9322
        %v9324 = vpop.f32.mrb[0].mxu0
        %9325 = vmatprep.mubr.bf16.mxu0 0
        %9326 = vmatmul.mubr.bf16.gmra.mrb[0].mxu0 %v9189
        %v9327 = vpop.f32.mrb[0].mxu0
        %v9328 = vadd.f32 0.0, %v9327
        %v9329 = vpop.f32.mrb[0].mxu0
        %v9330 = vpop.f32.mrb[0].mxu0
        %v9331 = vadd.f32 0.0, %v9330
        %v9332 = vpop.f32.mrb[0].mxu0
        %9333 = vmatprep.mubr.bf16.mxu0 0
        %9334 = vmatmul.mubr.bf16.gmra.mrb[0].mxu0 %v9192
        %v9335 = vpop.f32.mrb[0].mxu0
        %v9336 = vadd.f32 0.0, %v9335
        %v9337 = vpop.f32.mrb[0].mxu0
        %v9338 = vpop.f32.mrb[0].mxu0
        %v9339 = vadd.f32 0.0, %v9338
        %v9340 = vpop.f32.mrb[0].mxu0
        %9341 = vmatprep.mubr.bf16.mxu0 0
        %9342 = vmatmul.mubr.bf16.gmra.mrb[0].mxu0 %v9195
        %v9343 = vpop.f32.mrb[0].mxu0
        %v9344 = vadd.f32 0.0, %v9343
        %v9345 = vpop.f32.mrb[0].mxu0
        %v9346 = vpop.f32.mrb[0].mxu0
        %v9347 = vadd.f32 0.0, %v9346
        %v9348 = vpop.f32.mrb[0].mxu0
        %9349 = vmatprep.mubr.bf16.mxu0 0
        %9350 = vmatmul.mubr.bf16.gmra.mrb[0].mxu0 %v9198
        %v9351 = vpop.f32.mrb[0].mxu0
        %v9352 = vadd.f32 0.0, %v9351
        %v9353 = vpop.f32.mrb[0].mxu0
        %v9354 = vpop.f32.mrb[0].mxu0
        %v9355 = vadd.f32 0.0, %v9354
        %v9356 = vpop.f32.mrb[0].mxu0
        %9357 = vmatprep.mubr.bf16.mxu0 0
        %9358 = vmatmul.mubr.bf16.gmra.mrb[0].mxu0 %v9201
        %v9359 = vpop.f32.mrb[0].mxu0
        %v9360 = vadd.f32 0.0, %v9359
        %v9361 = vpop.f32.mrb[0].mxu0
        %v9362 = vpop.f32.mrb[0].mxu0
        %v9363 = vadd.f32 0.0, %v9362
        %v9364 = vpop.f32.mrb[0].mxu0
        %9365 = vmatprep.mubr.bf16.mxu0 0
        %9366 = vmatmul.mubr.bf16.gmra.mrb[0].mxu0 %v9204
        %v9367 = vpop.f32.mrb[0].mxu0
        %v9368 = vadd.f32 0.0, %v9367
        %v9369 = vpop.f32.mrb[0].mxu0
        %v9370 = vpop.f32.mrb[0].mxu0
        %v9371 = vadd.f32 0.0, %v9370
        %v9372 = vpop.f32.mrb[0].mxu0
        %9373 = vmatprep.mubr.bf16.mxu0 0
        %9374 = vmatmul.mubr.bf16.gmra.mrb[0].mxu0 %v9207
        %v9375 = vpop.f32.mrb[0].mxu0
        %v9376 = vadd.f32 0.0, %v9375
        %v9377 = vpop.f32.mrb[0].mxu0
        %v9378 = vpop.f32.mrb[0].mxu0
        %v9379 = vadd.f32 0.0, %v9378
        %v9380 = vpop.f32.mrb[0].mxu0
        %9381 = vmatprep.mubr.bf16.mxu0 0
        %9382 = vmatmul.mubr.bf16.gmra.mrb[0].mxu0 %v9210
        %v9383 = vpop.f32.mrb[0].mxu0
        %v9384 = vadd.f32 0.0, %v9383
        %v9385 = vpop.f32.mrb[0].mxu0
        %v9386 = vpop.f32.mrb[0].mxu0
        %v9387 = vadd.f32 0.0, %v9386
        %v9388 = vpop.f32.mrb[0].mxu0
        %9389 = vmatprep.mubr.bf16.mxu0 0
        %9390 = vmatmul.mubr.bf16.gmra.mrb[0].mxu0 %v9213
        %v9391 = vpop.f32.mrb[0].mxu0
        %v9392 = vadd.f32 0.0, %v9391
        %v9393 = vpop.f32.mrb[0].mxu0
        %v9394 = vpop.f32.mrb[0].mxu0
        %v9395 = vadd.f32 0.0, %v9394
        %v9396 = vpop.f32.mrb[0].mxu0
        %9397 = vmatprep.mubr.bf16.mxu0 0
        %9398 = vmatmul.mubr.bf16.gmra.mrb[0].mxu0 %v9216
        %v9399 = vpop.f32.mrb[0].mxu0
        %v9400 = vadd.f32 0.0, %v9399
        %v9401 = vpop.f32.mrb[0].mxu0
        %v9402 = vpop.f32.mrb[0].mxu0
        %v9403 = vadd.f32 0.0, %v9402
        %v9404 = vpop.f32.mrb[0].mxu0
        %9405 = vmatprep.mubr.bf16.mxu0 0
        %9406 = vmatmul.mubr.bf16.gmra.mrb[0].mxu0 %v9219
        %v9407 = vpop.f32.mrb[0].mxu0
        %v9408 = vadd.f32 0.0, %v9407
        %v9409 = vpop.f32.mrb[0].mxu0
        %v9410 = vpop.f32.mrb[0].mxu0
        %v9411 = vadd.f32 0.0, %v9410
        %v9412 = vpop.f32.mrb[0].mxu0
        %9413 = vdwg.mxu0
        %v9414 = vadd.f32 %v9028, %v9256
        %v9415 = vadd.f32 %v9029, %v9259
        %v9416 = vadd.f32 %v9030, %v9264
        %v9417 = vadd.f32 %v9031, %v9267
        %v9418 = vadd.f32 %v9032, %v9272
        %v9419 = vadd.f32 %v9033, %v9275
        %v9420 = vadd.f32 %v9034, %v9280
        %v9421 = vadd.f32 %v9035, %v9283
        %v9422 = vadd.f32 %v9036, %v9288
        %v9423 = vadd.f32 %v9037, %v9291
        %v9424 = vadd.f32 %v9038, %v9296
        %v9425 = vadd.f32 %v9039, %v9299
        %v9426 = vadd.f32 %v9040, %v9304
        %v9427 = vadd.f32 %v9041, %v9307
        %v9428 = vadd.f32 %v9042, %v9312
        %v9429 = vadd.f32 %v9043, %v9315
        %v9430 = vadd.f32 %v9044, %v9320
        %v9431 = vadd.f32 %v9045, %v9323
        %v9432 = vadd.f32 %v9046, %v9328
        %v9433 = vadd.f32 %v9047, %v9331
        %v9434 = vadd.f32 %v9048, %v9336
        %v9435 = vadd.f32 %v9049, %v9339
        %v9436 = vadd.f32 %v9050, %v9344
        %v9437 = vadd.f32 %v9051, %v9347
        %v9438 = vadd.f32 %v9052, %v9352
        %v9439 = vadd.f32 %v9053, %v9355
        %v9440 = vadd.f32 %v9054, %v9360
        %v9441 = vadd.f32 %v9055, %v9363
        %v9442 = vadd.f32 %v9056, %v9368
        %v9443 = vadd.f32 %v9057, %v9371
        %v9444 = vadd.f32 %v9058, %v9376
        %v9445 = vadd.f32 %v9059, %v9379
        %v9446 = vadd.f32 %v9060, %v9384
        %v9447 = vadd.f32 %v9061, %v9387
        %v9448 = vadd.f32 %v9062, %v9392
        %v9449 = vadd.f32 %v9063, %v9395
        %v9450 = vadd.f32 %v9064, %v9400
        %v9451 = vadd.f32 %v9065, %v9403
        %v9452 = vadd.f32 %v9066, %v9408
        %v9453 = vadd.f32 %v9067, %v9411
        %v9454 = vld [vmem:[#allocation3 + $0x28] sm:$0xff]
        %v9455 = vld [vmem:[#allocation3 + $0x30] sm:$0xff]
        %v9456 = vld [vmem:[#allocation3 + $0x38] sm:$0xff]
        %v9457 = vld [vmem:[#allocation3 + $0x40] sm:$0xff]
        %v9458 = vld [vmem:[#allocation3 + $0x48] sm:$0xff]
        %v9459 = vld [vmem:[#allocation3 + $0x50] sm:$0xff]
        %v9460 = vld [vmem:[#allocation3 + $0x58] sm:$0xff]
        %v9461 = vld [vmem:[#allocation3 + $0x60] sm:$0xff]
        %v9462 = vld [vmem:[#allocation3 + $0x68] sm:$0xff]
        %v9463 = vld [vmem:[#allocation3 + $0x70] sm:$0xff]
        %v9464 = vld [vmem:[#allocation3 + $0x78] sm:$0xff]
        %v9465 = vld [vmem:[#allocation3 + $0x80] sm:$0xff]
        %v9466 = vld [vmem:[#allocation3 + $0x88] sm:$0xff]
        %v9467 = vld [vmem:[#allocation3 + $0x90] sm:$0xff]
        %v9468 = vld [vmem:[#allocation3 + $0x98] sm:$0xff]
        %v9469 = vld [vmem:[#allocation3 + $0xa0] sm:$0xff]
        %v9470 = vld [vmem:[#allocation3 + $0xa8] sm:$0xff]
        %v9471 = vld [vmem:[#allocation3 + $0xb0] sm:$0xff]
        %v9472 = vld [vmem:[#allocation3 + $0xb8] sm:$0xff]
        %v9473 = vld [vmem:[#allocation3 + $0xc0] sm:$0xff]
        %v9474 = vld [vmem:[#allocation3 + $0xc8] sm:$0xff]
        %v9475 = vld [vmem:[#allocation3 + $0xd0] sm:$0xff]
        %v9476 = vld [vmem:[#allocation3 + $0xd8] sm:$0xff]
        %v9477 = vld [vmem:[#allocation3 + $0xe0] sm:$0xff]
        %v9478 = vld [vmem:[#allocation3 + $0xe8] sm:$0xff]
        %v9479 = vld [vmem:[#allocation3 + $0xf0] sm:$0xff]
        %v9480 = vld [vmem:[#allocation3 + $0xf8] sm:$0xff]
        %v9481 = vld [vmem:[#allocation3 + $0x100] sm:$0xff]
        %v9482 = vld [vmem:[#allocation3 + $0x108] sm:$0xff]
        %v9483 = vld [vmem:[#allocation3 + $0x110] sm:$0xff]
        %v9484 = vld [vmem:[#allocation3 + $0x118] sm:$0xff]
        %v9485 = vld [vmem:[#allocation3 + $0x120] sm:$0xff]
        %v9486 = vld [vmem:[#allocation3 + $0x128] sm:$0xff]
        %v9487 = vld [vmem:[#allocation3 + $0x130] sm:$0xff]
        %v9488 = vld [vmem:[#allocation3 + $0x138] sm:$0xff]
        %v9489 = vld [vmem:[#allocation3 + $0x140] sm:$0xff]
        %v9490 = vld [vmem:[#allocation3 + $0x148] sm:$0xff]
        %v9491 = vld [vmem:[#allocation3 + $0x150] sm:$0xff]
        %v9492 = vld [vmem:[#allocation3 + $0x158] sm:$0xff]
        %v9493 = vld [vmem:[#allocation3 + $0x160] sm:$0xff]
        %v9494 = vpack.c.bf16 %v9455, %v9454
        %v9495 = vpack.c.bf16 %v9457, %v9456
        %v9496 = vpack.c.bf16 %v9459, %v9458
        %v9497 = vpack.c.bf16 %v9461, %v9460
        %v9498 = vpack.c.bf16 %v9463, %v9462
        %v9499 = vpack.c.bf16 %v9465, %v9464
        %v9500 = vpack.c.bf16 %v9467, %v9466
        %v9501 = vpack.c.bf16 %v9469, %v9468
        %v9502 = vpack.c.bf16 %v9471, %v9470
        %v9503 = vpack.c.bf16 %v9473, %v9472
        %v9504 = vpack.c.bf16 %v9475, %v9474
        %v9505 = vpack.c.bf16 %v9477, %v9476
        %v9506 = vpack.c.bf16 %v9479, %v9478
        %v9507 = vpack.c.bf16 %v9481, %v9480
        %v9508 = vpack.c.bf16 %v9483, %v9482
        %v9509 = vpack.c.bf16 %v9485, %v9484
        %v9510 = vpack.c.bf16 %v9487, %v9486
        %v9511 = vpack.c.bf16 %v9489, %v9488
        %v9512 = vpack.c.bf16 %v9491, %v9490
        %v9513 = vpack.c.bf16 %v9493, %v9492
        %s9514 = scalar_lea.vmem [#allocation19], 192
        %v9515 = vld [vmem:[%s9514] sm:$0xf]
        %v9516 = vld [vmem:[%s9514 + $0x4] sm:$0xf]
        %v9517 = vld [vmem:[%s9514 + $0x8] sm:$0xf]
        %v9518 = vld [vmem:[%s9514 + $0xc] sm:$0xf]
        %v9519 = vld [vmem:[%s9514 + $0x10] sm:$0xf]
        %v9520 = vld [vmem:[%s9514 + $0x14] sm:$0xf]
        %v9521 = vld [vmem:[%s9514 + $0x18] sm:$0xf]
        %v9522 = vld [vmem:[%s9514 + $0x1c] sm:$0xf]
        %v9531 = vunpack.c.l.b16 %v9515
        %v9532 = vunpack.c.l.b16 %v9516
        %v9533 = vunpack.c.l.b16 %v9517
        %v9534 = vunpack.c.l.b16 %v9518
        %v9535 = vunpack.c.l.b16 %v9519
        %v9536 = vunpack.c.l.b16 %v9520
        %v9537 = vunpack.c.l.b16 %v9521
        %v9538 = vunpack.c.l.b16 %v9522
        %v9539 = vpack.c.b16 %v9532, %v9531
        %v9540 = vpack.c.b16 %v9534, %v9533
        %v9541 = vpack.c.b16 %v9536, %v9535
        %v9542 = vpack.c.b16 %v9538, %v9537
        %v9548 = vsel %vm6213, %v9494, 0
        %v9551 = vsel %vm6213, %v9495, 0
        %v9554 = vsel %vm6213, %v9496, 0
        %v9557 = vsel %vm6213, %v9497, 0
        %v9560 = vsel %vm6213, %v9498, 0
        %v9563 = vsel %vm6213, %v9499, 0
        %v9566 = vsel %vm6213, %v9500, 0
        %v9569 = vsel %vm6213, %v9501, 0
        %v9572 = vsel %vm6213, %v9502, 0
        %v9575 = vsel %vm6213, %v9503, 0
        %v9578 = vsel %vm6213, %v9504, 0
        %v9581 = vsel %vm6213, %v9505, 0
        %v9584 = vsel %vm6213, %v9506, 0
        %v9587 = vsel %vm6213, %v9507, 0
        %v9590 = vsel %vm6213, %v9508, 0
        %v9593 = vsel %vm6213, %v9509, 0
        %v9596 = vsel %vm6213, %v9510, 0
        %v9599 = vsel %vm6213, %v9511, 0
        %v9602 = vsel %vm6213, %v9512, 0
        %v9605 = vsel %vm6213, %v9513, 0
        %9607 = vmatprep.subr.bf16.mxu0 0
        %9608 = vmatpush1.bf16.msra.mxu0 %v9539
        %9609 = vmatprep.subr.bf16.mxu0 0
        %9610 = vmatpush1.bf16.msra.mxu0 %v9540
        %9611 = vmatprep.subr.bf16.mxu0 0
        %9612 = vmatpush1.bf16.msra.mxu0 %v9541
        %9613 = vmatprep.subr.bf16.mxu0 0
        %9614 = vmatpush1.bf16.msra.mxu0 %v9542
        %9615 = vmatprep.subr.bf16.mxu0 0
        %9616 = vmatpush1.bf16.msra.mxu0 0
        %9617 = vmatprep.subr.bf16.mxu0 0
        %9618 = vmatpush1.bf16.msra.mxu0 0
        %9619 = vmatprep.subr.bf16.mxu0 0
        %9620 = vmatpush1.bf16.msra.mxu0 0
        %9621 = vmatprep.subr.bf16.mxu0 0
        %9622 = vmatpush1.bf16.msra.mxu0 0
        %9623 = vmatprep.subr.bf16.mxu0 0
        %9624 = vmatpush1.bf16.msra.mxu0 0
        %9625 = vmatprep.subr.bf16.mxu0 0
        %9626 = vmatpush1.bf16.msra.mxu0 0
        %9627 = vmatprep.subr.bf16.mxu0 0
        %9628 = vmatpush1.bf16.msra.mxu0 0
        %9629 = vmatprep.subr.bf16.mxu0 0
        %9630 = vmatpush1.bf16.msra.mxu0 0
        %9631 = vmatprep.subr.bf16.mxu0 0
        %9632 = vmatpush1.bf16.msra.mxu0 0
        %9633 = vmatprep.subr.bf16.mxu0 0
        %9634 = vmatpush1.bf16.msra.mxu0 0
        %9635 = vmatprep.subr.bf16.mxu0 0
        %9636 = vmatpush1.bf16.msra.mxu0 0
        %9637 = vmatprep.subr.bf16.mxu0 0
        %9638 = vmatpush1.bf16.msra.mxu0 0
        %9639 = vmatprep.mubr.bf16.mxu0 0
        %9640 = vmatmul.mubr.bf16.gmra.mrb[0].mxu0 %v9548
        %v9641 = vpop.f32.mrb[0].mxu0
        %v9642 = vadd.f32 0.0, %v9641
        %v9643 = vpop.f32.mrb[0].mxu0
        %v9644 = vpop.f32.mrb[0].mxu0
        %v9645 = vadd.f32 0.0, %v9644
        %v9646 = vpop.f32.mrb[0].mxu0
        %9647 = vmatprep.mubr.bf16.mxu0 0
        %9648 = vmatmul.mubr.bf16.gmra.mrb[0].mxu0 %v9551
        %v9649 = vpop.f32.mrb[0].mxu0
        %v9650 = vadd.f32 0.0, %v9649
        %v9651 = vpop.f32.mrb[0].mxu0
        %v9652 = vpop.f32.mrb[0].mxu0
        %v9653 = vadd.f32 0.0, %v9652
        %v9654 = vpop.f32.mrb[0].mxu0
        %9655 = vmatprep.mubr.bf16.mxu0 0
        %9656 = vmatmul.mubr.bf16.gmra.mrb[0].mxu0 %v9554
        %v9657 = vpop.f32.mrb[0].mxu0
        %v9658 = vadd.f32 0.0, %v9657
        %v9659 = vpop.f32.mrb[0].mxu0
        %v9660 = vpop.f32.mrb[0].mxu0
        %v9661 = vadd.f32 0.0, %v9660
        %v9662 = vpop.f32.mrb[0].mxu0
        %9663 = vmatprep.mubr.bf16.mxu0 0
        %9664 = vmatmul.mubr.bf16.gmra.mrb[0].mxu0 %v9557
        %v9665 = vpop.f32.mrb[0].mxu0
        %v9666 = vadd.f32 0.0, %v9665
        %v9667 = vpop.f32.mrb[0].mxu0
        %v9668 = vpop.f32.mrb[0].mxu0
        %v9669 = vadd.f32 0.0, %v9668
        %v9670 = vpop.f32.mrb[0].mxu0
        %9671 = vmatprep.mubr.bf16.mxu0 0
        %9672 = vmatmul.mubr.bf16.gmra.mrb[0].mxu0 %v9560
        %v9673 = vpop.f32.mrb[0].mxu0
        %v9674 = vadd.f32 0.0, %v9673
        %v9675 = vpop.f32.mrb[0].mxu0
        %v9676 = vpop.f32.mrb[0].mxu0
        %v9677 = vadd.f32 0.0, %v9676
        %v9678 = vpop.f32.mrb[0].mxu0
        %9679 = vmatprep.mubr.bf16.mxu0 0
        %9680 = vmatmul.mubr.bf16.gmra.mrb[0].mxu0 %v9563
        %v9681 = vpop.f32.mrb[0].mxu0
        %v9682 = vadd.f32 0.0, %v9681
        %v9683 = vpop.f32.mrb[0].mxu0
        %v9684 = vpop.f32.mrb[0].mxu0
        %v9685 = vadd.f32 0.0, %v9684
        %v9686 = vpop.f32.mrb[0].mxu0
        %9687 = vmatprep.mubr.bf16.mxu0 0
        %9688 = vmatmul.mubr.bf16.gmra.mrb[0].mxu0 %v9566
        %v9689 = vpop.f32.mrb[0].mxu0
        %v9690 = vadd.f32 0.0, %v9689
        %v9691 = vpop.f32.mrb[0].mxu0
        %v9692 = vpop.f32.mrb[0].mxu0
        %v9693 = vadd.f32 0.0, %v9692
        %v9694 = vpop.f32.mrb[0].mxu0
        %9695 = vmatprep.mubr.bf16.mxu0 0
        %9696 = vmatmul.mubr.bf16.gmra.mrb[0].mxu0 %v9569
        %v9697 = vpop.f32.mrb[0].mxu0
        %v9698 = vadd.f32 0.0, %v9697
        %v9699 = vpop.f32.mrb[0].mxu0
        %v9700 = vpop.f32.mrb[0].mxu0
        %v9701 = vadd.f32 0.0, %v9700
        %v9702 = vpop.f32.mrb[0].mxu0
        %9703 = vmatprep.mubr.bf16.mxu0 0
        %9704 = vmatmul.mubr.bf16.gmra.mrb[0].mxu0 %v9572
        %v9705 = vpop.f32.mrb[0].mxu0
        %v9706 = vadd.f32 0.0, %v9705
        %v9707 = vpop.f32.mrb[0].mxu0
        %v9708 = vpop.f32.mrb[0].mxu0
        %v9709 = vadd.f32 0.0, %v9708
        %v9710 = vpop.f32.mrb[0].mxu0
        %9711 = vmatprep.mubr.bf16.mxu0 0
        %9712 = vmatmul.mubr.bf16.gmra.mrb[0].mxu0 %v9575
        %v9713 = vpop.f32.mrb[0].mxu0
        %v9714 = vadd.f32 0.0, %v9713
        %v9715 = vpop.f32.mrb[0].mxu0
        %v9716 = vpop.f32.mrb[0].mxu0
        %v9717 = vadd.f32 0.0, %v9716
        %v9718 = vpop.f32.mrb[0].mxu0
        %9719 = vmatprep.mubr.bf16.mxu0 0
        %9720 = vmatmul.mubr.bf16.gmra.mrb[0].mxu0 %v9578
        %v9721 = vpop.f32.mrb[0].mxu0
        %v9722 = vadd.f32 0.0, %v9721
        %v9723 = vpop.f32.mrb[0].mxu0
        %v9724 = vpop.f32.mrb[0].mxu0
        %v9725 = vadd.f32 0.0, %v9724
        %v9726 = vpop.f32.mrb[0].mxu0
        %9727 = vmatprep.mubr.bf16.mxu0 0
        %9728 = vmatmul.mubr.bf16.gmra.mrb[0].mxu0 %v9581
        %v9729 = vpop.f32.mrb[0].mxu0
        %v9730 = vadd.f32 0.0, %v9729
        %v9731 = vpop.f32.mrb[0].mxu0
        %v9732 = vpop.f32.mrb[0].mxu0
        %v9733 = vadd.f32 0.0, %v9732
        %v9734 = vpop.f32.mrb[0].mxu0
        %9735 = vmatprep.mubr.bf16.mxu0 0
        %9736 = vmatmul.mubr.bf16.gmra.mrb[0].mxu0 %v9584
        %v9737 = vpop.f32.mrb[0].mxu0
        %v9738 = vadd.f32 0.0, %v9737
        %v9739 = vpop.f32.mrb[0].mxu0
        %v9740 = vpop.f32.mrb[0].mxu0
        %v9741 = vadd.f32 0.0, %v9740
        %v9742 = vpop.f32.mrb[0].mxu0
        %9743 = vmatprep.mubr.bf16.mxu0 0
        %9744 = vmatmul.mubr.bf16.gmra.mrb[0].mxu0 %v9587
        %v9745 = vpop.f32.mrb[0].mxu0
        %v9746 = vadd.f32 0.0, %v9745
        %v9747 = vpop.f32.mrb[0].mxu0
        %v9748 = vpop.f32.mrb[0].mxu0
        %v9749 = vadd.f32 0.0, %v9748
        %v9750 = vpop.f32.mrb[0].mxu0
        %9751 = vmatprep.mubr.bf16.mxu0 0
        %9752 = vmatmul.mubr.bf16.gmra.mrb[0].mxu0 %v9590
        %v9753 = vpop.f32.mrb[0].mxu0
        %v9754 = vadd.f32 0.0, %v9753
        %v9755 = vpop.f32.mrb[0].mxu0
        %v9756 = vpop.f32.mrb[0].mxu0
        %v9757 = vadd.f32 0.0, %v9756
        %v9758 = vpop.f32.mrb[0].mxu0
        %9759 = vmatprep.mubr.bf16.mxu0 0
        %9760 = vmatmul.mubr.bf16.gmra.mrb[0].mxu0 %v9593
        %v9761 = vpop.f32.mrb[0].mxu0
        %v9762 = vadd.f32 0.0, %v9761
        %v9763 = vpop.f32.mrb[0].mxu0
        %v9764 = vpop.f32.mrb[0].mxu0
        %v9765 = vadd.f32 0.0, %v9764
        %v9766 = vpop.f32.mrb[0].mxu0
        %9767 = vmatprep.mubr.bf16.mxu0 0
        %9768 = vmatmul.mubr.bf16.gmra.mrb[0].mxu0 %v9596
        %v9769 = vpop.f32.mrb[0].mxu0
        %v9770 = vadd.f32 0.0, %v9769
        %v9771 = vpop.f32.mrb[0].mxu0
        %v9772 = vpop.f32.mrb[0].mxu0
        %v9773 = vadd.f32 0.0, %v9772
        %v9774 = vpop.f32.mrb[0].mxu0
        %9775 = vmatprep.mubr.bf16.mxu0 0
        %9776 = vmatmul.mubr.bf16.gmra.mrb[0].mxu0 %v9599
        %v9777 = vpop.f32.mrb[0].mxu0
        %v9778 = vadd.f32 0.0, %v9777
        %v9779 = vpop.f32.mrb[0].mxu0
        %v9780 = vpop.f32.mrb[0].mxu0
        %v9781 = vadd.f32 0.0, %v9780
        %v9782 = vpop.f32.mrb[0].mxu0
        %9783 = vmatprep.mubr.bf16.mxu0 0
        %9784 = vmatmul.mubr.bf16.gmra.mrb[0].mxu0 %v9602
        %v9785 = vpop.f32.mrb[0].mxu0
        %v9786 = vadd.f32 0.0, %v9785
        %v9787 = vpop.f32.mrb[0].mxu0
        %v9788 = vpop.f32.mrb[0].mxu0
        %v9789 = vadd.f32 0.0, %v9788
        %v9790 = vpop.f32.mrb[0].mxu0
        %9791 = vmatprep.mubr.bf16.mxu0 0
        %9792 = vmatmul.mubr.bf16.gmra.mrb[0].mxu0 %v9605
        %v9793 = vpop.f32.mrb[0].mxu0
        %v9794 = vadd.f32 0.0, %v9793
        %v9795 = vpop.f32.mrb[0].mxu0
        %v9796 = vpop.f32.mrb[0].mxu0
        %v9797 = vadd.f32 0.0, %v9796
        %v9798 = vpop.f32.mrb[0].mxu0
        %9799 = vdwg.mxu0
        %v9800 = vadd.f32 %v9414, %v9642
        %v9801 = vadd.f32 %v9415, %v9645
        %v9802 = vadd.f32 %v9416, %v9650
        %v9803 = vadd.f32 %v9417, %v9653
        %v9804 = vadd.f32 %v9418, %v9658
        %v9805 = vadd.f32 %v9419, %v9661
        %v9806 = vadd.f32 %v9420, %v9666
        %v9807 = vadd.f32 %v9421, %v9669
        %v9808 = vadd.f32 %v9422, %v9674
        %v9809 = vadd.f32 %v9423, %v9677
        %v9810 = vadd.f32 %v9424, %v9682
        %v9811 = vadd.f32 %v9425, %v9685
        %v9812 = vadd.f32 %v9426, %v9690
        %v9813 = vadd.f32 %v9427, %v9693
        %v9814 = vadd.f32 %v9428, %v9698
        %v9815 = vadd.f32 %v9429, %v9701
        %v9816 = vadd.f32 %v9430, %v9706
        %v9817 = vadd.f32 %v9431, %v9709
        %v9818 = vadd.f32 %v9432, %v9714
        %v9819 = vadd.f32 %v9433, %v9717
        %v9820 = vadd.f32 %v9434, %v9722
        %v9821 = vadd.f32 %v9435, %v9725
        %v9822 = vadd.f32 %v9436, %v9730
        %v9823 = vadd.f32 %v9437, %v9733
        %v9824 = vadd.f32 %v9438, %v9738
        %v9825 = vadd.f32 %v9439, %v9741
        %v9826 = vadd.f32 %v9440, %v9746
        %v9827 = vadd.f32 %v9441, %v9749
        %v9828 = vadd.f32 %v9442, %v9754
        %v9829 = vadd.f32 %v9443, %v9757
        %v9830 = vadd.f32 %v9444, %v9762
        %v9831 = vadd.f32 %v9445, %v9765
        %v9832 = vadd.f32 %v9446, %v9770
        %v9833 = vadd.f32 %v9447, %v9773
        %v9834 = vadd.f32 %v9448, %v9778
        %v9835 = vadd.f32 %v9449, %v9781
        %v9836 = vadd.f32 %v9450, %v9786
        %v9837 = vadd.f32 %v9451, %v9789
        %v9838 = vadd.f32 %v9452, %v9794
        %v9839 = vadd.f32 %v9453, %v9797
        %v9840 = vld [vmem:[#allocation3 + $0x29] sm:$0xff]
        %v9841 = vld [vmem:[#allocation3 + $0x31] sm:$0xff]
        %v9842 = vld [vmem:[#allocation3 + $0x39] sm:$0xff]
        %v9843 = vld [vmem:[#allocation3 + $0x41] sm:$0xff]
        %v9844 = vld [vmem:[#allocation3 + $0x49] sm:$0xff]
        %v9845 = vld [vmem:[#allocation3 + $0x51] sm:$0xff]
        %v9846 = vld [vmem:[#allocation3 + $0x59] sm:$0xff]
        %v9847 = vld [vmem:[#allocation3 + $0x61] sm:$0xff]
        %v9848 = vld [vmem:[#allocation3 + $0x69] sm:$0xff]
        %v9849 = vld [vmem:[#allocation3 + $0x71] sm:$0xff]
        %v9850 = vld [vmem:[#allocation3 + $0x79] sm:$0xff]
        %v9851 = vld [vmem:[#allocation3 + $0x81] sm:$0xff]
        %v9852 = vld [vmem:[#allocation3 + $0x89] sm:$0xff]
        %v9853 = vld [vmem:[#allocation3 + $0x91] sm:$0xff]
        %v9854 = vld [vmem:[#allocation3 + $0x99] sm:$0xff]
        %v9855 = vld [vmem:[#allocation3 + $0xa1] sm:$0xff]
        %v9856 = vld [vmem:[#allocation3 + $0xa9] sm:$0xff]
        %v9857 = vld [vmem:[#allocation3 + $0xb1] sm:$0xff]
        %v9858 = vld [vmem:[#allocation3 + $0xb9] sm:$0xff]
        %v9859 = vld [vmem:[#allocation3 + $0xc1] sm:$0xff]
        %v9860 = vld [vmem:[#allocation3 + $0xc9] sm:$0xff]
        %v9861 = vld [vmem:[#allocation3 + $0xd1] sm:$0xff]
        %v9862 = vld [vmem:[#allocation3 + $0xd9] sm:$0xff]
        %v9863 = vld [vmem:[#allocation3 + $0xe1] sm:$0xff]
        %v9864 = vld [vmem:[#allocation3 + $0xe9] sm:$0xff]
        %v9865 = vld [vmem:[#allocation3 + $0xf1] sm:$0xff]
        %v9866 = vld [vmem:[#allocation3 + $0xf9] sm:$0xff]
        %v9867 = vld [vmem:[#allocation3 + $0x101] sm:$0xff]
        %v9868 = vld [vmem:[#allocation3 + $0x109] sm:$0xff]
        %v9869 = vld [vmem:[#allocation3 + $0x111] sm:$0xff]
        %v9870 = vld [vmem:[#allocation3 + $0x119] sm:$0xff]
        %v9871 = vld [vmem:[#allocation3 + $0x121] sm:$0xff]
        %v9872 = vld [vmem:[#allocation3 + $0x129] sm:$0xff]
        %v9873 = vld [vmem:[#allocation3 + $0x131] sm:$0xff]
        %v9874 = vld [vmem:[#allocation3 + $0x139] sm:$0xff]
        %v9875 = vld [vmem:[#allocation3 + $0x141] sm:$0xff]
        %v9876 = vld [vmem:[#allocation3 + $0x149] sm:$0xff]
        %v9877 = vld [vmem:[#allocation3 + $0x151] sm:$0xff]
        %v9878 = vld [vmem:[#allocation3 + $0x159] sm:$0xff]
        %v9879 = vld [vmem:[#allocation3 + $0x161] sm:$0xff]
        %v9880 = vpack.c.bf16 %v9841, %v9840
        %v9881 = vpack.c.bf16 %v9843, %v9842
        %v9882 = vpack.c.bf16 %v9845, %v9844
        %v9883 = vpack.c.bf16 %v9847, %v9846
        %v9884 = vpack.c.bf16 %v9849, %v9848
        %v9885 = vpack.c.bf16 %v9851, %v9850
        %v9886 = vpack.c.bf16 %v9853, %v9852
        %v9887 = vpack.c.bf16 %v9855, %v9854
        %v9888 = vpack.c.bf16 %v9857, %v9856
        %v9889 = vpack.c.bf16 %v9859, %v9858
        %v9890 = vpack.c.bf16 %v9861, %v9860
        %v9891 = vpack.c.bf16 %v9863, %v9862
        %v9892 = vpack.c.bf16 %v9865, %v9864
        %v9893 = vpack.c.bf16 %v9867, %v9866
        %v9894 = vpack.c.bf16 %v9869, %v9868
        %v9895 = vpack.c.bf16 %v9871, %v9870
        %v9896 = vpack.c.bf16 %v9873, %v9872
        %v9897 = vpack.c.bf16 %v9875, %v9874
        %v9898 = vpack.c.bf16 %v9877, %v9876
        %v9899 = vpack.c.bf16 %v9879, %v9878
        %s9900 = scalar_lea.vmem [#allocation19], 224
        %v9901 = vld [vmem:[%s9900] sm:$0xf]
        %v9902 = vld [vmem:[%s9900 + $0x4] sm:$0xf]
        %v9903 = vld [vmem:[%s9900 + $0x8] sm:$0xf]
        %v9904 = vld [vmem:[%s9900 + $0xc] sm:$0xf]
        %v9905 = vld [vmem:[%s9900 + $0x10] sm:$0xf]
        %v9906 = vld [vmem:[%s9900 + $0x14] sm:$0xf]
        %v9907 = vld [vmem:[%s9900 + $0x18] sm:$0xf]
        %v9908 = vld [vmem:[%s9900 + $0x1c] sm:$0xf]
        %v9917 = vunpack.c.l.b16 %v9901
        %v9918 = vunpack.c.l.b16 %v9902
        %v9919 = vunpack.c.l.b16 %v9903
        %v9920 = vunpack.c.l.b16 %v9904
        %v9921 = vunpack.c.l.b16 %v9905
        %v9922 = vunpack.c.l.b16 %v9906
        %v9923 = vunpack.c.l.b16 %v9907
        %v9924 = vunpack.c.l.b16 %v9908
        %v9925 = vpack.c.b16 %v9918, %v9917
        %v9926 = vpack.c.b16 %v9920, %v9919
        %v9927 = vpack.c.b16 %v9922, %v9921
        %v9928 = vpack.c.b16 %v9924, %v9923
        %v9934 = vsel %vm6213, %v9880, 0
        %v9937 = vsel %vm6213, %v9881, 0
        %v9940 = vsel %vm6213, %v9882, 0
        %v9943 = vsel %vm6213, %v9883, 0
        %v9946 = vsel %vm6213, %v9884, 0
        %v9949 = vsel %vm6213, %v9885, 0
        %v9952 = vsel %vm6213, %v9886, 0
        %v9955 = vsel %vm6213, %v9887, 0
        %v9958 = vsel %vm6213, %v9888, 0
        %v9961 = vsel %vm6213, %v9889, 0
        %v9964 = vsel %vm6213, %v9890, 0
        %v9967 = vsel %vm6213, %v9891, 0
        %v9970 = vsel %vm6213, %v9892, 0
        %v9973 = vsel %vm6213, %v9893, 0
        %v9976 = vsel %vm6213, %v9894, 0
        %v9979 = vsel %vm6213, %v9895, 0
        %v9982 = vsel %vm6213, %v9896, 0
        %v9985 = vsel %vm6213, %v9897, 0
        %v9988 = vsel %vm6213, %v9898, 0
        %v9991 = vsel %vm6213, %v9899, 0
        %9993 = vmatprep.subr.bf16.mxu0 0
        %9994 = vmatpush1.bf16.msra.mxu0 %v9925
        %9995 = vmatprep.subr.bf16.mxu0 0
        %9996 = vmatpush1.bf16.msra.mxu0 %v9926
        %9997 = vmatprep.subr.bf16.mxu0 0
        %9998 = vmatpush1.bf16.msra.mxu0 %v9927
        %9999 = vmatprep.subr.bf16.mxu0 0
        %10000 = vmatpush1.bf16.msra.mxu0 %v9928
        %10001 = vmatprep.subr.bf16.mxu0 0
        %10002 = vmatpush1.bf16.msra.mxu0 0
        %10003 = vmatprep.subr.bf16.mxu0 0
        %10004 = vmatpush1.bf16.msra.mxu0 0
        %10005 = vmatprep.subr.bf16.mxu0 0
        %10006 = vmatpush1.bf16.msra.mxu0 0
        %10007 = vmatprep.subr.bf16.mxu0 0
        %10008 = vmatpush1.bf16.msra.mxu0 0
        %10009 = vmatprep.subr.bf16.mxu0 0
        %10010 = vmatpush1.bf16.msra.mxu0 0
        %10011 = vmatprep.subr.bf16.mxu0 0
        %10012 = vmatpush1.bf16.msra.mxu0 0
        %10013 = vmatprep.subr.bf16.mxu0 0
        %10014 = vmatpush1.bf16.msra.mxu0 0
        %10015 = vmatprep.subr.bf16.mxu0 0
        %10016 = vmatpush1.bf16.msra.mxu0 0
        %10017 = vmatprep.subr.bf16.mxu0 0
        %10018 = vmatpush1.bf16.msra.mxu0 0
        %10019 = vmatprep.subr.bf16.mxu0 0
        %10020 = vmatpush1.bf16.msra.mxu0 0
        %10021 = vmatprep.subr.bf16.mxu0 0
        %10022 = vmatpush1.bf16.msra.mxu0 0
        %10023 = vmatprep.subr.bf16.mxu0 0
        %10024 = vmatpush1.bf16.msra.mxu0 0
        %10025 = vmatprep.mubr.bf16.mxu0 0
        %10026 = vmatmul.mubr.bf16.gmra.mrb[0].mxu0 %v9934
        %v10027 = vpop.f32.mrb[0].mxu0
        %v10028 = vadd.f32 0.0, %v10027
        %v10029 = vpop.f32.mrb[0].mxu0
        %v10030 = vpop.f32.mrb[0].mxu0
        %v10031 = vadd.f32 0.0, %v10030
        %v10032 = vpop.f32.mrb[0].mxu0
        %10033 = vmatprep.mubr.bf16.mxu0 0
        %10034 = vmatmul.mubr.bf16.gmra.mrb[0].mxu0 %v9937
        %v10035 = vpop.f32.mrb[0].mxu0
        %v10036 = vadd.f32 0.0, %v10035
        %v10037 = vpop.f32.mrb[0].mxu0
        %v10038 = vpop.f32.mrb[0].mxu0
        %v10039 = vadd.f32 0.0, %v10038
        %v10040 = vpop.f32.mrb[0].mxu0
        %10041 = vmatprep.mubr.bf16.mxu0 0
        %10042 = vmatmul.mubr.bf16.gmra.mrb[0].mxu0 %v9940
        %v10043 = vpop.f32.mrb[0].mxu0
        %v10044 = vadd.f32 0.0, %v10043
        %v10045 = vpop.f32.mrb[0].mxu0
        %v10046 = vpop.f32.mrb[0].mxu0
        %v10047 = vadd.f32 0.0, %v10046
        %v10048 = vpop.f32.mrb[0].mxu0
        %10049 = vmatprep.mubr.bf16.mxu0 0
        %10050 = vmatmul.mubr.bf16.gmra.mrb[0].mxu0 %v9943
        %v10051 = vpop.f32.mrb[0].mxu0
        %v10052 = vadd.f32 0.0, %v10051
        %v10053 = vpop.f32.mrb[0].mxu0
        %v10054 = vpop.f32.mrb[0].mxu0
        %v10055 = vadd.f32 0.0, %v10054
        %v10056 = vpop.f32.mrb[0].mxu0
        %10057 = vmatprep.mubr.bf16.mxu0 0
        %10058 = vmatmul.mubr.bf16.gmra.mrb[0].mxu0 %v9946
        %v10059 = vpop.f32.mrb[0].mxu0
        %v10060 = vadd.f32 0.0, %v10059
        %v10061 = vpop.f32.mrb[0].mxu0
        %v10062 = vpop.f32.mrb[0].mxu0
        %v10063 = vadd.f32 0.0, %v10062
        %v10064 = vpop.f32.mrb[0].mxu0
        %10065 = vmatprep.mubr.bf16.mxu0 0
        %10066 = vmatmul.mubr.bf16.gmra.mrb[0].mxu0 %v9949
        %v10067 = vpop.f32.mrb[0].mxu0
        %v10068 = vadd.f32 0.0, %v10067
        %v10069 = vpop.f32.mrb[0].mxu0
        %v10070 = vpop.f32.mrb[0].mxu0
        %v10071 = vadd.f32 0.0, %v10070
        %v10072 = vpop.f32.mrb[0].mxu0
        %10073 = vmatprep.mubr.bf16.mxu0 0
        %10074 = vmatmul.mubr.bf16.gmra.mrb[0].mxu0 %v9952
        %v10075 = vpop.f32.mrb[0].mxu0
        %v10076 = vadd.f32 0.0, %v10075
        %v10077 = vpop.f32.mrb[0].mxu0
        %v10078 = vpop.f32.mrb[0].mxu0
        %v10079 = vadd.f32 0.0, %v10078
        %v10080 = vpop.f32.mrb[0].mxu0
        %10081 = vmatprep.mubr.bf16.mxu0 0
        %10082 = vmatmul.mubr.bf16.gmra.mrb[0].mxu0 %v9955
        %v10083 = vpop.f32.mrb[0].mxu0
        %v10084 = vadd.f32 0.0, %v10083
        %v10085 = vpop.f32.mrb[0].mxu0
        %v10086 = vpop.f32.mrb[0].mxu0
        %v10087 = vadd.f32 0.0, %v10086
        %v10088 = vpop.f32.mrb[0].mxu0
        %10089 = vmatprep.mubr.bf16.mxu0 0
        %10090 = vmatmul.mubr.bf16.gmra.mrb[0].mxu0 %v9958
        %v10091 = vpop.f32.mrb[0].mxu0
        %v10092 = vadd.f32 0.0, %v10091
        %v10093 = vpop.f32.mrb[0].mxu0
        %v10094 = vpop.f32.mrb[0].mxu0
        %v10095 = vadd.f32 0.0, %v10094
        %v10096 = vpop.f32.mrb[0].mxu0
        %10097 = vmatprep.mubr.bf16.mxu0 0
        %10098 = vmatmul.mubr.bf16.gmra.mrb[0].mxu0 %v9961
        %v10099 = vpop.f32.mrb[0].mxu0
        %v10100 = vadd.f32 0.0, %v10099
        %v10101 = vpop.f32.mrb[0].mxu0
        %v10102 = vpop.f32.mrb[0].mxu0
        %v10103 = vadd.f32 0.0, %v10102
        %v10104 = vpop.f32.mrb[0].mxu0
        %10105 = vmatprep.mubr.bf16.mxu0 0
        %10106 = vmatmul.mubr.bf16.gmra.mrb[0].mxu0 %v9964
        %v10107 = vpop.f32.mrb[0].mxu0
        %v10108 = vadd.f32 0.0, %v10107
        %v10109 = vpop.f32.mrb[0].mxu0
        %v10110 = vpop.f32.mrb[0].mxu0
        %v10111 = vadd.f32 0.0, %v10110
        %v10112 = vpop.f32.mrb[0].mxu0
        %10113 = vmatprep.mubr.bf16.mxu0 0
        %10114 = vmatmul.mubr.bf16.gmra.mrb[0].mxu0 %v9967
        %v10115 = vpop.f32.mrb[0].mxu0
        %v10116 = vadd.f32 0.0, %v10115
        %v10117 = vpop.f32.mrb[0].mxu0
        %v10118 = vpop.f32.mrb[0].mxu0
        %v10119 = vadd.f32 0.0, %v10118
        %v10120 = vpop.f32.mrb[0].mxu0
        %10121 = vmatprep.mubr.bf16.mxu0 0
        %10122 = vmatmul.mubr.bf16.gmra.mrb[0].mxu0 %v9970
        %v10123 = vpop.f32.mrb[0].mxu0
        %v10124 = vadd.f32 0.0, %v10123
        %v10125 = vpop.f32.mrb[0].mxu0
        %v10126 = vpop.f32.mrb[0].mxu0
        %v10127 = vadd.f32 0.0, %v10126
        %v10128 = vpop.f32.mrb[0].mxu0
        %10129 = vmatprep.mubr.bf16.mxu0 0
        %10130 = vmatmul.mubr.bf16.gmra.mrb[0].mxu0 %v9973
        %v10131 = vpop.f32.mrb[0].mxu0
        %v10132 = vadd.f32 0.0, %v10131
        %v10133 = vpop.f32.mrb[0].mxu0
        %v10134 = vpop.f32.mrb[0].mxu0
        %v10135 = vadd.f32 0.0, %v10134
        %v10136 = vpop.f32.mrb[0].mxu0
        %10137 = vmatprep.mubr.bf16.mxu0 0
        %10138 = vmatmul.mubr.bf16.gmra.mrb[0].mxu0 %v9976
        %v10139 = vpop.f32.mrb[0].mxu0
        %v10140 = vadd.f32 0.0, %v10139
        %v10141 = vpop.f32.mrb[0].mxu0
        %v10142 = vpop.f32.mrb[0].mxu0
        %v10143 = vadd.f32 0.0, %v10142
        %v10144 = vpop.f32.mrb[0].mxu0
        %10145 = vmatprep.mubr.bf16.mxu0 0
        %10146 = vmatmul.mubr.bf16.gmra.mrb[0].mxu0 %v9979
        %v10147 = vpop.f32.mrb[0].mxu0
        %v10148 = vadd.f32 0.0, %v10147
        %v10149 = vpop.f32.mrb[0].mxu0
        %v10150 = vpop.f32.mrb[0].mxu0
        %v10151 = vadd.f32 0.0, %v10150
        %v10152 = vpop.f32.mrb[0].mxu0
        %10153 = vmatprep.mubr.bf16.mxu0 0
        %10154 = vmatmul.mubr.bf16.gmra.mrb[0].mxu0 %v9982
        %v10155 = vpop.f32.mrb[0].mxu0
        %v10156 = vadd.f32 0.0, %v10155
        %v10157 = vpop.f32.mrb[0].mxu0
        %v10158 = vpop.f32.mrb[0].mxu0
        %v10159 = vadd.f32 0.0, %v10158
        %v10160 = vpop.f32.mrb[0].mxu0
        %10161 = vmatprep.mubr.bf16.mxu0 0
        %10162 = vmatmul.mubr.bf16.gmra.mrb[0].mxu0 %v9985
        %v10163 = vpop.f32.mrb[0].mxu0
        %v10164 = vadd.f32 0.0, %v10163
        %v10165 = vpop.f32.mrb[0].mxu0
        %v10166 = vpop.f32.mrb[0].mxu0
        %v10167 = vadd.f32 0.0, %v10166
        %v10168 = vpop.f32.mrb[0].mxu0
        %10169 = vmatprep.mubr.bf16.mxu0 0
        %10170 = vmatmul.mubr.bf16.gmra.mrb[0].mxu0 %v9988
        %v10171 = vpop.f32.mrb[0].mxu0
        %v10172 = vadd.f32 0.0, %v10171
        %v10173 = vpop.f32.mrb[0].mxu0
        %v10174 = vpop.f32.mrb[0].mxu0
        %v10175 = vadd.f32 0.0, %v10174
        %v10176 = vpop.f32.mrb[0].mxu0
        %10177 = vmatprep.mubr.bf16.mxu0 0
        %10178 = vmatmul.mubr.bf16.gmra.mrb[0].mxu0 %v9991
        %v10179 = vpop.f32.mrb[0].mxu0
        %v10180 = vadd.f32 0.0, %v10179
        %v10181 = vpop.f32.mrb[0].mxu0
        %v10182 = vpop.f32.mrb[0].mxu0
        %v10183 = vadd.f32 0.0, %v10182
        %v10184 = vpop.f32.mrb[0].mxu0
        %10185 = vdwg.mxu0
        %v10186 = vadd.f32 %v9800, %v10028
        %v10187 = vadd.f32 %v9801, %v10031
        %v10188 = vadd.f32 %v9802, %v10036
        %v10189 = vadd.f32 %v9803, %v10039
        %v10190 = vadd.f32 %v9804, %v10044
        %v10191 = vadd.f32 %v9805, %v10047
        %v10192 = vadd.f32 %v9806, %v10052
        %v10193 = vadd.f32 %v9807, %v10055
        %v10194 = vadd.f32 %v9808, %v10060
        %v10195 = vadd.f32 %v9809, %v10063
        %v10196 = vadd.f32 %v9810, %v10068
        %v10197 = vadd.f32 %v9811, %v10071
        %v10198 = vadd.f32 %v9812, %v10076
        %v10199 = vadd.f32 %v9813, %v10079
        %v10200 = vadd.f32 %v9814, %v10084
        %v10201 = vadd.f32 %v9815, %v10087
        %v10202 = vadd.f32 %v9816, %v10092
        %v10203 = vadd.f32 %v9817, %v10095
        %v10204 = vadd.f32 %v9818, %v10100
        %v10205 = vadd.f32 %v9819, %v10103
        %v10206 = vadd.f32 %v9820, %v10108
        %v10207 = vadd.f32 %v9821, %v10111
        %v10208 = vadd.f32 %v9822, %v10116
        %v10209 = vadd.f32 %v9823, %v10119
        %v10210 = vadd.f32 %v9824, %v10124
        %v10211 = vadd.f32 %v9825, %v10127
        %v10212 = vadd.f32 %v9826, %v10132
        %v10213 = vadd.f32 %v9827, %v10135
        %v10214 = vadd.f32 %v9828, %v10140
        %v10215 = vadd.f32 %v9829, %v10143
        %v10216 = vadd.f32 %v9830, %v10148
        %v10217 = vadd.f32 %v9831, %v10151
        %v10218 = vadd.f32 %v9832, %v10156
        %v10219 = vadd.f32 %v9833, %v10159
        %v10220 = vadd.f32 %v9834, %v10164
        %v10221 = vadd.f32 %v9835, %v10167
        %v10222 = vadd.f32 %v9836, %v10172
        %v10223 = vadd.f32 %v9837, %v10175
        %v10224 = vadd.f32 %v9838, %v10180
        %v10225 = vadd.f32 %v9839, %v10183
        %v10226 = vld [vmem:[#allocation3 + $0x2a] sm:$0xff]
        %v10227 = vld [vmem:[#allocation3 + $0x32] sm:$0xff]
        %v10228 = vld [vmem:[#allocation3 + $0x3a] sm:$0xff]
        %v10229 = vld [vmem:[#allocation3 + $0x42] sm:$0xff]
        %v10230 = vld [vmem:[#allocation3 + $0x4a] sm:$0xff]
        %v10231 = vld [vmem:[#allocation3 + $0x52] sm:$0xff]
        %v10232 = vld [vmem:[#allocation3 + $0x5a] sm:$0xff]
        %v10233 = vld [vmem:[#allocation3 + $0x62] sm:$0xff]
        %v10234 = vld [vmem:[#allocation3 + $0x6a] sm:$0xff]
        %v10235 = vld [vmem:[#allocation3 + $0x72] sm:$0xff]
        %v10236 = vld [vmem:[#allocation3 + $0x7a] sm:$0xff]
        %v10237 = vld [vmem:[#allocation3 + $0x82] sm:$0xff]
        %v10238 = vld [vmem:[#allocation3 + $0x8a] sm:$0xff]
        %v10239 = vld [vmem:[#allocation3 + $0x92] sm:$0xff]
        %v10240 = vld [vmem:[#allocation3 + $0x9a] sm:$0xff]
        %v10241 = vld [vmem:[#allocation3 + $0xa2] sm:$0xff]
        %v10242 = vld [vmem:[#allocation3 + $0xaa] sm:$0xff]
        %v10243 = vld [vmem:[#allocation3 + $0xb2] sm:$0xff]
        %v10244 = vld [vmem:[#allocation3 + $0xba] sm:$0xff]
        %v10245 = vld [vmem:[#allocation3 + $0xc2] sm:$0xff]
        %v10246 = vld [vmem:[#allocation3 + $0xca] sm:$0xff]
        %v10247 = vld [vmem:[#allocation3 + $0xd2] sm:$0xff]
        %v10248 = vld [vmem:[#allocation3 + $0xda] sm:$0xff]
        %v10249 = vld [vmem:[#allocation3 + $0xe2] sm:$0xff]
        %v10250 = vld [vmem:[#allocation3 + $0xea] sm:$0xff]
        %v10251 = vld [vmem:[#allocation3 + $0xf2] sm:$0xff]
        %v10252 = vld [vmem:[#allocation3 + $0xfa] sm:$0xff]
        %v10253 = vld [vmem:[#allocation3 + $0x102] sm:$0xff]
        %v10254 = vld [vmem:[#allocation3 + $0x10a] sm:$0xff]
        %v10255 = vld [vmem:[#allocation3 + $0x112] sm:$0xff]
        %v10256 = vld [vmem:[#allocation3 + $0x11a] sm:$0xff]
        %v10257 = vld [vmem:[#allocation3 + $0x122] sm:$0xff]
        %v10258 = vld [vmem:[#allocation3 + $0x12a] sm:$0xff]
        %v10259 = vld [vmem:[#allocation3 + $0x132] sm:$0xff]
        %v10260 = vld [vmem:[#allocation3 + $0x13a] sm:$0xff]
        %v10261 = vld [vmem:[#allocation3 + $0x142] sm:$0xff]
        %v10262 = vld [vmem:[#allocation3 + $0x14a] sm:$0xff]
        %v10263 = vld [vmem:[#allocation3 + $0x152] sm:$0xff]
        %v10264 = vld [vmem:[#allocation3 + $0x15a] sm:$0xff]
        %v10265 = vld [vmem:[#allocation3 + $0x162] sm:$0xff]
        %v10266 = vpack.c.bf16 %v10227, %v10226
        %v10267 = vpack.c.bf16 %v10229, %v10228
        %v10268 = vpack.c.bf16 %v10231, %v10230
        %v10269 = vpack.c.bf16 %v10233, %v10232
        %v10270 = vpack.c.bf16 %v10235, %v10234
        %v10271 = vpack.c.bf16 %v10237, %v10236
        %v10272 = vpack.c.bf16 %v10239, %v10238
        %v10273 = vpack.c.bf16 %v10241, %v10240
        %v10274 = vpack.c.bf16 %v10243, %v10242
        %v10275 = vpack.c.bf16 %v10245, %v10244
        %v10276 = vpack.c.bf16 %v10247, %v10246
        %v10277 = vpack.c.bf16 %v10249, %v10248
        %v10278 = vpack.c.bf16 %v10251, %v10250
        %v10279 = vpack.c.bf16 %v10253, %v10252
        %v10280 = vpack.c.bf16 %v10255, %v10254
        %v10281 = vpack.c.bf16 %v10257, %v10256
        %v10282 = vpack.c.bf16 %v10259, %v10258
        %v10283 = vpack.c.bf16 %v10261, %v10260
        %v10284 = vpack.c.bf16 %v10263, %v10262
        %v10285 = vpack.c.bf16 %v10265, %v10264
        %s10286 = scalar_lea.vmem [#allocation19], 256
        %v10287 = vld [vmem:[%s10286] sm:$0xf]
        %v10288 = vld [vmem:[%s10286 + $0x4] sm:$0xf]
        %v10289 = vld [vmem:[%s10286 + $0x8] sm:$0xf]
        %v10290 = vld [vmem:[%s10286 + $0xc] sm:$0xf]
        %v10291 = vld [vmem:[%s10286 + $0x10] sm:$0xf]
        %v10292 = vld [vmem:[%s10286 + $0x14] sm:$0xf]
        %v10293 = vld [vmem:[%s10286 + $0x18] sm:$0xf]
        %v10294 = vld [vmem:[%s10286 + $0x1c] sm:$0xf]
        %v10303 = vunpack.c.l.b16 %v10287
        %v10304 = vunpack.c.l.b16 %v10288
        %v10305 = vunpack.c.l.b16 %v10289
        %v10306 = vunpack.c.l.b16 %v10290
        %v10307 = vunpack.c.l.b16 %v10291
        %v10308 = vunpack.c.l.b16 %v10292
        %v10309 = vunpack.c.l.b16 %v10293
        %v10310 = vunpack.c.l.b16 %v10294
        %v10311 = vpack.c.b16 %v10304, %v10303
        %v10312 = vpack.c.b16 %v10306, %v10305
        %v10313 = vpack.c.b16 %v10308, %v10307
        %v10314 = vpack.c.b16 %v10310, %v10309
        %v10320 = vsel %vm6213, %v10266, 0
        %v10323 = vsel %vm6213, %v10267, 0
        %v10326 = vsel %vm6213, %v10268, 0
        %v10329 = vsel %vm6213, %v10269, 0
        %v10332 = vsel %vm6213, %v10270, 0
        %v10335 = vsel %vm6213, %v10271, 0
        %v10338 = vsel %vm6213, %v10272, 0
        %v10341 = vsel %vm6213, %v10273, 0
        %v10344 = vsel %vm6213, %v10274, 0
        %v10347 = vsel %vm6213, %v10275, 0
        %v10350 = vsel %vm6213, %v10276, 0
        %v10353 = vsel %vm6213, %v10277, 0
        %v10356 = vsel %vm6213, %v10278, 0
        %v10359 = vsel %vm6213, %v10279, 0
        %v10362 = vsel %vm6213, %v10280, 0
        %v10365 = vsel %vm6213, %v10281, 0
        %v10368 = vsel %vm6213, %v10282, 0
        %v10371 = vsel %vm6213, %v10283, 0
        %v10374 = vsel %vm6213, %v10284, 0
        %v10377 = vsel %vm6213, %v10285, 0
        %10379 = vmatprep.subr.bf16.mxu0 0
        %10380 = vmatpush1.bf16.msra.mxu0 %v10311
        %10381 = vmatprep.subr.bf16.mxu0 0
        %10382 = vmatpush1.bf16.msra.mxu0 %v10312
        %10383 = vmatprep.subr.bf16.mxu0 0
        %10384 = vmatpush1.bf16.msra.mxu0 %v10313
        %10385 = vmatprep.subr.bf16.mxu0 0
        %10386 = vmatpush1.bf16.msra.mxu0 %v10314
        %10387 = vmatprep.subr.bf16.mxu0 0
        %10388 = vmatpush1.bf16.msra.mxu0 0
        %10389 = vmatprep.subr.bf16.mxu0 0
        %10390 = vmatpush1.bf16.msra.mxu0 0
        %10391 = vmatprep.subr.bf16.mxu0 0
        %10392 = vmatpush1.bf16.msra.mxu0 0
        %10393 = vmatprep.subr.bf16.mxu0 0
        %10394 = vmatpush1.bf16.msra.mxu0 0
        %10395 = vmatprep.subr.bf16.mxu0 0
        %10396 = vmatpush1.bf16.msra.mxu0 0
        %10397 = vmatprep.subr.bf16.mxu0 0
        %10398 = vmatpush1.bf16.msra.mxu0 0
        %10399 = vmatprep.subr.bf16.mxu0 0
        %10400 = vmatpush1.bf16.msra.mxu0 0
        %10401 = vmatprep.subr.bf16.mxu0 0
        %10402 = vmatpush1.bf16.msra.mxu0 0
        %10403 = vmatprep.subr.bf16.mxu0 0
        %10404 = vmatpush1.bf16.msra.mxu0 0
        %10405 = vmatprep.subr.bf16.mxu0 0
        %10406 = vmatpush1.bf16.msra.mxu0 0
        %10407 = vmatprep.subr.bf16.mxu0 0
        %10408 = vmatpush1.bf16.msra.mxu0 0
        %10409 = vmatprep.subr.bf16.mxu0 0
        %10410 = vmatpush1.bf16.msra.mxu0 0
        %10411 = vmatprep.mubr.bf16.mxu0 0
        %10412 = vmatmul.mubr.bf16.gmra.mrb[0].mxu0 %v10320
        %v10413 = vpop.f32.mrb[0].mxu0
        %v10414 = vadd.f32 0.0, %v10413
        %v10415 = vpop.f32.mrb[0].mxu0
        %v10416 = vpop.f32.mrb[0].mxu0
        %v10417 = vadd.f32 0.0, %v10416
        %v10418 = vpop.f32.mrb[0].mxu0
        %10419 = vmatprep.mubr.bf16.mxu0 0
        %10420 = vmatmul.mubr.bf16.gmra.mrb[0].mxu0 %v10323
        %v10421 = vpop.f32.mrb[0].mxu0
        %v10422 = vadd.f32 0.0, %v10421
        %v10423 = vpop.f32.mrb[0].mxu0
        %v10424 = vpop.f32.mrb[0].mxu0
        %v10425 = vadd.f32 0.0, %v10424
        %v10426 = vpop.f32.mrb[0].mxu0
        %10427 = vmatprep.mubr.bf16.mxu0 0
        %10428 = vmatmul.mubr.bf16.gmra.mrb[0].mxu0 %v10326
        %v10429 = vpop.f32.mrb[0].mxu0
        %v10430 = vadd.f32 0.0, %v10429
        %v10431 = vpop.f32.mrb[0].mxu0
        %v10432 = vpop.f32.mrb[0].mxu0
        %v10433 = vadd.f32 0.0, %v10432
        %v10434 = vpop.f32.mrb[0].mxu0
        %10435 = vmatprep.mubr.bf16.mxu0 0
        %10436 = vmatmul.mubr.bf16.gmra.mrb[0].mxu0 %v10329
        %v10437 = vpop.f32.mrb[0].mxu0
        %v10438 = vadd.f32 0.0, %v10437
        %v10439 = vpop.f32.mrb[0].mxu0
        %v10440 = vpop.f32.mrb[0].mxu0
        %v10441 = vadd.f32 0.0, %v10440
        %v10442 = vpop.f32.mrb[0].mxu0
        %10443 = vmatprep.mubr.bf16.mxu0 0
        %10444 = vmatmul.mubr.bf16.gmra.mrb[0].mxu0 %v10332
        %v10445 = vpop.f32.mrb[0].mxu0
        %v10446 = vadd.f32 0.0, %v10445
        %v10447 = vpop.f32.mrb[0].mxu0
        %v10448 = vpop.f32.mrb[0].mxu0
        %v10449 = vadd.f32 0.0, %v10448
        %v10450 = vpop.f32.mrb[0].mxu0
        %10451 = vmatprep.mubr.bf16.mxu0 0
        %10452 = vmatmul.mubr.bf16.gmra.mrb[0].mxu0 %v10335
        %v10453 = vpop.f32.mrb[0].mxu0
        %v10454 = vadd.f32 0.0, %v10453
        %v10455 = vpop.f32.mrb[0].mxu0
        %v10456 = vpop.f32.mrb[0].mxu0
        %v10457 = vadd.f32 0.0, %v10456
        %v10458 = vpop.f32.mrb[0].mxu0
        %10459 = vmatprep.mubr.bf16.mxu0 0
        %10460 = vmatmul.mubr.bf16.gmra.mrb[0].mxu0 %v10338
        %v10461 = vpop.f32.mrb[0].mxu0
        %v10462 = vadd.f32 0.0, %v10461
        %v10463 = vpop.f32.mrb[0].mxu0
        %v10464 = vpop.f32.mrb[0].mxu0
        %v10465 = vadd.f32 0.0, %v10464
        %v10466 = vpop.f32.mrb[0].mxu0
        %10467 = vmatprep.mubr.bf16.mxu0 0
        %10468 = vmatmul.mubr.bf16.gmra.mrb[0].mxu0 %v10341
        %v10469 = vpop.f32.mrb[0].mxu0
        %v10470 = vadd.f32 0.0, %v10469
        %v10471 = vpop.f32.mrb[0].mxu0
        %v10472 = vpop.f32.mrb[0].mxu0
        %v10473 = vadd.f32 0.0, %v10472
        %v10474 = vpop.f32.mrb[0].mxu0
        %10475 = vmatprep.mubr.bf16.mxu0 0
        %10476 = vmatmul.mubr.bf16.gmra.mrb[0].mxu0 %v10344
        %v10477 = vpop.f32.mrb[0].mxu0
        %v10478 = vadd.f32 0.0, %v10477
        %v10479 = vpop.f32.mrb[0].mxu0
        %v10480 = vpop.f32.mrb[0].mxu0
        %v10481 = vadd.f32 0.0, %v10480
        %v10482 = vpop.f32.mrb[0].mxu0
        %10483 = vmatprep.mubr.bf16.mxu0 0
        %10484 = vmatmul.mubr.bf16.gmra.mrb[0].mxu0 %v10347
        %v10485 = vpop.f32.mrb[0].mxu0
        %v10486 = vadd.f32 0.0, %v10485
        %v10487 = vpop.f32.mrb[0].mxu0
        %v10488 = vpop.f32.mrb[0].mxu0
        %v10489 = vadd.f32 0.0, %v10488
        %v10490 = vpop.f32.mrb[0].mxu0
        %10491 = vmatprep.mubr.bf16.mxu0 0
        %10492 = vmatmul.mubr.bf16.gmra.mrb[0].mxu0 %v10350
        %v10493 = vpop.f32.mrb[0].mxu0
        %v10494 = vadd.f32 0.0, %v10493
        %v10495 = vpop.f32.mrb[0].mxu0
        %v10496 = vpop.f32.mrb[0].mxu0
        %v10497 = vadd.f32 0.0, %v10496
        %v10498 = vpop.f32.mrb[0].mxu0
        %10499 = vmatprep.mubr.bf16.mxu0 0
        %10500 = vmatmul.mubr.bf16.gmra.mrb[0].mxu0 %v10353
        %v10501 = vpop.f32.mrb[0].mxu0
        %v10502 = vadd.f32 0.0, %v10501
        %v10503 = vpop.f32.mrb[0].mxu0
        %v10504 = vpop.f32.mrb[0].mxu0
        %v10505 = vadd.f32 0.0, %v10504
        %v10506 = vpop.f32.mrb[0].mxu0
        %10507 = vmatprep.mubr.bf16.mxu0 0
        %10508 = vmatmul.mubr.bf16.gmra.mrb[0].mxu0 %v10356
        %v10509 = vpop.f32.mrb[0].mxu0
        %v10510 = vadd.f32 0.0, %v10509
        %v10511 = vpop.f32.mrb[0].mxu0
        %v10512 = vpop.f32.mrb[0].mxu0
        %v10513 = vadd.f32 0.0, %v10512
        %v10514 = vpop.f32.mrb[0].mxu0
        %10515 = vmatprep.mubr.bf16.mxu0 0
        %10516 = vmatmul.mubr.bf16.gmra.mrb[0].mxu0 %v10359
        %v10517 = vpop.f32.mrb[0].mxu0
        %v10518 = vadd.f32 0.0, %v10517
        %v10519 = vpop.f32.mrb[0].mxu0
        %v10520 = vpop.f32.mrb[0].mxu0
        %v10521 = vadd.f32 0.0, %v10520
        %v10522 = vpop.f32.mrb[0].mxu0
        %10523 = vmatprep.mubr.bf16.mxu0 0
        %10524 = vmatmul.mubr.bf16.gmra.mrb[0].mxu0 %v10362
        %v10525 = vpop.f32.mrb[0].mxu0
        %v10526 = vadd.f32 0.0, %v10525
        %v10527 = vpop.f32.mrb[0].mxu0
        %v10528 = vpop.f32.mrb[0].mxu0
        %v10529 = vadd.f32 0.0, %v10528
        %v10530 = vpop.f32.mrb[0].mxu0
        %10531 = vmatprep.mubr.bf16.mxu0 0
        %10532 = vmatmul.mubr.bf16.gmra.mrb[0].mxu0 %v10365
        %v10533 = vpop.f32.mrb[0].mxu0
        %v10534 = vadd.f32 0.0, %v10533
        %v10535 = vpop.f32.mrb[0].mxu0
        %v10536 = vpop.f32.mrb[0].mxu0
        %v10537 = vadd.f32 0.0, %v10536
        %v10538 = vpop.f32.mrb[0].mxu0
        %10539 = vmatprep.mubr.bf16.mxu0 0
        %10540 = vmatmul.mubr.bf16.gmra.mrb[0].mxu0 %v10368
        %v10541 = vpop.f32.mrb[0].mxu0
        %v10542 = vadd.f32 0.0, %v10541
        %v10543 = vpop.f32.mrb[0].mxu0
        %v10544 = vpop.f32.mrb[0].mxu0
        %v10545 = vadd.f32 0.0, %v10544
        %v10546 = vpop.f32.mrb[0].mxu0
        %10547 = vmatprep.mubr.bf16.mxu0 0
        %10548 = vmatmul.mubr.bf16.gmra.mrb[0].mxu0 %v10371
        %v10549 = vpop.f32.mrb[0].mxu0
        %v10550 = vadd.f32 0.0, %v10549
        %v10551 = vpop.f32.mrb[0].mxu0
        %v10552 = vpop.f32.mrb[0].mxu0
        %v10553 = vadd.f32 0.0, %v10552
        %v10554 = vpop.f32.mrb[0].mxu0
        %10555 = vmatprep.mubr.bf16.mxu0 0
        %10556 = vmatmul.mubr.bf16.gmra.mrb[0].mxu0 %v10374
        %v10557 = vpop.f32.mrb[0].mxu0
        %v10558 = vadd.f32 0.0, %v10557
        %v10559 = vpop.f32.mrb[0].mxu0
        %v10560 = vpop.f32.mrb[0].mxu0
        %v10561 = vadd.f32 0.0, %v10560
        %v10562 = vpop.f32.mrb[0].mxu0
        %10563 = vmatprep.mubr.bf16.mxu0 0
        %10564 = vmatmul.mubr.bf16.gmra.mrb[0].mxu0 %v10377
        %v10565 = vpop.f32.mrb[0].mxu0
        %v10566 = vadd.f32 0.0, %v10565
        %v10567 = vpop.f32.mrb[0].mxu0
        %v10568 = vpop.f32.mrb[0].mxu0
        %v10569 = vadd.f32 0.0, %v10568
        %v10570 = vpop.f32.mrb[0].mxu0
        %10571 = vdwg.mxu0
        %v10572 = vadd.f32 %v10186, %v10414
        %v10573 = vadd.f32 %v10187, %v10417
        %v10574 = vadd.f32 %v10188, %v10422
        %v10575 = vadd.f32 %v10189, %v10425
        %v10576 = vadd.f32 %v10190, %v10430
        %v10577 = vadd.f32 %v10191, %v10433
        %v10578 = vadd.f32 %v10192, %v10438
        %v10579 = vadd.f32 %v10193, %v10441
        %v10580 = vadd.f32 %v10194, %v10446
        %v10581 = vadd.f32 %v10195, %v10449
        %v10582 = vadd.f32 %v10196, %v10454
        %v10583 = vadd.f32 %v10197, %v10457
        %v10584 = vadd.f32 %v10198, %v10462
        %v10585 = vadd.f32 %v10199, %v10465
        %v10586 = vadd.f32 %v10200, %v10470
        %v10587 = vadd.f32 %v10201, %v10473
        %v10588 = vadd.f32 %v10202, %v10478
        %v10589 = vadd.f32 %v10203, %v10481
        %v10590 = vadd.f32 %v10204, %v10486
        %v10591 = vadd.f32 %v10205, %v10489
        %v10592 = vadd.f32 %v10206, %v10494
        %v10593 = vadd.f32 %v10207, %v10497
        %v10594 = vadd.f32 %v10208, %v10502
        %v10595 = vadd.f32 %v10209, %v10505
        %v10596 = vadd.f32 %v10210, %v10510
        %v10597 = vadd.f32 %v10211, %v10513
        %v10598 = vadd.f32 %v10212, %v10518
        %v10599 = vadd.f32 %v10213, %v10521
        %v10600 = vadd.f32 %v10214, %v10526
        %v10601 = vadd.f32 %v10215, %v10529
        %v10602 = vadd.f32 %v10216, %v10534
        %v10603 = vadd.f32 %v10217, %v10537
        %v10604 = vadd.f32 %v10218, %v10542
        %v10605 = vadd.f32 %v10219, %v10545
        %v10606 = vadd.f32 %v10220, %v10550
        %v10607 = vadd.f32 %v10221, %v10553
        %v10608 = vadd.f32 %v10222, %v10558
        %v10609 = vadd.f32 %v10223, %v10561
        %v10610 = vadd.f32 %v10224, %v10566
        %v10611 = vadd.f32 %v10225, %v10569
        %v10612 = vld [vmem:[#allocation21] sm:$0x1]
        %v10614 = vlaneseq
        %v10615 = vshrl.u32 %v10614, 7
        %v10616 = vsub.s32 0, %v10615
        %v10617 = vrot.slane %v10612, %v10616
        %v10619 = vadd.f32 %v10572, %v10617
        %v10620 = vadd.f32 %v10573, %v10617
        %v10621 = vadd.f32 %v10574, %v10617
        %v10622 = vadd.f32 %v10575, %v10617
        %v10623 = vadd.f32 %v10576, %v10617
        %v10624 = vadd.f32 %v10577, %v10617
        %v10625 = vadd.f32 %v10578, %v10617
        %v10626 = vadd.f32 %v10579, %v10617
        %v10627 = vadd.f32 %v10580, %v10617
        %v10628 = vadd.f32 %v10581, %v10617
        %v10629 = vadd.f32 %v10582, %v10617
        %v10630 = vadd.f32 %v10583, %v10617
        %v10631 = vadd.f32 %v10584, %v10617
        %v10632 = vadd.f32 %v10585, %v10617
        %v10633 = vadd.f32 %v10586, %v10617
        %v10634 = vadd.f32 %v10587, %v10617
        %v10635 = vadd.f32 %v10588, %v10617
        %v10636 = vadd.f32 %v10589, %v10617
        %v10637 = vadd.f32 %v10590, %v10617
        %v10638 = vadd.f32 %v10591, %v10617
        %v10639 = vadd.f32 %v10592, %v10617
        %v10640 = vadd.f32 %v10593, %v10617
        %v10641 = vadd.f32 %v10594, %v10617
        %v10642 = vadd.f32 %v10595, %v10617
        %v10643 = vadd.f32 %v10596, %v10617
        %v10644 = vadd.f32 %v10597, %v10617
        %v10645 = vadd.f32 %v10598, %v10617
        %v10646 = vadd.f32 %v10599, %v10617
        %v10647 = vadd.f32 %v10600, %v10617
        %v10648 = vadd.f32 %v10601, %v10617
        %v10649 = vadd.f32 %v10602, %v10617
        %v10650 = vadd.f32 %v10603, %v10617
        %v10651 = vadd.f32 %v10604, %v10617
        %v10652 = vadd.f32 %v10605, %v10617
        %v10653 = vadd.f32 %v10606, %v10617
        %v10654 = vadd.f32 %v10607, %v10617
        %v10655 = vadd.f32 %v10608, %v10617
        %v10656 = vadd.f32 %v10609, %v10617
        %v10657 = vadd.f32 %v10610, %v10617
        %v10658 = vadd.f32 %v10611, %v10617
        %v10659 = vpack.c.bf16 %v668, %v667
        %v10660 = vpack.c.bf16 %v670, %v669
        %v10661 = vpack.c.bf16 %v672, %v671
        %v10662 = vpack.c.bf16 %v674, %v673
        %v10663 = vpack.c.bf16 %v676, %v675
        %v10664 = vpack.c.bf16 %v678, %v677
        %v10665 = vpack.c.bf16 %v680, %v679
        %v10666 = vpack.c.bf16 %v682, %v681
        %v10667 = vpack.c.bf16 %v684, %v683
        %v10668 = vpack.c.bf16 %v686, %v685
        %v10669 = vpack.c.bf16 %v688, %v687
        %v10670 = vpack.c.bf16 %v690, %v689
        %v10671 = vpack.c.bf16 %v692, %v691
        %v10672 = vpack.c.bf16 %v694, %v693
        %v10673 = vpack.c.bf16 %v696, %v695
        %v10674 = vpack.c.bf16 %v698, %v697
        %v10675 = vpack.c.bf16 %v700, %v699
        %v10676 = vpack.c.bf16 %v702, %v701
        %v10677 = vpack.c.bf16 %v704, %v703
        %v10678 = vpack.c.bf16 %v706, %v705
        %v10679 = vpack.c.bf16 %v707, %v707
        %v10680 = vld [vmem:[#allocation24] sm:$0xf]
        %v10681 = vld [vmem:[#allocation24 + $0x4] sm:$0xf]
        %v10682 = vld [vmem:[#allocation24 + $0x8] sm:$0xf]
        %v10683 = vld [vmem:[#allocation24 + $0xc] sm:$0xf]
        %v10684 = vld [vmem:[#allocation25] sm:$0x1]
        %v10686 = vlaneseq
        %v10687 = vshrl.u32 %v10686, 7
        %v10688 = vsub.s32 0, %v10687
        %v10689 = vrot.slane %v10684, %v10688
        %vm10712 = vcmask 1046528
        %v10713 = vrot.slane %v10659, 1
        %v10714 = vrot.slane %v10660, 1
        %v10715 = vsel %vm10712, %v10713, %v10714
        %v10716 = vrot.slane %v10661, 1
        %v10717 = vsel %vm10712, %v10714, %v10716
        %v10718 = vrot.slane %v10662, 1
        %v10719 = vsel %vm10712, %v10716, %v10718
        %v10720 = vrot.slane %v10663, 1
        %v10721 = vsel %vm10712, %v10718, %v10720
        %v10722 = vrot.slane %v10664, 1
        %v10723 = vsel %vm10712, %v10720, %v10722
        %v10724 = vrot.slane %v10665, 1
        %v10725 = vsel %vm10712, %v10722, %v10724
        %v10726 = vrot.slane %v10666, 1
        %v10727 = vsel %vm10712, %v10724, %v10726
        %v10728 = vrot.slane %v10667, 1
        %v10729 = vsel %vm10712, %v10726, %v10728
        %v10730 = vrot.slane %v10668, 1
        %v10731 = vsel %vm10712, %v10728, %v10730
        %v10732 = vrot.slane %v10669, 1
        %v10733 = vsel %vm10712, %v10730, %v10732
        %v10734 = vrot.slane %v10670, 1
        %v10735 = vsel %vm10712, %v10732, %v10734
        %v10736 = vrot.slane %v10671, 1
        %v10737 = vsel %vm10712, %v10734, %v10736
        %v10738 = vrot.slane %v10672, 1
        %v10739 = vsel %vm10712, %v10736, %v10738
        %v10740 = vrot.slane %v10673, 1
        %v10741 = vsel %vm10712, %v10738, %v10740
        %v10742 = vrot.slane %v10674, 1
        %v10743 = vsel %vm10712, %v10740, %v10742
        %v10744 = vrot.slane %v10675, 1
        %v10745 = vsel %vm10712, %v10742, %v10744
        %v10746 = vrot.slane %v10676, 1
        %v10747 = vsel %vm10712, %v10744, %v10746
        %v10748 = vrot.slane %v10677, 1
        %v10749 = vsel %vm10712, %v10746, %v10748
        %v10750 = vrot.slane %v10678, 1
        %v10751 = vsel %vm10712, %v10748, %v10750
        %v10752 = vrot.slane %v10679, 1
        %v10753 = vsel %vm10712, %v10750, %v10752
        %v10758 = vunpack.c.l.b16 %v10680
        %v10759 = vunpack.c.l.b16 %v10681
        %v10760 = vunpack.c.l.b16 %v10682
        %v10761 = vunpack.c.l.b16 %v10683
        %v10762 = vpack.c.b16 %v10759, %v10758
        %v10763 = vpack.c.b16 %v10761, %v10760
        %v10767 = vsel %vm717, %v10715, 0
        %v10770 = vsel %vm717, %v10717, 0
        %v10773 = vsel %vm717, %v10719, 0
        %v10776 = vsel %vm717, %v10721, 0
        %v10779 = vsel %vm717, %v10723, 0
        %v10782 = vsel %vm717, %v10725, 0
        %v10785 = vsel %vm717, %v10727, 0
        %v10788 = vsel %vm717, %v10729, 0
        %v10791 = vsel %vm717, %v10731, 0
        %v10794 = vsel %vm717, %v10733, 0
        %v10797 = vsel %vm717, %v10735, 0
        %v10800 = vsel %vm717, %v10737, 0
        %v10803 = vsel %vm717, %v10739, 0
        %v10806 = vsel %vm717, %v10741, 0
        %v10809 = vsel %vm717, %v10743, 0
        %v10812 = vsel %vm717, %v10745, 0
        %v10815 = vsel %vm717, %v10747, 0
        %v10818 = vsel %vm717, %v10749, 0
        %v10821 = vsel %vm717, %v10751, 0
        %v10824 = vsel %vm717, %v10753, 0
        %10826 = vmatprep.subr.bf16.mxu0 0
        %10827 = vmatpush1.bf16.msra.mxu0 %v10762
        %10828 = vmatprep.subr.bf16.mxu0 0
        %10829 = vmatpush1.bf16.msra.mxu0 %v10763
        %10830 = vmatprep.subr.bf16.mxu0 0
        %10831 = vmatpush1.bf16.msra.mxu0 0
        %10832 = vmatprep.subr.bf16.mxu0 0
        %10833 = vmatpush1.bf16.msra.mxu0 0
        %10834 = vmatprep.subr.bf16.mxu0 0
        %10835 = vmatpush1.bf16.msra.mxu0 0
        %10836 = vmatprep.subr.bf16.mxu0 0
        %10837 = vmatpush1.bf16.msra.mxu0 0
        %10838 = vmatprep.subr.bf16.mxu0 0
        %10839 = vmatpush1.bf16.msra.mxu0 0
        %10840 = vmatprep.subr.bf16.mxu0 0
        %10841 = vmatpush1.bf16.msra.mxu0 0
        %10842 = vmatprep.subr.bf16.mxu0 0
        %10843 = vmatpush1.bf16.msra.mxu0 0
        %10844 = vmatprep.subr.bf16.mxu0 0
        %10845 = vmatpush1.bf16.msra.mxu0 0
        %10846 = vmatprep.subr.bf16.mxu0 0
        %10847 = vmatpush1.bf16.msra.mxu0 0
        %10848 = vmatprep.subr.bf16.mxu0 0
        %10849 = vmatpush1.bf16.msra.mxu0 0
        %10850 = vmatprep.subr.bf16.mxu0 0
        %10851 = vmatpush1.bf16.msra.mxu0 0
        %10852 = vmatprep.subr.bf16.mxu0 0
        %10853 = vmatpush1.bf16.msra.mxu0 0
        %10854 = vmatprep.subr.bf16.mxu0 0
        %10855 = vmatpush1.bf16.msra.mxu0 0
        %10856 = vmatprep.subr.bf16.mxu0 0
        %10857 = vmatpush1.bf16.msra.mxu0 0
        %10858 = vmatprep.mubr.bf16.mxu0 0
        %10859 = vmatmul.mubr.bf16.gmra.mrb[0].mxu0 %v10767
        %v10860 = vpop.f32.mrb[0].mxu0
        %v10861 = vadd.f32 %v10689, %v10860
        %v10862 = vpop.f32.mrb[0].mxu0
        %v10863 = vpop.f32.mrb[0].mxu0
        %v10864 = vadd.f32 %v10689, %v10863
        %v10865 = vpop.f32.mrb[0].mxu0
        %10866 = vmatprep.mubr.bf16.mxu0 0
        %10867 = vmatmul.mubr.bf16.gmra.mrb[0].mxu0 %v10770
        %v10868 = vpop.f32.mrb[0].mxu0
        %v10869 = vadd.f32 %v10689, %v10868
        %v10870 = vpop.f32.mrb[0].mxu0
        %v10871 = vpop.f32.mrb[0].mxu0
        %v10872 = vadd.f32 %v10689, %v10871
        %v10873 = vpop.f32.mrb[0].mxu0
        %10874 = vmatprep.mubr.bf16.mxu0 0
        %10875 = vmatmul.mubr.bf16.gmra.mrb[0].mxu0 %v10773
        %v10876 = vpop.f32.mrb[0].mxu0
        %v10877 = vadd.f32 %v10689, %v10876
        %v10878 = vpop.f32.mrb[0].mxu0
        %v10879 = vpop.f32.mrb[0].mxu0
        %v10880 = vadd.f32 %v10689, %v10879
        %v10881 = vpop.f32.mrb[0].mxu0
        %10882 = vmatprep.mubr.bf16.mxu0 0
        %10883 = vmatmul.mubr.bf16.gmra.mrb[0].mxu0 %v10776
        %v10884 = vpop.f32.mrb[0].mxu0
        %v10885 = vadd.f32 %v10689, %v10884
        %v10886 = vpop.f32.mrb[0].mxu0
        %v10887 = vpop.f32.mrb[0].mxu0
        %v10888 = vadd.f32 %v10689, %v10887
        %v10889 = vpop.f32.mrb[0].mxu0
        %10890 = vmatprep.mubr.bf16.mxu0 0
        %10891 = vmatmul.mubr.bf16.gmra.mrb[0].mxu0 %v10779
        %v10892 = vpop.f32.mrb[0].mxu0
        %v10893 = vadd.f32 %v10689, %v10892
        %v10894 = vpop.f32.mrb[0].mxu0
        %v10895 = vpop.f32.mrb[0].mxu0
        %v10896 = vadd.f32 %v10689, %v10895
        %v10897 = vpop.f32.mrb[0].mxu0
        %10898 = vmatprep.mubr.bf16.mxu0 0
        %10899 = vmatmul.mubr.bf16.gmra.mrb[0].mxu0 %v10782
        %v10900 = vpop.f32.mrb[0].mxu0
        %v10901 = vadd.f32 %v10689, %v10900
        %v10902 = vpop.f32.mrb[0].mxu0
        %v10903 = vpop.f32.mrb[0].mxu0
        %v10904 = vadd.f32 %v10689, %v10903
        %v10905 = vpop.f32.mrb[0].mxu0
        %10906 = vmatprep.mubr.bf16.mxu0 0
        %10907 = vmatmul.mubr.bf16.gmra.mrb[0].mxu0 %v10785
        %v10908 = vpop.f32.mrb[0].mxu0
        %v10909 = vadd.f32 %v10689, %v10908
        %v10910 = vpop.f32.mrb[0].mxu0
        %v10911 = vpop.f32.mrb[0].mxu0
        %v10912 = vadd.f32 %v10689, %v10911
        %v10913 = vpop.f32.mrb[0].mxu0
        %10914 = vmatprep.mubr.bf16.mxu0 0
        %10915 = vmatmul.mubr.bf16.gmra.mrb[0].mxu0 %v10788
        %v10916 = vpop.f32.mrb[0].mxu0
        %v10917 = vadd.f32 %v10689, %v10916
        %v10918 = vpop.f32.mrb[0].mxu0
        %v10919 = vpop.f32.mrb[0].mxu0
        %v10920 = vadd.f32 %v10689, %v10919
        %v10921 = vpop.f32.mrb[0].mxu0
        %10922 = vmatprep.mubr.bf16.mxu0 0
        %10923 = vmatmul.mubr.bf16.gmra.mrb[0].mxu0 %v10791
        %v10924 = vpop.f32.mrb[0].mxu0
        %v10925 = vadd.f32 %v10689, %v10924
        %v10926 = vpop.f32.mrb[0].mxu0
        %v10927 = vpop.f32.mrb[0].mxu0
        %v10928 = vadd.f32 %v10689, %v10927
        %v10929 = vpop.f32.mrb[0].mxu0
        %10930 = vmatprep.mubr.bf16.mxu0 0
        %10931 = vmatmul.mubr.bf16.gmra.mrb[0].mxu0 %v10794
        %v10932 = vpop.f32.mrb[0].mxu0
        %v10933 = vadd.f32 %v10689, %v10932
        %v10934 = vpop.f32.mrb[0].mxu0
        %v10935 = vpop.f32.mrb[0].mxu0
        %v10936 = vadd.f32 %v10689, %v10935
        %v10937 = vpop.f32.mrb[0].mxu0
        %10938 = vmatprep.mubr.bf16.mxu0 0
        %10939 = vmatmul.mubr.bf16.gmra.mrb[0].mxu0 %v10797
        %v10940 = vpop.f32.mrb[0].mxu0
        %v10941 = vadd.f32 %v10689, %v10940
        %v10942 = vpop.f32.mrb[0].mxu0
        %v10943 = vpop.f32.mrb[0].mxu0
        %v10944 = vadd.f32 %v10689, %v10943
        %v10945 = vpop.f32.mrb[0].mxu0
        %10946 = vmatprep.mubr.bf16.mxu0 0
        %10947 = vmatmul.mubr.bf16.gmra.mrb[0].mxu0 %v10800
        %v10948 = vpop.f32.mrb[0].mxu0
        %v10949 = vadd.f32 %v10689, %v10948
        %v10950 = vpop.f32.mrb[0].mxu0
        %v10951 = vpop.f32.mrb[0].mxu0
        %v10952 = vadd.f32 %v10689, %v10951
        %v10953 = vpop.f32.mrb[0].mxu0
        %10954 = vmatprep.mubr.bf16.mxu0 0
        %10955 = vmatmul.mubr.bf16.gmra.mrb[0].mxu0 %v10803
        %v10956 = vpop.f32.mrb[0].mxu0
        %v10957 = vadd.f32 %v10689, %v10956
        %v10958 = vpop.f32.mrb[0].mxu0
        %v10959 = vpop.f32.mrb[0].mxu0
        %v10960 = vadd.f32 %v10689, %v10959
        %v10961 = vpop.f32.mrb[0].mxu0
        %10962 = vmatprep.mubr.bf16.mxu0 0
        %10963 = vmatmul.mubr.bf16.gmra.mrb[0].mxu0 %v10806
        %v10964 = vpop.f32.mrb[0].mxu0
        %v10965 = vadd.f32 %v10689, %v10964
        %v10966 = vpop.f32.mrb[0].mxu0
        %v10967 = vpop.f32.mrb[0].mxu0
        %v10968 = vadd.f32 %v10689, %v10967
        %v10969 = vpop.f32.mrb[0].mxu0
        %10970 = vmatprep.mubr.bf16.mxu0 0
        %10971 = vmatmul.mubr.bf16.gmra.mrb[0].mxu0 %v10809
        %v10972 = vpop.f32.mrb[0].mxu0
        %v10973 = vadd.f32 %v10689, %v10972
        %v10974 = vpop.f32.mrb[0].mxu0
        %v10975 = vpop.f32.mrb[0].mxu0
        %v10976 = vadd.f32 %v10689, %v10975
        %v10977 = vpop.f32.mrb[0].mxu0
        %10978 = vmatprep.mubr.bf16.mxu0 0
        %10979 = vmatmul.mubr.bf16.gmra.mrb[0].mxu0 %v10812
        %v10980 = vpop.f32.mrb[0].mxu0
        %v10981 = vadd.f32 %v10689, %v10980
        %v10982 = vpop.f32.mrb[0].mxu0
        %v10983 = vpop.f32.mrb[0].mxu0
        %v10984 = vadd.f32 %v10689, %v10983
        %v10985 = vpop.f32.mrb[0].mxu0
        %10986 = vmatprep.mubr.bf16.mxu0 0
        %10987 = vmatmul.mubr.bf16.gmra.mrb[0].mxu0 %v10815
        %v10988 = vpop.f32.mrb[0].mxu0
        %v10989 = vadd.f32 %v10689, %v10988
        %v10990 = vpop.f32.mrb[0].mxu0
        %v10991 = vpop.f32.mrb[0].mxu0
        %v10992 = vadd.f32 %v10689, %v10991
        %v10993 = vpop.f32.mrb[0].mxu0
        %10994 = vmatprep.mubr.bf16.mxu0 0
        %10995 = vmatmul.mubr.bf16.gmra.mrb[0].mxu0 %v10818
        %v10996 = vpop.f32.mrb[0].mxu0
        %v10997 = vadd.f32 %v10689, %v10996
        %v10998 = vpop.f32.mrb[0].mxu0
        %v10999 = vpop.f32.mrb[0].mxu0
        %v11000 = vadd.f32 %v10689, %v10999
        %v11001 = vpop.f32.mrb[0].mxu0
        %11002 = vmatprep.mubr.bf16.mxu0 0
        %11003 = vmatmul.mubr.bf16.gmra.mrb[0].mxu0 %v10821
        %v11004 = vpop.f32.mrb[0].mxu0
        %v11005 = vadd.f32 %v10689, %v11004
        %v11006 = vpop.f32.mrb[0].mxu0
        %v11007 = vpop.f32.mrb[0].mxu0
        %v11008 = vadd.f32 %v10689, %v11007
        %v11009 = vpop.f32.mrb[0].mxu0
        %11010 = vmatprep.mubr.bf16.mxu0 0
        %11011 = vmatmul.mubr.bf16.gmra.mrb[0].mxu0 %v10824
        %v11012 = vpop.f32.mrb[0].mxu0
        %v11013 = vadd.f32 %v10689, %v11012
        %v11014 = vpop.f32.mrb[0].mxu0
        %v11015 = vpop.f32.mrb[0].mxu0
        %v11016 = vadd.f32 %v10689, %v11015
        %v11017 = vpop.f32.mrb[0].mxu0
        %11018 = vdwg.mxu0
        %v11019 = vadd.f32 %v10619, %v10861
        %v11020 = vadd.f32 %v10620, %v10864
        %v11021 = vadd.f32 %v10621, %v10869
        %v11022 = vadd.f32 %v10622, %v10872
        %v11023 = vadd.f32 %v10623, %v10877
        %v11024 = vadd.f32 %v10624, %v10880
        %v11025 = vadd.f32 %v10625, %v10885
        %v11026 = vadd.f32 %v10626, %v10888
        %v11027 = vadd.f32 %v10627, %v10893
        %v11028 = vadd.f32 %v10628, %v10896
        %v11029 = vadd.f32 %v10629, %v10901
        %v11030 = vadd.f32 %v10630, %v10904
        %v11031 = vadd.f32 %v10631, %v10909
        %v11032 = vadd.f32 %v10632, %v10912
        %v11033 = vadd.f32 %v10633, %v10917
        %v11034 = vadd.f32 %v10634, %v10920
        %v11035 = vadd.f32 %v10635, %v10925
        %v11036 = vadd.f32 %v10636, %v10928
        %v11037 = vadd.f32 %v10637, %v10933
        %v11038 = vadd.f32 %v10638, %v10936
        %v11039 = vadd.f32 %v10639, %v10941
        %v11040 = vadd.f32 %v10640, %v10944
        %v11041 = vadd.f32 %v10641, %v10949
        %v11042 = vadd.f32 %v10642, %v10952
        %v11043 = vadd.f32 %v10643, %v10957
        %v11044 = vadd.f32 %v10644, %v10960
        %v11045 = vadd.f32 %v10645, %v10965
        %v11046 = vadd.f32 %v10646, %v10968
        %v11047 = vadd.f32 %v10647, %v10973
        %v11048 = vadd.f32 %v10648, %v10976
        %v11049 = vadd.f32 %v10649, %v10981
        %v11050 = vadd.f32 %v10650, %v10984
        %v11051 = vadd.f32 %v10651, %v10989
        %v11052 = vadd.f32 %v10652, %v10992
        %v11053 = vadd.f32 %v10653, %v10997
        %v11054 = vadd.f32 %v10654, %v11000
        %v11055 = vadd.f32 %v10655, %v11005
        %v11056 = vadd.f32 %v10656, %v11008
        %v11057 = vadd.f32 %v10657, %v11013
        %v11058 = vadd.f32 %v10658, %v11016
        %11059 = vst.msk [vmem:[%s660] sm:$0xff] %vm6213, %v11019
        %11060 = vst.msk [vmem:[%s660 + $0x8] sm:$0xff] %vm6213, %v11020
        %11061 = vst.msk [vmem:[%s660 + $0x10] sm:$0xff] %vm6213, %v11021
        %11062 = vst.msk [vmem:[%s660 + $0x18] sm:$0xff] %vm6213, %v11022
        %11063 = vst.msk [vmem:[%s660 + $0x20] sm:$0xff] %vm6213, %v11023
        %11064 = vst.msk [vmem:[%s660 + $0x28] sm:$0xff] %vm6213, %v11024
        %11065 = vst.msk [vmem:[%s660 + $0x30] sm:$0xff] %vm6213, %v11025
        %11066 = vst.msk [vmem:[%s660 + $0x38] sm:$0xff] %vm6213, %v11026
        %11067 = vst.msk [vmem:[%s660 + $0x40] sm:$0xff] %vm6213, %v11027
        %11068 = vst.msk [vmem:[%s660 + $0x48] sm:$0xff] %vm6213, %v11028
        %11069 = vst.msk [vmem:[%s660 + $0x50] sm:$0xff] %vm6213, %v11029
        %11070 = vst.msk [vmem:[%s660 + $0x58] sm:$0xff] %vm6213, %v11030
        %11071 = vst.msk [vmem:[%s660 + $0x60] sm:$0xff] %vm6213, %v11031
        %11072 = vst.msk [vmem:[%s660 + $0x68] sm:$0xff] %vm6213, %v11032
        %11073 = vst.msk [vmem:[%s660 + $0x70] sm:$0xff] %vm6213, %v11033
        %11074 = vst.msk [vmem:[%s660 + $0x78] sm:$0xff] %vm6213, %v11034
        %11075 = vst.msk [vmem:[%s660 + $0x80] sm:$0xff] %vm6213, %v11035
        %11076 = vst.msk [vmem:[%s660 + $0x88] sm:$0xff] %vm6213, %v11036
        %11077 = vst.msk [vmem:[%s660 + $0x90] sm:$0xff] %vm6213, %v11037
        %11078 = vst.msk [vmem:[%s660 + $0x98] sm:$0xff] %vm6213, %v11038
        %11079 = vst.msk [vmem:[%s660 + $0xa0] sm:$0xff] %vm6213, %v11039
        %11080 = vst.msk [vmem:[%s660 + $0xa8] sm:$0xff] %vm6213, %v11040
        %11081 = vst.msk [vmem:[%s660 + $0xb0] sm:$0xff] %vm6213, %v11041
        %11082 = vst.msk [vmem:[%s660 + $0xb8] sm:$0xff] %vm6213, %v11042
        %11083 = vst.msk [vmem:[%s660 + $0xc0] sm:$0xff] %vm6213, %v11043
        %11084 = vst.msk [vmem:[%s660 + $0xc8] sm:$0xff] %vm6213, %v11044
        %11085 = vst.msk [vmem:[%s660 + $0xd0] sm:$0xff] %vm6213, %v11045
        %11086 = vst.msk [vmem:[%s660 + $0xd8] sm:$0xff] %vm6213, %v11046
        %11087 = vst.msk [vmem:[%s660 + $0xe0] sm:$0xff] %vm6213, %v11047
        %11088 = vst.msk [vmem:[%s660 + $0xe8] sm:$0xff] %vm6213, %v11048
        %11089 = vst.msk [vmem:[%s660 + $0xf0] sm:$0xff] %vm6213, %v11049
        %11090 = vst.msk [vmem:[%s660 + $0xf8] sm:$0xff] %vm6213, %v11050
        %11091 = vst.msk [vmem:[%s660 + $0x100] sm:$0xff] %vm6213, %v11051
        %11092 = vst.msk [vmem:[%s660 + $0x108] sm:$0xff] %vm6213, %v11052
        %11093 = vst.msk [vmem:[%s660 + $0x110] sm:$0xff] %vm6213, %v11053
        %11094 = vst.msk [vmem:[%s660 + $0x118] sm:$0xff] %vm6213, %v11054
        %11095 = vst.msk [vmem:[%s660 + $0x120] sm:$0xff] %vm6213, %v11055
        %11096 = vst.msk [vmem:[%s660 + $0x128] sm:$0xff] %vm6213, %v11056
        %11097 = vst.msk [vmem:[%s660 + $0x130] sm:$0xff] %vm6213, %v11057
        %11098 = vst.msk [vmem:[%s660 + $0x138] sm:$0xff] %vm6213, %v11058
        %s11099 = sand.u32 %s345, 1
        %s11100 = scalar_lea.sflag [#allocation6], %s11099
        %s11101 = sand.u32 %s345, 1
        %s11102 = smul.addr %s11101, 320
        %s11103 = scalar_lea.vmem [#allocation27], %s11102
        // Predicated region
        $region133: #{tpu_custom_call.1} parent=75 // pred_check
          %p11104 = pneg %p355
        $region134: #{tpu_custom_call.1} parent=75 // pred_check_branch
          %11106 = sbr.rel (%p11104) target = $region136
        $region135: #{tpu_custom_call.1} parent=75 // pred_region
          %s11108 = ssub.s32 5120, 5120
          %11109 = vsyncadd %s11100, %s11108
          %s11110 = smul.addr %s38, 40
          %s11111 = smul.addr %s11110, 128
          %s11112 = scalar_lea.hbm %s14, %s11111
          %s11113 = sshll.u32 %s11103, 4
          %s11114 = int_to_ptr.vmem [resolvable:$true] %s11113
          %11119 = dma.vmem_to_hbm [thread:$0]  %s11114, 5120, %s11112, %s11100, 128, 128, 8
        $region136: #{tpu_custom_call.1} parent=75 // pred_fallthru
          _
      $region76: #{tpu_custom_call.1} parent=5 // pred_fallthru
        _
      %p11120 = scmp.le.s32.totalorder 2, %s33
      // Predicated region
      $region137: #{tpu_custom_call.1} parent=5 // pred_check
        %p11121 = pneg %p11120
      $region138: #{tpu_custom_call.1} parent=5 // pred_check_branch
        %11123 = sbr.rel (%p11121) target = $region140
      $region139: #{tpu_custom_call.1} parent=5 // pred_region
        %s11124 = ssub.s32 %s33, 2
        // Predicated region
        $region141: #{tpu_custom_call.1} parent=139 // pred_check
          %p11125 = pneg %p361
        $region142: #{tpu_custom_call.1} parent=139 // pred_check_branch
          %11127 = sbr.rel (%p11125) target = $region144
        $region143: #{tpu_custom_call.1} parent=139 // pred_region
          %s11128 = sand.u32 %s346, 1
          %s11129 = scalar_lea.sflag [#allocation6], %s11128
          %s11130 = sand.u32 %s346, 1
          %s11131 = smul.addr %s11130, 320
          %s11132 = scalar_lea.vmem [#allocation27], %s11131
          %11133 = dma.done %s11129, 5120
        $region144: #{tpu_custom_call.1} parent=139 // pred_fallthru
          _
      $region140: #{tpu_custom_call.1} parent=5 // pred_fallthru
        _
    $region6: #{tpu_custom_call.1} parent=1 // loop_footer
      %s37 = sadd.s32 1, %s33
    $region7: #{tpu_custom_call.1} parent=1 // loop_footer_branch
      %32 = sbr.rel target = $region3
    $region8: #{tpu_custom_call.1} parent=1 // loop_exit
      _
    %11134 = vsyncpa [#allocation5], 1
    %s11135 = scalar_lea.sflag [#allocation5], 1
    %11136 = vsyncpa %s11135, 1
    %11137 = vsyncpa [#allocation8], 1
    %11138 = vsyncpa [#allocation11], 1
    %11139 = vsyncpa [#allocation14], 1
    %11140 = vsyncpa [#allocation17], 1
    %11141 = vsyncpa [#allocation20], 1
    %11142 = vsyncpa [#allocation23], 1
    %11143 = vsyncpa [#allocation26], 1
    %11144 = vsyncpa [#allocation6], 1
    %s11145 = scalar_lea.sflag [#allocation6], 1
    %11146 = vsyncpa %s11145, 1

</llo_original>
